<compile_context>
chip_gen: v7x
topology: tpu7x:2x2x1
jax: 0.10.0
libtpu: 0.0.40
codegen_flags: <defaults>
</compile_context>

<pallas_src>
import functools

import jax
import jax.numpy as jnp
from jax.experimental import pallas as pl
from jax.experimental.pallas import tpu as pltpu

NUM_FEATURES = 32 * 32 * 3       # 3072
HIDDEN = 750
NUM_CATEGORIES = 10

HIDDEN_PAD = 768                 # 750 -> next multiple of 128
OUT_PAD = 128                    # 10  -> 128 for lane-dense (unmasked) stores
ROW_ALIGN = 16                   # bf16 sublane packing: 16 rows per packed vreg


def _round_up(x, m):
    return (x + m - 1) // m * m


def _mlp_kernel(x_ref, w1_ref, b1_ref, w2_ref, b2_ref, o_ref):
    # fc1: bf16 MXU matmul, f32 accumulation; bias add + ReLU in f32.
    h1 = jnp.dot(x_ref[...], w1_ref[...], preferred_element_type=jnp.float32)
    h1 = jnp.maximum(h1 + b1_ref[...], 0.0)
    # fc2 (no activation).
    out = jnp.dot(h1.astype(jnp.bfloat16), w2_ref[...],
                  preferred_element_type=jnp.float32)
    o_ref[...] = (out + b2_ref[...]).astype(o_ref.dtype)


def pack_params(params):
    """Zero-pad to lane-friendly sizes and cast weight matrices to bf16."""
    w1, b1, w2, b2 = params
    w1p = jnp.zeros((NUM_FEATURES, HIDDEN_PAD), jnp.bfloat16)
    w1p = w1p.at[:, :HIDDEN].set(w1.astype(jnp.bfloat16))
    b1p = jnp.zeros((1, HIDDEN_PAD), jnp.float32).at[:, :HIDDEN].set(b1)
    w2p = jnp.zeros((HIDDEN_PAD, OUT_PAD), jnp.bfloat16)
    w2p = w2p.at[:HIDDEN, :NUM_CATEGORIES].set(w2.astype(jnp.bfloat16))
    b2p = jnp.zeros((1, OUT_PAD), jnp.float32).at[:, :NUM_CATEGORIES].set(b2)
    return w1p, b1p, w2p, b2p


def _choose_tile(batch, block_b):
    """Batch tile: big (default 512) to amortize ~0.35us/step pipeline overhead,
    but capped so the grid has >= 2 steps when the batch allows (v7x dual-TC),
    and 16-row aligned for bf16 sublane packing."""
    half = _round_up(-(-batch // 2), ROW_ALIGN)
    tb = max(ROW_ALIGN, min(block_b, half))
    return tb, _round_up(batch, tb)


@functools.partial(jax.jit, static_argnames=("block_b",))
def one_layer_forward(x_nchw, packed_params, *, block_b=512):
    """x_nchw: (B, 3, 32, 32) float32. Returns (B, 10) float32."""
    w1p, b1p, w2p, b2p = packed_params
    B = x_nchw.shape[0]

    # Glue: flatten exactly like torch.flatten(x, 1) on an NCHW tensor, then cast
    # to bf16 so the kernel streams half the activation bytes (cast/pad fuse with
    # the reshape under jit; no standalone f32 copy hits HBM twice).
    x = x_nchw.reshape(B, NUM_FEATURES).astype(jnp.bfloat16)

    tb, b_pad = _choose_tile(B, block_b)
    if b_pad != B:
        x = jnp.pad(x, ((0, b_pad - B), (0, 0)))

    grid = (b_pad // tb,)
    flops = 2 * b_pad * (NUM_FEATURES * HIDDEN_PAD + HIDDEN_PAD * OUT_PAD)
    bytes_accessed = (w1p.size * 2 + w2p.size * 2 + b1p.size * 4 + b2p.size * 4
                      + x.size * 2 + b_pad * OUT_PAD * 4)

    # Grid-invariant operands: constant block index -> fetched once and held
    # VMEM-resident; single buffer (no point double-buffering something that
    # never changes).
    def resident(shape):
        return pl.BlockSpec(shape, lambda i: (0, 0), pipeline_mode=pl.Buffered(1))

    out = pl.pallas_call(
        _mlp_kernel,
        out_shape=jax.ShapeDtypeStruct((b_pad, OUT_PAD), jnp.float32),
        grid_spec=pltpu.PrefetchScalarGridSpec(
            num_scalar_prefetch=0,
            grid=grid,
            in_specs=[
                # Activations: one bf16 batch tile per grid step (double-buffered).
                pl.BlockSpec((tb, NUM_FEATURES), lambda i: (i, 0)),
                resident((NUM_FEATURES, HIDDEN_PAD)),   # W1 (bf16, ~4.5 MiB)
                resident((1, HIDDEN_PAD)),              # b1
                resident((HIDDEN_PAD, OUT_PAD)),        # W2
                resident((1, OUT_PAD)),                 # b2
            ],
            out_specs=pl.BlockSpec((tb, OUT_PAD), lambda i: (i, 0)),
        ),
        compiler_params=pltpu.CompilerParams(
            dimension_semantics=("parallel",),
            # > v5e 16 MiB default scoped limit, ~14 MiB needed at tb=512,
            # leaves headroom under v7x's 64 MiB physical VMEM per TensorCore.
            vmem_limit_bytes=48 << 20,
        ),
        cost_estimate=pl.CostEstimate(
            flops=flops, transcendentals=0, bytes_accessed=bytes_accessed),
    )(x, w1p, b1p, w2p, b2p)

    return out[:B, :NUM_CATEGORIES]


def init_params(key):
    """nn.Linear-style uniform(-1/sqrt(fan_in), +1/sqrt(fan_in)) init.

    Weights stored as (in_features, out_features) — i.e. PyTorch weight.T —
    so the kernel computes y = x @ W + b directly.
    """
    def linear(k, fan_in, fan_out):
        kw, kb = jax.random.split(k)
        bound = 1.0 / jnp.sqrt(float(fan_in))
        w = jax.random.uniform(kw, (fan_in, fan_out), jnp.float32, -bound, bound)
        b = jax.random.uniform(kb, (1, fan_out), jnp.float32, -bound, bound)
        return w, b

    k1, k2 = jax.random.split(key)
    w1, b1 = linear(k1, NUM_FEATURES, HIDDEN)
    w2, b2 = linear(k2, HIDDEN, NUM_CATEGORIES)
    return (w1, b1, w2, b2)


def _reference_bf16(x_nchw, params):
    """Same math as the kernel (bf16 inputs/weights, f32 accumulation)."""
    w1, b1, w2, b2 = params
    x = x_nchw.reshape(x_nchw.shape[0], NUM_FEATURES).astype(jnp.bfloat16)
    h1 = jnp.dot(x, w1.astype(jnp.bfloat16),
                 preferred_element_type=jnp.float32) + b1
    h1 = jnp.maximum(h1, 0.0)
    return jnp.dot(h1.astype(jnp.bfloat16), w2.astype(jnp.bfloat16),
                   preferred_element_type=jnp.float32) + b2


if __name__ == "__main__":
    key = jax.random.PRNGKey(0)
    kx, kp = jax.random.split(key)

    B = 32   # small batch; exercises a 2-step grid (tb=16) and the parallel axis
    x = jax.random.normal(kx, (B, 3, 32, 32), jnp.float32)   # NCHW like PyTorch
    params = init_params(kp)
    packed = pack_params(params)

    out = jax.block_until_ready(one_layer_forward(x, packed))

    ref = _reference_bf16(x, params)
    assert out.shape == (B, NUM_CATEGORIES), out.shape
    assert jnp.allclose(out, ref, atol=2e-2, rtol=2e-2), "mismatch vs. JAX reference"

    print("KERNEL_OK")
</pallas_src>

<mosaic_0001>
module attributes {stable_mosaic.version = 11 : i64} {
  func.func @_mlp_kernel(%arg0: i32, %arg1: memref<16x3072xbf16, #tpu.memory_space<vmem>>, %arg2: memref<3072x768xbf16, #tpu.memory_space<vmem>>, %arg3: memref<1x768xf32, #tpu.memory_space<vmem>>, %arg4: memref<768x128xbf16, #tpu.memory_space<vmem>>, %arg5: memref<1x128xf32, #tpu.memory_space<vmem>>, %arg6: memref<16x128xf32, #tpu.memory_space<vmem>>) attributes {dimension_semantics = [#tpu.dimension_semantics<parallel>], iteration_bounds = array<i64: 2>, scalar_prefetch = 0 : i64, scratch_operands = 0 : i64, tpu.core_type = #tpu.core_type<tc>, window_params = [{transform_indices = @transform_0, window_bounds = array<i64: 16, 3072>}, {pipeline_mode = #tpu.pipeline_mode<synchronous>, transform_indices = @transform_1, window_bounds = array<i64: 3072, 768>}, {pipeline_mode = #tpu.pipeline_mode<synchronous>, transform_indices = @transform_2, window_bounds = array<i64: 1, 768>}, {pipeline_mode = #tpu.pipeline_mode<synchronous>, transform_indices = @transform_3, window_bounds = array<i64: 768, 128>}, {pipeline_mode = #tpu.pipeline_mode<synchronous>, transform_indices = @transform_4, window_bounds = array<i64: 1, 128>}, {transform_indices = @transform_5, window_bounds = array<i64: 16, 128>}]} {
    %c0 = arith.constant 0 : index
    %c0_0 = arith.constant 0 : index
    %0 = vector.load %arg1[%c0, %c0_0] : memref<16x3072xbf16, #tpu.memory_space<vmem>>, vector<16x3072xbf16>
    %c0_1 = arith.constant 0 : index
    %c0_2 = arith.constant 0 : index
    %1 = vector.load %arg2[%c0_1, %c0_2] : memref<3072x768xbf16, #tpu.memory_space<vmem>>, vector<3072x768xbf16>
    %cst = arith.constant dense<0.000000e+00> : vector<16x768xf32>
    %2 = tpu.matmul %0, %1, %cst {dimension_numbers = #tpu.dot_dimension_numbers<[1], [0], [0], [1], [0, 0, 1, 1], [], []>} : vector<16x3072xbf16>, vector<3072x768xbf16>, vector<16x768xf32> -> vector<16x768xf32>
    %c0_3 = arith.constant 0 : index
    %c0_4 = arith.constant 0 : index
    %3 = vector.load %arg3[%c0_3, %c0_4] : memref<1x768xf32, #tpu.memory_space<vmem>>, vector<1x768xf32>
    %4 = vector.broadcast %3 : vector<1x768xf32> to vector<16x768xf32>
    %5 = arith.addf %2, %4 : vector<16x768xf32>
    %cst_5 = arith.constant 0.000000e+00 : f32
    %6 = vector.broadcast %cst_5 : f32 to vector<16x768xf32>
    %7 = arith.maximumf %5, %6 : vector<16x768xf32>
    %8 = arith.truncf %7 : vector<16x768xf32> to vector<16x768xbf16>
    %c0_6 = arith.constant 0 : index
    %c0_7 = arith.constant 0 : index
    %9 = vector.load %arg4[%c0_6, %c0_7] : memref<768x128xbf16, #tpu.memory_space<vmem>>, vector<768x128xbf16>
    %cst_8 = arith.constant dense<0.000000e+00> : vector<16x128xf32>
    %10 = tpu.matmul %8, %9, %cst_8 {dimension_numbers = #tpu.dot_dimension_numbers<[1], [0], [0], [1], [0, 0, 1, 1], [], []>} : vector<16x768xbf16>, vector<768x128xbf16>, vector<16x128xf32> -> vector<16x128xf32>
    %c0_9 = arith.constant 0 : index
    %c0_10 = arith.constant 0 : index
    %11 = vector.load %arg5[%c0_9, %c0_10] : memref<1x128xf32, #tpu.memory_space<vmem>>, vector<1x128xf32>
    %12 = vector.broadcast %11 : vector<1x128xf32> to vector<16x128xf32>
    %13 = arith.addf %10, %12 : vector<16x128xf32>
    %c0_11 = arith.constant 0 : index
    %c0_12 = arith.constant 0 : index
    %14 = vector.load %arg6[%c0_11, %c0_12] : memref<16x128xf32, #tpu.memory_space<vmem>>, vector<16x128xf32>
    tpu.vector_store %arg6[%c0_11, %c0_12], %13 {strides = array<i32>} : memref<16x128xf32, #tpu.memory_space<vmem>>, vector<16x128xf32>,
    return
  }
  func.func @transform_0(%arg0: i32) -> (i32, i32) {
    %c0_i32 = arith.constant 0 : i32
    %c0_i32_0 = arith.constant 0 : i32
    return %arg0, %c0_i32 : i32, i32
  }
  func.func @transform_1(%arg0: i32) -> (i32, i32) {
    %c0_i32 = arith.constant 0 : i32
    %c0_i32_0 = arith.constant 0 : i32
    %c0_i32_1 = arith.constant 0 : i32
    return %c0_i32, %c0_i32_0 : i32, i32
  }
  func.func @transform_2(%arg0: i32) -> (i32, i32) {
    %c0_i32 = arith.constant 0 : i32
    %c0_i32_0 = arith.constant 0 : i32
    %c0_i32_1 = arith.constant 0 : i32
    return %c0_i32, %c0_i32_0 : i32, i32
  }
  func.func @transform_3(%arg0: i32) -> (i32, i32) {
    %c0_i32 = arith.constant 0 : i32
    %c0_i32_0 = arith.constant 0 : i32
    %c0_i32_1 = arith.constant 0 : i32
    return %c0_i32, %c0_i32_0 : i32, i32
  }
  func.func @transform_4(%arg0: i32) -> (i32, i32) {
    %c0_i32 = arith.constant 0 : i32
    %c0_i32_0 = arith.constant 0 : i32
    %c0_i32_1 = arith.constant 0 : i32
    return %c0_i32, %c0_i32_0 : i32, i32
  }
  func.func @transform_5(%arg0: i32) -> (i32, i32) {
    %c0_i32 = arith.constant 0 : i32
    %c0_i32_0 = arith.constant 0 : i32
    return %arg0, %c0_i32 : i32, i32
  }
}

</mosaic_0001>

<llo_original>
// kernel: one_layer_forward.1
$region0: #{one_layer_forward.1}
  #allocation0 [shape = 'u32[]', space=smem, size = 0x4, offset = 0x4, fixed_abs, tag = 'smem constant byte address 0x4 - core index']
  #allocation1 [shape = 'u32[144,128]{1,0:T(1,128)}', space=vmem, size = 0x12000, scoped, tag = 'internal scratch']
  %s0 = inlined_call_operand.vmem [shape: bf16[32,3072], index: 0, kind: input, shape index: {}]
  %s1 = inlined_call_operand.hbm [shape: bf16[3072,768], index: 1, kind: input, shape index: {}]
  %s2 = inlined_call_operand.hbm [shape: f32[1,768], index: 2, kind: input, shape index: {}]
  %s3 = inlined_call_operand.hbm [shape: bf16[768,128], index: 3, kind: input, shape index: {}]
  %s4 = inlined_call_operand.hbm [shape: f32[1,128], index: 4, kind: input, shape index: {}]
  %s5 = inlined_call_operand.vmem [shape: f32[32,128], index: 5, kind: output, shape index: {}]
  %s6 = sld [smem:[#allocation0]]
  $region69: #{one_layer_forward.1} parent=0
    _
  %s8 = ssub.s32 1, %s6
  %s9 = scalar_select 0, %s8, %s6
  $region1: #{one_layer_forward.1} parent=0
    #allocation2 [shape = 'u8[4718592]{0}', space=vmem, size = 0x480000, scoped, tag = 'input window, operand 1, single buffered']
    #allocation3 [shape = 's32[2]{0}', space=sflag, size = 0x8, scoped, tag = 'scoped memory for one_layer_forward.1']
    #allocation4 [shape = 'u8[3072]{0}', space=vmem, size = 0xc00, scoped, tag = 'input window, operand 2, single buffered']
    #allocation5 [shape = 's32[1]{0}', space=sflag, size = 0x4, scoped, tag = 'scoped memory for one_layer_forward.1']
    #allocation6 [shape = 'u8[196608]{0}', space=vmem, size = 0x30000, scoped, tag = 'input window, operand 3, single buffered']
    #allocation7 [shape = 'u8[512]{0}', space=vmem, size = 0x400, scoped, tag = 'input window, operand 4, single buffered']
    #allocation8 [shape = 's32[1]{0}', space=sflag, size = 0x4, scoped, tag = 'scoped memory for one_layer_forward.1']
    %10 = vsyncpa [#allocation3], 0
    %11 = vsyncpa [#allocation5], 0
    %12 = vsyncpa [#allocation8], 0
    loop: start=0, step=1, limit=4
    $region2: #{one_layer_forward.1} parent=1 // loop_pre_header
      _
    $region3: #{one_layer_forward.1} parent=1 // loop_header
      %s14 = sphi 0, %s18
      %p15 = scmp.ge.s32.totalorder %s14, 4
      %s24 = sphi 0, %s26
      %s27 = sphi 0, %s24
      %s28 = sphi 0, %s27
      %s44 = sphi 0, %s28
      %s48 = sphi 0, %s48
      %s50 = sphi 0, %s48
      %s51 = sphi 0, %s50
      %s65 = sphi 0, %s51
      %s69 = sphi 0, %s69
      %s71 = sphi 0, %s69
      %s72 = sphi 0, %s71
      %s86 = sphi 0, %s72
      %s90 = sphi 0, %s90
      %s92 = sphi 0, %s90
      %s93 = sphi 0, %s92
      %s107 = sphi 0, %s93
      %s111 = sphi 0, %s111
      %s113 = sphi 0, %s111
      %s114 = sphi 0, %s113
      %s128 = sphi 0, %s114
      %s134 = sphi 0, %s136
      %s137 = sphi 0, %s134
      %s138 = sphi 0, %s137
      %s154 = sphi 0, %s138
    $region4: #{one_layer_forward.1} parent=1 // loop_header_branch
      %17 = sbr.rel (%p15) target = $region8
    $region5: #{one_layer_forward.1} parent=1 // loop_body
      %s19 = ssub.s32 %s14, 1
      %s20 = ssub.s32 %s14, 2
      %s21 = sadd.s32 %s14, 1
      %s22 = ssub.s32 %s14, %s21
      %p23 = scmp.eq.s32.totalorder %s22, 0
      %s25 = sadd.s32 %s24, 1
      %s26 = scalar_select %p23, %s24, %s25
      %p29 = pneg %p23
      %p30 = scmp.eq.s32.totalorder %s14, 1
      %p31 = por %p29, %p30
      %p32 = scmp.ne.s32.totalorder %s24, %s27
      %p33 = scmp.eq.s32.totalorder %s14, 0
      %p34 = por %p32, %p33
      %p35 = scmp.ne.s32.totalorder %s24, %s27
      %p36 = scmp.eq.s32.totalorder %s19, 1
      %p37 = por %p35, %p36
      %p38 = scmp.ne.s32.totalorder %s27, %s28
      %p39 = scmp.eq.s32.totalorder %s19, 0
      %p40 = por %p38, %p39
      %p41 = scmp.ne.s32.totalorder %s27, %s28
      %p42 = scmp.eq.s32.totalorder %s20, 1
      %p43 = por %p41, %p42
      %p45 = scmp.ne.s32.totalorder %s28, %s44
      %p46 = scmp.eq.s32.totalorder %s20, 0
      %p47 = por %p45, %p46
      %s49 = sadd.s32 %s48, 1
      %p52 = scmp.eq.s32.totalorder %s14, 1
      %p53 = scmp.ne.s32.totalorder %s48, %s50
      %p54 = scmp.eq.s32.totalorder %s14, 0
      %p55 = por %p53, %p54
      %p56 = scmp.ne.s32.totalorder %s48, %s50
      %p57 = scmp.eq.s32.totalorder %s19, 1
      %p58 = por %p56, %p57
      %p59 = scmp.ne.s32.totalorder %s50, %s51
      %p60 = scmp.eq.s32.totalorder %s19, 0
      %p61 = por %p59, %p60
      %p62 = scmp.ne.s32.totalorder %s50, %s51
      %p63 = scmp.eq.s32.totalorder %s20, 1
      %p64 = por %p62, %p63
      %p66 = scmp.ne.s32.totalorder %s51, %s65
      %p67 = scmp.eq.s32.totalorder %s20, 0
      %p68 = por %p66, %p67
      %s70 = sadd.s32 %s69, 1
      %p73 = scmp.eq.s32.totalorder %s14, 1
      %p74 = scmp.ne.s32.totalorder %s69, %s71
      %p75 = scmp.eq.s32.totalorder %s14, 0
      %p76 = por %p74, %p75
      %p77 = scmp.ne.s32.totalorder %s69, %s71
      %p78 = scmp.eq.s32.totalorder %s19, 1
      %p79 = por %p77, %p78
      %p80 = scmp.ne.s32.totalorder %s71, %s72
      %p81 = scmp.eq.s32.totalorder %s19, 0
      %p82 = por %p80, %p81
      %p83 = scmp.ne.s32.totalorder %s71, %s72
      %p84 = scmp.eq.s32.totalorder %s20, 1
      %p85 = por %p83, %p84
      %p87 = scmp.ne.s32.totalorder %s72, %s86
      %p88 = scmp.eq.s32.totalorder %s20, 0
      %p89 = por %p87, %p88
      %s91 = sadd.s32 %s90, 1
      %p94 = scmp.eq.s32.totalorder %s14, 1
      %p95 = scmp.ne.s32.totalorder %s90, %s92
      %p96 = scmp.eq.s32.totalorder %s14, 0
      %p97 = por %p95, %p96
      %p98 = scmp.ne.s32.totalorder %s90, %s92
      %p99 = scmp.eq.s32.totalorder %s19, 1
      %p100 = por %p98, %p99
      %p101 = scmp.ne.s32.totalorder %s92, %s93
      %p102 = scmp.eq.s32.totalorder %s19, 0
      %p103 = por %p101, %p102
      %p104 = scmp.ne.s32.totalorder %s92, %s93
      %p105 = scmp.eq.s32.totalorder %s20, 1
      %p106 = por %p104, %p105
      %p108 = scmp.ne.s32.totalorder %s93, %s107
      %p109 = scmp.eq.s32.totalorder %s20, 0
      %p110 = por %p108, %p109
      %s112 = sadd.s32 %s111, 1
      %p115 = scmp.eq.s32.totalorder %s14, 1
      %p116 = scmp.ne.s32.totalorder %s111, %s113
      %p117 = scmp.eq.s32.totalorder %s14, 0
      %p118 = por %p116, %p117
      %p119 = scmp.ne.s32.totalorder %s111, %s113
      %p120 = scmp.eq.s32.totalorder %s19, 1
      %p121 = por %p119, %p120
      %p122 = scmp.ne.s32.totalorder %s113, %s114
      %p123 = scmp.eq.s32.totalorder %s19, 0
      %p124 = por %p122, %p123
      %p125 = scmp.ne.s32.totalorder %s113, %s114
      %p126 = scmp.eq.s32.totalorder %s20, 1
      %p127 = por %p125, %p126
      %p129 = scmp.ne.s32.totalorder %s114, %s128
      %p130 = scmp.eq.s32.totalorder %s20, 0
      %p131 = por %p129, %p130
      %s132 = ssub.s32 %s14, %s21
      %p133 = scmp.eq.s32.totalorder %s132, 0
      %s135 = sadd.s32 %s134, 1
      %s136 = scalar_select %p133, %s134, %s135
      %p139 = pneg %p133
      %p140 = scmp.eq.s32.totalorder %s14, 1
      %p141 = por %p139, %p140
      %p142 = scmp.ne.s32.totalorder %s134, %s137
      %p143 = scmp.eq.s32.totalorder %s14, 0
      %p144 = por %p142, %p143
      %p145 = scmp.ne.s32.totalorder %s134, %s137
      %p146 = scmp.eq.s32.totalorder %s19, 1
      %p147 = por %p145, %p146
      %p148 = scmp.ne.s32.totalorder %s137, %s138
      %p149 = scmp.eq.s32.totalorder %s19, 0
      %p150 = por %p148, %p149
      %p151 = scmp.ne.s32.totalorder %s137, %s138
      %p152 = scmp.eq.s32.totalorder %s20, 1
      %p153 = por %p151, %p152
      %p155 = scmp.ne.s32.totalorder %s138, %s154
      %p156 = scmp.eq.s32.totalorder %s20, 0
      %p157 = por %p155, %p156
      %p158 = scmp.le.s32.totalorder 1, %s14
      %p159 = scmp.lt.s32.totalorder %s14, 3
      %p160 = pnand %p158, %p159
      %p161 = pneg %p160
      // Predicated region
      $region9: #{one_layer_forward.1} parent=5 // pred_check
        _
      $region10: #{one_layer_forward.1} parent=5 // pred_check_branch
        %163 = sbr.rel (%p160) target = $region12
      $region11: #{one_layer_forward.1} parent=5 // pred_region
        %s164 = ssub.s32 %s14, 1
        // Predicated region
        $region13: #{one_layer_forward.1} parent=11 // pred_check
          %p165 = pneg %p61
        $region14: #{one_layer_forward.1} parent=11 // pred_check_branch
          %167 = sbr.rel (%p165) target = $region16
        $region15: #{one_layer_forward.1} parent=11 // pred_region
          %s169 = ssub.s32 147456, 147456
          %170 = vsyncadd [#allocation3], %s169
          %s171 = sshll.u32 [#allocation2], 4
          %s172 = int_to_ptr.vmem [resolvable:$true] %s171
          %177 = dma.hbm_to_vmem [thread:$0]  %s1, 147456, %s172, [#allocation3], 384, 384, 24
        $region16: #{one_layer_forward.1} parent=11 // pred_fallthru
          _
        // Predicated region
        $region17: #{one_layer_forward.1} parent=11 // pred_check
          %p178 = pneg %p82
        $region18: #{one_layer_forward.1} parent=11 // pred_check_branch
          %180 = sbr.rel (%p178) target = $region20
        $region19: #{one_layer_forward.1} parent=11 // pred_region
          %s182 = ssub.s32 96, 96
          %183 = vsyncadd [#allocation5], %s182
          %s185 = sshll.u32 [#allocation4], 4
          %s186 = int_to_ptr.vmem [resolvable:$true] %s185
          %188 = dma.hbm_to_vmem [thread:$0]  %s2, 96, %s186, [#allocation5]
        $region20: #{one_layer_forward.1} parent=11 // pred_fallthru
          _
        // Predicated region
        $region21: #{one_layer_forward.1} parent=11 // pred_check
          %p189 = pneg %p103
        $region22: #{one_layer_forward.1} parent=11 // pred_check_branch
          %191 = sbr.rel (%p189) target = $region24
        $region23: #{one_layer_forward.1} parent=11 // pred_region
          %s193 = ssub.s32 6144, 6144
          %194 = vsyncadd [#allocation5], %s193
          %s195 = sshll.u32 [#allocation6], 4
          %s196 = int_to_ptr.vmem [resolvable:$true] %s195
          %201 = dma.hbm_to_vmem [thread:$0]  %s3, 6144, %s196, [#allocation5], 64, 64, 4
        $region24: #{one_layer_forward.1} parent=11 // pred_fallthru
          _
        // Predicated region
        $region25: #{one_layer_forward.1} parent=11 // pred_check
          %p202 = pneg %p124
        $region26: #{one_layer_forward.1} parent=11 // pred_check_branch
          %204 = sbr.rel (%p202) target = $region28
        $region27: #{one_layer_forward.1} parent=11 // pred_region
          %s206 = ssub.s32 16, 16
          %207 = vsyncadd [#allocation8], %s206
          %s209 = sshll.u32 [#allocation7], 4
          %s210 = int_to_ptr.vmem [resolvable:$true] %s209
          %212 = dma.hbm_to_vmem [thread:$0]  %s4, 16, %s210, [#allocation8]
        $region28: #{one_layer_forward.1} parent=11 // pred_fallthru
          _
      $region12: #{one_layer_forward.1} parent=5 // pred_fallthru
        _
      %p213 = scmp.lt.s32.totalorder %s14, 2
      // Predicated region
      $region29: #{one_layer_forward.1} parent=5 // pred_check
        %p214 = pneg %p213
      $region30: #{one_layer_forward.1} parent=5 // pred_check_branch
        %216 = sbr.rel (%p214) target = $region32
      $region31: #{one_layer_forward.1} parent=5 // pred_region
        // Predicated region
        $region33: #{one_layer_forward.1} parent=31 // pred_check
          %p217 = pneg %p34
        $region34: #{one_layer_forward.1} parent=31 // pred_check_branch
          %219 = sbr.rel (%p217) target = $region36
        $region35: #{one_layer_forward.1} parent=31 // pred_region
          %s220 = smul.u32 2, %s14
          %p221 = scmp.lt.s32.totalorder %s220, 3
          %s222 = scalar_select %p221, %s220, 3
          %s223 = smul.addr %s222, 24
          %s224 = smul.addr %s223, 4
          %s225 = scalar_lea.vmem %s0, %s224
          %s226 = smul.u32 2, %s14
        $region36: #{one_layer_forward.1} parent=31 // pred_fallthru
          _
      $region32: #{one_layer_forward.1} parent=5 // pred_fallthru
        _
      %p227 = scmp.le.s32.totalorder 1, %s14
      %p228 = scmp.lt.s32.totalorder %s14, 3
      %p229 = pnand %p227, %p228
      %p230 = pneg %p229
      // Predicated region
      $region37: #{one_layer_forward.1} parent=5 // pred_check
        _
      $region38: #{one_layer_forward.1} parent=5 // pred_check_branch
        %232 = sbr.rel (%p229) target = $region40
      $region39: #{one_layer_forward.1} parent=5 // pred_region
        %s233 = ssub.s32 %s14, 1
        // Predicated region
        $region41: #{one_layer_forward.1} parent=39 // pred_check
          %p234 = pneg %p61
        $region42: #{one_layer_forward.1} parent=39 // pred_check_branch
          %236 = sbr.rel (%p234) target = $region44
        $region43: #{one_layer_forward.1} parent=39 // pred_region
          %237 = dma.done [#allocation3], 147456
        $region44: #{one_layer_forward.1} parent=39 // pred_fallthru
          _
        // Predicated region
        $region45: #{one_layer_forward.1} parent=39 // pred_check
          %p238 = pneg %p82
        $region46: #{one_layer_forward.1} parent=39 // pred_check_branch
          %240 = sbr.rel (%p238) target = $region48
        $region47: #{one_layer_forward.1} parent=39 // pred_region
          %241 = dma.done [#allocation5], 96
        $region48: #{one_layer_forward.1} parent=39 // pred_fallthru
          _
        // Predicated region
        $region49: #{one_layer_forward.1} parent=39 // pred_check
          %p242 = pneg %p103
        $region50: #{one_layer_forward.1} parent=39 // pred_check_branch
          %244 = sbr.rel (%p242) target = $region52
        $region51: #{one_layer_forward.1} parent=39 // pred_region
          %245 = dma.done [#allocation5], 6144
        $region52: #{one_layer_forward.1} parent=39 // pred_fallthru
          _
        // Predicated region
        $region53: #{one_layer_forward.1} parent=39 // pred_check
          %p246 = pneg %p124
        $region54: #{one_layer_forward.1} parent=39 // pred_check_branch
          %248 = sbr.rel (%p246) target = $region56
        $region55: #{one_layer_forward.1} parent=39 // pred_region
          %249 = dma.done [#allocation8], 16
        $region56: #{one_layer_forward.1} parent=39 // pred_fallthru
          _
        %s250 = smul.u32 2, %s19
        %p251 = scmp.lt.s32.totalorder %s250, 3
        %s252 = scalar_select %p251, %s250, 3
        %s253 = smul.addr %s252, 24
        %s254 = smul.addr %s253, 4
        %s255 = scalar_lea.vmem %s0, %s254
        %p256 = pneg %p40
        %p257 = pneg %p37
        %p258 = pneg %p61
        %p259 = pneg %p58
        %p260 = pneg %p82
        %p261 = pneg %p79
        %p262 = pneg %p103
        %p263 = pneg %p100
        %p264 = pneg %p124
        %p265 = pneg %p121
        %p266 = pneg %p150
        %p267 = pneg %p147
        %s268 = smul.u32 2, %s19
        %p269 = scmp.lt.s32.totalorder %s268, 3
        %s270 = scalar_select %p269, %s268, 3
        %s271 = smul.addr %s270, 8
        %s272 = scalar_lea.vmem %s5, %s271
        %s273 = smul.u32 2, %s19
        %p274 = scmp.lt.s32.totalorder %s273, 3
        %s275 = scalar_select %p274, %s273, 3
        %s276 = smul.addr %s275, 24
        %s277 = smul.addr %s276, 4
        %s278 = scalar_lea.vmem %s0, %s277
        %s279 = smul.u32 2, %s19
        %s280 = smul.u32 2, %s19
        %p281 = scmp.lt.s32.totalorder %s280, 3
        %s282 = scalar_select %p281, %s280, 3
        %s283 = smul.addr %s282, 8
        %s284 = scalar_lea.vmem %s5, %s283
        %s285 = smul.u32 2, %s19
        %v287 = vld [vmem:[%s278] sm:$0xff]
        %v288 = vld [vmem:[%s278 + $0x8] sm:$0xff]
        %v289 = vld [vmem:[%s278 + $0x10] sm:$0xff]
        %v290 = vld [vmem:[%s278 + $0x18] sm:$0xff]
        %v291 = vld [vmem:[%s278 + $0x20] sm:$0xff]
        %v292 = vld [vmem:[%s278 + $0x28] sm:$0xff]
        %v293 = vld [vmem:[%s278 + $0x30] sm:$0xff]
        %v294 = vld [vmem:[%s278 + $0x38] sm:$0xff]
        %v295 = vld [vmem:[%s278 + $0x40] sm:$0xff]
        %v296 = vld [vmem:[%s278 + $0x48] sm:$0xff]
        %v297 = vld [vmem:[%s278 + $0x50] sm:$0xff]
        %v298 = vld [vmem:[%s278 + $0x58] sm:$0xff]
        %v299 = vld [vmem:[%s278 + $0x60] sm:$0xff]
        %v300 = vld [vmem:[%s278 + $0x68] sm:$0xff]
        %v301 = vld [vmem:[%s278 + $0x70] sm:$0xff]
        %v302 = vld [vmem:[%s278 + $0x78] sm:$0xff]
        %v303 = vld [vmem:[%s278 + $0x80] sm:$0xff]
        %v304 = vld [vmem:[%s278 + $0x88] sm:$0xff]
        %v305 = vld [vmem:[%s278 + $0x90] sm:$0xff]
        %v306 = vld [vmem:[%s278 + $0x98] sm:$0xff]
        %v307 = vld [vmem:[%s278 + $0xa0] sm:$0xff]
        %v308 = vld [vmem:[%s278 + $0xa8] sm:$0xff]
        %v309 = vld [vmem:[%s278 + $0xb0] sm:$0xff]
        %v310 = vld [vmem:[%s278 + $0xb8] sm:$0xff]
        %v311 = vld [vmem:[#allocation2] sm:$0xff]
        %v312 = vld [vmem:[#allocation2 + $0x8] sm:$0xff]
        %v313 = vld [vmem:[#allocation2 + $0x10] sm:$0xff]
        %v314 = vld [vmem:[#allocation2 + $0x18] sm:$0xff]
        %v315 = vld [vmem:[#allocation2 + $0x20] sm:$0xff]
        %v316 = vld [vmem:[#allocation2 + $0x28] sm:$0xff]
        %v317 = vld [vmem:[#allocation2 + $0x30] sm:$0xff]
        %v318 = vld [vmem:[#allocation2 + $0x38] sm:$0xff]
        %v319 = vld [vmem:[#allocation2 + $0x40] sm:$0xff]
        %v320 = vld [vmem:[#allocation2 + $0x48] sm:$0xff]
        %v321 = vld [vmem:[#allocation2 + $0x50] sm:$0xff]
        %v322 = vld [vmem:[#allocation2 + $0x58] sm:$0xff]
        %v323 = vld [vmem:[#allocation2 + $0x60] sm:$0xff]
        %v324 = vld [vmem:[#allocation2 + $0x68] sm:$0xff]
        %v325 = vld [vmem:[#allocation2 + $0x70] sm:$0xff]
        %v326 = vld [vmem:[#allocation2 + $0x78] sm:$0xff]
        %v327 = vld [vmem:[#allocation2 + $0x80] sm:$0xff]
        %v328 = vld [vmem:[#allocation2 + $0x88] sm:$0xff]
        %v329 = vld [vmem:[#allocation2 + $0x90] sm:$0xff]
        %v330 = vld [vmem:[#allocation2 + $0x98] sm:$0xff]
        %v331 = vld [vmem:[#allocation2 + $0xa0] sm:$0xff]
        %v332 = vld [vmem:[#allocation2 + $0xa8] sm:$0xff]
        %v333 = vld [vmem:[#allocation2 + $0xb0] sm:$0xff]
        %v334 = vld [vmem:[#allocation2 + $0xb8] sm:$0xff]
        %v335 = vld [vmem:[#allocation2 + $0xc0] sm:$0xff]
        %v336 = vld [vmem:[#allocation2 + $0xc8] sm:$0xff]
        %v337 = vld [vmem:[#allocation2 + $0xd0] sm:$0xff]
        %v338 = vld [vmem:[#allocation2 + $0xd8] sm:$0xff]
        %v339 = vld [vmem:[#allocation2 + $0xe0] sm:$0xff]
        %v340 = vld [vmem:[#allocation2 + $0xe8] sm:$0xff]
        %v341 = vld [vmem:[#allocation2 + $0xf0] sm:$0xff]
        %v342 = vld [vmem:[#allocation2 + $0xf8] sm:$0xff]
        %v343 = vld [vmem:[#allocation2 + $0x100] sm:$0xff]
        %v344 = vld [vmem:[#allocation2 + $0x108] sm:$0xff]
        %v345 = vld [vmem:[#allocation2 + $0x110] sm:$0xff]
        %v346 = vld [vmem:[#allocation2 + $0x118] sm:$0xff]
        %v347 = vld [vmem:[#allocation2 + $0x120] sm:$0xff]
        %v348 = vld [vmem:[#allocation2 + $0x128] sm:$0xff]
        %v349 = vld [vmem:[#allocation2 + $0x130] sm:$0xff]
        %v350 = vld [vmem:[#allocation2 + $0x138] sm:$0xff]
        %v351 = vld [vmem:[#allocation2 + $0x140] sm:$0xff]
        %v352 = vld [vmem:[#allocation2 + $0x148] sm:$0xff]
        %v353 = vld [vmem:[#allocation2 + $0x150] sm:$0xff]
        %v354 = vld [vmem:[#allocation2 + $0x158] sm:$0xff]
        %v355 = vld [vmem:[#allocation2 + $0x160] sm:$0xff]
        %v356 = vld [vmem:[#allocation2 + $0x168] sm:$0xff]
        %v357 = vld [vmem:[#allocation2 + $0x170] sm:$0xff]
        %v358 = vld [vmem:[#allocation2 + $0x178] sm:$0xff]
        %v359 = vld [vmem:[#allocation2 + $0x180] sm:$0xff]
        %v360 = vld [vmem:[#allocation2 + $0x188] sm:$0xff]
        %v361 = vld [vmem:[#allocation2 + $0x190] sm:$0xff]
        %v362 = vld [vmem:[#allocation2 + $0x198] sm:$0xff]
        %v363 = vld [vmem:[#allocation2 + $0x1a0] sm:$0xff]
        %v364 = vld [vmem:[#allocation2 + $0x1a8] sm:$0xff]
        %v365 = vld [vmem:[#allocation2 + $0x1b0] sm:$0xff]
        %v366 = vld [vmem:[#allocation2 + $0x1b8] sm:$0xff]
        %v367 = vld [vmem:[#allocation2 + $0x1c0] sm:$0xff]
        %v368 = vld [vmem:[#allocation2 + $0x1c8] sm:$0xff]
        %v369 = vld [vmem:[#allocation2 + $0x1d0] sm:$0xff]
        %v370 = vld [vmem:[#allocation2 + $0x1d8] sm:$0xff]
        %v371 = vld [vmem:[#allocation2 + $0x1e0] sm:$0xff]
        %v372 = vld [vmem:[#allocation2 + $0x1e8] sm:$0xff]
        %v373 = vld [vmem:[#allocation2 + $0x1f0] sm:$0xff]
        %v374 = vld [vmem:[#allocation2 + $0x1f8] sm:$0xff]
        %v375 = vld [vmem:[#allocation2 + $0x200] sm:$0xff]
        %v376 = vld [vmem:[#allocation2 + $0x208] sm:$0xff]
        %v377 = vld [vmem:[#allocation2 + $0x210] sm:$0xff]
        %v378 = vld [vmem:[#allocation2 + $0x218] sm:$0xff]
        %v379 = vld [vmem:[#allocation2 + $0x220] sm:$0xff]
        %v380 = vld [vmem:[#allocation2 + $0x228] sm:$0xff]
        %v381 = vld [vmem:[#allocation2 + $0x230] sm:$0xff]
        %v382 = vld [vmem:[#allocation2 + $0x238] sm:$0xff]
        %v383 = vld [vmem:[#allocation2 + $0x240] sm:$0xff]
        %v384 = vld [vmem:[#allocation2 + $0x248] sm:$0xff]
        %v385 = vld [vmem:[#allocation2 + $0x250] sm:$0xff]
        %v386 = vld [vmem:[#allocation2 + $0x258] sm:$0xff]
        %v387 = vld [vmem:[#allocation2 + $0x260] sm:$0xff]
        %v388 = vld [vmem:[#allocation2 + $0x268] sm:$0xff]
        %v389 = vld [vmem:[#allocation2 + $0x270] sm:$0xff]
        %v390 = vld [vmem:[#allocation2 + $0x278] sm:$0xff]
        %v391 = vld [vmem:[#allocation2 + $0x280] sm:$0xff]
        %v392 = vld [vmem:[#allocation2 + $0x288] sm:$0xff]
        %v393 = vld [vmem:[#allocation2 + $0x290] sm:$0xff]
        %v394 = vld [vmem:[#allocation2 + $0x298] sm:$0xff]
        %v395 = vld [vmem:[#allocation2 + $0x2a0] sm:$0xff]
        %v396 = vld [vmem:[#allocation2 + $0x2a8] sm:$0xff]
        %v397 = vld [vmem:[#allocation2 + $0x2b0] sm:$0xff]
        %v398 = vld [vmem:[#allocation2 + $0x2b8] sm:$0xff]
        %v399 = vld [vmem:[#allocation2 + $0x2c0] sm:$0xff]
        %v400 = vld [vmem:[#allocation2 + $0x2c8] sm:$0xff]
        %v401 = vld [vmem:[#allocation2 + $0x2d0] sm:$0xff]
        %v402 = vld [vmem:[#allocation2 + $0x2d8] sm:$0xff]
        %v403 = vld [vmem:[#allocation2 + $0x2e0] sm:$0xff]
        %v404 = vld [vmem:[#allocation2 + $0x2e8] sm:$0xff]
        %v405 = vld [vmem:[#allocation2 + $0x2f0] sm:$0xff]
        %v406 = vld [vmem:[#allocation2 + $0x2f8] sm:$0xff]
        %v407 = vld [vmem:[#allocation2 + $0x300] sm:$0xff]
        %v408 = vld [vmem:[#allocation2 + $0x308] sm:$0xff]
        %v409 = vld [vmem:[#allocation2 + $0x310] sm:$0xff]
        %v410 = vld [vmem:[#allocation2 + $0x318] sm:$0xff]
        %v411 = vld [vmem:[#allocation2 + $0x320] sm:$0xff]
        %v412 = vld [vmem:[#allocation2 + $0x328] sm:$0xff]
        %v413 = vld [vmem:[#allocation2 + $0x330] sm:$0xff]
        %v414 = vld [vmem:[#allocation2 + $0x338] sm:$0xff]
        %v415 = vld [vmem:[#allocation2 + $0x340] sm:$0xff]
        %v416 = vld [vmem:[#allocation2 + $0x348] sm:$0xff]
        %v417 = vld [vmem:[#allocation2 + $0x350] sm:$0xff]
        %v418 = vld [vmem:[#allocation2 + $0x358] sm:$0xff]
        %v419 = vld [vmem:[#allocation2 + $0x360] sm:$0xff]
        %v420 = vld [vmem:[#allocation2 + $0x368] sm:$0xff]
        %v421 = vld [vmem:[#allocation2 + $0x370] sm:$0xff]
        %v422 = vld [vmem:[#allocation2 + $0x378] sm:$0xff]
        %v423 = vld [vmem:[#allocation2 + $0x380] sm:$0xff]
        %v424 = vld [vmem:[#allocation2 + $0x388] sm:$0xff]
        %v425 = vld [vmem:[#allocation2 + $0x390] sm:$0xff]
        %v426 = vld [vmem:[#allocation2 + $0x398] sm:$0xff]
        %v427 = vld [vmem:[#allocation2 + $0x3a0] sm:$0xff]
        %v428 = vld [vmem:[#allocation2 + $0x3a8] sm:$0xff]
        %v429 = vld [vmem:[#allocation2 + $0x3b0] sm:$0xff]
        %v430 = vld [vmem:[#allocation2 + $0x3b8] sm:$0xff]
        %v431 = vld [vmem:[#allocation2 + $0x3c0] sm:$0xff]
        %v432 = vld [vmem:[#allocation2 + $0x3c8] sm:$0xff]
        %v433 = vld [vmem:[#allocation2 + $0x3d0] sm:$0xff]
        %v434 = vld [vmem:[#allocation2 + $0x3d8] sm:$0xff]
        %v435 = vld [vmem:[#allocation2 + $0x3e0] sm:$0xff]
        %v436 = vld [vmem:[#allocation2 + $0x3e8] sm:$0xff]
        %v437 = vld [vmem:[#allocation2 + $0x3f0] sm:$0xff]
        %v438 = vld [vmem:[#allocation2 + $0x3f8] sm:$0xff]
        %v439 = vld [vmem:[#allocation2 + $0x400] sm:$0xff]
        %v440 = vld [vmem:[#allocation2 + $0x408] sm:$0xff]
        %v441 = vld [vmem:[#allocation2 + $0x410] sm:$0xff]
        %v442 = vld [vmem:[#allocation2 + $0x418] sm:$0xff]
        %v443 = vld [vmem:[#allocation2 + $0x420] sm:$0xff]
        %v444 = vld [vmem:[#allocation2 + $0x428] sm:$0xff]
        %v445 = vld [vmem:[#allocation2 + $0x430] sm:$0xff]
        %v446 = vld [vmem:[#allocation2 + $0x438] sm:$0xff]
        %v447 = vld [vmem:[#allocation2 + $0x440] sm:$0xff]
        %v448 = vld [vmem:[#allocation2 + $0x448] sm:$0xff]
        %v449 = vld [vmem:[#allocation2 + $0x450] sm:$0xff]
        %v450 = vld [vmem:[#allocation2 + $0x458] sm:$0xff]
        %v451 = vld [vmem:[#allocation2 + $0x460] sm:$0xff]
        %v452 = vld [vmem:[#allocation2 + $0x468] sm:$0xff]
        %v453 = vld [vmem:[#allocation2 + $0x470] sm:$0xff]
        %v454 = vld [vmem:[#allocation2 + $0x478] sm:$0xff]
        %v455 = vld [vmem:[#allocation2 + $0x480] sm:$0xff]
        %v456 = vld [vmem:[#allocation2 + $0x488] sm:$0xff]
        %v457 = vld [vmem:[#allocation2 + $0x490] sm:$0xff]
        %v458 = vld [vmem:[#allocation2 + $0x498] sm:$0xff]
        %v459 = vld [vmem:[#allocation2 + $0x4a0] sm:$0xff]
        %v460 = vld [vmem:[#allocation2 + $0x4a8] sm:$0xff]
        %v461 = vld [vmem:[#allocation2 + $0x4b0] sm:$0xff]
        %v462 = vld [vmem:[#allocation2 + $0x4b8] sm:$0xff]
        %v463 = vld [vmem:[#allocation2 + $0x4c0] sm:$0xff]
        %v464 = vld [vmem:[#allocation2 + $0x4c8] sm:$0xff]
        %v465 = vld [vmem:[#allocation2 + $0x4d0] sm:$0xff]
        %v466 = vld [vmem:[#allocation2 + $0x4d8] sm:$0xff]
        %v467 = vld [vmem:[#allocation2 + $0x4e0] sm:$0xff]
        %v468 = vld [vmem:[#allocation2 + $0x4e8] sm:$0xff]
        %v469 = vld [vmem:[#allocation2 + $0x4f0] sm:$0xff]
        %v470 = vld [vmem:[#allocation2 + $0x4f8] sm:$0xff]
        %v471 = vld [vmem:[#allocation2 + $0x500] sm:$0xff]
        %v472 = vld [vmem:[#allocation2 + $0x508] sm:$0xff]
        %v473 = vld [vmem:[#allocation2 + $0x510] sm:$0xff]
        %v474 = vld [vmem:[#allocation2 + $0x518] sm:$0xff]
        %v475 = vld [vmem:[#allocation2 + $0x520] sm:$0xff]
        %v476 = vld [vmem:[#allocation2 + $0x528] sm:$0xff]
        %v477 = vld [vmem:[#allocation2 + $0x530] sm:$0xff]
        %v478 = vld [vmem:[#allocation2 + $0x538] sm:$0xff]
        %v479 = vld [vmem:[#allocation2 + $0x540] sm:$0xff]
        %v480 = vld [vmem:[#allocation2 + $0x548] sm:$0xff]
        %v481 = vld [vmem:[#allocation2 + $0x550] sm:$0xff]
        %v482 = vld [vmem:[#allocation2 + $0x558] sm:$0xff]
        %v483 = vld [vmem:[#allocation2 + $0x560] sm:$0xff]
        %v484 = vld [vmem:[#allocation2 + $0x568] sm:$0xff]
        %v485 = vld [vmem:[#allocation2 + $0x570] sm:$0xff]
        %v486 = vld [vmem:[#allocation2 + $0x578] sm:$0xff]
        %v487 = vld [vmem:[#allocation2 + $0x580] sm:$0xff]
        %v488 = vld [vmem:[#allocation2 + $0x588] sm:$0xff]
        %v489 = vld [vmem:[#allocation2 + $0x590] sm:$0xff]
        %v490 = vld [vmem:[#allocation2 + $0x598] sm:$0xff]
        %v491 = vld [vmem:[#allocation2 + $0x5a0] sm:$0xff]
        %v492 = vld [vmem:[#allocation2 + $0x5a8] sm:$0xff]
        %v493 = vld [vmem:[#allocation2 + $0x5b0] sm:$0xff]
        %v494 = vld [vmem:[#allocation2 + $0x5b8] sm:$0xff]
        %v495 = vld [vmem:[#allocation2 + $0x5c0] sm:$0xff]
        %v496 = vld [vmem:[#allocation2 + $0x5c8] sm:$0xff]
        %v497 = vld [vmem:[#allocation2 + $0x5d0] sm:$0xff]
        %v498 = vld [vmem:[#allocation2 + $0x5d8] sm:$0xff]
        %v499 = vld [vmem:[#allocation2 + $0x5e0] sm:$0xff]
        %v500 = vld [vmem:[#allocation2 + $0x5e8] sm:$0xff]
        %v501 = vld [vmem:[#allocation2 + $0x5f0] sm:$0xff]
        %v502 = vld [vmem:[#allocation2 + $0x5f8] sm:$0xff]
        %v503 = vld [vmem:[#allocation2 + $0x600] sm:$0xff]
        %v504 = vld [vmem:[#allocation2 + $0x608] sm:$0xff]
        %v505 = vld [vmem:[#allocation2 + $0x610] sm:$0xff]
        %v506 = vld [vmem:[#allocation2 + $0x618] sm:$0xff]
        %v507 = vld [vmem:[#allocation2 + $0x620] sm:$0xff]
        %v508 = vld [vmem:[#allocation2 + $0x628] sm:$0xff]
        %v509 = vld [vmem:[#allocation2 + $0x630] sm:$0xff]
        %v510 = vld [vmem:[#allocation2 + $0x638] sm:$0xff]
        %v511 = vld [vmem:[#allocation2 + $0x640] sm:$0xff]
        %v512 = vld [vmem:[#allocation2 + $0x648] sm:$0xff]
        %v513 = vld [vmem:[#allocation2 + $0x650] sm:$0xff]
        %v514 = vld [vmem:[#allocation2 + $0x658] sm:$0xff]
        %v515 = vld [vmem:[#allocation2 + $0x660] sm:$0xff]
        %v516 = vld [vmem:[#allocation2 + $0x668] sm:$0xff]
        %v517 = vld [vmem:[#allocation2 + $0x670] sm:$0xff]
        %v518 = vld [vmem:[#allocation2 + $0x678] sm:$0xff]
        %v519 = vld [vmem:[#allocation2 + $0x680] sm:$0xff]
        %v520 = vld [vmem:[#allocation2 + $0x688] sm:$0xff]
        %v521 = vld [vmem:[#allocation2 + $0x690] sm:$0xff]
        %v522 = vld [vmem:[#allocation2 + $0x698] sm:$0xff]
        %v523 = vld [vmem:[#allocation2 + $0x6a0] sm:$0xff]
        %v524 = vld [vmem:[#allocation2 + $0x6a8] sm:$0xff]
        %v525 = vld [vmem:[#allocation2 + $0x6b0] sm:$0xff]
        %v526 = vld [vmem:[#allocation2 + $0x6b8] sm:$0xff]
        %v527 = vld [vmem:[#allocation2 + $0x6c0] sm:$0xff]
        %v528 = vld [vmem:[#allocation2 + $0x6c8] sm:$0xff]
        %v529 = vld [vmem:[#allocation2 + $0x6d0] sm:$0xff]
        %v530 = vld [vmem:[#allocation2 + $0x6d8] sm:$0xff]
        %v531 = vld [vmem:[#allocation2 + $0x6e0] sm:$0xff]
        %v532 = vld [vmem:[#allocation2 + $0x6e8] sm:$0xff]
        %v533 = vld [vmem:[#allocation2 + $0x6f0] sm:$0xff]
        %v534 = vld [vmem:[#allocation2 + $0x6f8] sm:$0xff]
        %v535 = vld [vmem:[#allocation2 + $0x700] sm:$0xff]
        %v536 = vld [vmem:[#allocation2 + $0x708] sm:$0xff]
        %v537 = vld [vmem:[#allocation2 + $0x710] sm:$0xff]
        %v538 = vld [vmem:[#allocation2 + $0x718] sm:$0xff]
        %v539 = vld [vmem:[#allocation2 + $0x720] sm:$0xff]
        %v540 = vld [vmem:[#allocation2 + $0x728] sm:$0xff]
        %v541 = vld [vmem:[#allocation2 + $0x730] sm:$0xff]
        %v542 = vld [vmem:[#allocation2 + $0x738] sm:$0xff]
        %v543 = vld [vmem:[#allocation2 + $0x740] sm:$0xff]
        %v544 = vld [vmem:[#allocation2 + $0x748] sm:$0xff]
        %v545 = vld [vmem:[#allocation2 + $0x750] sm:$0xff]
        %v546 = vld [vmem:[#allocation2 + $0x758] sm:$0xff]
        %v547 = vld [vmem:[#allocation2 + $0x760] sm:$0xff]
        %v548 = vld [vmem:[#allocation2 + $0x768] sm:$0xff]
        %v549 = vld [vmem:[#allocation2 + $0x770] sm:$0xff]
        %v550 = vld [vmem:[#allocation2 + $0x778] sm:$0xff]
        %v551 = vld [vmem:[#allocation2 + $0x780] sm:$0xff]
        %v552 = vld [vmem:[#allocation2 + $0x788] sm:$0xff]
        %v553 = vld [vmem:[#allocation2 + $0x790] sm:$0xff]
        %v554 = vld [vmem:[#allocation2 + $0x798] sm:$0xff]
        %v555 = vld [vmem:[#allocation2 + $0x7a0] sm:$0xff]
        %v556 = vld [vmem:[#allocation2 + $0x7a8] sm:$0xff]
        %v557 = vld [vmem:[#allocation2 + $0x7b0] sm:$0xff]
        %v558 = vld [vmem:[#allocation2 + $0x7b8] sm:$0xff]
        %v559 = vld [vmem:[#allocation2 + $0x7c0] sm:$0xff]
        %v560 = vld [vmem:[#allocation2 + $0x7c8] sm:$0xff]
        %v561 = vld [vmem:[#allocation2 + $0x7d0] sm:$0xff]
        %v562 = vld [vmem:[#allocation2 + $0x7d8] sm:$0xff]
        %v563 = vld [vmem:[#allocation2 + $0x7e0] sm:$0xff]
        %v564 = vld [vmem:[#allocation2 + $0x7e8] sm:$0xff]
        %v565 = vld [vmem:[#allocation2 + $0x7f0] sm:$0xff]
        %v566 = vld [vmem:[#allocation2 + $0x7f8] sm:$0xff]
        %v567 = vld [vmem:[#allocation2 + $0x800] sm:$0xff]
        %v568 = vld [vmem:[#allocation2 + $0x808] sm:$0xff]
        %v569 = vld [vmem:[#allocation2 + $0x810] sm:$0xff]
        %v570 = vld [vmem:[#allocation2 + $0x818] sm:$0xff]
        %v571 = vld [vmem:[#allocation2 + $0x820] sm:$0xff]
        %v572 = vld [vmem:[#allocation2 + $0x828] sm:$0xff]
        %v573 = vld [vmem:[#allocation2 + $0x830] sm:$0xff]
        %v574 = vld [vmem:[#allocation2 + $0x838] sm:$0xff]
        %v575 = vld [vmem:[#allocation2 + $0x840] sm:$0xff]
        %v576 = vld [vmem:[#allocation2 + $0x848] sm:$0xff]
        %v577 = vld [vmem:[#allocation2 + $0x850] sm:$0xff]
        %v578 = vld [vmem:[#allocation2 + $0x858] sm:$0xff]
        %v579 = vld [vmem:[#allocation2 + $0x860] sm:$0xff]
        %v580 = vld [vmem:[#allocation2 + $0x868] sm:$0xff]
        %v581 = vld [vmem:[#allocation2 + $0x870] sm:$0xff]
        %v582 = vld [vmem:[#allocation2 + $0x878] sm:$0xff]
        %v583 = vld [vmem:[#allocation2 + $0x880] sm:$0xff]
        %v584 = vld [vmem:[#allocation2 + $0x888] sm:$0xff]
        %v585 = vld [vmem:[#allocation2 + $0x890] sm:$0xff]
        %v586 = vld [vmem:[#allocation2 + $0x898] sm:$0xff]
        %v587 = vld [vmem:[#allocation2 + $0x8a0] sm:$0xff]
        %v588 = vld [vmem:[#allocation2 + $0x8a8] sm:$0xff]
        %v589 = vld [vmem:[#allocation2 + $0x8b0] sm:$0xff]
        %v590 = vld [vmem:[#allocation2 + $0x8b8] sm:$0xff]
        %v591 = vld [vmem:[#allocation2 + $0x8c0] sm:$0xff]
        %v592 = vld [vmem:[#allocation2 + $0x8c8] sm:$0xff]
        %v593 = vld [vmem:[#allocation2 + $0x8d0] sm:$0xff]
        %v594 = vld [vmem:[#allocation2 + $0x8d8] sm:$0xff]
        %v595 = vld [vmem:[#allocation2 + $0x8e0] sm:$0xff]
        %v596 = vld [vmem:[#allocation2 + $0x8e8] sm:$0xff]
        %v597 = vld [vmem:[#allocation2 + $0x8f0] sm:$0xff]
        %v598 = vld [vmem:[#allocation2 + $0x8f8] sm:$0xff]
        %v599 = vld [vmem:[#allocation2 + $0x900] sm:$0xff]
        %v600 = vld [vmem:[#allocation2 + $0x908] sm:$0xff]
        %v601 = vld [vmem:[#allocation2 + $0x910] sm:$0xff]
        %v602 = vld [vmem:[#allocation2 + $0x918] sm:$0xff]
        %v603 = vld [vmem:[#allocation2 + $0x920] sm:$0xff]
        %v604 = vld [vmem:[#allocation2 + $0x928] sm:$0xff]
        %v605 = vld [vmem:[#allocation2 + $0x930] sm:$0xff]
        %v606 = vld [vmem:[#allocation2 + $0x938] sm:$0xff]
        %v607 = vld [vmem:[#allocation2 + $0x940] sm:$0xff]
        %v608 = vld [vmem:[#allocation2 + $0x948] sm:$0xff]
        %v609 = vld [vmem:[#allocation2 + $0x950] sm:$0xff]
        %v610 = vld [vmem:[#allocation2 + $0x958] sm:$0xff]
        %v611 = vld [vmem:[#allocation2 + $0x960] sm:$0xff]
        %v612 = vld [vmem:[#allocation2 + $0x968] sm:$0xff]
        %v613 = vld [vmem:[#allocation2 + $0x970] sm:$0xff]
        %v614 = vld [vmem:[#allocation2 + $0x978] sm:$0xff]
        %v615 = vld [vmem:[#allocation2 + $0x980] sm:$0xff]
        %v616 = vld [vmem:[#allocation2 + $0x988] sm:$0xff]
        %v617 = vld [vmem:[#allocation2 + $0x990] sm:$0xff]
        %v618 = vld [vmem:[#allocation2 + $0x998] sm:$0xff]
        %v619 = vld [vmem:[#allocation2 + $0x9a0] sm:$0xff]
        %v620 = vld [vmem:[#allocation2 + $0x9a8] sm:$0xff]
        %v621 = vld [vmem:[#allocation2 + $0x9b0] sm:$0xff]
        %v622 = vld [vmem:[#allocation2 + $0x9b8] sm:$0xff]
        %v623 = vld [vmem:[#allocation2 + $0x9c0] sm:$0xff]
        %v624 = vld [vmem:[#allocation2 + $0x9c8] sm:$0xff]
        %v625 = vld [vmem:[#allocation2 + $0x9d0] sm:$0xff]
        %v626 = vld [vmem:[#allocation2 + $0x9d8] sm:$0xff]
        %v627 = vld [vmem:[#allocation2 + $0x9e0] sm:$0xff]
        %v628 = vld [vmem:[#allocation2 + $0x9e8] sm:$0xff]
        %v629 = vld [vmem:[#allocation2 + $0x9f0] sm:$0xff]
        %v630 = vld [vmem:[#allocation2 + $0x9f8] sm:$0xff]
        %v631 = vld [vmem:[#allocation2 + $0xa00] sm:$0xff]
        %v632 = vld [vmem:[#allocation2 + $0xa08] sm:$0xff]
        %v633 = vld [vmem:[#allocation2 + $0xa10] sm:$0xff]
        %v634 = vld [vmem:[#allocation2 + $0xa18] sm:$0xff]
        %v635 = vld [vmem:[#allocation2 + $0xa20] sm:$0xff]
        %v636 = vld [vmem:[#allocation2 + $0xa28] sm:$0xff]
        %v637 = vld [vmem:[#allocation2 + $0xa30] sm:$0xff]
        %v638 = vld [vmem:[#allocation2 + $0xa38] sm:$0xff]
        %v639 = vld [vmem:[#allocation2 + $0xa40] sm:$0xff]
        %v640 = vld [vmem:[#allocation2 + $0xa48] sm:$0xff]
        %v641 = vld [vmem:[#allocation2 + $0xa50] sm:$0xff]
        %v642 = vld [vmem:[#allocation2 + $0xa58] sm:$0xff]
        %v643 = vld [vmem:[#allocation2 + $0xa60] sm:$0xff]
        %v644 = vld [vmem:[#allocation2 + $0xa68] sm:$0xff]
        %v645 = vld [vmem:[#allocation2 + $0xa70] sm:$0xff]
        %v646 = vld [vmem:[#allocation2 + $0xa78] sm:$0xff]
        %v647 = vld [vmem:[#allocation2 + $0xa80] sm:$0xff]
        %v648 = vld [vmem:[#allocation2 + $0xa88] sm:$0xff]
        %v649 = vld [vmem:[#allocation2 + $0xa90] sm:$0xff]
        %v650 = vld [vmem:[#allocation2 + $0xa98] sm:$0xff]
        %v651 = vld [vmem:[#allocation2 + $0xaa0] sm:$0xff]
        %v652 = vld [vmem:[#allocation2 + $0xaa8] sm:$0xff]
        %v653 = vld [vmem:[#allocation2 + $0xab0] sm:$0xff]
        %v654 = vld [vmem:[#allocation2 + $0xab8] sm:$0xff]
        %v655 = vld [vmem:[#allocation2 + $0xac0] sm:$0xff]
        %v656 = vld [vmem:[#allocation2 + $0xac8] sm:$0xff]
        %v657 = vld [vmem:[#allocation2 + $0xad0] sm:$0xff]
        %v658 = vld [vmem:[#allocation2 + $0xad8] sm:$0xff]
        %v659 = vld [vmem:[#allocation2 + $0xae0] sm:$0xff]
        %v660 = vld [vmem:[#allocation2 + $0xae8] sm:$0xff]
        %v661 = vld [vmem:[#allocation2 + $0xaf0] sm:$0xff]
        %v662 = vld [vmem:[#allocation2 + $0xaf8] sm:$0xff]
        %v663 = vld [vmem:[#allocation2 + $0xb00] sm:$0xff]
        %v664 = vld [vmem:[#allocation2 + $0xb08] sm:$0xff]
        %v665 = vld [vmem:[#allocation2 + $0xb10] sm:$0xff]
        %v666 = vld [vmem:[#allocation2 + $0xb18] sm:$0xff]
        %v667 = vld [vmem:[#allocation2 + $0xb20] sm:$0xff]
        %v668 = vld [vmem:[#allocation2 + $0xb28] sm:$0xff]
        %v669 = vld [vmem:[#allocation2 + $0xb30] sm:$0xff]
        %v670 = vld [vmem:[#allocation2 + $0xb38] sm:$0xff]
        %v671 = vld [vmem:[#allocation2 + $0xb40] sm:$0xff]
        %v672 = vld [vmem:[#allocation2 + $0xb48] sm:$0xff]
        %v673 = vld [vmem:[#allocation2 + $0xb50] sm:$0xff]
        %v674 = vld [vmem:[#allocation2 + $0xb58] sm:$0xff]
        %v675 = vld [vmem:[#allocation2 + $0xb60] sm:$0xff]
        %v676 = vld [vmem:[#allocation2 + $0xb68] sm:$0xff]
        %v677 = vld [vmem:[#allocation2 + $0xb70] sm:$0xff]
        %v678 = vld [vmem:[#allocation2 + $0xb78] sm:$0xff]
        %v679 = vld [vmem:[#allocation2 + $0xb80] sm:$0xff]
        %v680 = vld [vmem:[#allocation2 + $0xb88] sm:$0xff]
        %v681 = vld [vmem:[#allocation2 + $0xb90] sm:$0xff]
        %v682 = vld [vmem:[#allocation2 + $0xb98] sm:$0xff]
        %v683 = vld [vmem:[#allocation2 + $0xba0] sm:$0xff]
        %v684 = vld [vmem:[#allocation2 + $0xba8] sm:$0xff]
        %v685 = vld [vmem:[#allocation2 + $0xbb0] sm:$0xff]
        %v686 = vld [vmem:[#allocation2 + $0xbb8] sm:$0xff]
        %v687 = vld [vmem:[#allocation2 + $0xbc0] sm:$0xff]
        %v688 = vld [vmem:[#allocation2 + $0xbc8] sm:$0xff]
        %v689 = vld [vmem:[#allocation2 + $0xbd0] sm:$0xff]
        %v690 = vld [vmem:[#allocation2 + $0xbd8] sm:$0xff]
        %v691 = vld [vmem:[#allocation2 + $0xbe0] sm:$0xff]
        %v692 = vld [vmem:[#allocation2 + $0xbe8] sm:$0xff]
        %v693 = vld [vmem:[#allocation2 + $0xbf0] sm:$0xff]
        %v694 = vld [vmem:[#allocation2 + $0xbf8] sm:$0xff]
        %v695 = vld [vmem:[#allocation2 + $0xc00] sm:$0xff]
        %v696 = vld [vmem:[#allocation2 + $0xc08] sm:$0xff]
        %v697 = vld [vmem:[#allocation2 + $0xc10] sm:$0xff]
        %v698 = vld [vmem:[#allocation2 + $0xc18] sm:$0xff]
        %v699 = vld [vmem:[#allocation2 + $0xc20] sm:$0xff]
        %v700 = vld [vmem:[#allocation2 + $0xc28] sm:$0xff]
        %v701 = vld [vmem:[#allocation2 + $0xc30] sm:$0xff]
        %v702 = vld [vmem:[#allocation2 + $0xc38] sm:$0xff]
        %v703 = vld [vmem:[#allocation2 + $0xc40] sm:$0xff]
        %v704 = vld [vmem:[#allocation2 + $0xc48] sm:$0xff]
        %v705 = vld [vmem:[#allocation2 + $0xc50] sm:$0xff]
        %v706 = vld [vmem:[#allocation2 + $0xc58] sm:$0xff]
        %v707 = vld [vmem:[#allocation2 + $0xc60] sm:$0xff]
        %v708 = vld [vmem:[#allocation2 + $0xc68] sm:$0xff]
        %v709 = vld [vmem:[#allocation2 + $0xc70] sm:$0xff]
        %v710 = vld [vmem:[#allocation2 + $0xc78] sm:$0xff]
        %v711 = vld [vmem:[#allocation2 + $0xc80] sm:$0xff]
        %v712 = vld [vmem:[#allocation2 + $0xc88] sm:$0xff]
        %v713 = vld [vmem:[#allocation2 + $0xc90] sm:$0xff]
        %v714 = vld [vmem:[#allocation2 + $0xc98] sm:$0xff]
        %v715 = vld [vmem:[#allocation2 + $0xca0] sm:$0xff]
        %v716 = vld [vmem:[#allocation2 + $0xca8] sm:$0xff]
        %v717 = vld [vmem:[#allocation2 + $0xcb0] sm:$0xff]
        %v718 = vld [vmem:[#allocation2 + $0xcb8] sm:$0xff]
        %v719 = vld [vmem:[#allocation2 + $0xcc0] sm:$0xff]
        %v720 = vld [vmem:[#allocation2 + $0xcc8] sm:$0xff]
        %v721 = vld [vmem:[#allocation2 + $0xcd0] sm:$0xff]
        %v722 = vld [vmem:[#allocation2 + $0xcd8] sm:$0xff]
        %v723 = vld [vmem:[#allocation2 + $0xce0] sm:$0xff]
        %v724 = vld [vmem:[#allocation2 + $0xce8] sm:$0xff]
        %v725 = vld [vmem:[#allocation2 + $0xcf0] sm:$0xff]
        %v726 = vld [vmem:[#allocation2 + $0xcf8] sm:$0xff]
        %v727 = vld [vmem:[#allocation2 + $0xd00] sm:$0xff]
        %v728 = vld [vmem:[#allocation2 + $0xd08] sm:$0xff]
        %v729 = vld [vmem:[#allocation2 + $0xd10] sm:$0xff]
        %v730 = vld [vmem:[#allocation2 + $0xd18] sm:$0xff]
        %v731 = vld [vmem:[#allocation2 + $0xd20] sm:$0xff]
        %v732 = vld [vmem:[#allocation2 + $0xd28] sm:$0xff]
        %v733 = vld [vmem:[#allocation2 + $0xd30] sm:$0xff]
        %v734 = vld [vmem:[#allocation2 + $0xd38] sm:$0xff]
        %v735 = vld [vmem:[#allocation2 + $0xd40] sm:$0xff]
        %v736 = vld [vmem:[#allocation2 + $0xd48] sm:$0xff]
        %v737 = vld [vmem:[#allocation2 + $0xd50] sm:$0xff]
        %v738 = vld [vmem:[#allocation2 + $0xd58] sm:$0xff]
        %v739 = vld [vmem:[#allocation2 + $0xd60] sm:$0xff]
        %v740 = vld [vmem:[#allocation2 + $0xd68] sm:$0xff]
        %v741 = vld [vmem:[#allocation2 + $0xd70] sm:$0xff]
        %v742 = vld [vmem:[#allocation2 + $0xd78] sm:$0xff]
        %v743 = vld [vmem:[#allocation2 + $0xd80] sm:$0xff]
        %v744 = vld [vmem:[#allocation2 + $0xd88] sm:$0xff]
        %v745 = vld [vmem:[#allocation2 + $0xd90] sm:$0xff]
        %v746 = vld [vmem:[#allocation2 + $0xd98] sm:$0xff]
        %v747 = vld [vmem:[#allocation2 + $0xda0] sm:$0xff]
        %v748 = vld [vmem:[#allocation2 + $0xda8] sm:$0xff]
        %v749 = vld [vmem:[#allocation2 + $0xdb0] sm:$0xff]
        %v750 = vld [vmem:[#allocation2 + $0xdb8] sm:$0xff]
        %v751 = vld [vmem:[#allocation2 + $0xdc0] sm:$0xff]
        %v752 = vld [vmem:[#allocation2 + $0xdc8] sm:$0xff]
        %v753 = vld [vmem:[#allocation2 + $0xdd0] sm:$0xff]
        %v754 = vld [vmem:[#allocation2 + $0xdd8] sm:$0xff]
        %v755 = vld [vmem:[#allocation2 + $0xde0] sm:$0xff]
        %v756 = vld [vmem:[#allocation2 + $0xde8] sm:$0xff]
        %v757 = vld [vmem:[#allocation2 + $0xdf0] sm:$0xff]
        %v758 = vld [vmem:[#allocation2 + $0xdf8] sm:$0xff]
        %v759 = vld [vmem:[#allocation2 + $0xe00] sm:$0xff]
        %v760 = vld [vmem:[#allocation2 + $0xe08] sm:$0xff]
        %v761 = vld [vmem:[#allocation2 + $0xe10] sm:$0xff]
        %v762 = vld [vmem:[#allocation2 + $0xe18] sm:$0xff]
        %v763 = vld [vmem:[#allocation2 + $0xe20] sm:$0xff]
        %v764 = vld [vmem:[#allocation2 + $0xe28] sm:$0xff]
        %v765 = vld [vmem:[#allocation2 + $0xe30] sm:$0xff]
        %v766 = vld [vmem:[#allocation2 + $0xe38] sm:$0xff]
        %v767 = vld [vmem:[#allocation2 + $0xe40] sm:$0xff]
        %v768 = vld [vmem:[#allocation2 + $0xe48] sm:$0xff]
        %v769 = vld [vmem:[#allocation2 + $0xe50] sm:$0xff]
        %v770 = vld [vmem:[#allocation2 + $0xe58] sm:$0xff]
        %v771 = vld [vmem:[#allocation2 + $0xe60] sm:$0xff]
        %v772 = vld [vmem:[#allocation2 + $0xe68] sm:$0xff]
        %v773 = vld [vmem:[#allocation2 + $0xe70] sm:$0xff]
        %v774 = vld [vmem:[#allocation2 + $0xe78] sm:$0xff]
        %v775 = vld [vmem:[#allocation2 + $0xe80] sm:$0xff]
        %v776 = vld [vmem:[#allocation2 + $0xe88] sm:$0xff]
        %v777 = vld [vmem:[#allocation2 + $0xe90] sm:$0xff]
        %v778 = vld [vmem:[#allocation2 + $0xe98] sm:$0xff]
        %v779 = vld [vmem:[#allocation2 + $0xea0] sm:$0xff]
        %v780 = vld [vmem:[#allocation2 + $0xea8] sm:$0xff]
        %v781 = vld [vmem:[#allocation2 + $0xeb0] sm:$0xff]
        %v782 = vld [vmem:[#allocation2 + $0xeb8] sm:$0xff]
        %v783 = vld [vmem:[#allocation2 + $0xec0] sm:$0xff]
        %v784 = vld [vmem:[#allocation2 + $0xec8] sm:$0xff]
        %v785 = vld [vmem:[#allocation2 + $0xed0] sm:$0xff]
        %v786 = vld [vmem:[#allocation2 + $0xed8] sm:$0xff]
        %v787 = vld [vmem:[#allocation2 + $0xee0] sm:$0xff]
        %v788 = vld [vmem:[#allocation2 + $0xee8] sm:$0xff]
        %v789 = vld [vmem:[#allocation2 + $0xef0] sm:$0xff]
        %v790 = vld [vmem:[#allocation2 + $0xef8] sm:$0xff]
        %v791 = vld [vmem:[#allocation2 + $0xf00] sm:$0xff]
        %v792 = vld [vmem:[#allocation2 + $0xf08] sm:$0xff]
        %v793 = vld [vmem:[#allocation2 + $0xf10] sm:$0xff]
        %v794 = vld [vmem:[#allocation2 + $0xf18] sm:$0xff]
        %v795 = vld [vmem:[#allocation2 + $0xf20] sm:$0xff]
        %v796 = vld [vmem:[#allocation2 + $0xf28] sm:$0xff]
        %v797 = vld [vmem:[#allocation2 + $0xf30] sm:$0xff]
        %v798 = vld [vmem:[#allocation2 + $0xf38] sm:$0xff]
        %v799 = vld [vmem:[#allocation2 + $0xf40] sm:$0xff]
        %v800 = vld [vmem:[#allocation2 + $0xf48] sm:$0xff]
        %v801 = vld [vmem:[#allocation2 + $0xf50] sm:$0xff]
        %v802 = vld [vmem:[#allocation2 + $0xf58] sm:$0xff]
        %v803 = vld [vmem:[#allocation2 + $0xf60] sm:$0xff]
        %v804 = vld [vmem:[#allocation2 + $0xf68] sm:$0xff]
        %v805 = vld [vmem:[#allocation2 + $0xf70] sm:$0xff]
        %v806 = vld [vmem:[#allocation2 + $0xf78] sm:$0xff]
        %v807 = vld [vmem:[#allocation2 + $0xf80] sm:$0xff]
        %v808 = vld [vmem:[#allocation2 + $0xf88] sm:$0xff]
        %v809 = vld [vmem:[#allocation2 + $0xf90] sm:$0xff]
        %v810 = vld [vmem:[#allocation2 + $0xf98] sm:$0xff]
        %v811 = vld [vmem:[#allocation2 + $0xfa0] sm:$0xff]
        %v812 = vld [vmem:[#allocation2 + $0xfa8] sm:$0xff]
        %v813 = vld [vmem:[#allocation2 + $0xfb0] sm:$0xff]
        %v814 = vld [vmem:[#allocation2 + $0xfb8] sm:$0xff]
        %v815 = vld [vmem:[#allocation2 + $0xfc0] sm:$0xff]
        %v816 = vld [vmem:[#allocation2 + $0xfc8] sm:$0xff]
        %v817 = vld [vmem:[#allocation2 + $0xfd0] sm:$0xff]
        %v818 = vld [vmem:[#allocation2 + $0xfd8] sm:$0xff]
        %v819 = vld [vmem:[#allocation2 + $0xfe0] sm:$0xff]
        %v820 = vld [vmem:[#allocation2 + $0xfe8] sm:$0xff]
        %v821 = vld [vmem:[#allocation2 + $0xff0] sm:$0xff]
        %v822 = vld [vmem:[#allocation2 + $0xff8] sm:$0xff]
        %v823 = vld [vmem:[#allocation2 + $0x1000] sm:$0xff]
        %v824 = vld [vmem:[#allocation2 + $0x1008] sm:$0xff]
        %v825 = vld [vmem:[#allocation2 + $0x1010] sm:$0xff]
        %v826 = vld [vmem:[#allocation2 + $0x1018] sm:$0xff]
        %v827 = vld [vmem:[#allocation2 + $0x1020] sm:$0xff]
        %v828 = vld [vmem:[#allocation2 + $0x1028] sm:$0xff]
        %v829 = vld [vmem:[#allocation2 + $0x1030] sm:$0xff]
        %v830 = vld [vmem:[#allocation2 + $0x1038] sm:$0xff]
        %v831 = vld [vmem:[#allocation2 + $0x1040] sm:$0xff]
        %v832 = vld [vmem:[#allocation2 + $0x1048] sm:$0xff]
        %v833 = vld [vmem:[#allocation2 + $0x1050] sm:$0xff]
        %v834 = vld [vmem:[#allocation2 + $0x1058] sm:$0xff]
        %v835 = vld [vmem:[#allocation2 + $0x1060] sm:$0xff]
        %v836 = vld [vmem:[#allocation2 + $0x1068] sm:$0xff]
        %v837 = vld [vmem:[#allocation2 + $0x1070] sm:$0xff]
        %v838 = vld [vmem:[#allocation2 + $0x1078] sm:$0xff]
        %v839 = vld [vmem:[#allocation2 + $0x1080] sm:$0xff]
        %v840 = vld [vmem:[#allocation2 + $0x1088] sm:$0xff]
        %v841 = vld [vmem:[#allocation2 + $0x1090] sm:$0xff]
        %v842 = vld [vmem:[#allocation2 + $0x1098] sm:$0xff]
        %v843 = vld [vmem:[#allocation2 + $0x10a0] sm:$0xff]
        %v844 = vld [vmem:[#allocation2 + $0x10a8] sm:$0xff]
        %v845 = vld [vmem:[#allocation2 + $0x10b0] sm:$0xff]
        %v846 = vld [vmem:[#allocation2 + $0x10b8] sm:$0xff]
        %v847 = vld [vmem:[#allocation2 + $0x10c0] sm:$0xff]
        %v848 = vld [vmem:[#allocation2 + $0x10c8] sm:$0xff]
        %v849 = vld [vmem:[#allocation2 + $0x10d0] sm:$0xff]
        %v850 = vld [vmem:[#allocation2 + $0x10d8] sm:$0xff]
        %v851 = vld [vmem:[#allocation2 + $0x10e0] sm:$0xff]
        %v852 = vld [vmem:[#allocation2 + $0x10e8] sm:$0xff]
        %v853 = vld [vmem:[#allocation2 + $0x10f0] sm:$0xff]
        %v854 = vld [vmem:[#allocation2 + $0x10f8] sm:$0xff]
        %v855 = vld [vmem:[#allocation2 + $0x1100] sm:$0xff]
        %v856 = vld [vmem:[#allocation2 + $0x1108] sm:$0xff]
        %v857 = vld [vmem:[#allocation2 + $0x1110] sm:$0xff]
        %v858 = vld [vmem:[#allocation2 + $0x1118] sm:$0xff]
        %v859 = vld [vmem:[#allocation2 + $0x1120] sm:$0xff]
        %v860 = vld [vmem:[#allocation2 + $0x1128] sm:$0xff]
        %v861 = vld [vmem:[#allocation2 + $0x1130] sm:$0xff]
        %v862 = vld [vmem:[#allocation2 + $0x1138] sm:$0xff]
        %v863 = vld [vmem:[#allocation2 + $0x1140] sm:$0xff]
        %v864 = vld [vmem:[#allocation2 + $0x1148] sm:$0xff]
        %v865 = vld [vmem:[#allocation2 + $0x1150] sm:$0xff]
        %v866 = vld [vmem:[#allocation2 + $0x1158] sm:$0xff]
        %v867 = vld [vmem:[#allocation2 + $0x1160] sm:$0xff]
        %v868 = vld [vmem:[#allocation2 + $0x1168] sm:$0xff]
        %v869 = vld [vmem:[#allocation2 + $0x1170] sm:$0xff]
        %v870 = vld [vmem:[#allocation2 + $0x1178] sm:$0xff]
        %v871 = vld [vmem:[#allocation2 + $0x1180] sm:$0xff]
        %v872 = vld [vmem:[#allocation2 + $0x1188] sm:$0xff]
        %v873 = vld [vmem:[#allocation2 + $0x1190] sm:$0xff]
        %v874 = vld [vmem:[#allocation2 + $0x1198] sm:$0xff]
        %v875 = vld [vmem:[#allocation2 + $0x11a0] sm:$0xff]
        %v876 = vld [vmem:[#allocation2 + $0x11a8] sm:$0xff]
        %v877 = vld [vmem:[#allocation2 + $0x11b0] sm:$0xff]
        %v878 = vld [vmem:[#allocation2 + $0x11b8] sm:$0xff]
        %v879 = vld [vmem:[#allocation2 + $0x11c0] sm:$0xff]
        %v880 = vld [vmem:[#allocation2 + $0x11c8] sm:$0xff]
        %v881 = vld [vmem:[#allocation2 + $0x11d0] sm:$0xff]
        %v882 = vld [vmem:[#allocation2 + $0x11d8] sm:$0xff]
        %v883 = vld [vmem:[#allocation2 + $0x11e0] sm:$0xff]
        %v884 = vld [vmem:[#allocation2 + $0x11e8] sm:$0xff]
        %v885 = vld [vmem:[#allocation2 + $0x11f0] sm:$0xff]
        %v886 = vld [vmem:[#allocation2 + $0x11f8] sm:$0xff]
        %v887 = vld [vmem:[#allocation2 + $0x1200] sm:$0xff]
        %v888 = vld [vmem:[#allocation2 + $0x1208] sm:$0xff]
        %v889 = vld [vmem:[#allocation2 + $0x1210] sm:$0xff]
        %v890 = vld [vmem:[#allocation2 + $0x1218] sm:$0xff]
        %v891 = vld [vmem:[#allocation2 + $0x1220] sm:$0xff]
        %v892 = vld [vmem:[#allocation2 + $0x1228] sm:$0xff]
        %v893 = vld [vmem:[#allocation2 + $0x1230] sm:$0xff]
        %v894 = vld [vmem:[#allocation2 + $0x1238] sm:$0xff]
        %v895 = vld [vmem:[#allocation2 + $0x1240] sm:$0xff]
        %v896 = vld [vmem:[#allocation2 + $0x1248] sm:$0xff]
        %v897 = vld [vmem:[#allocation2 + $0x1250] sm:$0xff]
        %v898 = vld [vmem:[#allocation2 + $0x1258] sm:$0xff]
        %v899 = vld [vmem:[#allocation2 + $0x1260] sm:$0xff]
        %v900 = vld [vmem:[#allocation2 + $0x1268] sm:$0xff]
        %v901 = vld [vmem:[#allocation2 + $0x1270] sm:$0xff]
        %v902 = vld [vmem:[#allocation2 + $0x1278] sm:$0xff]
        %v903 = vld [vmem:[#allocation2 + $0x1280] sm:$0xff]
        %v904 = vld [vmem:[#allocation2 + $0x1288] sm:$0xff]
        %v905 = vld [vmem:[#allocation2 + $0x1290] sm:$0xff]
        %v906 = vld [vmem:[#allocation2 + $0x1298] sm:$0xff]
        %v907 = vld [vmem:[#allocation2 + $0x12a0] sm:$0xff]
        %v908 = vld [vmem:[#allocation2 + $0x12a8] sm:$0xff]
        %v909 = vld [vmem:[#allocation2 + $0x12b0] sm:$0xff]
        %v910 = vld [vmem:[#allocation2 + $0x12b8] sm:$0xff]
        %v911 = vld [vmem:[#allocation2 + $0x12c0] sm:$0xff]
        %v912 = vld [vmem:[#allocation2 + $0x12c8] sm:$0xff]
        %v913 = vld [vmem:[#allocation2 + $0x12d0] sm:$0xff]
        %v914 = vld [vmem:[#allocation2 + $0x12d8] sm:$0xff]
        %v915 = vld [vmem:[#allocation2 + $0x12e0] sm:$0xff]
        %v916 = vld [vmem:[#allocation2 + $0x12e8] sm:$0xff]
        %v917 = vld [vmem:[#allocation2 + $0x12f0] sm:$0xff]
        %v918 = vld [vmem:[#allocation2 + $0x12f8] sm:$0xff]
        %v919 = vld [vmem:[#allocation2 + $0x1300] sm:$0xff]
        %v920 = vld [vmem:[#allocation2 + $0x1308] sm:$0xff]
        %v921 = vld [vmem:[#allocation2 + $0x1310] sm:$0xff]
        %v922 = vld [vmem:[#allocation2 + $0x1318] sm:$0xff]
        %v923 = vld [vmem:[#allocation2 + $0x1320] sm:$0xff]
        %v924 = vld [vmem:[#allocation2 + $0x1328] sm:$0xff]
        %v925 = vld [vmem:[#allocation2 + $0x1330] sm:$0xff]
        %v926 = vld [vmem:[#allocation2 + $0x1338] sm:$0xff]
        %v927 = vld [vmem:[#allocation2 + $0x1340] sm:$0xff]
        %v928 = vld [vmem:[#allocation2 + $0x1348] sm:$0xff]
        %v929 = vld [vmem:[#allocation2 + $0x1350] sm:$0xff]
        %v930 = vld [vmem:[#allocation2 + $0x1358] sm:$0xff]
        %v931 = vld [vmem:[#allocation2 + $0x1360] sm:$0xff]
        %v932 = vld [vmem:[#allocation2 + $0x1368] sm:$0xff]
        %v933 = vld [vmem:[#allocation2 + $0x1370] sm:$0xff]
        %v934 = vld [vmem:[#allocation2 + $0x1378] sm:$0xff]
        %v935 = vld [vmem:[#allocation2 + $0x1380] sm:$0xff]
        %v936 = vld [vmem:[#allocation2 + $0x1388] sm:$0xff]
        %v937 = vld [vmem:[#allocation2 + $0x1390] sm:$0xff]
        %v938 = vld [vmem:[#allocation2 + $0x1398] sm:$0xff]
        %v939 = vld [vmem:[#allocation2 + $0x13a0] sm:$0xff]
        %v940 = vld [vmem:[#allocation2 + $0x13a8] sm:$0xff]
        %v941 = vld [vmem:[#allocation2 + $0x13b0] sm:$0xff]
        %v942 = vld [vmem:[#allocation2 + $0x13b8] sm:$0xff]
        %v943 = vld [vmem:[#allocation2 + $0x13c0] sm:$0xff]
        %v944 = vld [vmem:[#allocation2 + $0x13c8] sm:$0xff]
        %v945 = vld [vmem:[#allocation2 + $0x13d0] sm:$0xff]
        %v946 = vld [vmem:[#allocation2 + $0x13d8] sm:$0xff]
        %v947 = vld [vmem:[#allocation2 + $0x13e0] sm:$0xff]
        %v948 = vld [vmem:[#allocation2 + $0x13e8] sm:$0xff]
        %v949 = vld [vmem:[#allocation2 + $0x13f0] sm:$0xff]
        %v950 = vld [vmem:[#allocation2 + $0x13f8] sm:$0xff]
        %v951 = vld [vmem:[#allocation2 + $0x1400] sm:$0xff]
        %v952 = vld [vmem:[#allocation2 + $0x1408] sm:$0xff]
        %v953 = vld [vmem:[#allocation2 + $0x1410] sm:$0xff]
        %v954 = vld [vmem:[#allocation2 + $0x1418] sm:$0xff]
        %v955 = vld [vmem:[#allocation2 + $0x1420] sm:$0xff]
        %v956 = vld [vmem:[#allocation2 + $0x1428] sm:$0xff]
        %v957 = vld [vmem:[#allocation2 + $0x1430] sm:$0xff]
        %v958 = vld [vmem:[#allocation2 + $0x1438] sm:$0xff]
        %v959 = vld [vmem:[#allocation2 + $0x1440] sm:$0xff]
        %v960 = vld [vmem:[#allocation2 + $0x1448] sm:$0xff]
        %v961 = vld [vmem:[#allocation2 + $0x1450] sm:$0xff]
        %v962 = vld [vmem:[#allocation2 + $0x1458] sm:$0xff]
        %v963 = vld [vmem:[#allocation2 + $0x1460] sm:$0xff]
        %v964 = vld [vmem:[#allocation2 + $0x1468] sm:$0xff]
        %v965 = vld [vmem:[#allocation2 + $0x1470] sm:$0xff]
        %v966 = vld [vmem:[#allocation2 + $0x1478] sm:$0xff]
        %v967 = vld [vmem:[#allocation2 + $0x1480] sm:$0xff]
        %v968 = vld [vmem:[#allocation2 + $0x1488] sm:$0xff]
        %v969 = vld [vmem:[#allocation2 + $0x1490] sm:$0xff]
        %v970 = vld [vmem:[#allocation2 + $0x1498] sm:$0xff]
        %v971 = vld [vmem:[#allocation2 + $0x14a0] sm:$0xff]
        %v972 = vld [vmem:[#allocation2 + $0x14a8] sm:$0xff]
        %v973 = vld [vmem:[#allocation2 + $0x14b0] sm:$0xff]
        %v974 = vld [vmem:[#allocation2 + $0x14b8] sm:$0xff]
        %v975 = vld [vmem:[#allocation2 + $0x14c0] sm:$0xff]
        %v976 = vld [vmem:[#allocation2 + $0x14c8] sm:$0xff]
        %v977 = vld [vmem:[#allocation2 + $0x14d0] sm:$0xff]
        %v978 = vld [vmem:[#allocation2 + $0x14d8] sm:$0xff]
        %v979 = vld [vmem:[#allocation2 + $0x14e0] sm:$0xff]
        %v980 = vld [vmem:[#allocation2 + $0x14e8] sm:$0xff]
        %v981 = vld [vmem:[#allocation2 + $0x14f0] sm:$0xff]
        %v982 = vld [vmem:[#allocation2 + $0x14f8] sm:$0xff]
        %v983 = vld [vmem:[#allocation2 + $0x1500] sm:$0xff]
        %v984 = vld [vmem:[#allocation2 + $0x1508] sm:$0xff]
        %v985 = vld [vmem:[#allocation2 + $0x1510] sm:$0xff]
        %v986 = vld [vmem:[#allocation2 + $0x1518] sm:$0xff]
        %v987 = vld [vmem:[#allocation2 + $0x1520] sm:$0xff]
        %v988 = vld [vmem:[#allocation2 + $0x1528] sm:$0xff]
        %v989 = vld [vmem:[#allocation2 + $0x1530] sm:$0xff]
        %v990 = vld [vmem:[#allocation2 + $0x1538] sm:$0xff]
        %v991 = vld [vmem:[#allocation2 + $0x1540] sm:$0xff]
        %v992 = vld [vmem:[#allocation2 + $0x1548] sm:$0xff]
        %v993 = vld [vmem:[#allocation2 + $0x1550] sm:$0xff]
        %v994 = vld [vmem:[#allocation2 + $0x1558] sm:$0xff]
        %v995 = vld [vmem:[#allocation2 + $0x1560] sm:$0xff]
        %v996 = vld [vmem:[#allocation2 + $0x1568] sm:$0xff]
        %v997 = vld [vmem:[#allocation2 + $0x1570] sm:$0xff]
        %v998 = vld [vmem:[#allocation2 + $0x1578] sm:$0xff]
        %v999 = vld [vmem:[#allocation2 + $0x1580] sm:$0xff]
        %v1000 = vld [vmem:[#allocation2 + $0x1588] sm:$0xff]
        %v1001 = vld [vmem:[#allocation2 + $0x1590] sm:$0xff]
        %v1002 = vld [vmem:[#allocation2 + $0x1598] sm:$0xff]
        %v1003 = vld [vmem:[#allocation2 + $0x15a0] sm:$0xff]
        %v1004 = vld [vmem:[#allocation2 + $0x15a8] sm:$0xff]
        %v1005 = vld [vmem:[#allocation2 + $0x15b0] sm:$0xff]
        %v1006 = vld [vmem:[#allocation2 + $0x15b8] sm:$0xff]
        %v1007 = vld [vmem:[#allocation2 + $0x15c0] sm:$0xff]
        %v1008 = vld [vmem:[#allocation2 + $0x15c8] sm:$0xff]
        %v1009 = vld [vmem:[#allocation2 + $0x15d0] sm:$0xff]
        %v1010 = vld [vmem:[#allocation2 + $0x15d8] sm:$0xff]
        %v1011 = vld [vmem:[#allocation2 + $0x15e0] sm:$0xff]
        %v1012 = vld [vmem:[#allocation2 + $0x15e8] sm:$0xff]
        %v1013 = vld [vmem:[#allocation2 + $0x15f0] sm:$0xff]
        %v1014 = vld [vmem:[#allocation2 + $0x15f8] sm:$0xff]
        %v1015 = vld [vmem:[#allocation2 + $0x1600] sm:$0xff]
        %v1016 = vld [vmem:[#allocation2 + $0x1608] sm:$0xff]
        %v1017 = vld [vmem:[#allocation2 + $0x1610] sm:$0xff]
        %v1018 = vld [vmem:[#allocation2 + $0x1618] sm:$0xff]
        %v1019 = vld [vmem:[#allocation2 + $0x1620] sm:$0xff]
        %v1020 = vld [vmem:[#allocation2 + $0x1628] sm:$0xff]
        %v1021 = vld [vmem:[#allocation2 + $0x1630] sm:$0xff]
        %v1022 = vld [vmem:[#allocation2 + $0x1638] sm:$0xff]
        %v1023 = vld [vmem:[#allocation2 + $0x1640] sm:$0xff]
        %v1024 = vld [vmem:[#allocation2 + $0x1648] sm:$0xff]
        %v1025 = vld [vmem:[#allocation2 + $0x1650] sm:$0xff]
        %v1026 = vld [vmem:[#allocation2 + $0x1658] sm:$0xff]
        %v1027 = vld [vmem:[#allocation2 + $0x1660] sm:$0xff]
        %v1028 = vld [vmem:[#allocation2 + $0x1668] sm:$0xff]
        %v1029 = vld [vmem:[#allocation2 + $0x1670] sm:$0xff]
        %v1030 = vld [vmem:[#allocation2 + $0x1678] sm:$0xff]
        %v1031 = vld [vmem:[#allocation2 + $0x1680] sm:$0xff]
        %v1032 = vld [vmem:[#allocation2 + $0x1688] sm:$0xff]
        %v1033 = vld [vmem:[#allocation2 + $0x1690] sm:$0xff]
        %v1034 = vld [vmem:[#allocation2 + $0x1698] sm:$0xff]
        %v1035 = vld [vmem:[#allocation2 + $0x16a0] sm:$0xff]
        %v1036 = vld [vmem:[#allocation2 + $0x16a8] sm:$0xff]
        %v1037 = vld [vmem:[#allocation2 + $0x16b0] sm:$0xff]
        %v1038 = vld [vmem:[#allocation2 + $0x16b8] sm:$0xff]
        %v1039 = vld [vmem:[#allocation2 + $0x16c0] sm:$0xff]
        %v1040 = vld [vmem:[#allocation2 + $0x16c8] sm:$0xff]
        %v1041 = vld [vmem:[#allocation2 + $0x16d0] sm:$0xff]
        %v1042 = vld [vmem:[#allocation2 + $0x16d8] sm:$0xff]
        %v1043 = vld [vmem:[#allocation2 + $0x16e0] sm:$0xff]
        %v1044 = vld [vmem:[#allocation2 + $0x16e8] sm:$0xff]
        %v1045 = vld [vmem:[#allocation2 + $0x16f0] sm:$0xff]
        %v1046 = vld [vmem:[#allocation2 + $0x16f8] sm:$0xff]
        %v1047 = vld [vmem:[#allocation2 + $0x1700] sm:$0xff]
        %v1048 = vld [vmem:[#allocation2 + $0x1708] sm:$0xff]
        %v1049 = vld [vmem:[#allocation2 + $0x1710] sm:$0xff]
        %v1050 = vld [vmem:[#allocation2 + $0x1718] sm:$0xff]
        %v1051 = vld [vmem:[#allocation2 + $0x1720] sm:$0xff]
        %v1052 = vld [vmem:[#allocation2 + $0x1728] sm:$0xff]
        %v1053 = vld [vmem:[#allocation2 + $0x1730] sm:$0xff]
        %v1054 = vld [vmem:[#allocation2 + $0x1738] sm:$0xff]
        %v1055 = vld [vmem:[#allocation2 + $0x1740] sm:$0xff]
        %v1056 = vld [vmem:[#allocation2 + $0x1748] sm:$0xff]
        %v1057 = vld [vmem:[#allocation2 + $0x1750] sm:$0xff]
        %v1058 = vld [vmem:[#allocation2 + $0x1758] sm:$0xff]
        %v1059 = vld [vmem:[#allocation2 + $0x1760] sm:$0xff]
        %v1060 = vld [vmem:[#allocation2 + $0x1768] sm:$0xff]
        %v1061 = vld [vmem:[#allocation2 + $0x1770] sm:$0xff]
        %v1062 = vld [vmem:[#allocation2 + $0x1778] sm:$0xff]
        %v1063 = vld [vmem:[#allocation2 + $0x1780] sm:$0xff]
        %v1064 = vld [vmem:[#allocation2 + $0x1788] sm:$0xff]
        %v1065 = vld [vmem:[#allocation2 + $0x1790] sm:$0xff]
        %v1066 = vld [vmem:[#allocation2 + $0x1798] sm:$0xff]
        %v1067 = vld [vmem:[#allocation2 + $0x17a0] sm:$0xff]
        %v1068 = vld [vmem:[#allocation2 + $0x17a8] sm:$0xff]
        %v1069 = vld [vmem:[#allocation2 + $0x17b0] sm:$0xff]
        %v1070 = vld [vmem:[#allocation2 + $0x17b8] sm:$0xff]
        %v1071 = vld [vmem:[#allocation2 + $0x17c0] sm:$0xff]
        %v1072 = vld [vmem:[#allocation2 + $0x17c8] sm:$0xff]
        %v1073 = vld [vmem:[#allocation2 + $0x17d0] sm:$0xff]
        %v1074 = vld [vmem:[#allocation2 + $0x17d8] sm:$0xff]
        %v1075 = vld [vmem:[#allocation2 + $0x17e0] sm:$0xff]
        %v1076 = vld [vmem:[#allocation2 + $0x17e8] sm:$0xff]
        %v1077 = vld [vmem:[#allocation2 + $0x17f0] sm:$0xff]
        %v1078 = vld [vmem:[#allocation2 + $0x17f8] sm:$0xff]
        %v1079 = vld [vmem:[#allocation2 + $0x1800] sm:$0xff]
        %v1080 = vld [vmem:[#allocation2 + $0x1808] sm:$0xff]
        %v1081 = vld [vmem:[#allocation2 + $0x1810] sm:$0xff]
        %v1082 = vld [vmem:[#allocation2 + $0x1818] sm:$0xff]
        %v1083 = vld [vmem:[#allocation2 + $0x1820] sm:$0xff]
        %v1084 = vld [vmem:[#allocation2 + $0x1828] sm:$0xff]
        %v1085 = vld [vmem:[#allocation2 + $0x1830] sm:$0xff]
        %v1086 = vld [vmem:[#allocation2 + $0x1838] sm:$0xff]
        %v1087 = vld [vmem:[#allocation2 + $0x1840] sm:$0xff]
        %v1088 = vld [vmem:[#allocation2 + $0x1848] sm:$0xff]
        %v1089 = vld [vmem:[#allocation2 + $0x1850] sm:$0xff]
        %v1090 = vld [vmem:[#allocation2 + $0x1858] sm:$0xff]
        %v1091 = vld [vmem:[#allocation2 + $0x1860] sm:$0xff]
        %v1092 = vld [vmem:[#allocation2 + $0x1868] sm:$0xff]
        %v1093 = vld [vmem:[#allocation2 + $0x1870] sm:$0xff]
        %v1094 = vld [vmem:[#allocation2 + $0x1878] sm:$0xff]
        %v1095 = vld [vmem:[#allocation2 + $0x1880] sm:$0xff]
        %v1096 = vld [vmem:[#allocation2 + $0x1888] sm:$0xff]
        %v1097 = vld [vmem:[#allocation2 + $0x1890] sm:$0xff]
        %v1098 = vld [vmem:[#allocation2 + $0x1898] sm:$0xff]
        %v1099 = vld [vmem:[#allocation2 + $0x18a0] sm:$0xff]
        %v1100 = vld [vmem:[#allocation2 + $0x18a8] sm:$0xff]
        %v1101 = vld [vmem:[#allocation2 + $0x18b0] sm:$0xff]
        %v1102 = vld [vmem:[#allocation2 + $0x18b8] sm:$0xff]
        %v1103 = vld [vmem:[#allocation2 + $0x18c0] sm:$0xff]
        %v1104 = vld [vmem:[#allocation2 + $0x18c8] sm:$0xff]
        %v1105 = vld [vmem:[#allocation2 + $0x18d0] sm:$0xff]
        %v1106 = vld [vmem:[#allocation2 + $0x18d8] sm:$0xff]
        %v1107 = vld [vmem:[#allocation2 + $0x18e0] sm:$0xff]
        %v1108 = vld [vmem:[#allocation2 + $0x18e8] sm:$0xff]
        %v1109 = vld [vmem:[#allocation2 + $0x18f0] sm:$0xff]
        %v1110 = vld [vmem:[#allocation2 + $0x18f8] sm:$0xff]
        %v1111 = vld [vmem:[#allocation2 + $0x1900] sm:$0xff]
        %v1112 = vld [vmem:[#allocation2 + $0x1908] sm:$0xff]
        %v1113 = vld [vmem:[#allocation2 + $0x1910] sm:$0xff]
        %v1114 = vld [vmem:[#allocation2 + $0x1918] sm:$0xff]
        %v1115 = vld [vmem:[#allocation2 + $0x1920] sm:$0xff]
        %v1116 = vld [vmem:[#allocation2 + $0x1928] sm:$0xff]
        %v1117 = vld [vmem:[#allocation2 + $0x1930] sm:$0xff]
        %v1118 = vld [vmem:[#allocation2 + $0x1938] sm:$0xff]
        %v1119 = vld [vmem:[#allocation2 + $0x1940] sm:$0xff]
        %v1120 = vld [vmem:[#allocation2 + $0x1948] sm:$0xff]
        %v1121 = vld [vmem:[#allocation2 + $0x1950] sm:$0xff]
        %v1122 = vld [vmem:[#allocation2 + $0x1958] sm:$0xff]
        %v1123 = vld [vmem:[#allocation2 + $0x1960] sm:$0xff]
        %v1124 = vld [vmem:[#allocation2 + $0x1968] sm:$0xff]
        %v1125 = vld [vmem:[#allocation2 + $0x1970] sm:$0xff]
        %v1126 = vld [vmem:[#allocation2 + $0x1978] sm:$0xff]
        %v1127 = vld [vmem:[#allocation2 + $0x1980] sm:$0xff]
        %v1128 = vld [vmem:[#allocation2 + $0x1988] sm:$0xff]
        %v1129 = vld [vmem:[#allocation2 + $0x1990] sm:$0xff]
        %v1130 = vld [vmem:[#allocation2 + $0x1998] sm:$0xff]
        %v1131 = vld [vmem:[#allocation2 + $0x19a0] sm:$0xff]
        %v1132 = vld [vmem:[#allocation2 + $0x19a8] sm:$0xff]
        %v1133 = vld [vmem:[#allocation2 + $0x19b0] sm:$0xff]
        %v1134 = vld [vmem:[#allocation2 + $0x19b8] sm:$0xff]
        %v1135 = vld [vmem:[#allocation2 + $0x19c0] sm:$0xff]
        %v1136 = vld [vmem:[#allocation2 + $0x19c8] sm:$0xff]
        %v1137 = vld [vmem:[#allocation2 + $0x19d0] sm:$0xff]
        %v1138 = vld [vmem:[#allocation2 + $0x19d8] sm:$0xff]
        %v1139 = vld [vmem:[#allocation2 + $0x19e0] sm:$0xff]
        %v1140 = vld [vmem:[#allocation2 + $0x19e8] sm:$0xff]
        %v1141 = vld [vmem:[#allocation2 + $0x19f0] sm:$0xff]
        %v1142 = vld [vmem:[#allocation2 + $0x19f8] sm:$0xff]
        %v1143 = vld [vmem:[#allocation2 + $0x1a00] sm:$0xff]
        %v1144 = vld [vmem:[#allocation2 + $0x1a08] sm:$0xff]
        %v1145 = vld [vmem:[#allocation2 + $0x1a10] sm:$0xff]
        %v1146 = vld [vmem:[#allocation2 + $0x1a18] sm:$0xff]
        %v1147 = vld [vmem:[#allocation2 + $0x1a20] sm:$0xff]
        %v1148 = vld [vmem:[#allocation2 + $0x1a28] sm:$0xff]
        %v1149 = vld [vmem:[#allocation2 + $0x1a30] sm:$0xff]
        %v1150 = vld [vmem:[#allocation2 + $0x1a38] sm:$0xff]
        %v1151 = vld [vmem:[#allocation2 + $0x1a40] sm:$0xff]
        %v1152 = vld [vmem:[#allocation2 + $0x1a48] sm:$0xff]
        %v1153 = vld [vmem:[#allocation2 + $0x1a50] sm:$0xff]
        %v1154 = vld [vmem:[#allocation2 + $0x1a58] sm:$0xff]
        %v1155 = vld [vmem:[#allocation2 + $0x1a60] sm:$0xff]
        %v1156 = vld [vmem:[#allocation2 + $0x1a68] sm:$0xff]
        %v1157 = vld [vmem:[#allocation2 + $0x1a70] sm:$0xff]
        %v1158 = vld [vmem:[#allocation2 + $0x1a78] sm:$0xff]
        %v1159 = vld [vmem:[#allocation2 + $0x1a80] sm:$0xff]
        %v1160 = vld [vmem:[#allocation2 + $0x1a88] sm:$0xff]
        %v1161 = vld [vmem:[#allocation2 + $0x1a90] sm:$0xff]
        %v1162 = vld [vmem:[#allocation2 + $0x1a98] sm:$0xff]
        %v1163 = vld [vmem:[#allocation2 + $0x1aa0] sm:$0xff]
        %v1164 = vld [vmem:[#allocation2 + $0x1aa8] sm:$0xff]
        %v1165 = vld [vmem:[#allocation2 + $0x1ab0] sm:$0xff]
        %v1166 = vld [vmem:[#allocation2 + $0x1ab8] sm:$0xff]
        %v1167 = vld [vmem:[#allocation2 + $0x1ac0] sm:$0xff]
        %v1168 = vld [vmem:[#allocation2 + $0x1ac8] sm:$0xff]
        %v1169 = vld [vmem:[#allocation2 + $0x1ad0] sm:$0xff]
        %v1170 = vld [vmem:[#allocation2 + $0x1ad8] sm:$0xff]
        %v1171 = vld [vmem:[#allocation2 + $0x1ae0] sm:$0xff]
        %v1172 = vld [vmem:[#allocation2 + $0x1ae8] sm:$0xff]
        %v1173 = vld [vmem:[#allocation2 + $0x1af0] sm:$0xff]
        %v1174 = vld [vmem:[#allocation2 + $0x1af8] sm:$0xff]
        %v1175 = vld [vmem:[#allocation2 + $0x1b00] sm:$0xff]
        %v1176 = vld [vmem:[#allocation2 + $0x1b08] sm:$0xff]
        %v1177 = vld [vmem:[#allocation2 + $0x1b10] sm:$0xff]
        %v1178 = vld [vmem:[#allocation2 + $0x1b18] sm:$0xff]
        %v1179 = vld [vmem:[#allocation2 + $0x1b20] sm:$0xff]
        %v1180 = vld [vmem:[#allocation2 + $0x1b28] sm:$0xff]
        %v1181 = vld [vmem:[#allocation2 + $0x1b30] sm:$0xff]
        %v1182 = vld [vmem:[#allocation2 + $0x1b38] sm:$0xff]
        %v1183 = vld [vmem:[#allocation2 + $0x1b40] sm:$0xff]
        %v1184 = vld [vmem:[#allocation2 + $0x1b48] sm:$0xff]
        %v1185 = vld [vmem:[#allocation2 + $0x1b50] sm:$0xff]
        %v1186 = vld [vmem:[#allocation2 + $0x1b58] sm:$0xff]
        %v1187 = vld [vmem:[#allocation2 + $0x1b60] sm:$0xff]
        %v1188 = vld [vmem:[#allocation2 + $0x1b68] sm:$0xff]
        %v1189 = vld [vmem:[#allocation2 + $0x1b70] sm:$0xff]
        %v1190 = vld [vmem:[#allocation2 + $0x1b78] sm:$0xff]
        %v1191 = vld [vmem:[#allocation2 + $0x1b80] sm:$0xff]
        %v1192 = vld [vmem:[#allocation2 + $0x1b88] sm:$0xff]
        %v1193 = vld [vmem:[#allocation2 + $0x1b90] sm:$0xff]
        %v1194 = vld [vmem:[#allocation2 + $0x1b98] sm:$0xff]
        %v1195 = vld [vmem:[#allocation2 + $0x1ba0] sm:$0xff]
        %v1196 = vld [vmem:[#allocation2 + $0x1ba8] sm:$0xff]
        %v1197 = vld [vmem:[#allocation2 + $0x1bb0] sm:$0xff]
        %v1198 = vld [vmem:[#allocation2 + $0x1bb8] sm:$0xff]
        %v1199 = vld [vmem:[#allocation2 + $0x1bc0] sm:$0xff]
        %v1200 = vld [vmem:[#allocation2 + $0x1bc8] sm:$0xff]
        %v1201 = vld [vmem:[#allocation2 + $0x1bd0] sm:$0xff]
        %v1202 = vld [vmem:[#allocation2 + $0x1bd8] sm:$0xff]
        %v1203 = vld [vmem:[#allocation2 + $0x1be0] sm:$0xff]
        %v1204 = vld [vmem:[#allocation2 + $0x1be8] sm:$0xff]
        %v1205 = vld [vmem:[#allocation2 + $0x1bf0] sm:$0xff]
        %v1206 = vld [vmem:[#allocation2 + $0x1bf8] sm:$0xff]
        %v1207 = vld [vmem:[#allocation2 + $0x1c00] sm:$0xff]
        %v1208 = vld [vmem:[#allocation2 + $0x1c08] sm:$0xff]
        %v1209 = vld [vmem:[#allocation2 + $0x1c10] sm:$0xff]
        %v1210 = vld [vmem:[#allocation2 + $0x1c18] sm:$0xff]
        %v1211 = vld [vmem:[#allocation2 + $0x1c20] sm:$0xff]
        %v1212 = vld [vmem:[#allocation2 + $0x1c28] sm:$0xff]
        %v1213 = vld [vmem:[#allocation2 + $0x1c30] sm:$0xff]
        %v1214 = vld [vmem:[#allocation2 + $0x1c38] sm:$0xff]
        %v1215 = vld [vmem:[#allocation2 + $0x1c40] sm:$0xff]
        %v1216 = vld [vmem:[#allocation2 + $0x1c48] sm:$0xff]
        %v1217 = vld [vmem:[#allocation2 + $0x1c50] sm:$0xff]
        %v1218 = vld [vmem:[#allocation2 + $0x1c58] sm:$0xff]
        %v1219 = vld [vmem:[#allocation2 + $0x1c60] sm:$0xff]
        %v1220 = vld [vmem:[#allocation2 + $0x1c68] sm:$0xff]
        %v1221 = vld [vmem:[#allocation2 + $0x1c70] sm:$0xff]
        %v1222 = vld [vmem:[#allocation2 + $0x1c78] sm:$0xff]
        %v1223 = vld [vmem:[#allocation2 + $0x1c80] sm:$0xff]
        %v1224 = vld [vmem:[#allocation2 + $0x1c88] sm:$0xff]
        %v1225 = vld [vmem:[#allocation2 + $0x1c90] sm:$0xff]
        %v1226 = vld [vmem:[#allocation2 + $0x1c98] sm:$0xff]
        %v1227 = vld [vmem:[#allocation2 + $0x1ca0] sm:$0xff]
        %v1228 = vld [vmem:[#allocation2 + $0x1ca8] sm:$0xff]
        %v1229 = vld [vmem:[#allocation2 + $0x1cb0] sm:$0xff]
        %v1230 = vld [vmem:[#allocation2 + $0x1cb8] sm:$0xff]
        %v1231 = vld [vmem:[#allocation2 + $0x1cc0] sm:$0xff]
        %v1232 = vld [vmem:[#allocation2 + $0x1cc8] sm:$0xff]
        %v1233 = vld [vmem:[#allocation2 + $0x1cd0] sm:$0xff]
        %v1234 = vld [vmem:[#allocation2 + $0x1cd8] sm:$0xff]
        %v1235 = vld [vmem:[#allocation2 + $0x1ce0] sm:$0xff]
        %v1236 = vld [vmem:[#allocation2 + $0x1ce8] sm:$0xff]
        %v1237 = vld [vmem:[#allocation2 + $0x1cf0] sm:$0xff]
        %v1238 = vld [vmem:[#allocation2 + $0x1cf8] sm:$0xff]
        %v1239 = vld [vmem:[#allocation2 + $0x1d00] sm:$0xff]
        %v1240 = vld [vmem:[#allocation2 + $0x1d08] sm:$0xff]
        %v1241 = vld [vmem:[#allocation2 + $0x1d10] sm:$0xff]
        %v1242 = vld [vmem:[#allocation2 + $0x1d18] sm:$0xff]
        %v1243 = vld [vmem:[#allocation2 + $0x1d20] sm:$0xff]
        %v1244 = vld [vmem:[#allocation2 + $0x1d28] sm:$0xff]
        %v1245 = vld [vmem:[#allocation2 + $0x1d30] sm:$0xff]
        %v1246 = vld [vmem:[#allocation2 + $0x1d38] sm:$0xff]
        %v1247 = vld [vmem:[#allocation2 + $0x1d40] sm:$0xff]
        %v1248 = vld [vmem:[#allocation2 + $0x1d48] sm:$0xff]
        %v1249 = vld [vmem:[#allocation2 + $0x1d50] sm:$0xff]
        %v1250 = vld [vmem:[#allocation2 + $0x1d58] sm:$0xff]
        %v1251 = vld [vmem:[#allocation2 + $0x1d60] sm:$0xff]
        %v1252 = vld [vmem:[#allocation2 + $0x1d68] sm:$0xff]
        %v1253 = vld [vmem:[#allocation2 + $0x1d70] sm:$0xff]
        %v1254 = vld [vmem:[#allocation2 + $0x1d78] sm:$0xff]
        %v1255 = vld [vmem:[#allocation2 + $0x1d80] sm:$0xff]
        %v1256 = vld [vmem:[#allocation2 + $0x1d88] sm:$0xff]
        %v1257 = vld [vmem:[#allocation2 + $0x1d90] sm:$0xff]
        %v1258 = vld [vmem:[#allocation2 + $0x1d98] sm:$0xff]
        %v1259 = vld [vmem:[#allocation2 + $0x1da0] sm:$0xff]
        %v1260 = vld [vmem:[#allocation2 + $0x1da8] sm:$0xff]
        %v1261 = vld [vmem:[#allocation2 + $0x1db0] sm:$0xff]
        %v1262 = vld [vmem:[#allocation2 + $0x1db8] sm:$0xff]
        %v1263 = vld [vmem:[#allocation2 + $0x1dc0] sm:$0xff]
        %v1264 = vld [vmem:[#allocation2 + $0x1dc8] sm:$0xff]
        %v1265 = vld [vmem:[#allocation2 + $0x1dd0] sm:$0xff]
        %v1266 = vld [vmem:[#allocation2 + $0x1dd8] sm:$0xff]
        %v1267 = vld [vmem:[#allocation2 + $0x1de0] sm:$0xff]
        %v1268 = vld [vmem:[#allocation2 + $0x1de8] sm:$0xff]
        %v1269 = vld [vmem:[#allocation2 + $0x1df0] sm:$0xff]
        %v1270 = vld [vmem:[#allocation2 + $0x1df8] sm:$0xff]
        %v1271 = vld [vmem:[#allocation2 + $0x1e00] sm:$0xff]
        %v1272 = vld [vmem:[#allocation2 + $0x1e08] sm:$0xff]
        %v1273 = vld [vmem:[#allocation2 + $0x1e10] sm:$0xff]
        %v1274 = vld [vmem:[#allocation2 + $0x1e18] sm:$0xff]
        %v1275 = vld [vmem:[#allocation2 + $0x1e20] sm:$0xff]
        %v1276 = vld [vmem:[#allocation2 + $0x1e28] sm:$0xff]
        %v1277 = vld [vmem:[#allocation2 + $0x1e30] sm:$0xff]
        %v1278 = vld [vmem:[#allocation2 + $0x1e38] sm:$0xff]
        %v1279 = vld [vmem:[#allocation2 + $0x1e40] sm:$0xff]
        %v1280 = vld [vmem:[#allocation2 + $0x1e48] sm:$0xff]
        %v1281 = vld [vmem:[#allocation2 + $0x1e50] sm:$0xff]
        %v1282 = vld [vmem:[#allocation2 + $0x1e58] sm:$0xff]
        %v1283 = vld [vmem:[#allocation2 + $0x1e60] sm:$0xff]
        %v1284 = vld [vmem:[#allocation2 + $0x1e68] sm:$0xff]
        %v1285 = vld [vmem:[#allocation2 + $0x1e70] sm:$0xff]
        %v1286 = vld [vmem:[#allocation2 + $0x1e78] sm:$0xff]
        %v1287 = vld [vmem:[#allocation2 + $0x1e80] sm:$0xff]
        %v1288 = vld [vmem:[#allocation2 + $0x1e88] sm:$0xff]
        %v1289 = vld [vmem:[#allocation2 + $0x1e90] sm:$0xff]
        %v1290 = vld [vmem:[#allocation2 + $0x1e98] sm:$0xff]
        %v1291 = vld [vmem:[#allocation2 + $0x1ea0] sm:$0xff]
        %v1292 = vld [vmem:[#allocation2 + $0x1ea8] sm:$0xff]
        %v1293 = vld [vmem:[#allocation2 + $0x1eb0] sm:$0xff]
        %v1294 = vld [vmem:[#allocation2 + $0x1eb8] sm:$0xff]
        %v1295 = vld [vmem:[#allocation2 + $0x1ec0] sm:$0xff]
        %v1296 = vld [vmem:[#allocation2 + $0x1ec8] sm:$0xff]
        %v1297 = vld [vmem:[#allocation2 + $0x1ed0] sm:$0xff]
        %v1298 = vld [vmem:[#allocation2 + $0x1ed8] sm:$0xff]
        %v1299 = vld [vmem:[#allocation2 + $0x1ee0] sm:$0xff]
        %v1300 = vld [vmem:[#allocation2 + $0x1ee8] sm:$0xff]
        %v1301 = vld [vmem:[#allocation2 + $0x1ef0] sm:$0xff]
        %v1302 = vld [vmem:[#allocation2 + $0x1ef8] sm:$0xff]
        %v1303 = vld [vmem:[#allocation2 + $0x1f00] sm:$0xff]
        %v1304 = vld [vmem:[#allocation2 + $0x1f08] sm:$0xff]
        %v1305 = vld [vmem:[#allocation2 + $0x1f10] sm:$0xff]
        %v1306 = vld [vmem:[#allocation2 + $0x1f18] sm:$0xff]
        %v1307 = vld [vmem:[#allocation2 + $0x1f20] sm:$0xff]
        %v1308 = vld [vmem:[#allocation2 + $0x1f28] sm:$0xff]
        %v1309 = vld [vmem:[#allocation2 + $0x1f30] sm:$0xff]
        %v1310 = vld [vmem:[#allocation2 + $0x1f38] sm:$0xff]
        %v1311 = vld [vmem:[#allocation2 + $0x1f40] sm:$0xff]
        %v1312 = vld [vmem:[#allocation2 + $0x1f48] sm:$0xff]
        %v1313 = vld [vmem:[#allocation2 + $0x1f50] sm:$0xff]
        %v1314 = vld [vmem:[#allocation2 + $0x1f58] sm:$0xff]
        %v1315 = vld [vmem:[#allocation2 + $0x1f60] sm:$0xff]
        %v1316 = vld [vmem:[#allocation2 + $0x1f68] sm:$0xff]
        %v1317 = vld [vmem:[#allocation2 + $0x1f70] sm:$0xff]
        %v1318 = vld [vmem:[#allocation2 + $0x1f78] sm:$0xff]
        %v1319 = vld [vmem:[#allocation2 + $0x1f80] sm:$0xff]
        %v1320 = vld [vmem:[#allocation2 + $0x1f88] sm:$0xff]
        %v1321 = vld [vmem:[#allocation2 + $0x1f90] sm:$0xff]
        %v1322 = vld [vmem:[#allocation2 + $0x1f98] sm:$0xff]
        %v1323 = vld [vmem:[#allocation2 + $0x1fa0] sm:$0xff]
        %v1324 = vld [vmem:[#allocation2 + $0x1fa8] sm:$0xff]
        %v1325 = vld [vmem:[#allocation2 + $0x1fb0] sm:$0xff]
        %v1326 = vld [vmem:[#allocation2 + $0x1fb8] sm:$0xff]
        %v1327 = vld [vmem:[#allocation2 + $0x1fc0] sm:$0xff]
        %v1328 = vld [vmem:[#allocation2 + $0x1fc8] sm:$0xff]
        %v1329 = vld [vmem:[#allocation2 + $0x1fd0] sm:$0xff]
        %v1330 = vld [vmem:[#allocation2 + $0x1fd8] sm:$0xff]
        %v1331 = vld [vmem:[#allocation2 + $0x1fe0] sm:$0xff]
        %v1332 = vld [vmem:[#allocation2 + $0x1fe8] sm:$0xff]
        %v1333 = vld [vmem:[#allocation2 + $0x1ff0] sm:$0xff]
        %v1334 = vld [vmem:[#allocation2 + $0x1ff8] sm:$0xff]
        %v1335 = vld [vmem:[#allocation2 + $0x2000] sm:$0xff]
        %v1336 = vld [vmem:[#allocation2 + $0x2008] sm:$0xff]
        %v1337 = vld [vmem:[#allocation2 + $0x2010] sm:$0xff]
        %v1338 = vld [vmem:[#allocation2 + $0x2018] sm:$0xff]
        %v1339 = vld [vmem:[#allocation2 + $0x2020] sm:$0xff]
        %v1340 = vld [vmem:[#allocation2 + $0x2028] sm:$0xff]
        %v1341 = vld [vmem:[#allocation2 + $0x2030] sm:$0xff]
        %v1342 = vld [vmem:[#allocation2 + $0x2038] sm:$0xff]
        %v1343 = vld [vmem:[#allocation2 + $0x2040] sm:$0xff]
        %v1344 = vld [vmem:[#allocation2 + $0x2048] sm:$0xff]
        %v1345 = vld [vmem:[#allocation2 + $0x2050] sm:$0xff]
        %v1346 = vld [vmem:[#allocation2 + $0x2058] sm:$0xff]
        %v1347 = vld [vmem:[#allocation2 + $0x2060] sm:$0xff]
        %v1348 = vld [vmem:[#allocation2 + $0x2068] sm:$0xff]
        %v1349 = vld [vmem:[#allocation2 + $0x2070] sm:$0xff]
        %v1350 = vld [vmem:[#allocation2 + $0x2078] sm:$0xff]
        %v1351 = vld [vmem:[#allocation2 + $0x2080] sm:$0xff]
        %v1352 = vld [vmem:[#allocation2 + $0x2088] sm:$0xff]
        %v1353 = vld [vmem:[#allocation2 + $0x2090] sm:$0xff]
        %v1354 = vld [vmem:[#allocation2 + $0x2098] sm:$0xff]
        %v1355 = vld [vmem:[#allocation2 + $0x20a0] sm:$0xff]
        %v1356 = vld [vmem:[#allocation2 + $0x20a8] sm:$0xff]
        %v1357 = vld [vmem:[#allocation2 + $0x20b0] sm:$0xff]
        %v1358 = vld [vmem:[#allocation2 + $0x20b8] sm:$0xff]
        %v1359 = vld [vmem:[#allocation2 + $0x20c0] sm:$0xff]
        %v1360 = vld [vmem:[#allocation2 + $0x20c8] sm:$0xff]
        %v1361 = vld [vmem:[#allocation2 + $0x20d0] sm:$0xff]
        %v1362 = vld [vmem:[#allocation2 + $0x20d8] sm:$0xff]
        %v1363 = vld [vmem:[#allocation2 + $0x20e0] sm:$0xff]
        %v1364 = vld [vmem:[#allocation2 + $0x20e8] sm:$0xff]
        %v1365 = vld [vmem:[#allocation2 + $0x20f0] sm:$0xff]
        %v1366 = vld [vmem:[#allocation2 + $0x20f8] sm:$0xff]
        %v1367 = vld [vmem:[#allocation2 + $0x2100] sm:$0xff]
        %v1368 = vld [vmem:[#allocation2 + $0x2108] sm:$0xff]
        %v1369 = vld [vmem:[#allocation2 + $0x2110] sm:$0xff]
        %v1370 = vld [vmem:[#allocation2 + $0x2118] sm:$0xff]
        %v1371 = vld [vmem:[#allocation2 + $0x2120] sm:$0xff]
        %v1372 = vld [vmem:[#allocation2 + $0x2128] sm:$0xff]
        %v1373 = vld [vmem:[#allocation2 + $0x2130] sm:$0xff]
        %v1374 = vld [vmem:[#allocation2 + $0x2138] sm:$0xff]
        %v1375 = vld [vmem:[#allocation2 + $0x2140] sm:$0xff]
        %v1376 = vld [vmem:[#allocation2 + $0x2148] sm:$0xff]
        %v1377 = vld [vmem:[#allocation2 + $0x2150] sm:$0xff]
        %v1378 = vld [vmem:[#allocation2 + $0x2158] sm:$0xff]
        %v1379 = vld [vmem:[#allocation2 + $0x2160] sm:$0xff]
        %v1380 = vld [vmem:[#allocation2 + $0x2168] sm:$0xff]
        %v1381 = vld [vmem:[#allocation2 + $0x2170] sm:$0xff]
        %v1382 = vld [vmem:[#allocation2 + $0x2178] sm:$0xff]
        %v1383 = vld [vmem:[#allocation2 + $0x2180] sm:$0xff]
        %v1384 = vld [vmem:[#allocation2 + $0x2188] sm:$0xff]
        %v1385 = vld [vmem:[#allocation2 + $0x2190] sm:$0xff]
        %v1386 = vld [vmem:[#allocation2 + $0x2198] sm:$0xff]
        %v1387 = vld [vmem:[#allocation2 + $0x21a0] sm:$0xff]
        %v1388 = vld [vmem:[#allocation2 + $0x21a8] sm:$0xff]
        %v1389 = vld [vmem:[#allocation2 + $0x21b0] sm:$0xff]
        %v1390 = vld [vmem:[#allocation2 + $0x21b8] sm:$0xff]
        %v1391 = vld [vmem:[#allocation2 + $0x21c0] sm:$0xff]
        %v1392 = vld [vmem:[#allocation2 + $0x21c8] sm:$0xff]
        %v1393 = vld [vmem:[#allocation2 + $0x21d0] sm:$0xff]
        %v1394 = vld [vmem:[#allocation2 + $0x21d8] sm:$0xff]
        %v1395 = vld [vmem:[#allocation2 + $0x21e0] sm:$0xff]
        %v1396 = vld [vmem:[#allocation2 + $0x21e8] sm:$0xff]
        %v1397 = vld [vmem:[#allocation2 + $0x21f0] sm:$0xff]
        %v1398 = vld [vmem:[#allocation2 + $0x21f8] sm:$0xff]
        %v1399 = vld [vmem:[#allocation2 + $0x2200] sm:$0xff]
        %v1400 = vld [vmem:[#allocation2 + $0x2208] sm:$0xff]
        %v1401 = vld [vmem:[#allocation2 + $0x2210] sm:$0xff]
        %v1402 = vld [vmem:[#allocation2 + $0x2218] sm:$0xff]
        %v1403 = vld [vmem:[#allocation2 + $0x2220] sm:$0xff]
        %v1404 = vld [vmem:[#allocation2 + $0x2228] sm:$0xff]
        %v1405 = vld [vmem:[#allocation2 + $0x2230] sm:$0xff]
        %v1406 = vld [vmem:[#allocation2 + $0x2238] sm:$0xff]
        %v1407 = vld [vmem:[#allocation2 + $0x2240] sm:$0xff]
        %v1408 = vld [vmem:[#allocation2 + $0x2248] sm:$0xff]
        %v1409 = vld [vmem:[#allocation2 + $0x2250] sm:$0xff]
        %v1410 = vld [vmem:[#allocation2 + $0x2258] sm:$0xff]
        %v1411 = vld [vmem:[#allocation2 + $0x2260] sm:$0xff]
        %v1412 = vld [vmem:[#allocation2 + $0x2268] sm:$0xff]
        %v1413 = vld [vmem:[#allocation2 + $0x2270] sm:$0xff]
        %v1414 = vld [vmem:[#allocation2 + $0x2278] sm:$0xff]
        %v1415 = vld [vmem:[#allocation2 + $0x2280] sm:$0xff]
        %v1416 = vld [vmem:[#allocation2 + $0x2288] sm:$0xff]
        %v1417 = vld [vmem:[#allocation2 + $0x2290] sm:$0xff]
        %v1418 = vld [vmem:[#allocation2 + $0x2298] sm:$0xff]
        %v1419 = vld [vmem:[#allocation2 + $0x22a0] sm:$0xff]
        %v1420 = vld [vmem:[#allocation2 + $0x22a8] sm:$0xff]
        %v1421 = vld [vmem:[#allocation2 + $0x22b0] sm:$0xff]
        %v1422 = vld [vmem:[#allocation2 + $0x22b8] sm:$0xff]
        %v1423 = vld [vmem:[#allocation2 + $0x22c0] sm:$0xff]
        %v1424 = vld [vmem:[#allocation2 + $0x22c8] sm:$0xff]
        %v1425 = vld [vmem:[#allocation2 + $0x22d0] sm:$0xff]
        %v1426 = vld [vmem:[#allocation2 + $0x22d8] sm:$0xff]
        %v1427 = vld [vmem:[#allocation2 + $0x22e0] sm:$0xff]
        %v1428 = vld [vmem:[#allocation2 + $0x22e8] sm:$0xff]
        %v1429 = vld [vmem:[#allocation2 + $0x22f0] sm:$0xff]
        %v1430 = vld [vmem:[#allocation2 + $0x22f8] sm:$0xff]
        %v1431 = vld [vmem:[#allocation2 + $0x2300] sm:$0xff]
        %v1432 = vld [vmem:[#allocation2 + $0x2308] sm:$0xff]
        %v1433 = vld [vmem:[#allocation2 + $0x2310] sm:$0xff]
        %v1434 = vld [vmem:[#allocation2 + $0x2318] sm:$0xff]
        %v1435 = vld [vmem:[#allocation2 + $0x2320] sm:$0xff]
        %v1436 = vld [vmem:[#allocation2 + $0x2328] sm:$0xff]
        %v1437 = vld [vmem:[#allocation2 + $0x2330] sm:$0xff]
        %v1438 = vld [vmem:[#allocation2 + $0x2338] sm:$0xff]
        %v1439 = vld [vmem:[#allocation2 + $0x2340] sm:$0xff]
        %v1440 = vld [vmem:[#allocation2 + $0x2348] sm:$0xff]
        %v1441 = vld [vmem:[#allocation2 + $0x2350] sm:$0xff]
        %v1442 = vld [vmem:[#allocation2 + $0x2358] sm:$0xff]
        %v1443 = vld [vmem:[#allocation2 + $0x2360] sm:$0xff]
        %v1444 = vld [vmem:[#allocation2 + $0x2368] sm:$0xff]
        %v1445 = vld [vmem:[#allocation2 + $0x2370] sm:$0xff]
        %v1446 = vld [vmem:[#allocation2 + $0x2378] sm:$0xff]
        %v1447 = vld [vmem:[#allocation2 + $0x2380] sm:$0xff]
        %v1448 = vld [vmem:[#allocation2 + $0x2388] sm:$0xff]
        %v1449 = vld [vmem:[#allocation2 + $0x2390] sm:$0xff]
        %v1450 = vld [vmem:[#allocation2 + $0x2398] sm:$0xff]
        %v1451 = vld [vmem:[#allocation2 + $0x23a0] sm:$0xff]
        %v1452 = vld [vmem:[#allocation2 + $0x23a8] sm:$0xff]
        %v1453 = vld [vmem:[#allocation2 + $0x23b0] sm:$0xff]
        %v1454 = vld [vmem:[#allocation2 + $0x23b8] sm:$0xff]
        %v1455 = vld [vmem:[#allocation2 + $0x23c0] sm:$0xff]
        %v1456 = vld [vmem:[#allocation2 + $0x23c8] sm:$0xff]
        %v1457 = vld [vmem:[#allocation2 + $0x23d0] sm:$0xff]
        %v1458 = vld [vmem:[#allocation2 + $0x23d8] sm:$0xff]
        %v1459 = vld [vmem:[#allocation2 + $0x23e0] sm:$0xff]
        %v1460 = vld [vmem:[#allocation2 + $0x23e8] sm:$0xff]
        %v1461 = vld [vmem:[#allocation2 + $0x23f0] sm:$0xff]
        %v1462 = vld [vmem:[#allocation2 + $0x23f8] sm:$0xff]
        %v1463 = vld [vmem:[#allocation4] sm:$0x3f]
        %v1465 = vlaneseq
        %v1466 = vshrl.u32 %v1465, 7
        %v1467 = vsub.s32 0, %v1466
        %v1468 = vrot.slane %v1463, %v1467
        %v1469 = vlaneseq
        %v1470 = vshrl.u32 %v1469, 7
        %v1471 = vsub.s32 1, %v1470
        %v1472 = vrot.slane %v1463, %v1471
        %v1473 = vlaneseq
        %v1474 = vshrl.u32 %v1473, 7
        %v1475 = vsub.s32 2, %v1474
        %v1476 = vrot.slane %v1463, %v1475
        %v1477 = vlaneseq
        %v1478 = vshrl.u32 %v1477, 7
        %v1479 = vsub.s32 3, %v1478
        %v1480 = vrot.slane %v1463, %v1479
        %v1481 = vlaneseq
        %v1482 = vshrl.u32 %v1481, 7
        %v1483 = vsub.s32 4, %v1482
        %v1484 = vrot.slane %v1463, %v1483
        %v1485 = vlaneseq
        %v1486 = vshrl.u32 %v1485, 7
        %v1487 = vsub.s32 5, %v1486
        %v1488 = vrot.slane %v1463, %v1487
        %v1519 = vunpack.c.l.b16 %v287
        %v1520 = vunpack.c.h.b16 %v287
        %v1521 = vunpack.c.l.b16 %v288
        %v1522 = vunpack.c.h.b16 %v288
        %v1523 = vunpack.c.l.b16 %v289
        %v1524 = vunpack.c.h.b16 %v289
        %v1525 = vunpack.c.l.b16 %v290
        %v1526 = vunpack.c.h.b16 %v290
        %v1527 = vunpack.c.l.b16 %v291
        %v1528 = vunpack.c.h.b16 %v291
        %v1529 = vunpack.c.l.b16 %v292
        %v1530 = vunpack.c.h.b16 %v292
        %v1531 = vunpack.c.l.b16 %v293
        %v1532 = vunpack.c.h.b16 %v293
        %v1533 = vunpack.c.l.b16 %v294
        %v1534 = vunpack.c.h.b16 %v294
        %v1535 = vunpack.c.l.b16 %v295
        %v1536 = vunpack.c.h.b16 %v295
        %v1537 = vunpack.c.l.b16 %v296
        %v1538 = vunpack.c.h.b16 %v296
        %v1539 = vunpack.c.l.b16 %v297
        %v1540 = vunpack.c.h.b16 %v297
        %v1541 = vunpack.c.l.b16 %v298
        %v1542 = vunpack.c.h.b16 %v298
        %v1543 = vunpack.c.l.b16 %v299
        %v1544 = vunpack.c.h.b16 %v299
        %v1545 = vunpack.c.l.b16 %v300
        %v1546 = vunpack.c.h.b16 %v300
        %v1547 = vunpack.c.l.b16 %v301
        %v1548 = vunpack.c.h.b16 %v301
        %v1549 = vunpack.c.l.b16 %v302
        %v1550 = vunpack.c.h.b16 %v302
        %v1551 = vunpack.c.l.b16 %v303
        %v1552 = vunpack.c.h.b16 %v303
        %v1553 = vunpack.c.l.b16 %v304
        %v1554 = vunpack.c.h.b16 %v304
        %v1555 = vunpack.c.l.b16 %v305
        %v1556 = vunpack.c.h.b16 %v305
        %v1557 = vunpack.c.l.b16 %v306
        %v1558 = vunpack.c.h.b16 %v306
        %v1559 = vunpack.c.l.b16 %v307
        %v1560 = vunpack.c.h.b16 %v307
        %v1561 = vunpack.c.l.b16 %v308
        %v1562 = vunpack.c.h.b16 %v308
        %v1563 = vunpack.c.l.b16 %v309
        %v1564 = vunpack.c.h.b16 %v309
        %v1565 = vunpack.c.l.b16 %v310
        %v1566 = vunpack.c.h.b16 %v310
        %v1567 = vpack.c.b16 %v1543, %v1519
        %v1568 = vpack.c.b16 %v1544, %v1520
        %v1569 = vpack.c.b16 %v1545, %v1521
        %v1570 = vpack.c.b16 %v1546, %v1522
        %v1571 = vpack.c.b16 %v1547, %v1523
        %v1572 = vpack.c.b16 %v1548, %v1524
        %v1573 = vpack.c.b16 %v1549, %v1525
        %v1574 = vpack.c.b16 %v1550, %v1526
        %v1575 = vpack.c.b16 %v1551, %v1527
        %v1576 = vpack.c.b16 %v1552, %v1528
        %v1577 = vpack.c.b16 %v1553, %v1529
        %v1578 = vpack.c.b16 %v1554, %v1530
        %v1579 = vpack.c.b16 %v1555, %v1531
        %v1580 = vpack.c.b16 %v1556, %v1532
        %v1581 = vpack.c.b16 %v1557, %v1533
        %v1582 = vpack.c.b16 %v1558, %v1534
        %v1583 = vpack.c.b16 %v1559, %v1535
        %v1584 = vpack.c.b16 %v1560, %v1536
        %v1585 = vpack.c.b16 %v1561, %v1537
        %v1586 = vpack.c.b16 %v1562, %v1538
        %v1587 = vpack.c.b16 %v1563, %v1539
        %v1588 = vpack.c.b16 %v1564, %v1540
        %v1589 = vpack.c.b16 %v1565, %v1541
        %v1590 = vpack.c.b16 %v1566, %v1542
        %v2767 = vunpack.c.l.b16 %v311
        %v2768 = vunpack.c.h.b16 %v311
        %v2769 = vunpack.c.l.b16 %v312
        %v2770 = vunpack.c.h.b16 %v312
        %v2771 = vunpack.c.l.b16 %v313
        %v2772 = vunpack.c.h.b16 %v313
        %v2773 = vunpack.c.l.b16 %v314
        %v2774 = vunpack.c.h.b16 %v314
        %v2775 = vunpack.c.l.b16 %v315
        %v2776 = vunpack.c.h.b16 %v315
        %v2777 = vunpack.c.l.b16 %v316
        %v2778 = vunpack.c.h.b16 %v316
        %v2779 = vunpack.c.l.b16 %v317
        %v2780 = vunpack.c.h.b16 %v317
        %v2781 = vunpack.c.l.b16 %v318
        %v2782 = vunpack.c.h.b16 %v318
        %v2783 = vunpack.c.l.b16 %v319
        %v2784 = vunpack.c.h.b16 %v319
        %v2785 = vunpack.c.l.b16 %v320
        %v2786 = vunpack.c.h.b16 %v320
        %v2787 = vunpack.c.l.b16 %v321
        %v2788 = vunpack.c.h.b16 %v321
        %v2789 = vunpack.c.l.b16 %v322
        %v2790 = vunpack.c.h.b16 %v322
        %v2791 = vunpack.c.l.b16 %v323
        %v2792 = vunpack.c.h.b16 %v323
        %v2793 = vunpack.c.l.b16 %v324
        %v2794 = vunpack.c.h.b16 %v324
        %v2795 = vunpack.c.l.b16 %v325
        %v2796 = vunpack.c.h.b16 %v325
        %v2797 = vunpack.c.l.b16 %v326
        %v2798 = vunpack.c.h.b16 %v326
        %v2799 = vunpack.c.l.b16 %v327
        %v2800 = vunpack.c.h.b16 %v327
        %v2801 = vunpack.c.l.b16 %v328
        %v2802 = vunpack.c.h.b16 %v328
        %v2803 = vunpack.c.l.b16 %v329
        %v2804 = vunpack.c.h.b16 %v329
        %v2805 = vunpack.c.l.b16 %v330
        %v2806 = vunpack.c.h.b16 %v330
        %v2807 = vunpack.c.l.b16 %v331
        %v2808 = vunpack.c.h.b16 %v331
        %v2809 = vunpack.c.l.b16 %v332
        %v2810 = vunpack.c.h.b16 %v332
        %v2811 = vunpack.c.l.b16 %v333
        %v2812 = vunpack.c.h.b16 %v333
        %v2813 = vunpack.c.l.b16 %v334
        %v2814 = vunpack.c.h.b16 %v334
        %v2815 = vunpack.c.l.b16 %v335
        %v2816 = vunpack.c.h.b16 %v335
        %v2817 = vunpack.c.l.b16 %v336
        %v2818 = vunpack.c.h.b16 %v336
        %v2819 = vunpack.c.l.b16 %v337
        %v2820 = vunpack.c.h.b16 %v337
        %v2821 = vunpack.c.l.b16 %v338
        %v2822 = vunpack.c.h.b16 %v338
        %v2823 = vunpack.c.l.b16 %v339
        %v2824 = vunpack.c.h.b16 %v339
        %v2825 = vunpack.c.l.b16 %v340
        %v2826 = vunpack.c.h.b16 %v340
        %v2827 = vunpack.c.l.b16 %v341
        %v2828 = vunpack.c.h.b16 %v341
        %v2829 = vunpack.c.l.b16 %v342
        %v2830 = vunpack.c.h.b16 %v342
        %v2831 = vunpack.c.l.b16 %v343
        %v2832 = vunpack.c.h.b16 %v343
        %v2833 = vunpack.c.l.b16 %v344
        %v2834 = vunpack.c.h.b16 %v344
        %v2835 = vunpack.c.l.b16 %v345
        %v2836 = vunpack.c.h.b16 %v345
        %v2837 = vunpack.c.l.b16 %v346
        %v2838 = vunpack.c.h.b16 %v346
        %v2839 = vunpack.c.l.b16 %v347
        %v2840 = vunpack.c.h.b16 %v347
        %v2841 = vunpack.c.l.b16 %v348
        %v2842 = vunpack.c.h.b16 %v348
        %v2843 = vunpack.c.l.b16 %v349
        %v2844 = vunpack.c.h.b16 %v349
        %v2845 = vunpack.c.l.b16 %v350
        %v2846 = vunpack.c.h.b16 %v350
        %v2847 = vunpack.c.l.b16 %v351
        %v2848 = vunpack.c.h.b16 %v351
        %v2849 = vunpack.c.l.b16 %v352
        %v2850 = vunpack.c.h.b16 %v352
        %v2851 = vunpack.c.l.b16 %v353
        %v2852 = vunpack.c.h.b16 %v353
        %v2853 = vunpack.c.l.b16 %v354
        %v2854 = vunpack.c.h.b16 %v354
        %v2855 = vunpack.c.l.b16 %v355
        %v2856 = vunpack.c.h.b16 %v355
        %v2857 = vunpack.c.l.b16 %v356
        %v2858 = vunpack.c.h.b16 %v356
        %v2859 = vunpack.c.l.b16 %v357
        %v2860 = vunpack.c.h.b16 %v357
        %v2861 = vunpack.c.l.b16 %v358
        %v2862 = vunpack.c.h.b16 %v358
        %v2863 = vunpack.c.l.b16 %v359
        %v2864 = vunpack.c.h.b16 %v359
        %v2865 = vunpack.c.l.b16 %v360
        %v2866 = vunpack.c.h.b16 %v360
        %v2867 = vunpack.c.l.b16 %v361
        %v2868 = vunpack.c.h.b16 %v361
        %v2869 = vunpack.c.l.b16 %v362
        %v2870 = vunpack.c.h.b16 %v362
        %v2871 = vunpack.c.l.b16 %v363
        %v2872 = vunpack.c.h.b16 %v363
        %v2873 = vunpack.c.l.b16 %v364
        %v2874 = vunpack.c.h.b16 %v364
        %v2875 = vunpack.c.l.b16 %v365
        %v2876 = vunpack.c.h.b16 %v365
        %v2877 = vunpack.c.l.b16 %v366
        %v2878 = vunpack.c.h.b16 %v366
        %v2879 = vunpack.c.l.b16 %v367
        %v2880 = vunpack.c.h.b16 %v367
        %v2881 = vunpack.c.l.b16 %v368
        %v2882 = vunpack.c.h.b16 %v368
        %v2883 = vunpack.c.l.b16 %v369
        %v2884 = vunpack.c.h.b16 %v369
        %v2885 = vunpack.c.l.b16 %v370
        %v2886 = vunpack.c.h.b16 %v370
        %v2887 = vunpack.c.l.b16 %v371
        %v2888 = vunpack.c.h.b16 %v371
        %v2889 = vunpack.c.l.b16 %v372
        %v2890 = vunpack.c.h.b16 %v372
        %v2891 = vunpack.c.l.b16 %v373
        %v2892 = vunpack.c.h.b16 %v373
        %v2893 = vunpack.c.l.b16 %v374
        %v2894 = vunpack.c.h.b16 %v374
        %v2895 = vunpack.c.l.b16 %v375
        %v2896 = vunpack.c.h.b16 %v375
        %v2897 = vunpack.c.l.b16 %v376
        %v2898 = vunpack.c.h.b16 %v376
        %v2899 = vunpack.c.l.b16 %v377
        %v2900 = vunpack.c.h.b16 %v377
        %v2901 = vunpack.c.l.b16 %v378
        %v2902 = vunpack.c.h.b16 %v378
        %v2903 = vunpack.c.l.b16 %v379
        %v2904 = vunpack.c.h.b16 %v379
        %v2905 = vunpack.c.l.b16 %v380
        %v2906 = vunpack.c.h.b16 %v380
        %v2907 = vunpack.c.l.b16 %v381
        %v2908 = vunpack.c.h.b16 %v381
        %v2909 = vunpack.c.l.b16 %v382
        %v2910 = vunpack.c.h.b16 %v382
        %v2911 = vunpack.c.l.b16 %v383
        %v2912 = vunpack.c.h.b16 %v383
        %v2913 = vunpack.c.l.b16 %v384
        %v2914 = vunpack.c.h.b16 %v384
        %v2915 = vunpack.c.l.b16 %v385
        %v2916 = vunpack.c.h.b16 %v385
        %v2917 = vunpack.c.l.b16 %v386
        %v2918 = vunpack.c.h.b16 %v386
        %v2919 = vunpack.c.l.b16 %v387
        %v2920 = vunpack.c.h.b16 %v387
        %v2921 = vunpack.c.l.b16 %v388
        %v2922 = vunpack.c.h.b16 %v388
        %v2923 = vunpack.c.l.b16 %v389
        %v2924 = vunpack.c.h.b16 %v389
        %v2925 = vunpack.c.l.b16 %v390
        %v2926 = vunpack.c.h.b16 %v390
        %v2927 = vunpack.c.l.b16 %v391
        %v2928 = vunpack.c.h.b16 %v391
        %v2929 = vunpack.c.l.b16 %v392
        %v2930 = vunpack.c.h.b16 %v392
        %v2931 = vunpack.c.l.b16 %v393
        %v2932 = vunpack.c.h.b16 %v393
        %v2933 = vunpack.c.l.b16 %v394
        %v2934 = vunpack.c.h.b16 %v394
        %v2935 = vunpack.c.l.b16 %v395
        %v2936 = vunpack.c.h.b16 %v395
        %v2937 = vunpack.c.l.b16 %v396
        %v2938 = vunpack.c.h.b16 %v396
        %v2939 = vunpack.c.l.b16 %v397
        %v2940 = vunpack.c.h.b16 %v397
        %v2941 = vunpack.c.l.b16 %v398
        %v2942 = vunpack.c.h.b16 %v398
        %v2943 = vunpack.c.l.b16 %v399
        %v2944 = vunpack.c.h.b16 %v399
        %v2945 = vunpack.c.l.b16 %v400
        %v2946 = vunpack.c.h.b16 %v400
        %v2947 = vunpack.c.l.b16 %v401
        %v2948 = vunpack.c.h.b16 %v401
        %v2949 = vunpack.c.l.b16 %v402
        %v2950 = vunpack.c.h.b16 %v402
        %v2951 = vunpack.c.l.b16 %v403
        %v2952 = vunpack.c.h.b16 %v403
        %v2953 = vunpack.c.l.b16 %v404
        %v2954 = vunpack.c.h.b16 %v404
        %v2955 = vunpack.c.l.b16 %v405
        %v2956 = vunpack.c.h.b16 %v405
        %v2957 = vunpack.c.l.b16 %v406
        %v2958 = vunpack.c.h.b16 %v406
        %v2959 = vunpack.c.l.b16 %v407
        %v2960 = vunpack.c.h.b16 %v407
        %v2961 = vunpack.c.l.b16 %v408
        %v2962 = vunpack.c.h.b16 %v408
        %v2963 = vunpack.c.l.b16 %v409
        %v2964 = vunpack.c.h.b16 %v409
        %v2965 = vunpack.c.l.b16 %v410
        %v2966 = vunpack.c.h.b16 %v410
        %v2967 = vunpack.c.l.b16 %v411
        %v2968 = vunpack.c.h.b16 %v411
        %v2969 = vunpack.c.l.b16 %v412
        %v2970 = vunpack.c.h.b16 %v412
        %v2971 = vunpack.c.l.b16 %v413
        %v2972 = vunpack.c.h.b16 %v413
        %v2973 = vunpack.c.l.b16 %v414
        %v2974 = vunpack.c.h.b16 %v414
        %v2975 = vunpack.c.l.b16 %v415
        %v2976 = vunpack.c.h.b16 %v415
        %v2977 = vunpack.c.l.b16 %v416
        %v2978 = vunpack.c.h.b16 %v416
        %v2979 = vunpack.c.l.b16 %v417
        %v2980 = vunpack.c.h.b16 %v417
        %v2981 = vunpack.c.l.b16 %v418
        %v2982 = vunpack.c.h.b16 %v418
        %v2983 = vunpack.c.l.b16 %v419
        %v2984 = vunpack.c.h.b16 %v419
        %v2985 = vunpack.c.l.b16 %v420
        %v2986 = vunpack.c.h.b16 %v420
        %v2987 = vunpack.c.l.b16 %v421
        %v2988 = vunpack.c.h.b16 %v421
        %v2989 = vunpack.c.l.b16 %v422
        %v2990 = vunpack.c.h.b16 %v422
        %v2991 = vunpack.c.l.b16 %v423
        %v2992 = vunpack.c.h.b16 %v423
        %v2993 = vunpack.c.l.b16 %v424
        %v2994 = vunpack.c.h.b16 %v424
        %v2995 = vunpack.c.l.b16 %v425
        %v2996 = vunpack.c.h.b16 %v425
        %v2997 = vunpack.c.l.b16 %v426
        %v2998 = vunpack.c.h.b16 %v426
        %v2999 = vunpack.c.l.b16 %v427
        %v3000 = vunpack.c.h.b16 %v427
        %v3001 = vunpack.c.l.b16 %v428
        %v3002 = vunpack.c.h.b16 %v428
        %v3003 = vunpack.c.l.b16 %v429
        %v3004 = vunpack.c.h.b16 %v429
        %v3005 = vunpack.c.l.b16 %v430
        %v3006 = vunpack.c.h.b16 %v430
        %v3007 = vunpack.c.l.b16 %v431
        %v3008 = vunpack.c.h.b16 %v431
        %v3009 = vunpack.c.l.b16 %v432
        %v3010 = vunpack.c.h.b16 %v432
        %v3011 = vunpack.c.l.b16 %v433
        %v3012 = vunpack.c.h.b16 %v433
        %v3013 = vunpack.c.l.b16 %v434
        %v3014 = vunpack.c.h.b16 %v434
        %v3015 = vunpack.c.l.b16 %v435
        %v3016 = vunpack.c.h.b16 %v435
        %v3017 = vunpack.c.l.b16 %v436
        %v3018 = vunpack.c.h.b16 %v436
        %v3019 = vunpack.c.l.b16 %v437
        %v3020 = vunpack.c.h.b16 %v437
        %v3021 = vunpack.c.l.b16 %v438
        %v3022 = vunpack.c.h.b16 %v438
        %v3023 = vunpack.c.l.b16 %v439
        %v3024 = vunpack.c.h.b16 %v439
        %v3025 = vunpack.c.l.b16 %v440
        %v3026 = vunpack.c.h.b16 %v440
        %v3027 = vunpack.c.l.b16 %v441
        %v3028 = vunpack.c.h.b16 %v441
        %v3029 = vunpack.c.l.b16 %v442
        %v3030 = vunpack.c.h.b16 %v442
        %v3031 = vunpack.c.l.b16 %v443
        %v3032 = vunpack.c.h.b16 %v443
        %v3033 = vunpack.c.l.b16 %v444
        %v3034 = vunpack.c.h.b16 %v444
        %v3035 = vunpack.c.l.b16 %v445
        %v3036 = vunpack.c.h.b16 %v445
        %v3037 = vunpack.c.l.b16 %v446
        %v3038 = vunpack.c.h.b16 %v446
        %v3039 = vunpack.c.l.b16 %v447
        %v3040 = vunpack.c.h.b16 %v447
        %v3041 = vunpack.c.l.b16 %v448
        %v3042 = vunpack.c.h.b16 %v448
        %v3043 = vunpack.c.l.b16 %v449
        %v3044 = vunpack.c.h.b16 %v449
        %v3045 = vunpack.c.l.b16 %v450
        %v3046 = vunpack.c.h.b16 %v450
        %v3047 = vunpack.c.l.b16 %v451
        %v3048 = vunpack.c.h.b16 %v451
        %v3049 = vunpack.c.l.b16 %v452
        %v3050 = vunpack.c.h.b16 %v452
        %v3051 = vunpack.c.l.b16 %v453
        %v3052 = vunpack.c.h.b16 %v453
        %v3053 = vunpack.c.l.b16 %v454
        %v3054 = vunpack.c.h.b16 %v454
        %v3055 = vunpack.c.l.b16 %v455
        %v3056 = vunpack.c.h.b16 %v455
        %v3057 = vunpack.c.l.b16 %v456
        %v3058 = vunpack.c.h.b16 %v456
        %v3059 = vunpack.c.l.b16 %v457
        %v3060 = vunpack.c.h.b16 %v457
        %v3061 = vunpack.c.l.b16 %v458
        %v3062 = vunpack.c.h.b16 %v458
        %v3063 = vunpack.c.l.b16 %v459
        %v3064 = vunpack.c.h.b16 %v459
        %v3065 = vunpack.c.l.b16 %v460
        %v3066 = vunpack.c.h.b16 %v460
        %v3067 = vunpack.c.l.b16 %v461
        %v3068 = vunpack.c.h.b16 %v461
        %v3069 = vunpack.c.l.b16 %v462
        %v3070 = vunpack.c.h.b16 %v462
        %v3071 = vunpack.c.l.b16 %v463
        %v3072 = vunpack.c.h.b16 %v463
        %v3073 = vunpack.c.l.b16 %v464
        %v3074 = vunpack.c.h.b16 %v464
        %v3075 = vunpack.c.l.b16 %v465
        %v3076 = vunpack.c.h.b16 %v465
        %v3077 = vunpack.c.l.b16 %v466
        %v3078 = vunpack.c.h.b16 %v466
        %v3079 = vunpack.c.l.b16 %v467
        %v3080 = vunpack.c.h.b16 %v467
        %v3081 = vunpack.c.l.b16 %v468
        %v3082 = vunpack.c.h.b16 %v468
        %v3083 = vunpack.c.l.b16 %v469
        %v3084 = vunpack.c.h.b16 %v469
        %v3085 = vunpack.c.l.b16 %v470
        %v3086 = vunpack.c.h.b16 %v470
        %v3087 = vunpack.c.l.b16 %v471
        %v3088 = vunpack.c.h.b16 %v471
        %v3089 = vunpack.c.l.b16 %v472
        %v3090 = vunpack.c.h.b16 %v472
        %v3091 = vunpack.c.l.b16 %v473
        %v3092 = vunpack.c.h.b16 %v473
        %v3093 = vunpack.c.l.b16 %v474
        %v3094 = vunpack.c.h.b16 %v474
        %v3095 = vunpack.c.l.b16 %v475
        %v3096 = vunpack.c.h.b16 %v475
        %v3097 = vunpack.c.l.b16 %v476
        %v3098 = vunpack.c.h.b16 %v476
        %v3099 = vunpack.c.l.b16 %v477
        %v3100 = vunpack.c.h.b16 %v477
        %v3101 = vunpack.c.l.b16 %v478
        %v3102 = vunpack.c.h.b16 %v478
        %v3103 = vunpack.c.l.b16 %v479
        %v3104 = vunpack.c.h.b16 %v479
        %v3105 = vunpack.c.l.b16 %v480
        %v3106 = vunpack.c.h.b16 %v480
        %v3107 = vunpack.c.l.b16 %v481
        %v3108 = vunpack.c.h.b16 %v481
        %v3109 = vunpack.c.l.b16 %v482
        %v3110 = vunpack.c.h.b16 %v482
        %v3111 = vunpack.c.l.b16 %v483
        %v3112 = vunpack.c.h.b16 %v483
        %v3113 = vunpack.c.l.b16 %v484
        %v3114 = vunpack.c.h.b16 %v484
        %v3115 = vunpack.c.l.b16 %v485
        %v3116 = vunpack.c.h.b16 %v485
        %v3117 = vunpack.c.l.b16 %v486
        %v3118 = vunpack.c.h.b16 %v486
        %v3119 = vunpack.c.l.b16 %v487
        %v3120 = vunpack.c.h.b16 %v487
        %v3121 = vunpack.c.l.b16 %v488
        %v3122 = vunpack.c.h.b16 %v488
        %v3123 = vunpack.c.l.b16 %v489
        %v3124 = vunpack.c.h.b16 %v489
        %v3125 = vunpack.c.l.b16 %v490
        %v3126 = vunpack.c.h.b16 %v490
        %v3127 = vunpack.c.l.b16 %v491
        %v3128 = vunpack.c.h.b16 %v491
        %v3129 = vunpack.c.l.b16 %v492
        %v3130 = vunpack.c.h.b16 %v492
        %v3131 = vunpack.c.l.b16 %v493
        %v3132 = vunpack.c.h.b16 %v493
        %v3133 = vunpack.c.l.b16 %v494
        %v3134 = vunpack.c.h.b16 %v494
        %v3135 = vunpack.c.l.b16 %v495
        %v3136 = vunpack.c.h.b16 %v495
        %v3137 = vunpack.c.l.b16 %v496
        %v3138 = vunpack.c.h.b16 %v496
        %v3139 = vunpack.c.l.b16 %v497
        %v3140 = vunpack.c.h.b16 %v497
        %v3141 = vunpack.c.l.b16 %v498
        %v3142 = vunpack.c.h.b16 %v498
        %v3143 = vunpack.c.l.b16 %v499
        %v3144 = vunpack.c.h.b16 %v499
        %v3145 = vunpack.c.l.b16 %v500
        %v3146 = vunpack.c.h.b16 %v500
        %v3147 = vunpack.c.l.b16 %v501
        %v3148 = vunpack.c.h.b16 %v501
        %v3149 = vunpack.c.l.b16 %v502
        %v3150 = vunpack.c.h.b16 %v502
        %v3151 = vunpack.c.l.b16 %v503
        %v3152 = vunpack.c.h.b16 %v503
        %v3153 = vunpack.c.l.b16 %v504
        %v3154 = vunpack.c.h.b16 %v504
        %v3155 = vunpack.c.l.b16 %v505
        %v3156 = vunpack.c.h.b16 %v505
        %v3157 = vunpack.c.l.b16 %v506
        %v3158 = vunpack.c.h.b16 %v506
        %v3159 = vunpack.c.l.b16 %v507
        %v3160 = vunpack.c.h.b16 %v507
        %v3161 = vunpack.c.l.b16 %v508
        %v3162 = vunpack.c.h.b16 %v508
        %v3163 = vunpack.c.l.b16 %v509
        %v3164 = vunpack.c.h.b16 %v509
        %v3165 = vunpack.c.l.b16 %v510
        %v3166 = vunpack.c.h.b16 %v510
        %v3167 = vunpack.c.l.b16 %v511
        %v3168 = vunpack.c.h.b16 %v511
        %v3169 = vunpack.c.l.b16 %v512
        %v3170 = vunpack.c.h.b16 %v512
        %v3171 = vunpack.c.l.b16 %v513
        %v3172 = vunpack.c.h.b16 %v513
        %v3173 = vunpack.c.l.b16 %v514
        %v3174 = vunpack.c.h.b16 %v514
        %v3175 = vunpack.c.l.b16 %v515
        %v3176 = vunpack.c.h.b16 %v515
        %v3177 = vunpack.c.l.b16 %v516
        %v3178 = vunpack.c.h.b16 %v516
        %v3179 = vunpack.c.l.b16 %v517
        %v3180 = vunpack.c.h.b16 %v517
        %v3181 = vunpack.c.l.b16 %v518
        %v3182 = vunpack.c.h.b16 %v518
        %v3183 = vunpack.c.l.b16 %v519
        %v3184 = vunpack.c.h.b16 %v519
        %v3185 = vunpack.c.l.b16 %v520
        %v3186 = vunpack.c.h.b16 %v520
        %v3187 = vunpack.c.l.b16 %v521
        %v3188 = vunpack.c.h.b16 %v521
        %v3189 = vunpack.c.l.b16 %v522
        %v3190 = vunpack.c.h.b16 %v522
        %v3191 = vunpack.c.l.b16 %v523
        %v3192 = vunpack.c.h.b16 %v523
        %v3193 = vunpack.c.l.b16 %v524
        %v3194 = vunpack.c.h.b16 %v524
        %v3195 = vunpack.c.l.b16 %v525
        %v3196 = vunpack.c.h.b16 %v525
        %v3197 = vunpack.c.l.b16 %v526
        %v3198 = vunpack.c.h.b16 %v526
        %v3199 = vunpack.c.l.b16 %v527
        %v3200 = vunpack.c.h.b16 %v527
        %v3201 = vunpack.c.l.b16 %v528
        %v3202 = vunpack.c.h.b16 %v528
        %v3203 = vunpack.c.l.b16 %v529
        %v3204 = vunpack.c.h.b16 %v529
        %v3205 = vunpack.c.l.b16 %v530
        %v3206 = vunpack.c.h.b16 %v530
        %v3207 = vunpack.c.l.b16 %v531
        %v3208 = vunpack.c.h.b16 %v531
        %v3209 = vunpack.c.l.b16 %v532
        %v3210 = vunpack.c.h.b16 %v532
        %v3211 = vunpack.c.l.b16 %v533
        %v3212 = vunpack.c.h.b16 %v533
        %v3213 = vunpack.c.l.b16 %v534
        %v3214 = vunpack.c.h.b16 %v534
        %v3215 = vunpack.c.l.b16 %v535
        %v3216 = vunpack.c.h.b16 %v535
        %v3217 = vunpack.c.l.b16 %v536
        %v3218 = vunpack.c.h.b16 %v536
        %v3219 = vunpack.c.l.b16 %v537
        %v3220 = vunpack.c.h.b16 %v537
        %v3221 = vunpack.c.l.b16 %v538
        %v3222 = vunpack.c.h.b16 %v538
        %v3223 = vunpack.c.l.b16 %v539
        %v3224 = vunpack.c.h.b16 %v539
        %v3225 = vunpack.c.l.b16 %v540
        %v3226 = vunpack.c.h.b16 %v540
        %v3227 = vunpack.c.l.b16 %v541
        %v3228 = vunpack.c.h.b16 %v541
        %v3229 = vunpack.c.l.b16 %v542
        %v3230 = vunpack.c.h.b16 %v542
        %v3231 = vunpack.c.l.b16 %v543
        %v3232 = vunpack.c.h.b16 %v543
        %v3233 = vunpack.c.l.b16 %v544
        %v3234 = vunpack.c.h.b16 %v544
        %v3235 = vunpack.c.l.b16 %v545
        %v3236 = vunpack.c.h.b16 %v545
        %v3237 = vunpack.c.l.b16 %v546
        %v3238 = vunpack.c.h.b16 %v546
        %v3239 = vunpack.c.l.b16 %v547
        %v3240 = vunpack.c.h.b16 %v547
        %v3241 = vunpack.c.l.b16 %v548
        %v3242 = vunpack.c.h.b16 %v548
        %v3243 = vunpack.c.l.b16 %v549
        %v3244 = vunpack.c.h.b16 %v549
        %v3245 = vunpack.c.l.b16 %v550
        %v3246 = vunpack.c.h.b16 %v550
        %v3247 = vunpack.c.l.b16 %v551
        %v3248 = vunpack.c.h.b16 %v551
        %v3249 = vunpack.c.l.b16 %v552
        %v3250 = vunpack.c.h.b16 %v552
        %v3251 = vunpack.c.l.b16 %v553
        %v3252 = vunpack.c.h.b16 %v553
        %v3253 = vunpack.c.l.b16 %v554
        %v3254 = vunpack.c.h.b16 %v554
        %v3255 = vunpack.c.l.b16 %v555
        %v3256 = vunpack.c.h.b16 %v555
        %v3257 = vunpack.c.l.b16 %v556
        %v3258 = vunpack.c.h.b16 %v556
        %v3259 = vunpack.c.l.b16 %v557
        %v3260 = vunpack.c.h.b16 %v557
        %v3261 = vunpack.c.l.b16 %v558
        %v3262 = vunpack.c.h.b16 %v558
        %v3263 = vunpack.c.l.b16 %v559
        %v3264 = vunpack.c.h.b16 %v559
        %v3265 = vunpack.c.l.b16 %v560
        %v3266 = vunpack.c.h.b16 %v560
        %v3267 = vunpack.c.l.b16 %v561
        %v3268 = vunpack.c.h.b16 %v561
        %v3269 = vunpack.c.l.b16 %v562
        %v3270 = vunpack.c.h.b16 %v562
        %v3271 = vunpack.c.l.b16 %v563
        %v3272 = vunpack.c.h.b16 %v563
        %v3273 = vunpack.c.l.b16 %v564
        %v3274 = vunpack.c.h.b16 %v564
        %v3275 = vunpack.c.l.b16 %v565
        %v3276 = vunpack.c.h.b16 %v565
        %v3277 = vunpack.c.l.b16 %v566
        %v3278 = vunpack.c.h.b16 %v566
        %v3279 = vunpack.c.l.b16 %v567
        %v3280 = vunpack.c.h.b16 %v567
        %v3281 = vunpack.c.l.b16 %v568
        %v3282 = vunpack.c.h.b16 %v568
        %v3283 = vunpack.c.l.b16 %v569
        %v3284 = vunpack.c.h.b16 %v569
        %v3285 = vunpack.c.l.b16 %v570
        %v3286 = vunpack.c.h.b16 %v570
        %v3287 = vunpack.c.l.b16 %v571
        %v3288 = vunpack.c.h.b16 %v571
        %v3289 = vunpack.c.l.b16 %v572
        %v3290 = vunpack.c.h.b16 %v572
        %v3291 = vunpack.c.l.b16 %v573
        %v3292 = vunpack.c.h.b16 %v573
        %v3293 = vunpack.c.l.b16 %v574
        %v3294 = vunpack.c.h.b16 %v574
        %v3295 = vunpack.c.l.b16 %v575
        %v3296 = vunpack.c.h.b16 %v575
        %v3297 = vunpack.c.l.b16 %v576
        %v3298 = vunpack.c.h.b16 %v576
        %v3299 = vunpack.c.l.b16 %v577
        %v3300 = vunpack.c.h.b16 %v577
        %v3301 = vunpack.c.l.b16 %v578
        %v3302 = vunpack.c.h.b16 %v578
        %v3303 = vunpack.c.l.b16 %v579
        %v3304 = vunpack.c.h.b16 %v579
        %v3305 = vunpack.c.l.b16 %v580
        %v3306 = vunpack.c.h.b16 %v580
        %v3307 = vunpack.c.l.b16 %v581
        %v3308 = vunpack.c.h.b16 %v581
        %v3309 = vunpack.c.l.b16 %v582
        %v3310 = vunpack.c.h.b16 %v582
        %v3311 = vunpack.c.l.b16 %v583
        %v3312 = vunpack.c.h.b16 %v583
        %v3313 = vunpack.c.l.b16 %v584
        %v3314 = vunpack.c.h.b16 %v584
        %v3315 = vunpack.c.l.b16 %v585
        %v3316 = vunpack.c.h.b16 %v585
        %v3317 = vunpack.c.l.b16 %v586
        %v3318 = vunpack.c.h.b16 %v586
        %v3319 = vunpack.c.l.b16 %v587
        %v3320 = vunpack.c.h.b16 %v587
        %v3321 = vunpack.c.l.b16 %v588
        %v3322 = vunpack.c.h.b16 %v588
        %v3323 = vunpack.c.l.b16 %v589
        %v3324 = vunpack.c.h.b16 %v589
        %v3325 = vunpack.c.l.b16 %v590
        %v3326 = vunpack.c.h.b16 %v590
        %v3327 = vunpack.c.l.b16 %v591
        %v3328 = vunpack.c.h.b16 %v591
        %v3329 = vunpack.c.l.b16 %v592
        %v3330 = vunpack.c.h.b16 %v592
        %v3331 = vunpack.c.l.b16 %v593
        %v3332 = vunpack.c.h.b16 %v593
        %v3333 = vunpack.c.l.b16 %v594
        %v3334 = vunpack.c.h.b16 %v594
        %v3335 = vunpack.c.l.b16 %v595
        %v3336 = vunpack.c.h.b16 %v595
        %v3337 = vunpack.c.l.b16 %v596
        %v3338 = vunpack.c.h.b16 %v596
        %v3339 = vunpack.c.l.b16 %v597
        %v3340 = vunpack.c.h.b16 %v597
        %v3341 = vunpack.c.l.b16 %v598
        %v3342 = vunpack.c.h.b16 %v598
        %v3343 = vunpack.c.l.b16 %v599
        %v3344 = vunpack.c.h.b16 %v599
        %v3345 = vunpack.c.l.b16 %v600
        %v3346 = vunpack.c.h.b16 %v600
        %v3347 = vunpack.c.l.b16 %v601
        %v3348 = vunpack.c.h.b16 %v601
        %v3349 = vunpack.c.l.b16 %v602
        %v3350 = vunpack.c.h.b16 %v602
        %v3351 = vunpack.c.l.b16 %v603
        %v3352 = vunpack.c.h.b16 %v603
        %v3353 = vunpack.c.l.b16 %v604
        %v3354 = vunpack.c.h.b16 %v604
        %v3355 = vunpack.c.l.b16 %v605
        %v3356 = vunpack.c.h.b16 %v605
        %v3357 = vunpack.c.l.b16 %v606
        %v3358 = vunpack.c.h.b16 %v606
        %v3359 = vunpack.c.l.b16 %v607
        %v3360 = vunpack.c.h.b16 %v607
        %v3361 = vunpack.c.l.b16 %v608
        %v3362 = vunpack.c.h.b16 %v608
        %v3363 = vunpack.c.l.b16 %v609
        %v3364 = vunpack.c.h.b16 %v609
        %v3365 = vunpack.c.l.b16 %v610
        %v3366 = vunpack.c.h.b16 %v610
        %v3367 = vunpack.c.l.b16 %v611
        %v3368 = vunpack.c.h.b16 %v611
        %v3369 = vunpack.c.l.b16 %v612
        %v3370 = vunpack.c.h.b16 %v612
        %v3371 = vunpack.c.l.b16 %v613
        %v3372 = vunpack.c.h.b16 %v613
        %v3373 = vunpack.c.l.b16 %v614
        %v3374 = vunpack.c.h.b16 %v614
        %v3375 = vunpack.c.l.b16 %v615
        %v3376 = vunpack.c.h.b16 %v615
        %v3377 = vunpack.c.l.b16 %v616
        %v3378 = vunpack.c.h.b16 %v616
        %v3379 = vunpack.c.l.b16 %v617
        %v3380 = vunpack.c.h.b16 %v617
        %v3381 = vunpack.c.l.b16 %v618
        %v3382 = vunpack.c.h.b16 %v618
        %v3383 = vunpack.c.l.b16 %v619
        %v3384 = vunpack.c.h.b16 %v619
        %v3385 = vunpack.c.l.b16 %v620
        %v3386 = vunpack.c.h.b16 %v620
        %v3387 = vunpack.c.l.b16 %v621
        %v3388 = vunpack.c.h.b16 %v621
        %v3389 = vunpack.c.l.b16 %v622
        %v3390 = vunpack.c.h.b16 %v622
        %v3391 = vunpack.c.l.b16 %v623
        %v3392 = vunpack.c.h.b16 %v623
        %v3393 = vunpack.c.l.b16 %v624
        %v3394 = vunpack.c.h.b16 %v624
        %v3395 = vunpack.c.l.b16 %v625
        %v3396 = vunpack.c.h.b16 %v625
        %v3397 = vunpack.c.l.b16 %v626
        %v3398 = vunpack.c.h.b16 %v626
        %v3399 = vunpack.c.l.b16 %v627
        %v3400 = vunpack.c.h.b16 %v627
        %v3401 = vunpack.c.l.b16 %v628
        %v3402 = vunpack.c.h.b16 %v628
        %v3403 = vunpack.c.l.b16 %v629
        %v3404 = vunpack.c.h.b16 %v629
        %v3405 = vunpack.c.l.b16 %v630
        %v3406 = vunpack.c.h.b16 %v630
        %v3407 = vunpack.c.l.b16 %v631
        %v3408 = vunpack.c.h.b16 %v631
        %v3409 = vunpack.c.l.b16 %v632
        %v3410 = vunpack.c.h.b16 %v632
        %v3411 = vunpack.c.l.b16 %v633
        %v3412 = vunpack.c.h.b16 %v633
        %v3413 = vunpack.c.l.b16 %v634
        %v3414 = vunpack.c.h.b16 %v634
        %v3415 = vunpack.c.l.b16 %v635
        %v3416 = vunpack.c.h.b16 %v635
        %v3417 = vunpack.c.l.b16 %v636
        %v3418 = vunpack.c.h.b16 %v636
        %v3419 = vunpack.c.l.b16 %v637
        %v3420 = vunpack.c.h.b16 %v637
        %v3421 = vunpack.c.l.b16 %v638
        %v3422 = vunpack.c.h.b16 %v638
        %v3423 = vunpack.c.l.b16 %v639
        %v3424 = vunpack.c.h.b16 %v639
        %v3425 = vunpack.c.l.b16 %v640
        %v3426 = vunpack.c.h.b16 %v640
        %v3427 = vunpack.c.l.b16 %v641
        %v3428 = vunpack.c.h.b16 %v641
        %v3429 = vunpack.c.l.b16 %v642
        %v3430 = vunpack.c.h.b16 %v642
        %v3431 = vunpack.c.l.b16 %v643
        %v3432 = vunpack.c.h.b16 %v643
        %v3433 = vunpack.c.l.b16 %v644
        %v3434 = vunpack.c.h.b16 %v644
        %v3435 = vunpack.c.l.b16 %v645
        %v3436 = vunpack.c.h.b16 %v645
        %v3437 = vunpack.c.l.b16 %v646
        %v3438 = vunpack.c.h.b16 %v646
        %v3439 = vunpack.c.l.b16 %v647
        %v3440 = vunpack.c.h.b16 %v647
        %v3441 = vunpack.c.l.b16 %v648
        %v3442 = vunpack.c.h.b16 %v648
        %v3443 = vunpack.c.l.b16 %v649
        %v3444 = vunpack.c.h.b16 %v649
        %v3445 = vunpack.c.l.b16 %v650
        %v3446 = vunpack.c.h.b16 %v650
        %v3447 = vunpack.c.l.b16 %v651
        %v3448 = vunpack.c.h.b16 %v651
        %v3449 = vunpack.c.l.b16 %v652
        %v3450 = vunpack.c.h.b16 %v652
        %v3451 = vunpack.c.l.b16 %v653
        %v3452 = vunpack.c.h.b16 %v653
        %v3453 = vunpack.c.l.b16 %v654
        %v3454 = vunpack.c.h.b16 %v654
        %v3455 = vunpack.c.l.b16 %v655
        %v3456 = vunpack.c.h.b16 %v655
        %v3457 = vunpack.c.l.b16 %v656
        %v3458 = vunpack.c.h.b16 %v656
        %v3459 = vunpack.c.l.b16 %v657
        %v3460 = vunpack.c.h.b16 %v657
        %v3461 = vunpack.c.l.b16 %v658
        %v3462 = vunpack.c.h.b16 %v658
        %v3463 = vunpack.c.l.b16 %v659
        %v3464 = vunpack.c.h.b16 %v659
        %v3465 = vunpack.c.l.b16 %v660
        %v3466 = vunpack.c.h.b16 %v660
        %v3467 = vunpack.c.l.b16 %v661
        %v3468 = vunpack.c.h.b16 %v661
        %v3469 = vunpack.c.l.b16 %v662
        %v3470 = vunpack.c.h.b16 %v662
        %v3471 = vunpack.c.l.b16 %v663
        %v3472 = vunpack.c.h.b16 %v663
        %v3473 = vunpack.c.l.b16 %v664
        %v3474 = vunpack.c.h.b16 %v664
        %v3475 = vunpack.c.l.b16 %v665
        %v3476 = vunpack.c.h.b16 %v665
        %v3477 = vunpack.c.l.b16 %v666
        %v3478 = vunpack.c.h.b16 %v666
        %v3479 = vunpack.c.l.b16 %v667
        %v3480 = vunpack.c.h.b16 %v667
        %v3481 = vunpack.c.l.b16 %v668
        %v3482 = vunpack.c.h.b16 %v668
        %v3483 = vunpack.c.l.b16 %v669
        %v3484 = vunpack.c.h.b16 %v669
        %v3485 = vunpack.c.l.b16 %v670
        %v3486 = vunpack.c.h.b16 %v670
        %v3487 = vunpack.c.l.b16 %v671
        %v3488 = vunpack.c.h.b16 %v671
        %v3489 = vunpack.c.l.b16 %v672
        %v3490 = vunpack.c.h.b16 %v672
        %v3491 = vunpack.c.l.b16 %v673
        %v3492 = vunpack.c.h.b16 %v673
        %v3493 = vunpack.c.l.b16 %v674
        %v3494 = vunpack.c.h.b16 %v674
        %v3495 = vunpack.c.l.b16 %v675
        %v3496 = vunpack.c.h.b16 %v675
        %v3497 = vunpack.c.l.b16 %v676
        %v3498 = vunpack.c.h.b16 %v676
        %v3499 = vunpack.c.l.b16 %v677
        %v3500 = vunpack.c.h.b16 %v677
        %v3501 = vunpack.c.l.b16 %v678
        %v3502 = vunpack.c.h.b16 %v678
        %v3503 = vunpack.c.l.b16 %v679
        %v3504 = vunpack.c.h.b16 %v679
        %v3505 = vunpack.c.l.b16 %v680
        %v3506 = vunpack.c.h.b16 %v680
        %v3507 = vunpack.c.l.b16 %v681
        %v3508 = vunpack.c.h.b16 %v681
        %v3509 = vunpack.c.l.b16 %v682
        %v3510 = vunpack.c.h.b16 %v682
        %v3511 = vunpack.c.l.b16 %v683
        %v3512 = vunpack.c.h.b16 %v683
        %v3513 = vunpack.c.l.b16 %v684
        %v3514 = vunpack.c.h.b16 %v684
        %v3515 = vunpack.c.l.b16 %v685
        %v3516 = vunpack.c.h.b16 %v685
        %v3517 = vunpack.c.l.b16 %v686
        %v3518 = vunpack.c.h.b16 %v686
        %v3519 = vunpack.c.l.b16 %v687
        %v3520 = vunpack.c.h.b16 %v687
        %v3521 = vunpack.c.l.b16 %v688
        %v3522 = vunpack.c.h.b16 %v688
        %v3523 = vunpack.c.l.b16 %v689
        %v3524 = vunpack.c.h.b16 %v689
        %v3525 = vunpack.c.l.b16 %v690
        %v3526 = vunpack.c.h.b16 %v690
        %v3527 = vunpack.c.l.b16 %v691
        %v3528 = vunpack.c.h.b16 %v691
        %v3529 = vunpack.c.l.b16 %v692
        %v3530 = vunpack.c.h.b16 %v692
        %v3531 = vunpack.c.l.b16 %v693
        %v3532 = vunpack.c.h.b16 %v693
        %v3533 = vunpack.c.l.b16 %v694
        %v3534 = vunpack.c.h.b16 %v694
        %v3535 = vunpack.c.l.b16 %v695
        %v3536 = vunpack.c.h.b16 %v695
        %v3537 = vunpack.c.l.b16 %v696
        %v3538 = vunpack.c.h.b16 %v696
        %v3539 = vunpack.c.l.b16 %v697
        %v3540 = vunpack.c.h.b16 %v697
        %v3541 = vunpack.c.l.b16 %v698
        %v3542 = vunpack.c.h.b16 %v698
        %v3543 = vunpack.c.l.b16 %v699
        %v3544 = vunpack.c.h.b16 %v699
        %v3545 = vunpack.c.l.b16 %v700
        %v3546 = vunpack.c.h.b16 %v700
        %v3547 = vunpack.c.l.b16 %v701
        %v3548 = vunpack.c.h.b16 %v701
        %v3549 = vunpack.c.l.b16 %v702
        %v3550 = vunpack.c.h.b16 %v702
        %v3551 = vunpack.c.l.b16 %v703
        %v3552 = vunpack.c.h.b16 %v703
        %v3553 = vunpack.c.l.b16 %v704
        %v3554 = vunpack.c.h.b16 %v704
        %v3555 = vunpack.c.l.b16 %v705
        %v3556 = vunpack.c.h.b16 %v705
        %v3557 = vunpack.c.l.b16 %v706
        %v3558 = vunpack.c.h.b16 %v706
        %v3559 = vunpack.c.l.b16 %v707
        %v3560 = vunpack.c.h.b16 %v707
        %v3561 = vunpack.c.l.b16 %v708
        %v3562 = vunpack.c.h.b16 %v708
        %v3563 = vunpack.c.l.b16 %v709
        %v3564 = vunpack.c.h.b16 %v709
        %v3565 = vunpack.c.l.b16 %v710
        %v3566 = vunpack.c.h.b16 %v710
        %v3567 = vunpack.c.l.b16 %v711
        %v3568 = vunpack.c.h.b16 %v711
        %v3569 = vunpack.c.l.b16 %v712
        %v3570 = vunpack.c.h.b16 %v712
        %v3571 = vunpack.c.l.b16 %v713
        %v3572 = vunpack.c.h.b16 %v713
        %v3573 = vunpack.c.l.b16 %v714
        %v3574 = vunpack.c.h.b16 %v714
        %v3575 = vunpack.c.l.b16 %v715
        %v3576 = vunpack.c.h.b16 %v715
        %v3577 = vunpack.c.l.b16 %v716
        %v3578 = vunpack.c.h.b16 %v716
        %v3579 = vunpack.c.l.b16 %v717
        %v3580 = vunpack.c.h.b16 %v717
        %v3581 = vunpack.c.l.b16 %v718
        %v3582 = vunpack.c.h.b16 %v718
        %v3583 = vunpack.c.l.b16 %v719
        %v3584 = vunpack.c.h.b16 %v719
        %v3585 = vunpack.c.l.b16 %v720
        %v3586 = vunpack.c.h.b16 %v720
        %v3587 = vunpack.c.l.b16 %v721
        %v3588 = vunpack.c.h.b16 %v721
        %v3589 = vunpack.c.l.b16 %v722
        %v3590 = vunpack.c.h.b16 %v722
        %v3591 = vunpack.c.l.b16 %v723
        %v3592 = vunpack.c.h.b16 %v723
        %v3593 = vunpack.c.l.b16 %v724
        %v3594 = vunpack.c.h.b16 %v724
        %v3595 = vunpack.c.l.b16 %v725
        %v3596 = vunpack.c.h.b16 %v725
        %v3597 = vunpack.c.l.b16 %v726
        %v3598 = vunpack.c.h.b16 %v726
        %v3599 = vunpack.c.l.b16 %v727
        %v3600 = vunpack.c.h.b16 %v727
        %v3601 = vunpack.c.l.b16 %v728
        %v3602 = vunpack.c.h.b16 %v728
        %v3603 = vunpack.c.l.b16 %v729
        %v3604 = vunpack.c.h.b16 %v729
        %v3605 = vunpack.c.l.b16 %v730
        %v3606 = vunpack.c.h.b16 %v730
        %v3607 = vunpack.c.l.b16 %v731
        %v3608 = vunpack.c.h.b16 %v731
        %v3609 = vunpack.c.l.b16 %v732
        %v3610 = vunpack.c.h.b16 %v732
        %v3611 = vunpack.c.l.b16 %v733
        %v3612 = vunpack.c.h.b16 %v733
        %v3613 = vunpack.c.l.b16 %v734
        %v3614 = vunpack.c.h.b16 %v734
        %v3615 = vunpack.c.l.b16 %v735
        %v3616 = vunpack.c.h.b16 %v735
        %v3617 = vunpack.c.l.b16 %v736
        %v3618 = vunpack.c.h.b16 %v736
        %v3619 = vunpack.c.l.b16 %v737
        %v3620 = vunpack.c.h.b16 %v737
        %v3621 = vunpack.c.l.b16 %v738
        %v3622 = vunpack.c.h.b16 %v738
        %v3623 = vunpack.c.l.b16 %v739
        %v3624 = vunpack.c.h.b16 %v739
        %v3625 = vunpack.c.l.b16 %v740
        %v3626 = vunpack.c.h.b16 %v740
        %v3627 = vunpack.c.l.b16 %v741
        %v3628 = vunpack.c.h.b16 %v741
        %v3629 = vunpack.c.l.b16 %v742
        %v3630 = vunpack.c.h.b16 %v742
        %v3631 = vunpack.c.l.b16 %v743
        %v3632 = vunpack.c.h.b16 %v743
        %v3633 = vunpack.c.l.b16 %v744
        %v3634 = vunpack.c.h.b16 %v744
        %v3635 = vunpack.c.l.b16 %v745
        %v3636 = vunpack.c.h.b16 %v745
        %v3637 = vunpack.c.l.b16 %v746
        %v3638 = vunpack.c.h.b16 %v746
        %v3639 = vunpack.c.l.b16 %v747
        %v3640 = vunpack.c.h.b16 %v747
        %v3641 = vunpack.c.l.b16 %v748
        %v3642 = vunpack.c.h.b16 %v748
        %v3643 = vunpack.c.l.b16 %v749
        %v3644 = vunpack.c.h.b16 %v749
        %v3645 = vunpack.c.l.b16 %v750
        %v3646 = vunpack.c.h.b16 %v750
        %v3647 = vunpack.c.l.b16 %v751
        %v3648 = vunpack.c.h.b16 %v751
        %v3649 = vunpack.c.l.b16 %v752
        %v3650 = vunpack.c.h.b16 %v752
        %v3651 = vunpack.c.l.b16 %v753
        %v3652 = vunpack.c.h.b16 %v753
        %v3653 = vunpack.c.l.b16 %v754
        %v3654 = vunpack.c.h.b16 %v754
        %v3655 = vunpack.c.l.b16 %v755
        %v3656 = vunpack.c.h.b16 %v755
        %v3657 = vunpack.c.l.b16 %v756
        %v3658 = vunpack.c.h.b16 %v756
        %v3659 = vunpack.c.l.b16 %v757
        %v3660 = vunpack.c.h.b16 %v757
        %v3661 = vunpack.c.l.b16 %v758
        %v3662 = vunpack.c.h.b16 %v758
        %v3663 = vunpack.c.l.b16 %v759
        %v3664 = vunpack.c.h.b16 %v759
        %v3665 = vunpack.c.l.b16 %v760
        %v3666 = vunpack.c.h.b16 %v760
        %v3667 = vunpack.c.l.b16 %v761
        %v3668 = vunpack.c.h.b16 %v761
        %v3669 = vunpack.c.l.b16 %v762
        %v3670 = vunpack.c.h.b16 %v762
        %v3671 = vunpack.c.l.b16 %v763
        %v3672 = vunpack.c.h.b16 %v763
        %v3673 = vunpack.c.l.b16 %v764
        %v3674 = vunpack.c.h.b16 %v764
        %v3675 = vunpack.c.l.b16 %v765
        %v3676 = vunpack.c.h.b16 %v765
        %v3677 = vunpack.c.l.b16 %v766
        %v3678 = vunpack.c.h.b16 %v766
        %v3679 = vunpack.c.l.b16 %v767
        %v3680 = vunpack.c.h.b16 %v767
        %v3681 = vunpack.c.l.b16 %v768
        %v3682 = vunpack.c.h.b16 %v768
        %v3683 = vunpack.c.l.b16 %v769
        %v3684 = vunpack.c.h.b16 %v769
        %v3685 = vunpack.c.l.b16 %v770
        %v3686 = vunpack.c.h.b16 %v770
        %v3687 = vunpack.c.l.b16 %v771
        %v3688 = vunpack.c.h.b16 %v771
        %v3689 = vunpack.c.l.b16 %v772
        %v3690 = vunpack.c.h.b16 %v772
        %v3691 = vunpack.c.l.b16 %v773
        %v3692 = vunpack.c.h.b16 %v773
        %v3693 = vunpack.c.l.b16 %v774
        %v3694 = vunpack.c.h.b16 %v774
        %v3695 = vunpack.c.l.b16 %v775
        %v3696 = vunpack.c.h.b16 %v775
        %v3697 = vunpack.c.l.b16 %v776
        %v3698 = vunpack.c.h.b16 %v776
        %v3699 = vunpack.c.l.b16 %v777
        %v3700 = vunpack.c.h.b16 %v777
        %v3701 = vunpack.c.l.b16 %v778
        %v3702 = vunpack.c.h.b16 %v778
        %v3703 = vunpack.c.l.b16 %v779
        %v3704 = vunpack.c.h.b16 %v779
        %v3705 = vunpack.c.l.b16 %v780
        %v3706 = vunpack.c.h.b16 %v780
        %v3707 = vunpack.c.l.b16 %v781
        %v3708 = vunpack.c.h.b16 %v781
        %v3709 = vunpack.c.l.b16 %v782
        %v3710 = vunpack.c.h.b16 %v782
        %v3711 = vunpack.c.l.b16 %v783
        %v3712 = vunpack.c.h.b16 %v783
        %v3713 = vunpack.c.l.b16 %v784
        %v3714 = vunpack.c.h.b16 %v784
        %v3715 = vunpack.c.l.b16 %v785
        %v3716 = vunpack.c.h.b16 %v785
        %v3717 = vunpack.c.l.b16 %v786
        %v3718 = vunpack.c.h.b16 %v786
        %v3719 = vunpack.c.l.b16 %v787
        %v3720 = vunpack.c.h.b16 %v787
        %v3721 = vunpack.c.l.b16 %v788
        %v3722 = vunpack.c.h.b16 %v788
        %v3723 = vunpack.c.l.b16 %v789
        %v3724 = vunpack.c.h.b16 %v789
        %v3725 = vunpack.c.l.b16 %v790
        %v3726 = vunpack.c.h.b16 %v790
        %v3727 = vunpack.c.l.b16 %v791
        %v3728 = vunpack.c.h.b16 %v791
        %v3729 = vunpack.c.l.b16 %v792
        %v3730 = vunpack.c.h.b16 %v792
        %v3731 = vunpack.c.l.b16 %v793
        %v3732 = vunpack.c.h.b16 %v793
        %v3733 = vunpack.c.l.b16 %v794
        %v3734 = vunpack.c.h.b16 %v794
        %v3735 = vunpack.c.l.b16 %v795
        %v3736 = vunpack.c.h.b16 %v795
        %v3737 = vunpack.c.l.b16 %v796
        %v3738 = vunpack.c.h.b16 %v796
        %v3739 = vunpack.c.l.b16 %v797
        %v3740 = vunpack.c.h.b16 %v797
        %v3741 = vunpack.c.l.b16 %v798
        %v3742 = vunpack.c.h.b16 %v798
        %v3743 = vunpack.c.l.b16 %v799
        %v3744 = vunpack.c.h.b16 %v799
        %v3745 = vunpack.c.l.b16 %v800
        %v3746 = vunpack.c.h.b16 %v800
        %v3747 = vunpack.c.l.b16 %v801
        %v3748 = vunpack.c.h.b16 %v801
        %v3749 = vunpack.c.l.b16 %v802
        %v3750 = vunpack.c.h.b16 %v802
        %v3751 = vunpack.c.l.b16 %v803
        %v3752 = vunpack.c.h.b16 %v803
        %v3753 = vunpack.c.l.b16 %v804
        %v3754 = vunpack.c.h.b16 %v804
        %v3755 = vunpack.c.l.b16 %v805
        %v3756 = vunpack.c.h.b16 %v805
        %v3757 = vunpack.c.l.b16 %v806
        %v3758 = vunpack.c.h.b16 %v806
        %v3759 = vunpack.c.l.b16 %v807
        %v3760 = vunpack.c.h.b16 %v807
        %v3761 = vunpack.c.l.b16 %v808
        %v3762 = vunpack.c.h.b16 %v808
        %v3763 = vunpack.c.l.b16 %v809
        %v3764 = vunpack.c.h.b16 %v809
        %v3765 = vunpack.c.l.b16 %v810
        %v3766 = vunpack.c.h.b16 %v810
        %v3767 = vunpack.c.l.b16 %v811
        %v3768 = vunpack.c.h.b16 %v811
        %v3769 = vunpack.c.l.b16 %v812
        %v3770 = vunpack.c.h.b16 %v812
        %v3771 = vunpack.c.l.b16 %v813
        %v3772 = vunpack.c.h.b16 %v813
        %v3773 = vunpack.c.l.b16 %v814
        %v3774 = vunpack.c.h.b16 %v814
        %v3775 = vunpack.c.l.b16 %v815
        %v3776 = vunpack.c.h.b16 %v815
        %v3777 = vunpack.c.l.b16 %v816
        %v3778 = vunpack.c.h.b16 %v816
        %v3779 = vunpack.c.l.b16 %v817
        %v3780 = vunpack.c.h.b16 %v817
        %v3781 = vunpack.c.l.b16 %v818
        %v3782 = vunpack.c.h.b16 %v818
        %v3783 = vunpack.c.l.b16 %v819
        %v3784 = vunpack.c.h.b16 %v819
        %v3785 = vunpack.c.l.b16 %v820
        %v3786 = vunpack.c.h.b16 %v820
        %v3787 = vunpack.c.l.b16 %v821
        %v3788 = vunpack.c.h.b16 %v821
        %v3789 = vunpack.c.l.b16 %v822
        %v3790 = vunpack.c.h.b16 %v822
        %v3791 = vunpack.c.l.b16 %v823
        %v3792 = vunpack.c.h.b16 %v823
        %v3793 = vunpack.c.l.b16 %v824
        %v3794 = vunpack.c.h.b16 %v824
        %v3795 = vunpack.c.l.b16 %v825
        %v3796 = vunpack.c.h.b16 %v825
        %v3797 = vunpack.c.l.b16 %v826
        %v3798 = vunpack.c.h.b16 %v826
        %v3799 = vunpack.c.l.b16 %v827
        %v3800 = vunpack.c.h.b16 %v827
        %v3801 = vunpack.c.l.b16 %v828
        %v3802 = vunpack.c.h.b16 %v828
        %v3803 = vunpack.c.l.b16 %v829
        %v3804 = vunpack.c.h.b16 %v829
        %v3805 = vunpack.c.l.b16 %v830
        %v3806 = vunpack.c.h.b16 %v830
        %v3807 = vunpack.c.l.b16 %v831
        %v3808 = vunpack.c.h.b16 %v831
        %v3809 = vunpack.c.l.b16 %v832
        %v3810 = vunpack.c.h.b16 %v832
        %v3811 = vunpack.c.l.b16 %v833
        %v3812 = vunpack.c.h.b16 %v833
        %v3813 = vunpack.c.l.b16 %v834
        %v3814 = vunpack.c.h.b16 %v834
        %v3815 = vunpack.c.l.b16 %v835
        %v3816 = vunpack.c.h.b16 %v835
        %v3817 = vunpack.c.l.b16 %v836
        %v3818 = vunpack.c.h.b16 %v836
        %v3819 = vunpack.c.l.b16 %v837
        %v3820 = vunpack.c.h.b16 %v837
        %v3821 = vunpack.c.l.b16 %v838
        %v3822 = vunpack.c.h.b16 %v838
        %v3823 = vunpack.c.l.b16 %v839
        %v3824 = vunpack.c.h.b16 %v839
        %v3825 = vunpack.c.l.b16 %v840
        %v3826 = vunpack.c.h.b16 %v840
        %v3827 = vunpack.c.l.b16 %v841
        %v3828 = vunpack.c.h.b16 %v841
        %v3829 = vunpack.c.l.b16 %v842
        %v3830 = vunpack.c.h.b16 %v842
        %v3831 = vunpack.c.l.b16 %v843
        %v3832 = vunpack.c.h.b16 %v843
        %v3833 = vunpack.c.l.b16 %v844
        %v3834 = vunpack.c.h.b16 %v844
        %v3835 = vunpack.c.l.b16 %v845
        %v3836 = vunpack.c.h.b16 %v845
        %v3837 = vunpack.c.l.b16 %v846
        %v3838 = vunpack.c.h.b16 %v846
        %v3839 = vunpack.c.l.b16 %v847
        %v3840 = vunpack.c.h.b16 %v847
        %v3841 = vunpack.c.l.b16 %v848
        %v3842 = vunpack.c.h.b16 %v848
        %v3843 = vunpack.c.l.b16 %v849
        %v3844 = vunpack.c.h.b16 %v849
        %v3845 = vunpack.c.l.b16 %v850
        %v3846 = vunpack.c.h.b16 %v850
        %v3847 = vunpack.c.l.b16 %v851
        %v3848 = vunpack.c.h.b16 %v851
        %v3849 = vunpack.c.l.b16 %v852
        %v3850 = vunpack.c.h.b16 %v852
        %v3851 = vunpack.c.l.b16 %v853
        %v3852 = vunpack.c.h.b16 %v853
        %v3853 = vunpack.c.l.b16 %v854
        %v3854 = vunpack.c.h.b16 %v854
        %v3855 = vunpack.c.l.b16 %v855
        %v3856 = vunpack.c.h.b16 %v855
        %v3857 = vunpack.c.l.b16 %v856
        %v3858 = vunpack.c.h.b16 %v856
        %v3859 = vunpack.c.l.b16 %v857
        %v3860 = vunpack.c.h.b16 %v857
        %v3861 = vunpack.c.l.b16 %v858
        %v3862 = vunpack.c.h.b16 %v858
        %v3863 = vunpack.c.l.b16 %v859
        %v3864 = vunpack.c.h.b16 %v859
        %v3865 = vunpack.c.l.b16 %v860
        %v3866 = vunpack.c.h.b16 %v860
        %v3867 = vunpack.c.l.b16 %v861
        %v3868 = vunpack.c.h.b16 %v861
        %v3869 = vunpack.c.l.b16 %v862
        %v3870 = vunpack.c.h.b16 %v862
        %v3871 = vunpack.c.l.b16 %v863
        %v3872 = vunpack.c.h.b16 %v863
        %v3873 = vunpack.c.l.b16 %v864
        %v3874 = vunpack.c.h.b16 %v864
        %v3875 = vunpack.c.l.b16 %v865
        %v3876 = vunpack.c.h.b16 %v865
        %v3877 = vunpack.c.l.b16 %v866
        %v3878 = vunpack.c.h.b16 %v866
        %v3879 = vunpack.c.l.b16 %v867
        %v3880 = vunpack.c.h.b16 %v867
        %v3881 = vunpack.c.l.b16 %v868
        %v3882 = vunpack.c.h.b16 %v868
        %v3883 = vunpack.c.l.b16 %v869
        %v3884 = vunpack.c.h.b16 %v869
        %v3885 = vunpack.c.l.b16 %v870
        %v3886 = vunpack.c.h.b16 %v870
        %v3887 = vunpack.c.l.b16 %v871
        %v3888 = vunpack.c.h.b16 %v871
        %v3889 = vunpack.c.l.b16 %v872
        %v3890 = vunpack.c.h.b16 %v872
        %v3891 = vunpack.c.l.b16 %v873
        %v3892 = vunpack.c.h.b16 %v873
        %v3893 = vunpack.c.l.b16 %v874
        %v3894 = vunpack.c.h.b16 %v874
        %v3895 = vunpack.c.l.b16 %v875
        %v3896 = vunpack.c.h.b16 %v875
        %v3897 = vunpack.c.l.b16 %v876
        %v3898 = vunpack.c.h.b16 %v876
        %v3899 = vunpack.c.l.b16 %v877
        %v3900 = vunpack.c.h.b16 %v877
        %v3901 = vunpack.c.l.b16 %v878
        %v3902 = vunpack.c.h.b16 %v878
        %v3903 = vunpack.c.l.b16 %v879
        %v3904 = vunpack.c.h.b16 %v879
        %v3905 = vunpack.c.l.b16 %v880
        %v3906 = vunpack.c.h.b16 %v880
        %v3907 = vunpack.c.l.b16 %v881
        %v3908 = vunpack.c.h.b16 %v881
        %v3909 = vunpack.c.l.b16 %v882
        %v3910 = vunpack.c.h.b16 %v882
        %v3911 = vunpack.c.l.b16 %v883
        %v3912 = vunpack.c.h.b16 %v883
        %v3913 = vunpack.c.l.b16 %v884
        %v3914 = vunpack.c.h.b16 %v884
        %v3915 = vunpack.c.l.b16 %v885
        %v3916 = vunpack.c.h.b16 %v885
        %v3917 = vunpack.c.l.b16 %v886
        %v3918 = vunpack.c.h.b16 %v886
        %v3919 = vunpack.c.l.b16 %v887
        %v3920 = vunpack.c.h.b16 %v887
        %v3921 = vunpack.c.l.b16 %v888
        %v3922 = vunpack.c.h.b16 %v888
        %v3923 = vunpack.c.l.b16 %v889
        %v3924 = vunpack.c.h.b16 %v889
        %v3925 = vunpack.c.l.b16 %v890
        %v3926 = vunpack.c.h.b16 %v890
        %v3927 = vunpack.c.l.b16 %v891
        %v3928 = vunpack.c.h.b16 %v891
        %v3929 = vunpack.c.l.b16 %v892
        %v3930 = vunpack.c.h.b16 %v892
        %v3931 = vunpack.c.l.b16 %v893
        %v3932 = vunpack.c.h.b16 %v893
        %v3933 = vunpack.c.l.b16 %v894
        %v3934 = vunpack.c.h.b16 %v894
        %v3935 = vunpack.c.l.b16 %v895
        %v3936 = vunpack.c.h.b16 %v895
        %v3937 = vunpack.c.l.b16 %v896
        %v3938 = vunpack.c.h.b16 %v896
        %v3939 = vunpack.c.l.b16 %v897
        %v3940 = vunpack.c.h.b16 %v897
        %v3941 = vunpack.c.l.b16 %v898
        %v3942 = vunpack.c.h.b16 %v898
        %v3943 = vunpack.c.l.b16 %v899
        %v3944 = vunpack.c.h.b16 %v899
        %v3945 = vunpack.c.l.b16 %v900
        %v3946 = vunpack.c.h.b16 %v900
        %v3947 = vunpack.c.l.b16 %v901
        %v3948 = vunpack.c.h.b16 %v901
        %v3949 = vunpack.c.l.b16 %v902
        %v3950 = vunpack.c.h.b16 %v902
        %v3951 = vunpack.c.l.b16 %v903
        %v3952 = vunpack.c.h.b16 %v903
        %v3953 = vunpack.c.l.b16 %v904
        %v3954 = vunpack.c.h.b16 %v904
        %v3955 = vunpack.c.l.b16 %v905
        %v3956 = vunpack.c.h.b16 %v905
        %v3957 = vunpack.c.l.b16 %v906
        %v3958 = vunpack.c.h.b16 %v906
        %v3959 = vunpack.c.l.b16 %v907
        %v3960 = vunpack.c.h.b16 %v907
        %v3961 = vunpack.c.l.b16 %v908
        %v3962 = vunpack.c.h.b16 %v908
        %v3963 = vunpack.c.l.b16 %v909
        %v3964 = vunpack.c.h.b16 %v909
        %v3965 = vunpack.c.l.b16 %v910
        %v3966 = vunpack.c.h.b16 %v910
        %v3967 = vunpack.c.l.b16 %v911
        %v3968 = vunpack.c.h.b16 %v911
        %v3969 = vunpack.c.l.b16 %v912
        %v3970 = vunpack.c.h.b16 %v912
        %v3971 = vunpack.c.l.b16 %v913
        %v3972 = vunpack.c.h.b16 %v913
        %v3973 = vunpack.c.l.b16 %v914
        %v3974 = vunpack.c.h.b16 %v914
        %v3975 = vunpack.c.l.b16 %v915
        %v3976 = vunpack.c.h.b16 %v915
        %v3977 = vunpack.c.l.b16 %v916
        %v3978 = vunpack.c.h.b16 %v916
        %v3979 = vunpack.c.l.b16 %v917
        %v3980 = vunpack.c.h.b16 %v917
        %v3981 = vunpack.c.l.b16 %v918
        %v3982 = vunpack.c.h.b16 %v918
        %v3983 = vunpack.c.l.b16 %v919
        %v3984 = vunpack.c.h.b16 %v919
        %v3985 = vunpack.c.l.b16 %v920
        %v3986 = vunpack.c.h.b16 %v920
        %v3987 = vunpack.c.l.b16 %v921
        %v3988 = vunpack.c.h.b16 %v921
        %v3989 = vunpack.c.l.b16 %v922
        %v3990 = vunpack.c.h.b16 %v922
        %v3991 = vunpack.c.l.b16 %v923
        %v3992 = vunpack.c.h.b16 %v923
        %v3993 = vunpack.c.l.b16 %v924
        %v3994 = vunpack.c.h.b16 %v924
        %v3995 = vunpack.c.l.b16 %v925
        %v3996 = vunpack.c.h.b16 %v925
        %v3997 = vunpack.c.l.b16 %v926
        %v3998 = vunpack.c.h.b16 %v926
        %v3999 = vunpack.c.l.b16 %v927
        %v4000 = vunpack.c.h.b16 %v927
        %v4001 = vunpack.c.l.b16 %v928
        %v4002 = vunpack.c.h.b16 %v928
        %v4003 = vunpack.c.l.b16 %v929
        %v4004 = vunpack.c.h.b16 %v929
        %v4005 = vunpack.c.l.b16 %v930
        %v4006 = vunpack.c.h.b16 %v930
        %v4007 = vunpack.c.l.b16 %v931
        %v4008 = vunpack.c.h.b16 %v931
        %v4009 = vunpack.c.l.b16 %v932
        %v4010 = vunpack.c.h.b16 %v932
        %v4011 = vunpack.c.l.b16 %v933
        %v4012 = vunpack.c.h.b16 %v933
        %v4013 = vunpack.c.l.b16 %v934
        %v4014 = vunpack.c.h.b16 %v934
        %v4015 = vunpack.c.l.b16 %v935
        %v4016 = vunpack.c.h.b16 %v935
        %v4017 = vunpack.c.l.b16 %v936
        %v4018 = vunpack.c.h.b16 %v936
        %v4019 = vunpack.c.l.b16 %v937
        %v4020 = vunpack.c.h.b16 %v937
        %v4021 = vunpack.c.l.b16 %v938
        %v4022 = vunpack.c.h.b16 %v938
        %v4023 = vunpack.c.l.b16 %v939
        %v4024 = vunpack.c.h.b16 %v939
        %v4025 = vunpack.c.l.b16 %v940
        %v4026 = vunpack.c.h.b16 %v940
        %v4027 = vunpack.c.l.b16 %v941
        %v4028 = vunpack.c.h.b16 %v941
        %v4029 = vunpack.c.l.b16 %v942
        %v4030 = vunpack.c.h.b16 %v942
        %v4031 = vunpack.c.l.b16 %v943
        %v4032 = vunpack.c.h.b16 %v943
        %v4033 = vunpack.c.l.b16 %v944
        %v4034 = vunpack.c.h.b16 %v944
        %v4035 = vunpack.c.l.b16 %v945
        %v4036 = vunpack.c.h.b16 %v945
        %v4037 = vunpack.c.l.b16 %v946
        %v4038 = vunpack.c.h.b16 %v946
        %v4039 = vunpack.c.l.b16 %v947
        %v4040 = vunpack.c.h.b16 %v947
        %v4041 = vunpack.c.l.b16 %v948
        %v4042 = vunpack.c.h.b16 %v948
        %v4043 = vunpack.c.l.b16 %v949
        %v4044 = vunpack.c.h.b16 %v949
        %v4045 = vunpack.c.l.b16 %v950
        %v4046 = vunpack.c.h.b16 %v950
        %v4047 = vunpack.c.l.b16 %v951
        %v4048 = vunpack.c.h.b16 %v951
        %v4049 = vunpack.c.l.b16 %v952
        %v4050 = vunpack.c.h.b16 %v952
        %v4051 = vunpack.c.l.b16 %v953
        %v4052 = vunpack.c.h.b16 %v953
        %v4053 = vunpack.c.l.b16 %v954
        %v4054 = vunpack.c.h.b16 %v954
        %v4055 = vunpack.c.l.b16 %v955
        %v4056 = vunpack.c.h.b16 %v955
        %v4057 = vunpack.c.l.b16 %v956
        %v4058 = vunpack.c.h.b16 %v956
        %v4059 = vunpack.c.l.b16 %v957
        %v4060 = vunpack.c.h.b16 %v957
        %v4061 = vunpack.c.l.b16 %v958
        %v4062 = vunpack.c.h.b16 %v958
        %v4063 = vunpack.c.l.b16 %v959
        %v4064 = vunpack.c.h.b16 %v959
        %v4065 = vunpack.c.l.b16 %v960
        %v4066 = vunpack.c.h.b16 %v960
        %v4067 = vunpack.c.l.b16 %v961
        %v4068 = vunpack.c.h.b16 %v961
        %v4069 = vunpack.c.l.b16 %v962
        %v4070 = vunpack.c.h.b16 %v962
        %v4071 = vunpack.c.l.b16 %v963
        %v4072 = vunpack.c.h.b16 %v963
        %v4073 = vunpack.c.l.b16 %v964
        %v4074 = vunpack.c.h.b16 %v964
        %v4075 = vunpack.c.l.b16 %v965
        %v4076 = vunpack.c.h.b16 %v965
        %v4077 = vunpack.c.l.b16 %v966
        %v4078 = vunpack.c.h.b16 %v966
        %v4079 = vunpack.c.l.b16 %v967
        %v4080 = vunpack.c.h.b16 %v967
        %v4081 = vunpack.c.l.b16 %v968
        %v4082 = vunpack.c.h.b16 %v968
        %v4083 = vunpack.c.l.b16 %v969
        %v4084 = vunpack.c.h.b16 %v969
        %v4085 = vunpack.c.l.b16 %v970
        %v4086 = vunpack.c.h.b16 %v970
        %v4087 = vunpack.c.l.b16 %v971
        %v4088 = vunpack.c.h.b16 %v971
        %v4089 = vunpack.c.l.b16 %v972
        %v4090 = vunpack.c.h.b16 %v972
        %v4091 = vunpack.c.l.b16 %v973
        %v4092 = vunpack.c.h.b16 %v973
        %v4093 = vunpack.c.l.b16 %v974
        %v4094 = vunpack.c.h.b16 %v974
        %v4095 = vunpack.c.l.b16 %v975
        %v4096 = vunpack.c.h.b16 %v975
        %v4097 = vunpack.c.l.b16 %v976
        %v4098 = vunpack.c.h.b16 %v976
        %v4099 = vunpack.c.l.b16 %v977
        %v4100 = vunpack.c.h.b16 %v977
        %v4101 = vunpack.c.l.b16 %v978
        %v4102 = vunpack.c.h.b16 %v978
        %v4103 = vunpack.c.l.b16 %v979
        %v4104 = vunpack.c.h.b16 %v979
        %v4105 = vunpack.c.l.b16 %v980
        %v4106 = vunpack.c.h.b16 %v980
        %v4107 = vunpack.c.l.b16 %v981
        %v4108 = vunpack.c.h.b16 %v981
        %v4109 = vunpack.c.l.b16 %v982
        %v4110 = vunpack.c.h.b16 %v982
        %v4111 = vunpack.c.l.b16 %v983
        %v4112 = vunpack.c.h.b16 %v983
        %v4113 = vunpack.c.l.b16 %v984
        %v4114 = vunpack.c.h.b16 %v984
        %v4115 = vunpack.c.l.b16 %v985
        %v4116 = vunpack.c.h.b16 %v985
        %v4117 = vunpack.c.l.b16 %v986
        %v4118 = vunpack.c.h.b16 %v986
        %v4119 = vunpack.c.l.b16 %v987
        %v4120 = vunpack.c.h.b16 %v987
        %v4121 = vunpack.c.l.b16 %v988
        %v4122 = vunpack.c.h.b16 %v988
        %v4123 = vunpack.c.l.b16 %v989
        %v4124 = vunpack.c.h.b16 %v989
        %v4125 = vunpack.c.l.b16 %v990
        %v4126 = vunpack.c.h.b16 %v990
        %v4127 = vunpack.c.l.b16 %v991
        %v4128 = vunpack.c.h.b16 %v991
        %v4129 = vunpack.c.l.b16 %v992
        %v4130 = vunpack.c.h.b16 %v992
        %v4131 = vunpack.c.l.b16 %v993
        %v4132 = vunpack.c.h.b16 %v993
        %v4133 = vunpack.c.l.b16 %v994
        %v4134 = vunpack.c.h.b16 %v994
        %v4135 = vunpack.c.l.b16 %v995
        %v4136 = vunpack.c.h.b16 %v995
        %v4137 = vunpack.c.l.b16 %v996
        %v4138 = vunpack.c.h.b16 %v996
        %v4139 = vunpack.c.l.b16 %v997
        %v4140 = vunpack.c.h.b16 %v997
        %v4141 = vunpack.c.l.b16 %v998
        %v4142 = vunpack.c.h.b16 %v998
        %v4143 = vunpack.c.l.b16 %v999
        %v4144 = vunpack.c.h.b16 %v999
        %v4145 = vunpack.c.l.b16 %v1000
        %v4146 = vunpack.c.h.b16 %v1000
        %v4147 = vunpack.c.l.b16 %v1001
        %v4148 = vunpack.c.h.b16 %v1001
        %v4149 = vunpack.c.l.b16 %v1002
        %v4150 = vunpack.c.h.b16 %v1002
        %v4151 = vunpack.c.l.b16 %v1003
        %v4152 = vunpack.c.h.b16 %v1003
        %v4153 = vunpack.c.l.b16 %v1004
        %v4154 = vunpack.c.h.b16 %v1004
        %v4155 = vunpack.c.l.b16 %v1005
        %v4156 = vunpack.c.h.b16 %v1005
        %v4157 = vunpack.c.l.b16 %v1006
        %v4158 = vunpack.c.h.b16 %v1006
        %v4159 = vunpack.c.l.b16 %v1007
        %v4160 = vunpack.c.h.b16 %v1007
        %v4161 = vunpack.c.l.b16 %v1008
        %v4162 = vunpack.c.h.b16 %v1008
        %v4163 = vunpack.c.l.b16 %v1009
        %v4164 = vunpack.c.h.b16 %v1009
        %v4165 = vunpack.c.l.b16 %v1010
        %v4166 = vunpack.c.h.b16 %v1010
        %v4167 = vunpack.c.l.b16 %v1011
        %v4168 = vunpack.c.h.b16 %v1011
        %v4169 = vunpack.c.l.b16 %v1012
        %v4170 = vunpack.c.h.b16 %v1012
        %v4171 = vunpack.c.l.b16 %v1013
        %v4172 = vunpack.c.h.b16 %v1013
        %v4173 = vunpack.c.l.b16 %v1014
        %v4174 = vunpack.c.h.b16 %v1014
        %v4175 = vunpack.c.l.b16 %v1015
        %v4176 = vunpack.c.h.b16 %v1015
        %v4177 = vunpack.c.l.b16 %v1016
        %v4178 = vunpack.c.h.b16 %v1016
        %v4179 = vunpack.c.l.b16 %v1017
        %v4180 = vunpack.c.h.b16 %v1017
        %v4181 = vunpack.c.l.b16 %v1018
        %v4182 = vunpack.c.h.b16 %v1018
        %v4183 = vunpack.c.l.b16 %v1019
        %v4184 = vunpack.c.h.b16 %v1019
        %v4185 = vunpack.c.l.b16 %v1020
        %v4186 = vunpack.c.h.b16 %v1020
        %v4187 = vunpack.c.l.b16 %v1021
        %v4188 = vunpack.c.h.b16 %v1021
        %v4189 = vunpack.c.l.b16 %v1022
        %v4190 = vunpack.c.h.b16 %v1022
        %v4191 = vunpack.c.l.b16 %v1023
        %v4192 = vunpack.c.h.b16 %v1023
        %v4193 = vunpack.c.l.b16 %v1024
        %v4194 = vunpack.c.h.b16 %v1024
        %v4195 = vunpack.c.l.b16 %v1025
        %v4196 = vunpack.c.h.b16 %v1025
        %v4197 = vunpack.c.l.b16 %v1026
        %v4198 = vunpack.c.h.b16 %v1026
        %v4199 = vunpack.c.l.b16 %v1027
        %v4200 = vunpack.c.h.b16 %v1027
        %v4201 = vunpack.c.l.b16 %v1028
        %v4202 = vunpack.c.h.b16 %v1028
        %v4203 = vunpack.c.l.b16 %v1029
        %v4204 = vunpack.c.h.b16 %v1029
        %v4205 = vunpack.c.l.b16 %v1030
        %v4206 = vunpack.c.h.b16 %v1030
        %v4207 = vunpack.c.l.b16 %v1031
        %v4208 = vunpack.c.h.b16 %v1031
        %v4209 = vunpack.c.l.b16 %v1032
        %v4210 = vunpack.c.h.b16 %v1032
        %v4211 = vunpack.c.l.b16 %v1033
        %v4212 = vunpack.c.h.b16 %v1033
        %v4213 = vunpack.c.l.b16 %v1034
        %v4214 = vunpack.c.h.b16 %v1034
        %v4215 = vunpack.c.l.b16 %v1035
        %v4216 = vunpack.c.h.b16 %v1035
        %v4217 = vunpack.c.l.b16 %v1036
        %v4218 = vunpack.c.h.b16 %v1036
        %v4219 = vunpack.c.l.b16 %v1037
        %v4220 = vunpack.c.h.b16 %v1037
        %v4221 = vunpack.c.l.b16 %v1038
        %v4222 = vunpack.c.h.b16 %v1038
        %v4223 = vunpack.c.l.b16 %v1039
        %v4224 = vunpack.c.h.b16 %v1039
        %v4225 = vunpack.c.l.b16 %v1040
        %v4226 = vunpack.c.h.b16 %v1040
        %v4227 = vunpack.c.l.b16 %v1041
        %v4228 = vunpack.c.h.b16 %v1041
        %v4229 = vunpack.c.l.b16 %v1042
        %v4230 = vunpack.c.h.b16 %v1042
        %v4231 = vunpack.c.l.b16 %v1043
        %v4232 = vunpack.c.h.b16 %v1043
        %v4233 = vunpack.c.l.b16 %v1044
        %v4234 = vunpack.c.h.b16 %v1044
        %v4235 = vunpack.c.l.b16 %v1045
        %v4236 = vunpack.c.h.b16 %v1045
        %v4237 = vunpack.c.l.b16 %v1046
        %v4238 = vunpack.c.h.b16 %v1046
        %v4239 = vunpack.c.l.b16 %v1047
        %v4240 = vunpack.c.h.b16 %v1047
        %v4241 = vunpack.c.l.b16 %v1048
        %v4242 = vunpack.c.h.b16 %v1048
        %v4243 = vunpack.c.l.b16 %v1049
        %v4244 = vunpack.c.h.b16 %v1049
        %v4245 = vunpack.c.l.b16 %v1050
        %v4246 = vunpack.c.h.b16 %v1050
        %v4247 = vunpack.c.l.b16 %v1051
        %v4248 = vunpack.c.h.b16 %v1051
        %v4249 = vunpack.c.l.b16 %v1052
        %v4250 = vunpack.c.h.b16 %v1052
        %v4251 = vunpack.c.l.b16 %v1053
        %v4252 = vunpack.c.h.b16 %v1053
        %v4253 = vunpack.c.l.b16 %v1054
        %v4254 = vunpack.c.h.b16 %v1054
        %v4255 = vunpack.c.l.b16 %v1055
        %v4256 = vunpack.c.h.b16 %v1055
        %v4257 = vunpack.c.l.b16 %v1056
        %v4258 = vunpack.c.h.b16 %v1056
        %v4259 = vunpack.c.l.b16 %v1057
        %v4260 = vunpack.c.h.b16 %v1057
        %v4261 = vunpack.c.l.b16 %v1058
        %v4262 = vunpack.c.h.b16 %v1058
        %v4263 = vunpack.c.l.b16 %v1059
        %v4264 = vunpack.c.h.b16 %v1059
        %v4265 = vunpack.c.l.b16 %v1060
        %v4266 = vunpack.c.h.b16 %v1060
        %v4267 = vunpack.c.l.b16 %v1061
        %v4268 = vunpack.c.h.b16 %v1061
        %v4269 = vunpack.c.l.b16 %v1062
        %v4270 = vunpack.c.h.b16 %v1062
        %v4271 = vunpack.c.l.b16 %v1063
        %v4272 = vunpack.c.h.b16 %v1063
        %v4273 = vunpack.c.l.b16 %v1064
        %v4274 = vunpack.c.h.b16 %v1064
        %v4275 = vunpack.c.l.b16 %v1065
        %v4276 = vunpack.c.h.b16 %v1065
        %v4277 = vunpack.c.l.b16 %v1066
        %v4278 = vunpack.c.h.b16 %v1066
        %v4279 = vunpack.c.l.b16 %v1067
        %v4280 = vunpack.c.h.b16 %v1067
        %v4281 = vunpack.c.l.b16 %v1068
        %v4282 = vunpack.c.h.b16 %v1068
        %v4283 = vunpack.c.l.b16 %v1069
        %v4284 = vunpack.c.h.b16 %v1069
        %v4285 = vunpack.c.l.b16 %v1070
        %v4286 = vunpack.c.h.b16 %v1070
        %v4287 = vunpack.c.l.b16 %v1071
        %v4288 = vunpack.c.h.b16 %v1071
        %v4289 = vunpack.c.l.b16 %v1072
        %v4290 = vunpack.c.h.b16 %v1072
        %v4291 = vunpack.c.l.b16 %v1073
        %v4292 = vunpack.c.h.b16 %v1073
        %v4293 = vunpack.c.l.b16 %v1074
        %v4294 = vunpack.c.h.b16 %v1074
        %v4295 = vunpack.c.l.b16 %v1075
        %v4296 = vunpack.c.h.b16 %v1075
        %v4297 = vunpack.c.l.b16 %v1076
        %v4298 = vunpack.c.h.b16 %v1076
        %v4299 = vunpack.c.l.b16 %v1077
        %v4300 = vunpack.c.h.b16 %v1077
        %v4301 = vunpack.c.l.b16 %v1078
        %v4302 = vunpack.c.h.b16 %v1078
        %v4303 = vunpack.c.l.b16 %v1079
        %v4304 = vunpack.c.h.b16 %v1079
        %v4305 = vunpack.c.l.b16 %v1080
        %v4306 = vunpack.c.h.b16 %v1080
        %v4307 = vunpack.c.l.b16 %v1081
        %v4308 = vunpack.c.h.b16 %v1081
        %v4309 = vunpack.c.l.b16 %v1082
        %v4310 = vunpack.c.h.b16 %v1082
        %v4311 = vunpack.c.l.b16 %v1083
        %v4312 = vunpack.c.h.b16 %v1083
        %v4313 = vunpack.c.l.b16 %v1084
        %v4314 = vunpack.c.h.b16 %v1084
        %v4315 = vunpack.c.l.b16 %v1085
        %v4316 = vunpack.c.h.b16 %v1085
        %v4317 = vunpack.c.l.b16 %v1086
        %v4318 = vunpack.c.h.b16 %v1086
        %v4319 = vunpack.c.l.b16 %v1087
        %v4320 = vunpack.c.h.b16 %v1087
        %v4321 = vunpack.c.l.b16 %v1088
        %v4322 = vunpack.c.h.b16 %v1088
        %v4323 = vunpack.c.l.b16 %v1089
        %v4324 = vunpack.c.h.b16 %v1089
        %v4325 = vunpack.c.l.b16 %v1090
        %v4326 = vunpack.c.h.b16 %v1090
        %v4327 = vunpack.c.l.b16 %v1091
        %v4328 = vunpack.c.h.b16 %v1091
        %v4329 = vunpack.c.l.b16 %v1092
        %v4330 = vunpack.c.h.b16 %v1092
        %v4331 = vunpack.c.l.b16 %v1093
        %v4332 = vunpack.c.h.b16 %v1093
        %v4333 = vunpack.c.l.b16 %v1094
        %v4334 = vunpack.c.h.b16 %v1094
        %v4335 = vunpack.c.l.b16 %v1095
        %v4336 = vunpack.c.h.b16 %v1095
        %v4337 = vunpack.c.l.b16 %v1096
        %v4338 = vunpack.c.h.b16 %v1096
        %v4339 = vunpack.c.l.b16 %v1097
        %v4340 = vunpack.c.h.b16 %v1097
        %v4341 = vunpack.c.l.b16 %v1098
        %v4342 = vunpack.c.h.b16 %v1098
        %v4343 = vunpack.c.l.b16 %v1099
        %v4344 = vunpack.c.h.b16 %v1099
        %v4345 = vunpack.c.l.b16 %v1100
        %v4346 = vunpack.c.h.b16 %v1100
        %v4347 = vunpack.c.l.b16 %v1101
        %v4348 = vunpack.c.h.b16 %v1101
        %v4349 = vunpack.c.l.b16 %v1102
        %v4350 = vunpack.c.h.b16 %v1102
        %v4351 = vunpack.c.l.b16 %v1103
        %v4352 = vunpack.c.h.b16 %v1103
        %v4353 = vunpack.c.l.b16 %v1104
        %v4354 = vunpack.c.h.b16 %v1104
        %v4355 = vunpack.c.l.b16 %v1105
        %v4356 = vunpack.c.h.b16 %v1105
        %v4357 = vunpack.c.l.b16 %v1106
        %v4358 = vunpack.c.h.b16 %v1106
        %v4359 = vunpack.c.l.b16 %v1107
        %v4360 = vunpack.c.h.b16 %v1107
        %v4361 = vunpack.c.l.b16 %v1108
        %v4362 = vunpack.c.h.b16 %v1108
        %v4363 = vunpack.c.l.b16 %v1109
        %v4364 = vunpack.c.h.b16 %v1109
        %v4365 = vunpack.c.l.b16 %v1110
        %v4366 = vunpack.c.h.b16 %v1110
        %v4367 = vunpack.c.l.b16 %v1111
        %v4368 = vunpack.c.h.b16 %v1111
        %v4369 = vunpack.c.l.b16 %v1112
        %v4370 = vunpack.c.h.b16 %v1112
        %v4371 = vunpack.c.l.b16 %v1113
        %v4372 = vunpack.c.h.b16 %v1113
        %v4373 = vunpack.c.l.b16 %v1114
        %v4374 = vunpack.c.h.b16 %v1114
        %v4375 = vunpack.c.l.b16 %v1115
        %v4376 = vunpack.c.h.b16 %v1115
        %v4377 = vunpack.c.l.b16 %v1116
        %v4378 = vunpack.c.h.b16 %v1116
        %v4379 = vunpack.c.l.b16 %v1117
        %v4380 = vunpack.c.h.b16 %v1117
        %v4381 = vunpack.c.l.b16 %v1118
        %v4382 = vunpack.c.h.b16 %v1118
        %v4383 = vunpack.c.l.b16 %v1119
        %v4384 = vunpack.c.h.b16 %v1119
        %v4385 = vunpack.c.l.b16 %v1120
        %v4386 = vunpack.c.h.b16 %v1120
        %v4387 = vunpack.c.l.b16 %v1121
        %v4388 = vunpack.c.h.b16 %v1121
        %v4389 = vunpack.c.l.b16 %v1122
        %v4390 = vunpack.c.h.b16 %v1122
        %v4391 = vunpack.c.l.b16 %v1123
        %v4392 = vunpack.c.h.b16 %v1123
        %v4393 = vunpack.c.l.b16 %v1124
        %v4394 = vunpack.c.h.b16 %v1124
        %v4395 = vunpack.c.l.b16 %v1125
        %v4396 = vunpack.c.h.b16 %v1125
        %v4397 = vunpack.c.l.b16 %v1126
        %v4398 = vunpack.c.h.b16 %v1126
        %v4399 = vunpack.c.l.b16 %v1127
        %v4400 = vunpack.c.h.b16 %v1127
        %v4401 = vunpack.c.l.b16 %v1128
        %v4402 = vunpack.c.h.b16 %v1128
        %v4403 = vunpack.c.l.b16 %v1129
        %v4404 = vunpack.c.h.b16 %v1129
        %v4405 = vunpack.c.l.b16 %v1130
        %v4406 = vunpack.c.h.b16 %v1130
        %v4407 = vunpack.c.l.b16 %v1131
        %v4408 = vunpack.c.h.b16 %v1131
        %v4409 = vunpack.c.l.b16 %v1132
        %v4410 = vunpack.c.h.b16 %v1132
        %v4411 = vunpack.c.l.b16 %v1133
        %v4412 = vunpack.c.h.b16 %v1133
        %v4413 = vunpack.c.l.b16 %v1134
        %v4414 = vunpack.c.h.b16 %v1134
        %v4415 = vunpack.c.l.b16 %v1135
        %v4416 = vunpack.c.h.b16 %v1135
        %v4417 = vunpack.c.l.b16 %v1136
        %v4418 = vunpack.c.h.b16 %v1136
        %v4419 = vunpack.c.l.b16 %v1137
        %v4420 = vunpack.c.h.b16 %v1137
        %v4421 = vunpack.c.l.b16 %v1138
        %v4422 = vunpack.c.h.b16 %v1138
        %v4423 = vunpack.c.l.b16 %v1139
        %v4424 = vunpack.c.h.b16 %v1139
        %v4425 = vunpack.c.l.b16 %v1140
        %v4426 = vunpack.c.h.b16 %v1140
        %v4427 = vunpack.c.l.b16 %v1141
        %v4428 = vunpack.c.h.b16 %v1141
        %v4429 = vunpack.c.l.b16 %v1142
        %v4430 = vunpack.c.h.b16 %v1142
        %v4431 = vunpack.c.l.b16 %v1143
        %v4432 = vunpack.c.h.b16 %v1143
        %v4433 = vunpack.c.l.b16 %v1144
        %v4434 = vunpack.c.h.b16 %v1144
        %v4435 = vunpack.c.l.b16 %v1145
        %v4436 = vunpack.c.h.b16 %v1145
        %v4437 = vunpack.c.l.b16 %v1146
        %v4438 = vunpack.c.h.b16 %v1146
        %v4439 = vunpack.c.l.b16 %v1147
        %v4440 = vunpack.c.h.b16 %v1147
        %v4441 = vunpack.c.l.b16 %v1148
        %v4442 = vunpack.c.h.b16 %v1148
        %v4443 = vunpack.c.l.b16 %v1149
        %v4444 = vunpack.c.h.b16 %v1149
        %v4445 = vunpack.c.l.b16 %v1150
        %v4446 = vunpack.c.h.b16 %v1150
        %v4447 = vunpack.c.l.b16 %v1151
        %v4448 = vunpack.c.h.b16 %v1151
        %v4449 = vunpack.c.l.b16 %v1152
        %v4450 = vunpack.c.h.b16 %v1152
        %v4451 = vunpack.c.l.b16 %v1153
        %v4452 = vunpack.c.h.b16 %v1153
        %v4453 = vunpack.c.l.b16 %v1154
        %v4454 = vunpack.c.h.b16 %v1154
        %v4455 = vunpack.c.l.b16 %v1155
        %v4456 = vunpack.c.h.b16 %v1155
        %v4457 = vunpack.c.l.b16 %v1156
        %v4458 = vunpack.c.h.b16 %v1156
        %v4459 = vunpack.c.l.b16 %v1157
        %v4460 = vunpack.c.h.b16 %v1157
        %v4461 = vunpack.c.l.b16 %v1158
        %v4462 = vunpack.c.h.b16 %v1158
        %v4463 = vunpack.c.l.b16 %v1159
        %v4464 = vunpack.c.h.b16 %v1159
        %v4465 = vunpack.c.l.b16 %v1160
        %v4466 = vunpack.c.h.b16 %v1160
        %v4467 = vunpack.c.l.b16 %v1161
        %v4468 = vunpack.c.h.b16 %v1161
        %v4469 = vunpack.c.l.b16 %v1162
        %v4470 = vunpack.c.h.b16 %v1162
        %v4471 = vunpack.c.l.b16 %v1163
        %v4472 = vunpack.c.h.b16 %v1163
        %v4473 = vunpack.c.l.b16 %v1164
        %v4474 = vunpack.c.h.b16 %v1164
        %v4475 = vunpack.c.l.b16 %v1165
        %v4476 = vunpack.c.h.b16 %v1165
        %v4477 = vunpack.c.l.b16 %v1166
        %v4478 = vunpack.c.h.b16 %v1166
        %v4479 = vunpack.c.l.b16 %v1167
        %v4480 = vunpack.c.h.b16 %v1167
        %v4481 = vunpack.c.l.b16 %v1168
        %v4482 = vunpack.c.h.b16 %v1168
        %v4483 = vunpack.c.l.b16 %v1169
        %v4484 = vunpack.c.h.b16 %v1169
        %v4485 = vunpack.c.l.b16 %v1170
        %v4486 = vunpack.c.h.b16 %v1170
        %v4487 = vunpack.c.l.b16 %v1171
        %v4488 = vunpack.c.h.b16 %v1171
        %v4489 = vunpack.c.l.b16 %v1172
        %v4490 = vunpack.c.h.b16 %v1172
        %v4491 = vunpack.c.l.b16 %v1173
        %v4492 = vunpack.c.h.b16 %v1173
        %v4493 = vunpack.c.l.b16 %v1174
        %v4494 = vunpack.c.h.b16 %v1174
        %v4495 = vunpack.c.l.b16 %v1175
        %v4496 = vunpack.c.h.b16 %v1175
        %v4497 = vunpack.c.l.b16 %v1176
        %v4498 = vunpack.c.h.b16 %v1176
        %v4499 = vunpack.c.l.b16 %v1177
        %v4500 = vunpack.c.h.b16 %v1177
        %v4501 = vunpack.c.l.b16 %v1178
        %v4502 = vunpack.c.h.b16 %v1178
        %v4503 = vunpack.c.l.b16 %v1179
        %v4504 = vunpack.c.h.b16 %v1179
        %v4505 = vunpack.c.l.b16 %v1180
        %v4506 = vunpack.c.h.b16 %v1180
        %v4507 = vunpack.c.l.b16 %v1181
        %v4508 = vunpack.c.h.b16 %v1181
        %v4509 = vunpack.c.l.b16 %v1182
        %v4510 = vunpack.c.h.b16 %v1182
        %v4511 = vunpack.c.l.b16 %v1183
        %v4512 = vunpack.c.h.b16 %v1183
        %v4513 = vunpack.c.l.b16 %v1184
        %v4514 = vunpack.c.h.b16 %v1184
        %v4515 = vunpack.c.l.b16 %v1185
        %v4516 = vunpack.c.h.b16 %v1185
        %v4517 = vunpack.c.l.b16 %v1186
        %v4518 = vunpack.c.h.b16 %v1186
        %v4519 = vunpack.c.l.b16 %v1187
        %v4520 = vunpack.c.h.b16 %v1187
        %v4521 = vunpack.c.l.b16 %v1188
        %v4522 = vunpack.c.h.b16 %v1188
        %v4523 = vunpack.c.l.b16 %v1189
        %v4524 = vunpack.c.h.b16 %v1189
        %v4525 = vunpack.c.l.b16 %v1190
        %v4526 = vunpack.c.h.b16 %v1190
        %v4527 = vunpack.c.l.b16 %v1191
        %v4528 = vunpack.c.h.b16 %v1191
        %v4529 = vunpack.c.l.b16 %v1192
        %v4530 = vunpack.c.h.b16 %v1192
        %v4531 = vunpack.c.l.b16 %v1193
        %v4532 = vunpack.c.h.b16 %v1193
        %v4533 = vunpack.c.l.b16 %v1194
        %v4534 = vunpack.c.h.b16 %v1194
        %v4535 = vunpack.c.l.b16 %v1195
        %v4536 = vunpack.c.h.b16 %v1195
        %v4537 = vunpack.c.l.b16 %v1196
        %v4538 = vunpack.c.h.b16 %v1196
        %v4539 = vunpack.c.l.b16 %v1197
        %v4540 = vunpack.c.h.b16 %v1197
        %v4541 = vunpack.c.l.b16 %v1198
        %v4542 = vunpack.c.h.b16 %v1198
        %v4543 = vunpack.c.l.b16 %v1199
        %v4544 = vunpack.c.h.b16 %v1199
        %v4545 = vunpack.c.l.b16 %v1200
        %v4546 = vunpack.c.h.b16 %v1200
        %v4547 = vunpack.c.l.b16 %v1201
        %v4548 = vunpack.c.h.b16 %v1201
        %v4549 = vunpack.c.l.b16 %v1202
        %v4550 = vunpack.c.h.b16 %v1202
        %v4551 = vunpack.c.l.b16 %v1203
        %v4552 = vunpack.c.h.b16 %v1203
        %v4553 = vunpack.c.l.b16 %v1204
        %v4554 = vunpack.c.h.b16 %v1204
        %v4555 = vunpack.c.l.b16 %v1205
        %v4556 = vunpack.c.h.b16 %v1205
        %v4557 = vunpack.c.l.b16 %v1206
        %v4558 = vunpack.c.h.b16 %v1206
        %v4559 = vunpack.c.l.b16 %v1207
        %v4560 = vunpack.c.h.b16 %v1207
        %v4561 = vunpack.c.l.b16 %v1208
        %v4562 = vunpack.c.h.b16 %v1208
        %v4563 = vunpack.c.l.b16 %v1209
        %v4564 = vunpack.c.h.b16 %v1209
        %v4565 = vunpack.c.l.b16 %v1210
        %v4566 = vunpack.c.h.b16 %v1210
        %v4567 = vunpack.c.l.b16 %v1211
        %v4568 = vunpack.c.h.b16 %v1211
        %v4569 = vunpack.c.l.b16 %v1212
        %v4570 = vunpack.c.h.b16 %v1212
        %v4571 = vunpack.c.l.b16 %v1213
        %v4572 = vunpack.c.h.b16 %v1213
        %v4573 = vunpack.c.l.b16 %v1214
        %v4574 = vunpack.c.h.b16 %v1214
        %v4575 = vunpack.c.l.b16 %v1215
        %v4576 = vunpack.c.h.b16 %v1215
        %v4577 = vunpack.c.l.b16 %v1216
        %v4578 = vunpack.c.h.b16 %v1216
        %v4579 = vunpack.c.l.b16 %v1217
        %v4580 = vunpack.c.h.b16 %v1217
        %v4581 = vunpack.c.l.b16 %v1218
        %v4582 = vunpack.c.h.b16 %v1218
        %v4583 = vunpack.c.l.b16 %v1219
        %v4584 = vunpack.c.h.b16 %v1219
        %v4585 = vunpack.c.l.b16 %v1220
        %v4586 = vunpack.c.h.b16 %v1220
        %v4587 = vunpack.c.l.b16 %v1221
        %v4588 = vunpack.c.h.b16 %v1221
        %v4589 = vunpack.c.l.b16 %v1222
        %v4590 = vunpack.c.h.b16 %v1222
        %v4591 = vunpack.c.l.b16 %v1223
        %v4592 = vunpack.c.h.b16 %v1223
        %v4593 = vunpack.c.l.b16 %v1224
        %v4594 = vunpack.c.h.b16 %v1224
        %v4595 = vunpack.c.l.b16 %v1225
        %v4596 = vunpack.c.h.b16 %v1225
        %v4597 = vunpack.c.l.b16 %v1226
        %v4598 = vunpack.c.h.b16 %v1226
        %v4599 = vunpack.c.l.b16 %v1227
        %v4600 = vunpack.c.h.b16 %v1227
        %v4601 = vunpack.c.l.b16 %v1228
        %v4602 = vunpack.c.h.b16 %v1228
        %v4603 = vunpack.c.l.b16 %v1229
        %v4604 = vunpack.c.h.b16 %v1229
        %v4605 = vunpack.c.l.b16 %v1230
        %v4606 = vunpack.c.h.b16 %v1230
        %v4607 = vunpack.c.l.b16 %v1231
        %v4608 = vunpack.c.h.b16 %v1231
        %v4609 = vunpack.c.l.b16 %v1232
        %v4610 = vunpack.c.h.b16 %v1232
        %v4611 = vunpack.c.l.b16 %v1233
        %v4612 = vunpack.c.h.b16 %v1233
        %v4613 = vunpack.c.l.b16 %v1234
        %v4614 = vunpack.c.h.b16 %v1234
        %v4615 = vunpack.c.l.b16 %v1235
        %v4616 = vunpack.c.h.b16 %v1235
        %v4617 = vunpack.c.l.b16 %v1236
        %v4618 = vunpack.c.h.b16 %v1236
        %v4619 = vunpack.c.l.b16 %v1237
        %v4620 = vunpack.c.h.b16 %v1237
        %v4621 = vunpack.c.l.b16 %v1238
        %v4622 = vunpack.c.h.b16 %v1238
        %v4623 = vunpack.c.l.b16 %v1239
        %v4624 = vunpack.c.h.b16 %v1239
        %v4625 = vunpack.c.l.b16 %v1240
        %v4626 = vunpack.c.h.b16 %v1240
        %v4627 = vunpack.c.l.b16 %v1241
        %v4628 = vunpack.c.h.b16 %v1241
        %v4629 = vunpack.c.l.b16 %v1242
        %v4630 = vunpack.c.h.b16 %v1242
        %v4631 = vunpack.c.l.b16 %v1243
        %v4632 = vunpack.c.h.b16 %v1243
        %v4633 = vunpack.c.l.b16 %v1244
        %v4634 = vunpack.c.h.b16 %v1244
        %v4635 = vunpack.c.l.b16 %v1245
        %v4636 = vunpack.c.h.b16 %v1245
        %v4637 = vunpack.c.l.b16 %v1246
        %v4638 = vunpack.c.h.b16 %v1246
        %v4639 = vunpack.c.l.b16 %v1247
        %v4640 = vunpack.c.h.b16 %v1247
        %v4641 = vunpack.c.l.b16 %v1248
        %v4642 = vunpack.c.h.b16 %v1248
        %v4643 = vunpack.c.l.b16 %v1249
        %v4644 = vunpack.c.h.b16 %v1249
        %v4645 = vunpack.c.l.b16 %v1250
        %v4646 = vunpack.c.h.b16 %v1250
        %v4647 = vunpack.c.l.b16 %v1251
        %v4648 = vunpack.c.h.b16 %v1251
        %v4649 = vunpack.c.l.b16 %v1252
        %v4650 = vunpack.c.h.b16 %v1252
        %v4651 = vunpack.c.l.b16 %v1253
        %v4652 = vunpack.c.h.b16 %v1253
        %v4653 = vunpack.c.l.b16 %v1254
        %v4654 = vunpack.c.h.b16 %v1254
        %v4655 = vunpack.c.l.b16 %v1255
        %v4656 = vunpack.c.h.b16 %v1255
        %v4657 = vunpack.c.l.b16 %v1256
        %v4658 = vunpack.c.h.b16 %v1256
        %v4659 = vunpack.c.l.b16 %v1257
        %v4660 = vunpack.c.h.b16 %v1257
        %v4661 = vunpack.c.l.b16 %v1258
        %v4662 = vunpack.c.h.b16 %v1258
        %v4663 = vunpack.c.l.b16 %v1259
        %v4664 = vunpack.c.h.b16 %v1259
        %v4665 = vunpack.c.l.b16 %v1260
        %v4666 = vunpack.c.h.b16 %v1260
        %v4667 = vunpack.c.l.b16 %v1261
        %v4668 = vunpack.c.h.b16 %v1261
        %v4669 = vunpack.c.l.b16 %v1262
        %v4670 = vunpack.c.h.b16 %v1262
        %v4671 = vunpack.c.l.b16 %v1263
        %v4672 = vunpack.c.h.b16 %v1263
        %v4673 = vunpack.c.l.b16 %v1264
        %v4674 = vunpack.c.h.b16 %v1264
        %v4675 = vunpack.c.l.b16 %v1265
        %v4676 = vunpack.c.h.b16 %v1265
        %v4677 = vunpack.c.l.b16 %v1266
        %v4678 = vunpack.c.h.b16 %v1266
        %v4679 = vunpack.c.l.b16 %v1267
        %v4680 = vunpack.c.h.b16 %v1267
        %v4681 = vunpack.c.l.b16 %v1268
        %v4682 = vunpack.c.h.b16 %v1268
        %v4683 = vunpack.c.l.b16 %v1269
        %v4684 = vunpack.c.h.b16 %v1269
        %v4685 = vunpack.c.l.b16 %v1270
        %v4686 = vunpack.c.h.b16 %v1270
        %v4687 = vunpack.c.l.b16 %v1271
        %v4688 = vunpack.c.h.b16 %v1271
        %v4689 = vunpack.c.l.b16 %v1272
        %v4690 = vunpack.c.h.b16 %v1272
        %v4691 = vunpack.c.l.b16 %v1273
        %v4692 = vunpack.c.h.b16 %v1273
        %v4693 = vunpack.c.l.b16 %v1274
        %v4694 = vunpack.c.h.b16 %v1274
        %v4695 = vunpack.c.l.b16 %v1275
        %v4696 = vunpack.c.h.b16 %v1275
        %v4697 = vunpack.c.l.b16 %v1276
        %v4698 = vunpack.c.h.b16 %v1276
        %v4699 = vunpack.c.l.b16 %v1277
        %v4700 = vunpack.c.h.b16 %v1277
        %v4701 = vunpack.c.l.b16 %v1278
        %v4702 = vunpack.c.h.b16 %v1278
        %v4703 = vunpack.c.l.b16 %v1279
        %v4704 = vunpack.c.h.b16 %v1279
        %v4705 = vunpack.c.l.b16 %v1280
        %v4706 = vunpack.c.h.b16 %v1280
        %v4707 = vunpack.c.l.b16 %v1281
        %v4708 = vunpack.c.h.b16 %v1281
        %v4709 = vunpack.c.l.b16 %v1282
        %v4710 = vunpack.c.h.b16 %v1282
        %v4711 = vunpack.c.l.b16 %v1283
        %v4712 = vunpack.c.h.b16 %v1283
        %v4713 = vunpack.c.l.b16 %v1284
        %v4714 = vunpack.c.h.b16 %v1284
        %v4715 = vunpack.c.l.b16 %v1285
        %v4716 = vunpack.c.h.b16 %v1285
        %v4717 = vunpack.c.l.b16 %v1286
        %v4718 = vunpack.c.h.b16 %v1286
        %v4719 = vunpack.c.l.b16 %v1287
        %v4720 = vunpack.c.h.b16 %v1287
        %v4721 = vunpack.c.l.b16 %v1288
        %v4722 = vunpack.c.h.b16 %v1288
        %v4723 = vunpack.c.l.b16 %v1289
        %v4724 = vunpack.c.h.b16 %v1289
        %v4725 = vunpack.c.l.b16 %v1290
        %v4726 = vunpack.c.h.b16 %v1290
        %v4727 = vunpack.c.l.b16 %v1291
        %v4728 = vunpack.c.h.b16 %v1291
        %v4729 = vunpack.c.l.b16 %v1292
        %v4730 = vunpack.c.h.b16 %v1292
        %v4731 = vunpack.c.l.b16 %v1293
        %v4732 = vunpack.c.h.b16 %v1293
        %v4733 = vunpack.c.l.b16 %v1294
        %v4734 = vunpack.c.h.b16 %v1294
        %v4735 = vunpack.c.l.b16 %v1295
        %v4736 = vunpack.c.h.b16 %v1295
        %v4737 = vunpack.c.l.b16 %v1296
        %v4738 = vunpack.c.h.b16 %v1296
        %v4739 = vunpack.c.l.b16 %v1297
        %v4740 = vunpack.c.h.b16 %v1297
        %v4741 = vunpack.c.l.b16 %v1298
        %v4742 = vunpack.c.h.b16 %v1298
        %v4743 = vunpack.c.l.b16 %v1299
        %v4744 = vunpack.c.h.b16 %v1299
        %v4745 = vunpack.c.l.b16 %v1300
        %v4746 = vunpack.c.h.b16 %v1300
        %v4747 = vunpack.c.l.b16 %v1301
        %v4748 = vunpack.c.h.b16 %v1301
        %v4749 = vunpack.c.l.b16 %v1302
        %v4750 = vunpack.c.h.b16 %v1302
        %v4751 = vunpack.c.l.b16 %v1303
        %v4752 = vunpack.c.h.b16 %v1303
        %v4753 = vunpack.c.l.b16 %v1304
        %v4754 = vunpack.c.h.b16 %v1304
        %v4755 = vunpack.c.l.b16 %v1305
        %v4756 = vunpack.c.h.b16 %v1305
        %v4757 = vunpack.c.l.b16 %v1306
        %v4758 = vunpack.c.h.b16 %v1306
        %v4759 = vunpack.c.l.b16 %v1307
        %v4760 = vunpack.c.h.b16 %v1307
        %v4761 = vunpack.c.l.b16 %v1308
        %v4762 = vunpack.c.h.b16 %v1308
        %v4763 = vunpack.c.l.b16 %v1309
        %v4764 = vunpack.c.h.b16 %v1309
        %v4765 = vunpack.c.l.b16 %v1310
        %v4766 = vunpack.c.h.b16 %v1310
        %v4767 = vunpack.c.l.b16 %v1311
        %v4768 = vunpack.c.h.b16 %v1311
        %v4769 = vunpack.c.l.b16 %v1312
        %v4770 = vunpack.c.h.b16 %v1312
        %v4771 = vunpack.c.l.b16 %v1313
        %v4772 = vunpack.c.h.b16 %v1313
        %v4773 = vunpack.c.l.b16 %v1314
        %v4774 = vunpack.c.h.b16 %v1314
        %v4775 = vunpack.c.l.b16 %v1315
        %v4776 = vunpack.c.h.b16 %v1315
        %v4777 = vunpack.c.l.b16 %v1316
        %v4778 = vunpack.c.h.b16 %v1316
        %v4779 = vunpack.c.l.b16 %v1317
        %v4780 = vunpack.c.h.b16 %v1317
        %v4781 = vunpack.c.l.b16 %v1318
        %v4782 = vunpack.c.h.b16 %v1318
        %v4783 = vunpack.c.l.b16 %v1319
        %v4784 = vunpack.c.h.b16 %v1319
        %v4785 = vunpack.c.l.b16 %v1320
        %v4786 = vunpack.c.h.b16 %v1320
        %v4787 = vunpack.c.l.b16 %v1321
        %v4788 = vunpack.c.h.b16 %v1321
        %v4789 = vunpack.c.l.b16 %v1322
        %v4790 = vunpack.c.h.b16 %v1322
        %v4791 = vunpack.c.l.b16 %v1323
        %v4792 = vunpack.c.h.b16 %v1323
        %v4793 = vunpack.c.l.b16 %v1324
        %v4794 = vunpack.c.h.b16 %v1324
        %v4795 = vunpack.c.l.b16 %v1325
        %v4796 = vunpack.c.h.b16 %v1325
        %v4797 = vunpack.c.l.b16 %v1326
        %v4798 = vunpack.c.h.b16 %v1326
        %v4799 = vunpack.c.l.b16 %v1327
        %v4800 = vunpack.c.h.b16 %v1327
        %v4801 = vunpack.c.l.b16 %v1328
        %v4802 = vunpack.c.h.b16 %v1328
        %v4803 = vunpack.c.l.b16 %v1329
        %v4804 = vunpack.c.h.b16 %v1329
        %v4805 = vunpack.c.l.b16 %v1330
        %v4806 = vunpack.c.h.b16 %v1330
        %v4807 = vunpack.c.l.b16 %v1331
        %v4808 = vunpack.c.h.b16 %v1331
        %v4809 = vunpack.c.l.b16 %v1332
        %v4810 = vunpack.c.h.b16 %v1332
        %v4811 = vunpack.c.l.b16 %v1333
        %v4812 = vunpack.c.h.b16 %v1333
        %v4813 = vunpack.c.l.b16 %v1334
        %v4814 = vunpack.c.h.b16 %v1334
        %v4815 = vunpack.c.l.b16 %v1335
        %v4816 = vunpack.c.h.b16 %v1335
        %v4817 = vunpack.c.l.b16 %v1336
        %v4818 = vunpack.c.h.b16 %v1336
        %v4819 = vunpack.c.l.b16 %v1337
        %v4820 = vunpack.c.h.b16 %v1337
        %v4821 = vunpack.c.l.b16 %v1338
        %v4822 = vunpack.c.h.b16 %v1338
        %v4823 = vunpack.c.l.b16 %v1339
        %v4824 = vunpack.c.h.b16 %v1339
        %v4825 = vunpack.c.l.b16 %v1340
        %v4826 = vunpack.c.h.b16 %v1340
        %v4827 = vunpack.c.l.b16 %v1341
        %v4828 = vunpack.c.h.b16 %v1341
        %v4829 = vunpack.c.l.b16 %v1342
        %v4830 = vunpack.c.h.b16 %v1342
        %v4831 = vunpack.c.l.b16 %v1343
        %v4832 = vunpack.c.h.b16 %v1343
        %v4833 = vunpack.c.l.b16 %v1344
        %v4834 = vunpack.c.h.b16 %v1344
        %v4835 = vunpack.c.l.b16 %v1345
        %v4836 = vunpack.c.h.b16 %v1345
        %v4837 = vunpack.c.l.b16 %v1346
        %v4838 = vunpack.c.h.b16 %v1346
        %v4839 = vunpack.c.l.b16 %v1347
        %v4840 = vunpack.c.h.b16 %v1347
        %v4841 = vunpack.c.l.b16 %v1348
        %v4842 = vunpack.c.h.b16 %v1348
        %v4843 = vunpack.c.l.b16 %v1349
        %v4844 = vunpack.c.h.b16 %v1349
        %v4845 = vunpack.c.l.b16 %v1350
        %v4846 = vunpack.c.h.b16 %v1350
        %v4847 = vunpack.c.l.b16 %v1351
        %v4848 = vunpack.c.h.b16 %v1351
        %v4849 = vunpack.c.l.b16 %v1352
        %v4850 = vunpack.c.h.b16 %v1352
        %v4851 = vunpack.c.l.b16 %v1353
        %v4852 = vunpack.c.h.b16 %v1353
        %v4853 = vunpack.c.l.b16 %v1354
        %v4854 = vunpack.c.h.b16 %v1354
        %v4855 = vunpack.c.l.b16 %v1355
        %v4856 = vunpack.c.h.b16 %v1355
        %v4857 = vunpack.c.l.b16 %v1356
        %v4858 = vunpack.c.h.b16 %v1356
        %v4859 = vunpack.c.l.b16 %v1357
        %v4860 = vunpack.c.h.b16 %v1357
        %v4861 = vunpack.c.l.b16 %v1358
        %v4862 = vunpack.c.h.b16 %v1358
        %v4863 = vunpack.c.l.b16 %v1359
        %v4864 = vunpack.c.h.b16 %v1359
        %v4865 = vunpack.c.l.b16 %v1360
        %v4866 = vunpack.c.h.b16 %v1360
        %v4867 = vunpack.c.l.b16 %v1361
        %v4868 = vunpack.c.h.b16 %v1361
        %v4869 = vunpack.c.l.b16 %v1362
        %v4870 = vunpack.c.h.b16 %v1362
        %v4871 = vunpack.c.l.b16 %v1363
        %v4872 = vunpack.c.h.b16 %v1363
        %v4873 = vunpack.c.l.b16 %v1364
        %v4874 = vunpack.c.h.b16 %v1364
        %v4875 = vunpack.c.l.b16 %v1365
        %v4876 = vunpack.c.h.b16 %v1365
        %v4877 = vunpack.c.l.b16 %v1366
        %v4878 = vunpack.c.h.b16 %v1366
        %v4879 = vunpack.c.l.b16 %v1367
        %v4880 = vunpack.c.h.b16 %v1367
        %v4881 = vunpack.c.l.b16 %v1368
        %v4882 = vunpack.c.h.b16 %v1368
        %v4883 = vunpack.c.l.b16 %v1369
        %v4884 = vunpack.c.h.b16 %v1369
        %v4885 = vunpack.c.l.b16 %v1370
        %v4886 = vunpack.c.h.b16 %v1370
        %v4887 = vunpack.c.l.b16 %v1371
        %v4888 = vunpack.c.h.b16 %v1371
        %v4889 = vunpack.c.l.b16 %v1372
        %v4890 = vunpack.c.h.b16 %v1372
        %v4891 = vunpack.c.l.b16 %v1373
        %v4892 = vunpack.c.h.b16 %v1373
        %v4893 = vunpack.c.l.b16 %v1374
        %v4894 = vunpack.c.h.b16 %v1374
        %v4895 = vunpack.c.l.b16 %v1375
        %v4896 = vunpack.c.h.b16 %v1375
        %v4897 = vunpack.c.l.b16 %v1376
        %v4898 = vunpack.c.h.b16 %v1376
        %v4899 = vunpack.c.l.b16 %v1377
        %v4900 = vunpack.c.h.b16 %v1377
        %v4901 = vunpack.c.l.b16 %v1378
        %v4902 = vunpack.c.h.b16 %v1378
        %v4903 = vunpack.c.l.b16 %v1379
        %v4904 = vunpack.c.h.b16 %v1379
        %v4905 = vunpack.c.l.b16 %v1380
        %v4906 = vunpack.c.h.b16 %v1380
        %v4907 = vunpack.c.l.b16 %v1381
        %v4908 = vunpack.c.h.b16 %v1381
        %v4909 = vunpack.c.l.b16 %v1382
        %v4910 = vunpack.c.h.b16 %v1382
        %v4911 = vunpack.c.l.b16 %v1383
        %v4912 = vunpack.c.h.b16 %v1383
        %v4913 = vunpack.c.l.b16 %v1384
        %v4914 = vunpack.c.h.b16 %v1384
        %v4915 = vunpack.c.l.b16 %v1385
        %v4916 = vunpack.c.h.b16 %v1385
        %v4917 = vunpack.c.l.b16 %v1386
        %v4918 = vunpack.c.h.b16 %v1386
        %v4919 = vunpack.c.l.b16 %v1387
        %v4920 = vunpack.c.h.b16 %v1387
        %v4921 = vunpack.c.l.b16 %v1388
        %v4922 = vunpack.c.h.b16 %v1388
        %v4923 = vunpack.c.l.b16 %v1389
        %v4924 = vunpack.c.h.b16 %v1389
        %v4925 = vunpack.c.l.b16 %v1390
        %v4926 = vunpack.c.h.b16 %v1390
        %v4927 = vunpack.c.l.b16 %v1391
        %v4928 = vunpack.c.h.b16 %v1391
        %v4929 = vunpack.c.l.b16 %v1392
        %v4930 = vunpack.c.h.b16 %v1392
        %v4931 = vunpack.c.l.b16 %v1393
        %v4932 = vunpack.c.h.b16 %v1393
        %v4933 = vunpack.c.l.b16 %v1394
        %v4934 = vunpack.c.h.b16 %v1394
        %v4935 = vunpack.c.l.b16 %v1395
        %v4936 = vunpack.c.h.b16 %v1395
        %v4937 = vunpack.c.l.b16 %v1396
        %v4938 = vunpack.c.h.b16 %v1396
        %v4939 = vunpack.c.l.b16 %v1397
        %v4940 = vunpack.c.h.b16 %v1397
        %v4941 = vunpack.c.l.b16 %v1398
        %v4942 = vunpack.c.h.b16 %v1398
        %v4943 = vunpack.c.l.b16 %v1399
        %v4944 = vunpack.c.h.b16 %v1399
        %v4945 = vunpack.c.l.b16 %v1400
        %v4946 = vunpack.c.h.b16 %v1400
        %v4947 = vunpack.c.l.b16 %v1401
        %v4948 = vunpack.c.h.b16 %v1401
        %v4949 = vunpack.c.l.b16 %v1402
        %v4950 = vunpack.c.h.b16 %v1402
        %v4951 = vunpack.c.l.b16 %v1403
        %v4952 = vunpack.c.h.b16 %v1403
        %v4953 = vunpack.c.l.b16 %v1404
        %v4954 = vunpack.c.h.b16 %v1404
        %v4955 = vunpack.c.l.b16 %v1405
        %v4956 = vunpack.c.h.b16 %v1405
        %v4957 = vunpack.c.l.b16 %v1406
        %v4958 = vunpack.c.h.b16 %v1406
        %v4959 = vunpack.c.l.b16 %v1407
        %v4960 = vunpack.c.h.b16 %v1407
        %v4961 = vunpack.c.l.b16 %v1408
        %v4962 = vunpack.c.h.b16 %v1408
        %v4963 = vunpack.c.l.b16 %v1409
        %v4964 = vunpack.c.h.b16 %v1409
        %v4965 = vunpack.c.l.b16 %v1410
        %v4966 = vunpack.c.h.b16 %v1410
        %v4967 = vunpack.c.l.b16 %v1411
        %v4968 = vunpack.c.h.b16 %v1411
        %v4969 = vunpack.c.l.b16 %v1412
        %v4970 = vunpack.c.h.b16 %v1412
        %v4971 = vunpack.c.l.b16 %v1413
        %v4972 = vunpack.c.h.b16 %v1413
        %v4973 = vunpack.c.l.b16 %v1414
        %v4974 = vunpack.c.h.b16 %v1414
        %v4975 = vunpack.c.l.b16 %v1415
        %v4976 = vunpack.c.h.b16 %v1415
        %v4977 = vunpack.c.l.b16 %v1416
        %v4978 = vunpack.c.h.b16 %v1416
        %v4979 = vunpack.c.l.b16 %v1417
        %v4980 = vunpack.c.h.b16 %v1417
        %v4981 = vunpack.c.l.b16 %v1418
        %v4982 = vunpack.c.h.b16 %v1418
        %v4983 = vunpack.c.l.b16 %v1419
        %v4984 = vunpack.c.h.b16 %v1419
        %v4985 = vunpack.c.l.b16 %v1420
        %v4986 = vunpack.c.h.b16 %v1420
        %v4987 = vunpack.c.l.b16 %v1421
        %v4988 = vunpack.c.h.b16 %v1421
        %v4989 = vunpack.c.l.b16 %v1422
        %v4990 = vunpack.c.h.b16 %v1422
        %v4991 = vunpack.c.l.b16 %v1423
        %v4992 = vunpack.c.h.b16 %v1423
        %v4993 = vunpack.c.l.b16 %v1424
        %v4994 = vunpack.c.h.b16 %v1424
        %v4995 = vunpack.c.l.b16 %v1425
        %v4996 = vunpack.c.h.b16 %v1425
        %v4997 = vunpack.c.l.b16 %v1426
        %v4998 = vunpack.c.h.b16 %v1426
        %v4999 = vunpack.c.l.b16 %v1427
        %v5000 = vunpack.c.h.b16 %v1427
        %v5001 = vunpack.c.l.b16 %v1428
        %v5002 = vunpack.c.h.b16 %v1428
        %v5003 = vunpack.c.l.b16 %v1429
        %v5004 = vunpack.c.h.b16 %v1429
        %v5005 = vunpack.c.l.b16 %v1430
        %v5006 = vunpack.c.h.b16 %v1430
        %v5007 = vunpack.c.l.b16 %v1431
        %v5008 = vunpack.c.h.b16 %v1431
        %v5009 = vunpack.c.l.b16 %v1432
        %v5010 = vunpack.c.h.b16 %v1432
        %v5011 = vunpack.c.l.b16 %v1433
        %v5012 = vunpack.c.h.b16 %v1433
        %v5013 = vunpack.c.l.b16 %v1434
        %v5014 = vunpack.c.h.b16 %v1434
        %v5015 = vunpack.c.l.b16 %v1435
        %v5016 = vunpack.c.h.b16 %v1435
        %v5017 = vunpack.c.l.b16 %v1436
        %v5018 = vunpack.c.h.b16 %v1436
        %v5019 = vunpack.c.l.b16 %v1437
        %v5020 = vunpack.c.h.b16 %v1437
        %v5021 = vunpack.c.l.b16 %v1438
        %v5022 = vunpack.c.h.b16 %v1438
        %v5023 = vunpack.c.l.b16 %v1439
        %v5024 = vunpack.c.h.b16 %v1439
        %v5025 = vunpack.c.l.b16 %v1440
        %v5026 = vunpack.c.h.b16 %v1440
        %v5027 = vunpack.c.l.b16 %v1441
        %v5028 = vunpack.c.h.b16 %v1441
        %v5029 = vunpack.c.l.b16 %v1442
        %v5030 = vunpack.c.h.b16 %v1442
        %v5031 = vunpack.c.l.b16 %v1443
        %v5032 = vunpack.c.h.b16 %v1443
        %v5033 = vunpack.c.l.b16 %v1444
        %v5034 = vunpack.c.h.b16 %v1444
        %v5035 = vunpack.c.l.b16 %v1445
        %v5036 = vunpack.c.h.b16 %v1445
        %v5037 = vunpack.c.l.b16 %v1446
        %v5038 = vunpack.c.h.b16 %v1446
        %v5039 = vunpack.c.l.b16 %v1447
        %v5040 = vunpack.c.h.b16 %v1447
        %v5041 = vunpack.c.l.b16 %v1448
        %v5042 = vunpack.c.h.b16 %v1448
        %v5043 = vunpack.c.l.b16 %v1449
        %v5044 = vunpack.c.h.b16 %v1449
        %v5045 = vunpack.c.l.b16 %v1450
        %v5046 = vunpack.c.h.b16 %v1450
        %v5047 = vunpack.c.l.b16 %v1451
        %v5048 = vunpack.c.h.b16 %v1451
        %v5049 = vunpack.c.l.b16 %v1452
        %v5050 = vunpack.c.h.b16 %v1452
        %v5051 = vunpack.c.l.b16 %v1453
        %v5052 = vunpack.c.h.b16 %v1453
        %v5053 = vunpack.c.l.b16 %v1454
        %v5054 = vunpack.c.h.b16 %v1454
        %v5055 = vunpack.c.l.b16 %v1455
        %v5056 = vunpack.c.h.b16 %v1455
        %v5057 = vunpack.c.l.b16 %v1456
        %v5058 = vunpack.c.h.b16 %v1456
        %v5059 = vunpack.c.l.b16 %v1457
        %v5060 = vunpack.c.h.b16 %v1457
        %v5061 = vunpack.c.l.b16 %v1458
        %v5062 = vunpack.c.h.b16 %v1458
        %v5063 = vunpack.c.l.b16 %v1459
        %v5064 = vunpack.c.h.b16 %v1459
        %v5065 = vunpack.c.l.b16 %v1460
        %v5066 = vunpack.c.h.b16 %v1460
        %v5067 = vunpack.c.l.b16 %v1461
        %v5068 = vunpack.c.h.b16 %v1461
        %v5069 = vunpack.c.l.b16 %v1462
        %v5070 = vunpack.c.h.b16 %v1462
        %v5071 = vpack.c.b16 %v2773, %v2767
        %v5072 = vpack.c.b16 %v2774, %v2768
        %v5073 = vpack.c.b16 %v2775, %v2769
        %v5074 = vpack.c.b16 %v2776, %v2770
        %v5075 = vpack.c.b16 %v2777, %v2771
        %v5076 = vpack.c.b16 %v2778, %v2772
        %v5077 = vpack.c.b16 %v2785, %v2779
        %v5078 = vpack.c.b16 %v2786, %v2780
        %v5079 = vpack.c.b16 %v2787, %v2781
        %v5080 = vpack.c.b16 %v2788, %v2782
        %v5081 = vpack.c.b16 %v2789, %v2783
        %v5082 = vpack.c.b16 %v2790, %v2784
        %v5083 = vpack.c.b16 %v2797, %v2791
        %v5084 = vpack.c.b16 %v2798, %v2792
        %v5085 = vpack.c.b16 %v2799, %v2793
        %v5086 = vpack.c.b16 %v2800, %v2794
        %v5087 = vpack.c.b16 %v2801, %v2795
        %v5088 = vpack.c.b16 %v2802, %v2796
        %v5089 = vpack.c.b16 %v2809, %v2803
        %v5090 = vpack.c.b16 %v2810, %v2804
        %v5091 = vpack.c.b16 %v2811, %v2805
        %v5092 = vpack.c.b16 %v2812, %v2806
        %v5093 = vpack.c.b16 %v2813, %v2807
        %v5094 = vpack.c.b16 %v2814, %v2808
        %v5095 = vpack.c.b16 %v2821, %v2815
        %v5096 = vpack.c.b16 %v2822, %v2816
        %v5097 = vpack.c.b16 %v2823, %v2817
        %v5098 = vpack.c.b16 %v2824, %v2818
        %v5099 = vpack.c.b16 %v2825, %v2819
        %v5100 = vpack.c.b16 %v2826, %v2820
        %v5101 = vpack.c.b16 %v2833, %v2827
        %v5102 = vpack.c.b16 %v2834, %v2828
        %v5103 = vpack.c.b16 %v2835, %v2829
        %v5104 = vpack.c.b16 %v2836, %v2830
        %v5105 = vpack.c.b16 %v2837, %v2831
        %v5106 = vpack.c.b16 %v2838, %v2832
        %v5107 = vpack.c.b16 %v2845, %v2839
        %v5108 = vpack.c.b16 %v2846, %v2840
        %v5109 = vpack.c.b16 %v2847, %v2841
        %v5110 = vpack.c.b16 %v2848, %v2842
        %v5111 = vpack.c.b16 %v2849, %v2843
        %v5112 = vpack.c.b16 %v2850, %v2844
        %v5113 = vpack.c.b16 %v2857, %v2851
        %v5114 = vpack.c.b16 %v2858, %v2852
        %v5115 = vpack.c.b16 %v2859, %v2853
        %v5116 = vpack.c.b16 %v2860, %v2854
        %v5117 = vpack.c.b16 %v2861, %v2855
        %v5118 = vpack.c.b16 %v2862, %v2856
        %v5119 = vpack.c.b16 %v2869, %v2863
        %v5120 = vpack.c.b16 %v2870, %v2864
        %v5121 = vpack.c.b16 %v2871, %v2865
        %v5122 = vpack.c.b16 %v2872, %v2866
        %v5123 = vpack.c.b16 %v2873, %v2867
        %v5124 = vpack.c.b16 %v2874, %v2868
        %v5125 = vpack.c.b16 %v2881, %v2875
        %v5126 = vpack.c.b16 %v2882, %v2876
        %v5127 = vpack.c.b16 %v2883, %v2877
        %v5128 = vpack.c.b16 %v2884, %v2878
        %v5129 = vpack.c.b16 %v2885, %v2879
        %v5130 = vpack.c.b16 %v2886, %v2880
        %v5131 = vpack.c.b16 %v2893, %v2887
        %v5132 = vpack.c.b16 %v2894, %v2888
        %v5133 = vpack.c.b16 %v2895, %v2889
        %v5134 = vpack.c.b16 %v2896, %v2890
        %v5135 = vpack.c.b16 %v2897, %v2891
        %v5136 = vpack.c.b16 %v2898, %v2892
        %v5137 = vpack.c.b16 %v2905, %v2899
        %v5138 = vpack.c.b16 %v2906, %v2900
        %v5139 = vpack.c.b16 %v2907, %v2901
        %v5140 = vpack.c.b16 %v2908, %v2902
        %v5141 = vpack.c.b16 %v2909, %v2903
        %v5142 = vpack.c.b16 %v2910, %v2904
        %v5143 = vpack.c.b16 %v2917, %v2911
        %v5144 = vpack.c.b16 %v2918, %v2912
        %v5145 = vpack.c.b16 %v2919, %v2913
        %v5146 = vpack.c.b16 %v2920, %v2914
        %v5147 = vpack.c.b16 %v2921, %v2915
        %v5148 = vpack.c.b16 %v2922, %v2916
        %v5149 = vpack.c.b16 %v2929, %v2923
        %v5150 = vpack.c.b16 %v2930, %v2924
        %v5151 = vpack.c.b16 %v2931, %v2925
        %v5152 = vpack.c.b16 %v2932, %v2926
        %v5153 = vpack.c.b16 %v2933, %v2927
        %v5154 = vpack.c.b16 %v2934, %v2928
        %v5155 = vpack.c.b16 %v2941, %v2935
        %v5156 = vpack.c.b16 %v2942, %v2936
        %v5157 = vpack.c.b16 %v2943, %v2937
        %v5158 = vpack.c.b16 %v2944, %v2938
        %v5159 = vpack.c.b16 %v2945, %v2939
        %v5160 = vpack.c.b16 %v2946, %v2940
        %v5161 = vpack.c.b16 %v2953, %v2947
        %v5162 = vpack.c.b16 %v2954, %v2948
        %v5163 = vpack.c.b16 %v2955, %v2949
        %v5164 = vpack.c.b16 %v2956, %v2950
        %v5165 = vpack.c.b16 %v2957, %v2951
        %v5166 = vpack.c.b16 %v2958, %v2952
        %v5167 = vpack.c.b16 %v2965, %v2959
        %v5168 = vpack.c.b16 %v2966, %v2960
        %v5169 = vpack.c.b16 %v2967, %v2961
        %v5170 = vpack.c.b16 %v2968, %v2962
        %v5171 = vpack.c.b16 %v2969, %v2963
        %v5172 = vpack.c.b16 %v2970, %v2964
        %v5173 = vpack.c.b16 %v2977, %v2971
        %v5174 = vpack.c.b16 %v2978, %v2972
        %v5175 = vpack.c.b16 %v2979, %v2973
        %v5176 = vpack.c.b16 %v2980, %v2974
        %v5177 = vpack.c.b16 %v2981, %v2975
        %v5178 = vpack.c.b16 %v2982, %v2976
        %v5179 = vpack.c.b16 %v2989, %v2983
        %v5180 = vpack.c.b16 %v2990, %v2984
        %v5181 = vpack.c.b16 %v2991, %v2985
        %v5182 = vpack.c.b16 %v2992, %v2986
        %v5183 = vpack.c.b16 %v2993, %v2987
        %v5184 = vpack.c.b16 %v2994, %v2988
        %v5185 = vpack.c.b16 %v3001, %v2995
        %v5186 = vpack.c.b16 %v3002, %v2996
        %v5187 = vpack.c.b16 %v3003, %v2997
        %v5188 = vpack.c.b16 %v3004, %v2998
        %v5189 = vpack.c.b16 %v3005, %v2999
        %v5190 = vpack.c.b16 %v3006, %v3000
        %v5191 = vpack.c.b16 %v3013, %v3007
        %v5192 = vpack.c.b16 %v3014, %v3008
        %v5193 = vpack.c.b16 %v3015, %v3009
        %v5194 = vpack.c.b16 %v3016, %v3010
        %v5195 = vpack.c.b16 %v3017, %v3011
        %v5196 = vpack.c.b16 %v3018, %v3012
        %v5197 = vpack.c.b16 %v3025, %v3019
        %v5198 = vpack.c.b16 %v3026, %v3020
        %v5199 = vpack.c.b16 %v3027, %v3021
        %v5200 = vpack.c.b16 %v3028, %v3022
        %v5201 = vpack.c.b16 %v3029, %v3023
        %v5202 = vpack.c.b16 %v3030, %v3024
        %v5203 = vpack.c.b16 %v3037, %v3031
        %v5204 = vpack.c.b16 %v3038, %v3032
        %v5205 = vpack.c.b16 %v3039, %v3033
        %v5206 = vpack.c.b16 %v3040, %v3034
        %v5207 = vpack.c.b16 %v3041, %v3035
        %v5208 = vpack.c.b16 %v3042, %v3036
        %v5209 = vpack.c.b16 %v3049, %v3043
        %v5210 = vpack.c.b16 %v3050, %v3044
        %v5211 = vpack.c.b16 %v3051, %v3045
        %v5212 = vpack.c.b16 %v3052, %v3046
        %v5213 = vpack.c.b16 %v3053, %v3047
        %v5214 = vpack.c.b16 %v3054, %v3048
        %v5215 = vpack.c.b16 %v3061, %v3055
        %v5216 = vpack.c.b16 %v3062, %v3056
        %v5217 = vpack.c.b16 %v3063, %v3057
        %v5218 = vpack.c.b16 %v3064, %v3058
        %v5219 = vpack.c.b16 %v3065, %v3059
        %v5220 = vpack.c.b16 %v3066, %v3060
        %v5221 = vpack.c.b16 %v3073, %v3067
        %v5222 = vpack.c.b16 %v3074, %v3068
        %v5223 = vpack.c.b16 %v3075, %v3069
        %v5224 = vpack.c.b16 %v3076, %v3070
        %v5225 = vpack.c.b16 %v3077, %v3071
        %v5226 = vpack.c.b16 %v3078, %v3072
        %v5227 = vpack.c.b16 %v3085, %v3079
        %v5228 = vpack.c.b16 %v3086, %v3080
        %v5229 = vpack.c.b16 %v3087, %v3081
        %v5230 = vpack.c.b16 %v3088, %v3082
        %v5231 = vpack.c.b16 %v3089, %v3083
        %v5232 = vpack.c.b16 %v3090, %v3084
        %v5233 = vpack.c.b16 %v3097, %v3091
        %v5234 = vpack.c.b16 %v3098, %v3092
        %v5235 = vpack.c.b16 %v3099, %v3093
        %v5236 = vpack.c.b16 %v3100, %v3094
        %v5237 = vpack.c.b16 %v3101, %v3095
        %v5238 = vpack.c.b16 %v3102, %v3096
        %v5239 = vpack.c.b16 %v3109, %v3103
        %v5240 = vpack.c.b16 %v3110, %v3104
        %v5241 = vpack.c.b16 %v3111, %v3105
        %v5242 = vpack.c.b16 %v3112, %v3106
        %v5243 = vpack.c.b16 %v3113, %v3107
        %v5244 = vpack.c.b16 %v3114, %v3108
        %v5245 = vpack.c.b16 %v3121, %v3115
        %v5246 = vpack.c.b16 %v3122, %v3116
        %v5247 = vpack.c.b16 %v3123, %v3117
        %v5248 = vpack.c.b16 %v3124, %v3118
        %v5249 = vpack.c.b16 %v3125, %v3119
        %v5250 = vpack.c.b16 %v3126, %v3120
        %v5251 = vpack.c.b16 %v3133, %v3127
        %v5252 = vpack.c.b16 %v3134, %v3128
        %v5253 = vpack.c.b16 %v3135, %v3129
        %v5254 = vpack.c.b16 %v3136, %v3130
        %v5255 = vpack.c.b16 %v3137, %v3131
        %v5256 = vpack.c.b16 %v3138, %v3132
        %v5257 = vpack.c.b16 %v3145, %v3139
        %v5258 = vpack.c.b16 %v3146, %v3140
        %v5259 = vpack.c.b16 %v3147, %v3141
        %v5260 = vpack.c.b16 %v3148, %v3142
        %v5261 = vpack.c.b16 %v3149, %v3143
        %v5262 = vpack.c.b16 %v3150, %v3144
        %v5263 = vpack.c.b16 %v3157, %v3151
        %v5264 = vpack.c.b16 %v3158, %v3152
        %v5265 = vpack.c.b16 %v3159, %v3153
        %v5266 = vpack.c.b16 %v3160, %v3154
        %v5267 = vpack.c.b16 %v3161, %v3155
        %v5268 = vpack.c.b16 %v3162, %v3156
        %v5269 = vpack.c.b16 %v3169, %v3163
        %v5270 = vpack.c.b16 %v3170, %v3164
        %v5271 = vpack.c.b16 %v3171, %v3165
        %v5272 = vpack.c.b16 %v3172, %v3166
        %v5273 = vpack.c.b16 %v3173, %v3167
        %v5274 = vpack.c.b16 %v3174, %v3168
        %v5275 = vpack.c.b16 %v3181, %v3175
        %v5276 = vpack.c.b16 %v3182, %v3176
        %v5277 = vpack.c.b16 %v3183, %v3177
        %v5278 = vpack.c.b16 %v3184, %v3178
        %v5279 = vpack.c.b16 %v3185, %v3179
        %v5280 = vpack.c.b16 %v3186, %v3180
        %v5281 = vpack.c.b16 %v3193, %v3187
        %v5282 = vpack.c.b16 %v3194, %v3188
        %v5283 = vpack.c.b16 %v3195, %v3189
        %v5284 = vpack.c.b16 %v3196, %v3190
        %v5285 = vpack.c.b16 %v3197, %v3191
        %v5286 = vpack.c.b16 %v3198, %v3192
        %v5287 = vpack.c.b16 %v3205, %v3199
        %v5288 = vpack.c.b16 %v3206, %v3200
        %v5289 = vpack.c.b16 %v3207, %v3201
        %v5290 = vpack.c.b16 %v3208, %v3202
        %v5291 = vpack.c.b16 %v3209, %v3203
        %v5292 = vpack.c.b16 %v3210, %v3204
        %v5293 = vpack.c.b16 %v3217, %v3211
        %v5294 = vpack.c.b16 %v3218, %v3212
        %v5295 = vpack.c.b16 %v3219, %v3213
        %v5296 = vpack.c.b16 %v3220, %v3214
        %v5297 = vpack.c.b16 %v3221, %v3215
        %v5298 = vpack.c.b16 %v3222, %v3216
        %v5299 = vpack.c.b16 %v3229, %v3223
        %v5300 = vpack.c.b16 %v3230, %v3224
        %v5301 = vpack.c.b16 %v3231, %v3225
        %v5302 = vpack.c.b16 %v3232, %v3226
        %v5303 = vpack.c.b16 %v3233, %v3227
        %v5304 = vpack.c.b16 %v3234, %v3228
        %v5305 = vpack.c.b16 %v3241, %v3235
        %v5306 = vpack.c.b16 %v3242, %v3236
        %v5307 = vpack.c.b16 %v3243, %v3237
        %v5308 = vpack.c.b16 %v3244, %v3238
        %v5309 = vpack.c.b16 %v3245, %v3239
        %v5310 = vpack.c.b16 %v3246, %v3240
        %v5311 = vpack.c.b16 %v3253, %v3247
        %v5312 = vpack.c.b16 %v3254, %v3248
        %v5313 = vpack.c.b16 %v3255, %v3249
        %v5314 = vpack.c.b16 %v3256, %v3250
        %v5315 = vpack.c.b16 %v3257, %v3251
        %v5316 = vpack.c.b16 %v3258, %v3252
        %v5317 = vpack.c.b16 %v3265, %v3259
        %v5318 = vpack.c.b16 %v3266, %v3260
        %v5319 = vpack.c.b16 %v3267, %v3261
        %v5320 = vpack.c.b16 %v3268, %v3262
        %v5321 = vpack.c.b16 %v3269, %v3263
        %v5322 = vpack.c.b16 %v3270, %v3264
        %v5323 = vpack.c.b16 %v3277, %v3271
        %v5324 = vpack.c.b16 %v3278, %v3272
        %v5325 = vpack.c.b16 %v3279, %v3273
        %v5326 = vpack.c.b16 %v3280, %v3274
        %v5327 = vpack.c.b16 %v3281, %v3275
        %v5328 = vpack.c.b16 %v3282, %v3276
        %v5329 = vpack.c.b16 %v3289, %v3283
        %v5330 = vpack.c.b16 %v3290, %v3284
        %v5331 = vpack.c.b16 %v3291, %v3285
        %v5332 = vpack.c.b16 %v3292, %v3286
        %v5333 = vpack.c.b16 %v3293, %v3287
        %v5334 = vpack.c.b16 %v3294, %v3288
        %v5335 = vpack.c.b16 %v3301, %v3295
        %v5336 = vpack.c.b16 %v3302, %v3296
        %v5337 = vpack.c.b16 %v3303, %v3297
        %v5338 = vpack.c.b16 %v3304, %v3298
        %v5339 = vpack.c.b16 %v3305, %v3299
        %v5340 = vpack.c.b16 %v3306, %v3300
        %v5341 = vpack.c.b16 %v3313, %v3307
        %v5342 = vpack.c.b16 %v3314, %v3308
        %v5343 = vpack.c.b16 %v3315, %v3309
        %v5344 = vpack.c.b16 %v3316, %v3310
        %v5345 = vpack.c.b16 %v3317, %v3311
        %v5346 = vpack.c.b16 %v3318, %v3312
        %v5347 = vpack.c.b16 %v3325, %v3319
        %v5348 = vpack.c.b16 %v3326, %v3320
        %v5349 = vpack.c.b16 %v3327, %v3321
        %v5350 = vpack.c.b16 %v3328, %v3322
        %v5351 = vpack.c.b16 %v3329, %v3323
        %v5352 = vpack.c.b16 %v3330, %v3324
        %v5353 = vpack.c.b16 %v3337, %v3331
        %v5354 = vpack.c.b16 %v3338, %v3332
        %v5355 = vpack.c.b16 %v3339, %v3333
        %v5356 = vpack.c.b16 %v3340, %v3334
        %v5357 = vpack.c.b16 %v3341, %v3335
        %v5358 = vpack.c.b16 %v3342, %v3336
        %v5359 = vpack.c.b16 %v3349, %v3343
        %v5360 = vpack.c.b16 %v3350, %v3344
        %v5361 = vpack.c.b16 %v3351, %v3345
        %v5362 = vpack.c.b16 %v3352, %v3346
        %v5363 = vpack.c.b16 %v3353, %v3347
        %v5364 = vpack.c.b16 %v3354, %v3348
        %v5365 = vpack.c.b16 %v3361, %v3355
        %v5366 = vpack.c.b16 %v3362, %v3356
        %v5367 = vpack.c.b16 %v3363, %v3357
        %v5368 = vpack.c.b16 %v3364, %v3358
        %v5369 = vpack.c.b16 %v3365, %v3359
        %v5370 = vpack.c.b16 %v3366, %v3360
        %v5371 = vpack.c.b16 %v3373, %v3367
        %v5372 = vpack.c.b16 %v3374, %v3368
        %v5373 = vpack.c.b16 %v3375, %v3369
        %v5374 = vpack.c.b16 %v3376, %v3370
        %v5375 = vpack.c.b16 %v3377, %v3371
        %v5376 = vpack.c.b16 %v3378, %v3372
        %v5377 = vpack.c.b16 %v3385, %v3379
        %v5378 = vpack.c.b16 %v3386, %v3380
        %v5379 = vpack.c.b16 %v3387, %v3381
        %v5380 = vpack.c.b16 %v3388, %v3382
        %v5381 = vpack.c.b16 %v3389, %v3383
        %v5382 = vpack.c.b16 %v3390, %v3384
        %v5383 = vpack.c.b16 %v3397, %v3391
        %v5384 = vpack.c.b16 %v3398, %v3392
        %v5385 = vpack.c.b16 %v3399, %v3393
        %v5386 = vpack.c.b16 %v3400, %v3394
        %v5387 = vpack.c.b16 %v3401, %v3395
        %v5388 = vpack.c.b16 %v3402, %v3396
        %v5389 = vpack.c.b16 %v3409, %v3403
        %v5390 = vpack.c.b16 %v3410, %v3404
        %v5391 = vpack.c.b16 %v3411, %v3405
        %v5392 = vpack.c.b16 %v3412, %v3406
        %v5393 = vpack.c.b16 %v3413, %v3407
        %v5394 = vpack.c.b16 %v3414, %v3408
        %v5395 = vpack.c.b16 %v3421, %v3415
        %v5396 = vpack.c.b16 %v3422, %v3416
        %v5397 = vpack.c.b16 %v3423, %v3417
        %v5398 = vpack.c.b16 %v3424, %v3418
        %v5399 = vpack.c.b16 %v3425, %v3419
        %v5400 = vpack.c.b16 %v3426, %v3420
        %v5401 = vpack.c.b16 %v3433, %v3427
        %v5402 = vpack.c.b16 %v3434, %v3428
        %v5403 = vpack.c.b16 %v3435, %v3429
        %v5404 = vpack.c.b16 %v3436, %v3430
        %v5405 = vpack.c.b16 %v3437, %v3431
        %v5406 = vpack.c.b16 %v3438, %v3432
        %v5407 = vpack.c.b16 %v3445, %v3439
        %v5408 = vpack.c.b16 %v3446, %v3440
        %v5409 = vpack.c.b16 %v3447, %v3441
        %v5410 = vpack.c.b16 %v3448, %v3442
        %v5411 = vpack.c.b16 %v3449, %v3443
        %v5412 = vpack.c.b16 %v3450, %v3444
        %v5413 = vpack.c.b16 %v3457, %v3451
        %v5414 = vpack.c.b16 %v3458, %v3452
        %v5415 = vpack.c.b16 %v3459, %v3453
        %v5416 = vpack.c.b16 %v3460, %v3454
        %v5417 = vpack.c.b16 %v3461, %v3455
        %v5418 = vpack.c.b16 %v3462, %v3456
        %v5419 = vpack.c.b16 %v3469, %v3463
        %v5420 = vpack.c.b16 %v3470, %v3464
        %v5421 = vpack.c.b16 %v3471, %v3465
        %v5422 = vpack.c.b16 %v3472, %v3466
        %v5423 = vpack.c.b16 %v3473, %v3467
        %v5424 = vpack.c.b16 %v3474, %v3468
        %v5425 = vpack.c.b16 %v3481, %v3475
        %v5426 = vpack.c.b16 %v3482, %v3476
        %v5427 = vpack.c.b16 %v3483, %v3477
        %v5428 = vpack.c.b16 %v3484, %v3478
        %v5429 = vpack.c.b16 %v3485, %v3479
        %v5430 = vpack.c.b16 %v3486, %v3480
        %v5431 = vpack.c.b16 %v3493, %v3487
        %v5432 = vpack.c.b16 %v3494, %v3488
        %v5433 = vpack.c.b16 %v3495, %v3489
        %v5434 = vpack.c.b16 %v3496, %v3490
        %v5435 = vpack.c.b16 %v3497, %v3491
        %v5436 = vpack.c.b16 %v3498, %v3492
        %v5437 = vpack.c.b16 %v3505, %v3499
        %v5438 = vpack.c.b16 %v3506, %v3500
        %v5439 = vpack.c.b16 %v3507, %v3501
        %v5440 = vpack.c.b16 %v3508, %v3502
        %v5441 = vpack.c.b16 %v3509, %v3503
        %v5442 = vpack.c.b16 %v3510, %v3504
        %v5443 = vpack.c.b16 %v3517, %v3511
        %v5444 = vpack.c.b16 %v3518, %v3512
        %v5445 = vpack.c.b16 %v3519, %v3513
        %v5446 = vpack.c.b16 %v3520, %v3514
        %v5447 = vpack.c.b16 %v3521, %v3515
        %v5448 = vpack.c.b16 %v3522, %v3516
        %v5449 = vpack.c.b16 %v3529, %v3523
        %v5450 = vpack.c.b16 %v3530, %v3524
        %v5451 = vpack.c.b16 %v3531, %v3525
        %v5452 = vpack.c.b16 %v3532, %v3526
        %v5453 = vpack.c.b16 %v3533, %v3527
        %v5454 = vpack.c.b16 %v3534, %v3528
        %v5455 = vpack.c.b16 %v3541, %v3535
        %v5456 = vpack.c.b16 %v3542, %v3536
        %v5457 = vpack.c.b16 %v3543, %v3537
        %v5458 = vpack.c.b16 %v3544, %v3538
        %v5459 = vpack.c.b16 %v3545, %v3539
        %v5460 = vpack.c.b16 %v3546, %v3540
        %v5461 = vpack.c.b16 %v3553, %v3547
        %v5462 = vpack.c.b16 %v3554, %v3548
        %v5463 = vpack.c.b16 %v3555, %v3549
        %v5464 = vpack.c.b16 %v3556, %v3550
        %v5465 = vpack.c.b16 %v3557, %v3551
        %v5466 = vpack.c.b16 %v3558, %v3552
        %v5467 = vpack.c.b16 %v3565, %v3559
        %v5468 = vpack.c.b16 %v3566, %v3560
        %v5469 = vpack.c.b16 %v3567, %v3561
        %v5470 = vpack.c.b16 %v3568, %v3562
        %v5471 = vpack.c.b16 %v3569, %v3563
        %v5472 = vpack.c.b16 %v3570, %v3564
        %v5473 = vpack.c.b16 %v3577, %v3571
        %v5474 = vpack.c.b16 %v3578, %v3572
        %v5475 = vpack.c.b16 %v3579, %v3573
        %v5476 = vpack.c.b16 %v3580, %v3574
        %v5477 = vpack.c.b16 %v3581, %v3575
        %v5478 = vpack.c.b16 %v3582, %v3576
        %v5479 = vpack.c.b16 %v3589, %v3583
        %v5480 = vpack.c.b16 %v3590, %v3584
        %v5481 = vpack.c.b16 %v3591, %v3585
        %v5482 = vpack.c.b16 %v3592, %v3586
        %v5483 = vpack.c.b16 %v3593, %v3587
        %v5484 = vpack.c.b16 %v3594, %v3588
        %v5485 = vpack.c.b16 %v3601, %v3595
        %v5486 = vpack.c.b16 %v3602, %v3596
        %v5487 = vpack.c.b16 %v3603, %v3597
        %v5488 = vpack.c.b16 %v3604, %v3598
        %v5489 = vpack.c.b16 %v3605, %v3599
        %v5490 = vpack.c.b16 %v3606, %v3600
        %v5491 = vpack.c.b16 %v3613, %v3607
        %v5492 = vpack.c.b16 %v3614, %v3608
        %v5493 = vpack.c.b16 %v3615, %v3609
        %v5494 = vpack.c.b16 %v3616, %v3610
        %v5495 = vpack.c.b16 %v3617, %v3611
        %v5496 = vpack.c.b16 %v3618, %v3612
        %v5497 = vpack.c.b16 %v3625, %v3619
        %v5498 = vpack.c.b16 %v3626, %v3620
        %v5499 = vpack.c.b16 %v3627, %v3621
        %v5500 = vpack.c.b16 %v3628, %v3622
        %v5501 = vpack.c.b16 %v3629, %v3623
        %v5502 = vpack.c.b16 %v3630, %v3624
        %v5503 = vpack.c.b16 %v3637, %v3631
        %v5504 = vpack.c.b16 %v3638, %v3632
        %v5505 = vpack.c.b16 %v3639, %v3633
        %v5506 = vpack.c.b16 %v3640, %v3634
        %v5507 = vpack.c.b16 %v3641, %v3635
        %v5508 = vpack.c.b16 %v3642, %v3636
        %v5509 = vpack.c.b16 %v3649, %v3643
        %v5510 = vpack.c.b16 %v3650, %v3644
        %v5511 = vpack.c.b16 %v3651, %v3645
        %v5512 = vpack.c.b16 %v3652, %v3646
        %v5513 = vpack.c.b16 %v3653, %v3647
        %v5514 = vpack.c.b16 %v3654, %v3648
        %v5515 = vpack.c.b16 %v3661, %v3655
        %v5516 = vpack.c.b16 %v3662, %v3656
        %v5517 = vpack.c.b16 %v3663, %v3657
        %v5518 = vpack.c.b16 %v3664, %v3658
        %v5519 = vpack.c.b16 %v3665, %v3659
        %v5520 = vpack.c.b16 %v3666, %v3660
        %v5521 = vpack.c.b16 %v3673, %v3667
        %v5522 = vpack.c.b16 %v3674, %v3668
        %v5523 = vpack.c.b16 %v3675, %v3669
        %v5524 = vpack.c.b16 %v3676, %v3670
        %v5525 = vpack.c.b16 %v3677, %v3671
        %v5526 = vpack.c.b16 %v3678, %v3672
        %v5527 = vpack.c.b16 %v3685, %v3679
        %v5528 = vpack.c.b16 %v3686, %v3680
        %v5529 = vpack.c.b16 %v3687, %v3681
        %v5530 = vpack.c.b16 %v3688, %v3682
        %v5531 = vpack.c.b16 %v3689, %v3683
        %v5532 = vpack.c.b16 %v3690, %v3684
        %v5533 = vpack.c.b16 %v3697, %v3691
        %v5534 = vpack.c.b16 %v3698, %v3692
        %v5535 = vpack.c.b16 %v3699, %v3693
        %v5536 = vpack.c.b16 %v3700, %v3694
        %v5537 = vpack.c.b16 %v3701, %v3695
        %v5538 = vpack.c.b16 %v3702, %v3696
        %v5539 = vpack.c.b16 %v3709, %v3703
        %v5540 = vpack.c.b16 %v3710, %v3704
        %v5541 = vpack.c.b16 %v3711, %v3705
        %v5542 = vpack.c.b16 %v3712, %v3706
        %v5543 = vpack.c.b16 %v3713, %v3707
        %v5544 = vpack.c.b16 %v3714, %v3708
        %v5545 = vpack.c.b16 %v3721, %v3715
        %v5546 = vpack.c.b16 %v3722, %v3716
        %v5547 = vpack.c.b16 %v3723, %v3717
        %v5548 = vpack.c.b16 %v3724, %v3718
        %v5549 = vpack.c.b16 %v3725, %v3719
        %v5550 = vpack.c.b16 %v3726, %v3720
        %v5551 = vpack.c.b16 %v3733, %v3727
        %v5552 = vpack.c.b16 %v3734, %v3728
        %v5553 = vpack.c.b16 %v3735, %v3729
        %v5554 = vpack.c.b16 %v3736, %v3730
        %v5555 = vpack.c.b16 %v3737, %v3731
        %v5556 = vpack.c.b16 %v3738, %v3732
        %v5557 = vpack.c.b16 %v3745, %v3739
        %v5558 = vpack.c.b16 %v3746, %v3740
        %v5559 = vpack.c.b16 %v3747, %v3741
        %v5560 = vpack.c.b16 %v3748, %v3742
        %v5561 = vpack.c.b16 %v3749, %v3743
        %v5562 = vpack.c.b16 %v3750, %v3744
        %v5563 = vpack.c.b16 %v3757, %v3751
        %v5564 = vpack.c.b16 %v3758, %v3752
        %v5565 = vpack.c.b16 %v3759, %v3753
        %v5566 = vpack.c.b16 %v3760, %v3754
        %v5567 = vpack.c.b16 %v3761, %v3755
        %v5568 = vpack.c.b16 %v3762, %v3756
        %v5569 = vpack.c.b16 %v3769, %v3763
        %v5570 = vpack.c.b16 %v3770, %v3764
        %v5571 = vpack.c.b16 %v3771, %v3765
        %v5572 = vpack.c.b16 %v3772, %v3766
        %v5573 = vpack.c.b16 %v3773, %v3767
        %v5574 = vpack.c.b16 %v3774, %v3768
        %v5575 = vpack.c.b16 %v3781, %v3775
        %v5576 = vpack.c.b16 %v3782, %v3776
        %v5577 = vpack.c.b16 %v3783, %v3777
        %v5578 = vpack.c.b16 %v3784, %v3778
        %v5579 = vpack.c.b16 %v3785, %v3779
        %v5580 = vpack.c.b16 %v3786, %v3780
        %v5581 = vpack.c.b16 %v3793, %v3787
        %v5582 = vpack.c.b16 %v3794, %v3788
        %v5583 = vpack.c.b16 %v3795, %v3789
        %v5584 = vpack.c.b16 %v3796, %v3790
        %v5585 = vpack.c.b16 %v3797, %v3791
        %v5586 = vpack.c.b16 %v3798, %v3792
        %v5587 = vpack.c.b16 %v3805, %v3799
        %v5588 = vpack.c.b16 %v3806, %v3800
        %v5589 = vpack.c.b16 %v3807, %v3801
        %v5590 = vpack.c.b16 %v3808, %v3802
        %v5591 = vpack.c.b16 %v3809, %v3803
        %v5592 = vpack.c.b16 %v3810, %v3804
        %v5593 = vpack.c.b16 %v3817, %v3811
        %v5594 = vpack.c.b16 %v3818, %v3812
        %v5595 = vpack.c.b16 %v3819, %v3813
        %v5596 = vpack.c.b16 %v3820, %v3814
        %v5597 = vpack.c.b16 %v3821, %v3815
        %v5598 = vpack.c.b16 %v3822, %v3816
        %v5599 = vpack.c.b16 %v3829, %v3823
        %v5600 = vpack.c.b16 %v3830, %v3824
        %v5601 = vpack.c.b16 %v3831, %v3825
        %v5602 = vpack.c.b16 %v3832, %v3826
        %v5603 = vpack.c.b16 %v3833, %v3827
        %v5604 = vpack.c.b16 %v3834, %v3828
        %v5605 = vpack.c.b16 %v3841, %v3835
        %v5606 = vpack.c.b16 %v3842, %v3836
        %v5607 = vpack.c.b16 %v3843, %v3837
        %v5608 = vpack.c.b16 %v3844, %v3838
        %v5609 = vpack.c.b16 %v3845, %v3839
        %v5610 = vpack.c.b16 %v3846, %v3840
        %v5611 = vpack.c.b16 %v3853, %v3847
        %v5612 = vpack.c.b16 %v3854, %v3848
        %v5613 = vpack.c.b16 %v3855, %v3849
        %v5614 = vpack.c.b16 %v3856, %v3850
        %v5615 = vpack.c.b16 %v3857, %v3851
        %v5616 = vpack.c.b16 %v3858, %v3852
        %v5617 = vpack.c.b16 %v3865, %v3859
        %v5618 = vpack.c.b16 %v3866, %v3860
        %v5619 = vpack.c.b16 %v3867, %v3861
        %v5620 = vpack.c.b16 %v3868, %v3862
        %v5621 = vpack.c.b16 %v3869, %v3863
        %v5622 = vpack.c.b16 %v3870, %v3864
        %v5623 = vpack.c.b16 %v3877, %v3871
        %v5624 = vpack.c.b16 %v3878, %v3872
        %v5625 = vpack.c.b16 %v3879, %v3873
        %v5626 = vpack.c.b16 %v3880, %v3874
        %v5627 = vpack.c.b16 %v3881, %v3875
        %v5628 = vpack.c.b16 %v3882, %v3876
        %v5629 = vpack.c.b16 %v3889, %v3883
        %v5630 = vpack.c.b16 %v3890, %v3884
        %v5631 = vpack.c.b16 %v3891, %v3885
        %v5632 = vpack.c.b16 %v3892, %v3886
        %v5633 = vpack.c.b16 %v3893, %v3887
        %v5634 = vpack.c.b16 %v3894, %v3888
        %v5635 = vpack.c.b16 %v3901, %v3895
        %v5636 = vpack.c.b16 %v3902, %v3896
        %v5637 = vpack.c.b16 %v3903, %v3897
        %v5638 = vpack.c.b16 %v3904, %v3898
        %v5639 = vpack.c.b16 %v3905, %v3899
        %v5640 = vpack.c.b16 %v3906, %v3900
        %v5641 = vpack.c.b16 %v3913, %v3907
        %v5642 = vpack.c.b16 %v3914, %v3908
        %v5643 = vpack.c.b16 %v3915, %v3909
        %v5644 = vpack.c.b16 %v3916, %v3910
        %v5645 = vpack.c.b16 %v3917, %v3911
        %v5646 = vpack.c.b16 %v3918, %v3912
        %v5647 = vpack.c.b16 %v3925, %v3919
        %v5648 = vpack.c.b16 %v3926, %v3920
        %v5649 = vpack.c.b16 %v3927, %v3921
        %v5650 = vpack.c.b16 %v3928, %v3922
        %v5651 = vpack.c.b16 %v3929, %v3923
        %v5652 = vpack.c.b16 %v3930, %v3924
        %v5653 = vpack.c.b16 %v3937, %v3931
        %v5654 = vpack.c.b16 %v3938, %v3932
        %v5655 = vpack.c.b16 %v3939, %v3933
        %v5656 = vpack.c.b16 %v3940, %v3934
        %v5657 = vpack.c.b16 %v3941, %v3935
        %v5658 = vpack.c.b16 %v3942, %v3936
        %v5659 = vpack.c.b16 %v3949, %v3943
        %v5660 = vpack.c.b16 %v3950, %v3944
        %v5661 = vpack.c.b16 %v3951, %v3945
        %v5662 = vpack.c.b16 %v3952, %v3946
        %v5663 = vpack.c.b16 %v3953, %v3947
        %v5664 = vpack.c.b16 %v3954, %v3948
        %v5665 = vpack.c.b16 %v3961, %v3955
        %v5666 = vpack.c.b16 %v3962, %v3956
        %v5667 = vpack.c.b16 %v3963, %v3957
        %v5668 = vpack.c.b16 %v3964, %v3958
        %v5669 = vpack.c.b16 %v3965, %v3959
        %v5670 = vpack.c.b16 %v3966, %v3960
        %v5671 = vpack.c.b16 %v3973, %v3967
        %v5672 = vpack.c.b16 %v3974, %v3968
        %v5673 = vpack.c.b16 %v3975, %v3969
        %v5674 = vpack.c.b16 %v3976, %v3970
        %v5675 = vpack.c.b16 %v3977, %v3971
        %v5676 = vpack.c.b16 %v3978, %v3972
        %v5677 = vpack.c.b16 %v3985, %v3979
        %v5678 = vpack.c.b16 %v3986, %v3980
        %v5679 = vpack.c.b16 %v3987, %v3981
        %v5680 = vpack.c.b16 %v3988, %v3982
        %v5681 = vpack.c.b16 %v3989, %v3983
        %v5682 = vpack.c.b16 %v3990, %v3984
        %v5683 = vpack.c.b16 %v3997, %v3991
        %v5684 = vpack.c.b16 %v3998, %v3992
        %v5685 = vpack.c.b16 %v3999, %v3993
        %v5686 = vpack.c.b16 %v4000, %v3994
        %v5687 = vpack.c.b16 %v4001, %v3995
        %v5688 = vpack.c.b16 %v4002, %v3996
        %v5689 = vpack.c.b16 %v4009, %v4003
        %v5690 = vpack.c.b16 %v4010, %v4004
        %v5691 = vpack.c.b16 %v4011, %v4005
        %v5692 = vpack.c.b16 %v4012, %v4006
        %v5693 = vpack.c.b16 %v4013, %v4007
        %v5694 = vpack.c.b16 %v4014, %v4008
        %v5695 = vpack.c.b16 %v4021, %v4015
        %v5696 = vpack.c.b16 %v4022, %v4016
        %v5697 = vpack.c.b16 %v4023, %v4017
        %v5698 = vpack.c.b16 %v4024, %v4018
        %v5699 = vpack.c.b16 %v4025, %v4019
        %v5700 = vpack.c.b16 %v4026, %v4020
        %v5701 = vpack.c.b16 %v4033, %v4027
        %v5702 = vpack.c.b16 %v4034, %v4028
        %v5703 = vpack.c.b16 %v4035, %v4029
        %v5704 = vpack.c.b16 %v4036, %v4030
        %v5705 = vpack.c.b16 %v4037, %v4031
        %v5706 = vpack.c.b16 %v4038, %v4032
        %v5707 = vpack.c.b16 %v4045, %v4039
        %v5708 = vpack.c.b16 %v4046, %v4040
        %v5709 = vpack.c.b16 %v4047, %v4041
        %v5710 = vpack.c.b16 %v4048, %v4042
        %v5711 = vpack.c.b16 %v4049, %v4043
        %v5712 = vpack.c.b16 %v4050, %v4044
        %v5713 = vpack.c.b16 %v4057, %v4051
        %v5714 = vpack.c.b16 %v4058, %v4052
        %v5715 = vpack.c.b16 %v4059, %v4053
        %v5716 = vpack.c.b16 %v4060, %v4054
        %v5717 = vpack.c.b16 %v4061, %v4055
        %v5718 = vpack.c.b16 %v4062, %v4056
        %v5719 = vpack.c.b16 %v4069, %v4063
        %v5720 = vpack.c.b16 %v4070, %v4064
        %v5721 = vpack.c.b16 %v4071, %v4065
        %v5722 = vpack.c.b16 %v4072, %v4066
        %v5723 = vpack.c.b16 %v4073, %v4067
        %v5724 = vpack.c.b16 %v4074, %v4068
        %v5725 = vpack.c.b16 %v4081, %v4075
        %v5726 = vpack.c.b16 %v4082, %v4076
        %v5727 = vpack.c.b16 %v4083, %v4077
        %v5728 = vpack.c.b16 %v4084, %v4078
        %v5729 = vpack.c.b16 %v4085, %v4079
        %v5730 = vpack.c.b16 %v4086, %v4080
        %v5731 = vpack.c.b16 %v4093, %v4087
        %v5732 = vpack.c.b16 %v4094, %v4088
        %v5733 = vpack.c.b16 %v4095, %v4089
        %v5734 = vpack.c.b16 %v4096, %v4090
        %v5735 = vpack.c.b16 %v4097, %v4091
        %v5736 = vpack.c.b16 %v4098, %v4092
        %v5737 = vpack.c.b16 %v4105, %v4099
        %v5738 = vpack.c.b16 %v4106, %v4100
        %v5739 = vpack.c.b16 %v4107, %v4101
        %v5740 = vpack.c.b16 %v4108, %v4102
        %v5741 = vpack.c.b16 %v4109, %v4103
        %v5742 = vpack.c.b16 %v4110, %v4104
        %v5743 = vpack.c.b16 %v4117, %v4111
        %v5744 = vpack.c.b16 %v4118, %v4112
        %v5745 = vpack.c.b16 %v4119, %v4113
        %v5746 = vpack.c.b16 %v4120, %v4114
        %v5747 = vpack.c.b16 %v4121, %v4115
        %v5748 = vpack.c.b16 %v4122, %v4116
        %v5749 = vpack.c.b16 %v4129, %v4123
        %v5750 = vpack.c.b16 %v4130, %v4124
        %v5751 = vpack.c.b16 %v4131, %v4125
        %v5752 = vpack.c.b16 %v4132, %v4126
        %v5753 = vpack.c.b16 %v4133, %v4127
        %v5754 = vpack.c.b16 %v4134, %v4128
        %v5755 = vpack.c.b16 %v4141, %v4135
        %v5756 = vpack.c.b16 %v4142, %v4136
        %v5757 = vpack.c.b16 %v4143, %v4137
        %v5758 = vpack.c.b16 %v4144, %v4138
        %v5759 = vpack.c.b16 %v4145, %v4139
        %v5760 = vpack.c.b16 %v4146, %v4140
        %v5761 = vpack.c.b16 %v4153, %v4147
        %v5762 = vpack.c.b16 %v4154, %v4148
        %v5763 = vpack.c.b16 %v4155, %v4149
        %v5764 = vpack.c.b16 %v4156, %v4150
        %v5765 = vpack.c.b16 %v4157, %v4151
        %v5766 = vpack.c.b16 %v4158, %v4152
        %v5767 = vpack.c.b16 %v4165, %v4159
        %v5768 = vpack.c.b16 %v4166, %v4160
        %v5769 = vpack.c.b16 %v4167, %v4161
        %v5770 = vpack.c.b16 %v4168, %v4162
        %v5771 = vpack.c.b16 %v4169, %v4163
        %v5772 = vpack.c.b16 %v4170, %v4164
        %v5773 = vpack.c.b16 %v4177, %v4171
        %v5774 = vpack.c.b16 %v4178, %v4172
        %v5775 = vpack.c.b16 %v4179, %v4173
        %v5776 = vpack.c.b16 %v4180, %v4174
        %v5777 = vpack.c.b16 %v4181, %v4175
        %v5778 = vpack.c.b16 %v4182, %v4176
        %v5779 = vpack.c.b16 %v4189, %v4183
        %v5780 = vpack.c.b16 %v4190, %v4184
        %v5781 = vpack.c.b16 %v4191, %v4185
        %v5782 = vpack.c.b16 %v4192, %v4186
        %v5783 = vpack.c.b16 %v4193, %v4187
        %v5784 = vpack.c.b16 %v4194, %v4188
        %v5785 = vpack.c.b16 %v4201, %v4195
        %v5786 = vpack.c.b16 %v4202, %v4196
        %v5787 = vpack.c.b16 %v4203, %v4197
        %v5788 = vpack.c.b16 %v4204, %v4198
        %v5789 = vpack.c.b16 %v4205, %v4199
        %v5790 = vpack.c.b16 %v4206, %v4200
        %v5791 = vpack.c.b16 %v4213, %v4207
        %v5792 = vpack.c.b16 %v4214, %v4208
        %v5793 = vpack.c.b16 %v4215, %v4209
        %v5794 = vpack.c.b16 %v4216, %v4210
        %v5795 = vpack.c.b16 %v4217, %v4211
        %v5796 = vpack.c.b16 %v4218, %v4212
        %v5797 = vpack.c.b16 %v4225, %v4219
        %v5798 = vpack.c.b16 %v4226, %v4220
        %v5799 = vpack.c.b16 %v4227, %v4221
        %v5800 = vpack.c.b16 %v4228, %v4222
        %v5801 = vpack.c.b16 %v4229, %v4223
        %v5802 = vpack.c.b16 %v4230, %v4224
        %v5803 = vpack.c.b16 %v4237, %v4231
        %v5804 = vpack.c.b16 %v4238, %v4232
        %v5805 = vpack.c.b16 %v4239, %v4233
        %v5806 = vpack.c.b16 %v4240, %v4234
        %v5807 = vpack.c.b16 %v4241, %v4235
        %v5808 = vpack.c.b16 %v4242, %v4236
        %v5809 = vpack.c.b16 %v4249, %v4243
        %v5810 = vpack.c.b16 %v4250, %v4244
        %v5811 = vpack.c.b16 %v4251, %v4245
        %v5812 = vpack.c.b16 %v4252, %v4246
        %v5813 = vpack.c.b16 %v4253, %v4247
        %v5814 = vpack.c.b16 %v4254, %v4248
        %v5815 = vpack.c.b16 %v4261, %v4255
        %v5816 = vpack.c.b16 %v4262, %v4256
        %v5817 = vpack.c.b16 %v4263, %v4257
        %v5818 = vpack.c.b16 %v4264, %v4258
        %v5819 = vpack.c.b16 %v4265, %v4259
        %v5820 = vpack.c.b16 %v4266, %v4260
        %v5821 = vpack.c.b16 %v4273, %v4267
        %v5822 = vpack.c.b16 %v4274, %v4268
        %v5823 = vpack.c.b16 %v4275, %v4269
        %v5824 = vpack.c.b16 %v4276, %v4270
        %v5825 = vpack.c.b16 %v4277, %v4271
        %v5826 = vpack.c.b16 %v4278, %v4272
        %v5827 = vpack.c.b16 %v4285, %v4279
        %v5828 = vpack.c.b16 %v4286, %v4280
        %v5829 = vpack.c.b16 %v4287, %v4281
        %v5830 = vpack.c.b16 %v4288, %v4282
        %v5831 = vpack.c.b16 %v4289, %v4283
        %v5832 = vpack.c.b16 %v4290, %v4284
        %v5833 = vpack.c.b16 %v4297, %v4291
        %v5834 = vpack.c.b16 %v4298, %v4292
        %v5835 = vpack.c.b16 %v4299, %v4293
        %v5836 = vpack.c.b16 %v4300, %v4294
        %v5837 = vpack.c.b16 %v4301, %v4295
        %v5838 = vpack.c.b16 %v4302, %v4296
        %v5839 = vpack.c.b16 %v4309, %v4303
        %v5840 = vpack.c.b16 %v4310, %v4304
        %v5841 = vpack.c.b16 %v4311, %v4305
        %v5842 = vpack.c.b16 %v4312, %v4306
        %v5843 = vpack.c.b16 %v4313, %v4307
        %v5844 = vpack.c.b16 %v4314, %v4308
        %v5845 = vpack.c.b16 %v4321, %v4315
        %v5846 = vpack.c.b16 %v4322, %v4316
        %v5847 = vpack.c.b16 %v4323, %v4317
        %v5848 = vpack.c.b16 %v4324, %v4318
        %v5849 = vpack.c.b16 %v4325, %v4319
        %v5850 = vpack.c.b16 %v4326, %v4320
        %v5851 = vpack.c.b16 %v4333, %v4327
        %v5852 = vpack.c.b16 %v4334, %v4328
        %v5853 = vpack.c.b16 %v4335, %v4329
        %v5854 = vpack.c.b16 %v4336, %v4330
        %v5855 = vpack.c.b16 %v4337, %v4331
        %v5856 = vpack.c.b16 %v4338, %v4332
        %v5857 = vpack.c.b16 %v4345, %v4339
        %v5858 = vpack.c.b16 %v4346, %v4340
        %v5859 = vpack.c.b16 %v4347, %v4341
        %v5860 = vpack.c.b16 %v4348, %v4342
        %v5861 = vpack.c.b16 %v4349, %v4343
        %v5862 = vpack.c.b16 %v4350, %v4344
        %v5863 = vpack.c.b16 %v4357, %v4351
        %v5864 = vpack.c.b16 %v4358, %v4352
        %v5865 = vpack.c.b16 %v4359, %v4353
        %v5866 = vpack.c.b16 %v4360, %v4354
        %v5867 = vpack.c.b16 %v4361, %v4355
        %v5868 = vpack.c.b16 %v4362, %v4356
        %v5869 = vpack.c.b16 %v4369, %v4363
        %v5870 = vpack.c.b16 %v4370, %v4364
        %v5871 = vpack.c.b16 %v4371, %v4365
        %v5872 = vpack.c.b16 %v4372, %v4366
        %v5873 = vpack.c.b16 %v4373, %v4367
        %v5874 = vpack.c.b16 %v4374, %v4368
        %v5875 = vpack.c.b16 %v4381, %v4375
        %v5876 = vpack.c.b16 %v4382, %v4376
        %v5877 = vpack.c.b16 %v4383, %v4377
        %v5878 = vpack.c.b16 %v4384, %v4378
        %v5879 = vpack.c.b16 %v4385, %v4379
        %v5880 = vpack.c.b16 %v4386, %v4380
        %v5881 = vpack.c.b16 %v4393, %v4387
        %v5882 = vpack.c.b16 %v4394, %v4388
        %v5883 = vpack.c.b16 %v4395, %v4389
        %v5884 = vpack.c.b16 %v4396, %v4390
        %v5885 = vpack.c.b16 %v4397, %v4391
        %v5886 = vpack.c.b16 %v4398, %v4392
        %v5887 = vpack.c.b16 %v4405, %v4399
        %v5888 = vpack.c.b16 %v4406, %v4400
        %v5889 = vpack.c.b16 %v4407, %v4401
        %v5890 = vpack.c.b16 %v4408, %v4402
        %v5891 = vpack.c.b16 %v4409, %v4403
        %v5892 = vpack.c.b16 %v4410, %v4404
        %v5893 = vpack.c.b16 %v4417, %v4411
        %v5894 = vpack.c.b16 %v4418, %v4412
        %v5895 = vpack.c.b16 %v4419, %v4413
        %v5896 = vpack.c.b16 %v4420, %v4414
        %v5897 = vpack.c.b16 %v4421, %v4415
        %v5898 = vpack.c.b16 %v4422, %v4416
        %v5899 = vpack.c.b16 %v4429, %v4423
        %v5900 = vpack.c.b16 %v4430, %v4424
        %v5901 = vpack.c.b16 %v4431, %v4425
        %v5902 = vpack.c.b16 %v4432, %v4426
        %v5903 = vpack.c.b16 %v4433, %v4427
        %v5904 = vpack.c.b16 %v4434, %v4428
        %v5905 = vpack.c.b16 %v4441, %v4435
        %v5906 = vpack.c.b16 %v4442, %v4436
        %v5907 = vpack.c.b16 %v4443, %v4437
        %v5908 = vpack.c.b16 %v4444, %v4438
        %v5909 = vpack.c.b16 %v4445, %v4439
        %v5910 = vpack.c.b16 %v4446, %v4440
        %v5911 = vpack.c.b16 %v4453, %v4447
        %v5912 = vpack.c.b16 %v4454, %v4448
        %v5913 = vpack.c.b16 %v4455, %v4449
        %v5914 = vpack.c.b16 %v4456, %v4450
        %v5915 = vpack.c.b16 %v4457, %v4451
        %v5916 = vpack.c.b16 %v4458, %v4452
        %v5917 = vpack.c.b16 %v4465, %v4459
        %v5918 = vpack.c.b16 %v4466, %v4460
        %v5919 = vpack.c.b16 %v4467, %v4461
        %v5920 = vpack.c.b16 %v4468, %v4462
        %v5921 = vpack.c.b16 %v4469, %v4463
        %v5922 = vpack.c.b16 %v4470, %v4464
        %v5923 = vpack.c.b16 %v4477, %v4471
        %v5924 = vpack.c.b16 %v4478, %v4472
        %v5925 = vpack.c.b16 %v4479, %v4473
        %v5926 = vpack.c.b16 %v4480, %v4474
        %v5927 = vpack.c.b16 %v4481, %v4475
        %v5928 = vpack.c.b16 %v4482, %v4476
        %v5929 = vpack.c.b16 %v4489, %v4483
        %v5930 = vpack.c.b16 %v4490, %v4484
        %v5931 = vpack.c.b16 %v4491, %v4485
        %v5932 = vpack.c.b16 %v4492, %v4486
        %v5933 = vpack.c.b16 %v4493, %v4487
        %v5934 = vpack.c.b16 %v4494, %v4488
        %v5935 = vpack.c.b16 %v4501, %v4495
        %v5936 = vpack.c.b16 %v4502, %v4496
        %v5937 = vpack.c.b16 %v4503, %v4497
        %v5938 = vpack.c.b16 %v4504, %v4498
        %v5939 = vpack.c.b16 %v4505, %v4499
        %v5940 = vpack.c.b16 %v4506, %v4500
        %v5941 = vpack.c.b16 %v4513, %v4507
        %v5942 = vpack.c.b16 %v4514, %v4508
        %v5943 = vpack.c.b16 %v4515, %v4509
        %v5944 = vpack.c.b16 %v4516, %v4510
        %v5945 = vpack.c.b16 %v4517, %v4511
        %v5946 = vpack.c.b16 %v4518, %v4512
        %v5947 = vpack.c.b16 %v4525, %v4519
        %v5948 = vpack.c.b16 %v4526, %v4520
        %v5949 = vpack.c.b16 %v4527, %v4521
        %v5950 = vpack.c.b16 %v4528, %v4522
        %v5951 = vpack.c.b16 %v4529, %v4523
        %v5952 = vpack.c.b16 %v4530, %v4524
        %v5953 = vpack.c.b16 %v4537, %v4531
        %v5954 = vpack.c.b16 %v4538, %v4532
        %v5955 = vpack.c.b16 %v4539, %v4533
        %v5956 = vpack.c.b16 %v4540, %v4534
        %v5957 = vpack.c.b16 %v4541, %v4535
        %v5958 = vpack.c.b16 %v4542, %v4536
        %v5959 = vpack.c.b16 %v4549, %v4543
        %v5960 = vpack.c.b16 %v4550, %v4544
        %v5961 = vpack.c.b16 %v4551, %v4545
        %v5962 = vpack.c.b16 %v4552, %v4546
        %v5963 = vpack.c.b16 %v4553, %v4547
        %v5964 = vpack.c.b16 %v4554, %v4548
        %v5965 = vpack.c.b16 %v4561, %v4555
        %v5966 = vpack.c.b16 %v4562, %v4556
        %v5967 = vpack.c.b16 %v4563, %v4557
        %v5968 = vpack.c.b16 %v4564, %v4558
        %v5969 = vpack.c.b16 %v4565, %v4559
        %v5970 = vpack.c.b16 %v4566, %v4560
        %v5971 = vpack.c.b16 %v4573, %v4567
        %v5972 = vpack.c.b16 %v4574, %v4568
        %v5973 = vpack.c.b16 %v4575, %v4569
        %v5974 = vpack.c.b16 %v4576, %v4570
        %v5975 = vpack.c.b16 %v4577, %v4571
        %v5976 = vpack.c.b16 %v4578, %v4572
        %v5977 = vpack.c.b16 %v4585, %v4579
        %v5978 = vpack.c.b16 %v4586, %v4580
        %v5979 = vpack.c.b16 %v4587, %v4581
        %v5980 = vpack.c.b16 %v4588, %v4582
        %v5981 = vpack.c.b16 %v4589, %v4583
        %v5982 = vpack.c.b16 %v4590, %v4584
        %v5983 = vpack.c.b16 %v4597, %v4591
        %v5984 = vpack.c.b16 %v4598, %v4592
        %v5985 = vpack.c.b16 %v4599, %v4593
        %v5986 = vpack.c.b16 %v4600, %v4594
        %v5987 = vpack.c.b16 %v4601, %v4595
        %v5988 = vpack.c.b16 %v4602, %v4596
        %v5989 = vpack.c.b16 %v4609, %v4603
        %v5990 = vpack.c.b16 %v4610, %v4604
        %v5991 = vpack.c.b16 %v4611, %v4605
        %v5992 = vpack.c.b16 %v4612, %v4606
        %v5993 = vpack.c.b16 %v4613, %v4607
        %v5994 = vpack.c.b16 %v4614, %v4608
        %v5995 = vpack.c.b16 %v4621, %v4615
        %v5996 = vpack.c.b16 %v4622, %v4616
        %v5997 = vpack.c.b16 %v4623, %v4617
        %v5998 = vpack.c.b16 %v4624, %v4618
        %v5999 = vpack.c.b16 %v4625, %v4619
        %v6000 = vpack.c.b16 %v4626, %v4620
        %v6001 = vpack.c.b16 %v4633, %v4627
        %v6002 = vpack.c.b16 %v4634, %v4628
        %v6003 = vpack.c.b16 %v4635, %v4629
        %v6004 = vpack.c.b16 %v4636, %v4630
        %v6005 = vpack.c.b16 %v4637, %v4631
        %v6006 = vpack.c.b16 %v4638, %v4632
        %v6007 = vpack.c.b16 %v4645, %v4639
        %v6008 = vpack.c.b16 %v4646, %v4640
        %v6009 = vpack.c.b16 %v4647, %v4641
        %v6010 = vpack.c.b16 %v4648, %v4642
        %v6011 = vpack.c.b16 %v4649, %v4643
        %v6012 = vpack.c.b16 %v4650, %v4644
        %v6013 = vpack.c.b16 %v4657, %v4651
        %v6014 = vpack.c.b16 %v4658, %v4652
        %v6015 = vpack.c.b16 %v4659, %v4653
        %v6016 = vpack.c.b16 %v4660, %v4654
        %v6017 = vpack.c.b16 %v4661, %v4655
        %v6018 = vpack.c.b16 %v4662, %v4656
        %v6019 = vpack.c.b16 %v4669, %v4663
        %v6020 = vpack.c.b16 %v4670, %v4664
        %v6021 = vpack.c.b16 %v4671, %v4665
        %v6022 = vpack.c.b16 %v4672, %v4666
        %v6023 = vpack.c.b16 %v4673, %v4667
        %v6024 = vpack.c.b16 %v4674, %v4668
        %v6025 = vpack.c.b16 %v4681, %v4675
        %v6026 = vpack.c.b16 %v4682, %v4676
        %v6027 = vpack.c.b16 %v4683, %v4677
        %v6028 = vpack.c.b16 %v4684, %v4678
        %v6029 = vpack.c.b16 %v4685, %v4679
        %v6030 = vpack.c.b16 %v4686, %v4680
        %v6031 = vpack.c.b16 %v4693, %v4687
        %v6032 = vpack.c.b16 %v4694, %v4688
        %v6033 = vpack.c.b16 %v4695, %v4689
        %v6034 = vpack.c.b16 %v4696, %v4690
        %v6035 = vpack.c.b16 %v4697, %v4691
        %v6036 = vpack.c.b16 %v4698, %v4692
        %v6037 = vpack.c.b16 %v4705, %v4699
        %v6038 = vpack.c.b16 %v4706, %v4700
        %v6039 = vpack.c.b16 %v4707, %v4701
        %v6040 = vpack.c.b16 %v4708, %v4702
        %v6041 = vpack.c.b16 %v4709, %v4703
        %v6042 = vpack.c.b16 %v4710, %v4704
        %v6043 = vpack.c.b16 %v4717, %v4711
        %v6044 = vpack.c.b16 %v4718, %v4712
        %v6045 = vpack.c.b16 %v4719, %v4713
        %v6046 = vpack.c.b16 %v4720, %v4714
        %v6047 = vpack.c.b16 %v4721, %v4715
        %v6048 = vpack.c.b16 %v4722, %v4716
        %v6049 = vpack.c.b16 %v4729, %v4723
        %v6050 = vpack.c.b16 %v4730, %v4724
        %v6051 = vpack.c.b16 %v4731, %v4725
        %v6052 = vpack.c.b16 %v4732, %v4726
        %v6053 = vpack.c.b16 %v4733, %v4727
        %v6054 = vpack.c.b16 %v4734, %v4728
        %v6055 = vpack.c.b16 %v4741, %v4735
        %v6056 = vpack.c.b16 %v4742, %v4736
        %v6057 = vpack.c.b16 %v4743, %v4737
        %v6058 = vpack.c.b16 %v4744, %v4738
        %v6059 = vpack.c.b16 %v4745, %v4739
        %v6060 = vpack.c.b16 %v4746, %v4740
        %v6061 = vpack.c.b16 %v4753, %v4747
        %v6062 = vpack.c.b16 %v4754, %v4748
        %v6063 = vpack.c.b16 %v4755, %v4749
        %v6064 = vpack.c.b16 %v4756, %v4750
        %v6065 = vpack.c.b16 %v4757, %v4751
        %v6066 = vpack.c.b16 %v4758, %v4752
        %v6067 = vpack.c.b16 %v4765, %v4759
        %v6068 = vpack.c.b16 %v4766, %v4760
        %v6069 = vpack.c.b16 %v4767, %v4761
        %v6070 = vpack.c.b16 %v4768, %v4762
        %v6071 = vpack.c.b16 %v4769, %v4763
        %v6072 = vpack.c.b16 %v4770, %v4764
        %v6073 = vpack.c.b16 %v4777, %v4771
        %v6074 = vpack.c.b16 %v4778, %v4772
        %v6075 = vpack.c.b16 %v4779, %v4773
        %v6076 = vpack.c.b16 %v4780, %v4774
        %v6077 = vpack.c.b16 %v4781, %v4775
        %v6078 = vpack.c.b16 %v4782, %v4776
        %v6079 = vpack.c.b16 %v4789, %v4783
        %v6080 = vpack.c.b16 %v4790, %v4784
        %v6081 = vpack.c.b16 %v4791, %v4785
        %v6082 = vpack.c.b16 %v4792, %v4786
        %v6083 = vpack.c.b16 %v4793, %v4787
        %v6084 = vpack.c.b16 %v4794, %v4788
        %v6085 = vpack.c.b16 %v4801, %v4795
        %v6086 = vpack.c.b16 %v4802, %v4796
        %v6087 = vpack.c.b16 %v4803, %v4797
        %v6088 = vpack.c.b16 %v4804, %v4798
        %v6089 = vpack.c.b16 %v4805, %v4799
        %v6090 = vpack.c.b16 %v4806, %v4800
        %v6091 = vpack.c.b16 %v4813, %v4807
        %v6092 = vpack.c.b16 %v4814, %v4808
        %v6093 = vpack.c.b16 %v4815, %v4809
        %v6094 = vpack.c.b16 %v4816, %v4810
        %v6095 = vpack.c.b16 %v4817, %v4811
        %v6096 = vpack.c.b16 %v4818, %v4812
        %v6097 = vpack.c.b16 %v4825, %v4819
        %v6098 = vpack.c.b16 %v4826, %v4820
        %v6099 = vpack.c.b16 %v4827, %v4821
        %v6100 = vpack.c.b16 %v4828, %v4822
        %v6101 = vpack.c.b16 %v4829, %v4823
        %v6102 = vpack.c.b16 %v4830, %v4824
        %v6103 = vpack.c.b16 %v4837, %v4831
        %v6104 = vpack.c.b16 %v4838, %v4832
        %v6105 = vpack.c.b16 %v4839, %v4833
        %v6106 = vpack.c.b16 %v4840, %v4834
        %v6107 = vpack.c.b16 %v4841, %v4835
        %v6108 = vpack.c.b16 %v4842, %v4836
        %v6109 = vpack.c.b16 %v4849, %v4843
        %v6110 = vpack.c.b16 %v4850, %v4844
        %v6111 = vpack.c.b16 %v4851, %v4845
        %v6112 = vpack.c.b16 %v4852, %v4846
        %v6113 = vpack.c.b16 %v4853, %v4847
        %v6114 = vpack.c.b16 %v4854, %v4848
        %v6115 = vpack.c.b16 %v4861, %v4855
        %v6116 = vpack.c.b16 %v4862, %v4856
        %v6117 = vpack.c.b16 %v4863, %v4857
        %v6118 = vpack.c.b16 %v4864, %v4858
        %v6119 = vpack.c.b16 %v4865, %v4859
        %v6120 = vpack.c.b16 %v4866, %v4860
        %v6121 = vpack.c.b16 %v4873, %v4867
        %v6122 = vpack.c.b16 %v4874, %v4868
        %v6123 = vpack.c.b16 %v4875, %v4869
        %v6124 = vpack.c.b16 %v4876, %v4870
        %v6125 = vpack.c.b16 %v4877, %v4871
        %v6126 = vpack.c.b16 %v4878, %v4872
        %v6127 = vpack.c.b16 %v4885, %v4879
        %v6128 = vpack.c.b16 %v4886, %v4880
        %v6129 = vpack.c.b16 %v4887, %v4881
        %v6130 = vpack.c.b16 %v4888, %v4882
        %v6131 = vpack.c.b16 %v4889, %v4883
        %v6132 = vpack.c.b16 %v4890, %v4884
        %v6133 = vpack.c.b16 %v4897, %v4891
        %v6134 = vpack.c.b16 %v4898, %v4892
        %v6135 = vpack.c.b16 %v4899, %v4893
        %v6136 = vpack.c.b16 %v4900, %v4894
        %v6137 = vpack.c.b16 %v4901, %v4895
        %v6138 = vpack.c.b16 %v4902, %v4896
        %v6139 = vpack.c.b16 %v4909, %v4903
        %v6140 = vpack.c.b16 %v4910, %v4904
        %v6141 = vpack.c.b16 %v4911, %v4905
        %v6142 = vpack.c.b16 %v4912, %v4906
        %v6143 = vpack.c.b16 %v4913, %v4907
        %v6144 = vpack.c.b16 %v4914, %v4908
        %v6145 = vpack.c.b16 %v4921, %v4915
        %v6146 = vpack.c.b16 %v4922, %v4916
        %v6147 = vpack.c.b16 %v4923, %v4917
        %v6148 = vpack.c.b16 %v4924, %v4918
        %v6149 = vpack.c.b16 %v4925, %v4919
        %v6150 = vpack.c.b16 %v4926, %v4920
        %v6151 = vpack.c.b16 %v4933, %v4927
        %v6152 = vpack.c.b16 %v4934, %v4928
        %v6153 = vpack.c.b16 %v4935, %v4929
        %v6154 = vpack.c.b16 %v4936, %v4930
        %v6155 = vpack.c.b16 %v4937, %v4931
        %v6156 = vpack.c.b16 %v4938, %v4932
        %v6157 = vpack.c.b16 %v4945, %v4939
        %v6158 = vpack.c.b16 %v4946, %v4940
        %v6159 = vpack.c.b16 %v4947, %v4941
        %v6160 = vpack.c.b16 %v4948, %v4942
        %v6161 = vpack.c.b16 %v4949, %v4943
        %v6162 = vpack.c.b16 %v4950, %v4944
        %v6163 = vpack.c.b16 %v4957, %v4951
        %v6164 = vpack.c.b16 %v4958, %v4952
        %v6165 = vpack.c.b16 %v4959, %v4953
        %v6166 = vpack.c.b16 %v4960, %v4954
        %v6167 = vpack.c.b16 %v4961, %v4955
        %v6168 = vpack.c.b16 %v4962, %v4956
        %v6169 = vpack.c.b16 %v4969, %v4963
        %v6170 = vpack.c.b16 %v4970, %v4964
        %v6171 = vpack.c.b16 %v4971, %v4965
        %v6172 = vpack.c.b16 %v4972, %v4966
        %v6173 = vpack.c.b16 %v4973, %v4967
        %v6174 = vpack.c.b16 %v4974, %v4968
        %v6175 = vpack.c.b16 %v4981, %v4975
        %v6176 = vpack.c.b16 %v4982, %v4976
        %v6177 = vpack.c.b16 %v4983, %v4977
        %v6178 = vpack.c.b16 %v4984, %v4978
        %v6179 = vpack.c.b16 %v4985, %v4979
        %v6180 = vpack.c.b16 %v4986, %v4980
        %v6181 = vpack.c.b16 %v4993, %v4987
        %v6182 = vpack.c.b16 %v4994, %v4988
        %v6183 = vpack.c.b16 %v4995, %v4989
        %v6184 = vpack.c.b16 %v4996, %v4990
        %v6185 = vpack.c.b16 %v4997, %v4991
        %v6186 = vpack.c.b16 %v4998, %v4992
        %v6187 = vpack.c.b16 %v5005, %v4999
        %v6188 = vpack.c.b16 %v5006, %v5000
        %v6189 = vpack.c.b16 %v5007, %v5001
        %v6190 = vpack.c.b16 %v5008, %v5002
        %v6191 = vpack.c.b16 %v5009, %v5003
        %v6192 = vpack.c.b16 %v5010, %v5004
        %v6193 = vpack.c.b16 %v5017, %v5011
        %v6194 = vpack.c.b16 %v5018, %v5012
        %v6195 = vpack.c.b16 %v5019, %v5013
        %v6196 = vpack.c.b16 %v5020, %v5014
        %v6197 = vpack.c.b16 %v5021, %v5015
        %v6198 = vpack.c.b16 %v5022, %v5016
        %v6199 = vpack.c.b16 %v5029, %v5023
        %v6200 = vpack.c.b16 %v5030, %v5024
        %v6201 = vpack.c.b16 %v5031, %v5025
        %v6202 = vpack.c.b16 %v5032, %v5026
        %v6203 = vpack.c.b16 %v5033, %v5027
        %v6204 = vpack.c.b16 %v5034, %v5028
        %v6205 = vpack.c.b16 %v5041, %v5035
        %v6206 = vpack.c.b16 %v5042, %v5036
        %v6207 = vpack.c.b16 %v5043, %v5037
        %v6208 = vpack.c.b16 %v5044, %v5038
        %v6209 = vpack.c.b16 %v5045, %v5039
        %v6210 = vpack.c.b16 %v5046, %v5040
        %v6211 = vpack.c.b16 %v5053, %v5047
        %v6212 = vpack.c.b16 %v5054, %v5048
        %v6213 = vpack.c.b16 %v5055, %v5049
        %v6214 = vpack.c.b16 %v5056, %v5050
        %v6215 = vpack.c.b16 %v5057, %v5051
        %v6216 = vpack.c.b16 %v5058, %v5052
        %v6217 = vpack.c.b16 %v5065, %v5059
        %v6218 = vpack.c.b16 %v5066, %v5060
        %v6219 = vpack.c.b16 %v5067, %v5061
        %v6220 = vpack.c.b16 %v5068, %v5062
        %v6221 = vpack.c.b16 %v5069, %v5063
        %v6222 = vpack.c.b16 %v5070, %v5064
        %7375 = vmatprep.subr.bf16.mxu0 %v5072
        %7376 = vmatpush1.bf16.msra.mxu0 %v5071
        %7377 = vmatprep.subr.bf16.mxu0 %v5078
        %7378 = vmatpush1.bf16.msra.mxu0 %v5077
        %7379 = vmatprep.subr.bf16.mxu0 %v5084
        %7380 = vmatpush1.bf16.msra.mxu0 %v5083
        %7381 = vmatprep.subr.bf16.mxu0 %v5090
        %7382 = vmatpush1.bf16.msra.mxu0 %v5089
        %7383 = vmatprep.subr.bf16.mxu0 %v5096
        %7384 = vmatpush1.bf16.msra.mxu0 %v5095
        %7385 = vmatprep.subr.bf16.mxu0 %v5102
        %7386 = vmatpush1.bf16.msra.mxu0 %v5101
        %7387 = vmatprep.subr.bf16.mxu0 %v5108
        %7388 = vmatpush1.bf16.msra.mxu0 %v5107
        %7389 = vmatprep.subr.bf16.mxu0 %v5114
        %7390 = vmatpush1.bf16.msra.mxu0 %v5113
        %7391 = vmatprep.subr.bf16.mxu0 %v5120
        %7392 = vmatpush1.bf16.msra.mxu0 %v5119
        %7393 = vmatprep.subr.bf16.mxu0 %v5126
        %7394 = vmatpush1.bf16.msra.mxu0 %v5125
        %7395 = vmatprep.subr.bf16.mxu0 %v5132
        %7396 = vmatpush1.bf16.msra.mxu0 %v5131
        %7397 = vmatprep.subr.bf16.mxu0 %v5138
        %7398 = vmatpush1.bf16.msra.mxu0 %v5137
        %7399 = vmatprep.subr.bf16.mxu0 %v5144
        %7400 = vmatpush1.bf16.msra.mxu0 %v5143
        %7401 = vmatprep.subr.bf16.mxu0 %v5150
        %7402 = vmatpush1.bf16.msra.mxu0 %v5149
        %7403 = vmatprep.subr.bf16.mxu0 %v5156
        %7404 = vmatpush1.bf16.msra.mxu0 %v5155
        %7405 = vmatprep.subr.bf16.mxu0 %v5162
        %7406 = vmatpush1.bf16.msra.mxu0 %v5161
        %7407 = vmatprep.mubr.bf16.mxu0 %v1568
        %7408 = vmatmul.mubr.bf16.gmra.mrb[0].mxu0 %v1567
        %v7409 = vpop.f32.mrb[0].mxu0
        %v7410 = vadd.f32 %v1468, %v7409
        %v7411 = vpop.f32.mrb[0].mxu0
        %v7412 = vadd.f32 %v1472, %v7411
        %v7413 = vpop.f32.mrb[0].mxu0
        %v7414 = vadd.f32 %v1468, %v7413
        %v7415 = vpop.f32.mrb[0].mxu0
        %v7416 = vadd.f32 %v1472, %v7415
        %7417 = vdwg.mxu0
        %7418 = vmatprep.subr.bf16.mxu0 %v5168
        %7419 = vmatpush1.bf16.msra.mxu0 %v5167
        %7420 = vmatprep.subr.bf16.mxu0 %v5174
        %7421 = vmatpush1.bf16.msra.mxu0 %v5173
        %7422 = vmatprep.subr.bf16.mxu0 %v5180
        %7423 = vmatpush1.bf16.msra.mxu0 %v5179
        %7424 = vmatprep.subr.bf16.mxu0 %v5186
        %7425 = vmatpush1.bf16.msra.mxu0 %v5185
        %7426 = vmatprep.subr.bf16.mxu0 %v5192
        %7427 = vmatpush1.bf16.msra.mxu0 %v5191
        %7428 = vmatprep.subr.bf16.mxu0 %v5198
        %7429 = vmatpush1.bf16.msra.mxu0 %v5197
        %7430 = vmatprep.subr.bf16.mxu0 %v5204
        %7431 = vmatpush1.bf16.msra.mxu0 %v5203
        %7432 = vmatprep.subr.bf16.mxu0 %v5210
        %7433 = vmatpush1.bf16.msra.mxu0 %v5209
        %7434 = vmatprep.subr.bf16.mxu0 %v5216
        %7435 = vmatpush1.bf16.msra.mxu0 %v5215
        %7436 = vmatprep.subr.bf16.mxu0 %v5222
        %7437 = vmatpush1.bf16.msra.mxu0 %v5221
        %7438 = vmatprep.subr.bf16.mxu0 %v5228
        %7439 = vmatpush1.bf16.msra.mxu0 %v5227
        %7440 = vmatprep.subr.bf16.mxu0 %v5234
        %7441 = vmatpush1.bf16.msra.mxu0 %v5233
        %7442 = vmatprep.subr.bf16.mxu0 %v5240
        %7443 = vmatpush1.bf16.msra.mxu0 %v5239
        %7444 = vmatprep.subr.bf16.mxu0 %v5246
        %7445 = vmatpush1.bf16.msra.mxu0 %v5245
        %7446 = vmatprep.subr.bf16.mxu0 %v5252
        %7447 = vmatpush1.bf16.msra.mxu0 %v5251
        %7448 = vmatprep.subr.bf16.mxu0 %v5258
        %7449 = vmatpush1.bf16.msra.mxu0 %v5257
        %7450 = vmatprep.mubr.bf16.mxu0 %v1570
        %7451 = vmatmul.mubr.bf16.gmra.mrb[0].mxu0 %v1569
        %v7452 = vpop.f32.mrb[0].mxu0
        %v7453 = vadd.f32 %v7410, %v7452
        %v7454 = vpop.f32.mrb[0].mxu0
        %v7455 = vadd.f32 %v7412, %v7454
        %v7456 = vpop.f32.mrb[0].mxu0
        %v7457 = vadd.f32 %v7414, %v7456
        %v7458 = vpop.f32.mrb[0].mxu0
        %v7459 = vadd.f32 %v7416, %v7458
        %7460 = vdwg.mxu0
        %7461 = vmatprep.subr.bf16.mxu0 %v5264
        %7462 = vmatpush1.bf16.msra.mxu0 %v5263
        %7463 = vmatprep.subr.bf16.mxu0 %v5270
        %7464 = vmatpush1.bf16.msra.mxu0 %v5269
        %7465 = vmatprep.subr.bf16.mxu0 %v5276
        %7466 = vmatpush1.bf16.msra.mxu0 %v5275
        %7467 = vmatprep.subr.bf16.mxu0 %v5282
        %7468 = vmatpush1.bf16.msra.mxu0 %v5281
        %7469 = vmatprep.subr.bf16.mxu0 %v5288
        %7470 = vmatpush1.bf16.msra.mxu0 %v5287
        %7471 = vmatprep.subr.bf16.mxu0 %v5294
        %7472 = vmatpush1.bf16.msra.mxu0 %v5293
        %7473 = vmatprep.subr.bf16.mxu0 %v5300
        %7474 = vmatpush1.bf16.msra.mxu0 %v5299
        %7475 = vmatprep.subr.bf16.mxu0 %v5306
        %7476 = vmatpush1.bf16.msra.mxu0 %v5305
        %7477 = vmatprep.subr.bf16.mxu0 %v5312
        %7478 = vmatpush1.bf16.msra.mxu0 %v5311
        %7479 = vmatprep.subr.bf16.mxu0 %v5318
        %7480 = vmatpush1.bf16.msra.mxu0 %v5317
        %7481 = vmatprep.subr.bf16.mxu0 %v5324
        %7482 = vmatpush1.bf16.msra.mxu0 %v5323
        %7483 = vmatprep.subr.bf16.mxu0 %v5330
        %7484 = vmatpush1.bf16.msra.mxu0 %v5329
        %7485 = vmatprep.subr.bf16.mxu0 %v5336
        %7486 = vmatpush1.bf16.msra.mxu0 %v5335
        %7487 = vmatprep.subr.bf16.mxu0 %v5342
        %7488 = vmatpush1.bf16.msra.mxu0 %v5341
        %7489 = vmatprep.subr.bf16.mxu0 %v5348
        %7490 = vmatpush1.bf16.msra.mxu0 %v5347
        %7491 = vmatprep.subr.bf16.mxu0 %v5354
        %7492 = vmatpush1.bf16.msra.mxu0 %v5353
        %7493 = vmatprep.mubr.bf16.mxu0 %v1572
        %7494 = vmatmul.mubr.bf16.gmra.mrb[0].mxu0 %v1571
        %v7495 = vpop.f32.mrb[0].mxu0
        %v7496 = vadd.f32 %v7453, %v7495
        %v7497 = vpop.f32.mrb[0].mxu0
        %v7498 = vadd.f32 %v7455, %v7497
        %v7499 = vpop.f32.mrb[0].mxu0
        %v7500 = vadd.f32 %v7457, %v7499
        %v7501 = vpop.f32.mrb[0].mxu0
        %v7502 = vadd.f32 %v7459, %v7501
        %7503 = vdwg.mxu0
        %7504 = vmatprep.subr.bf16.mxu0 %v5360
        %7505 = vmatpush1.bf16.msra.mxu0 %v5359
        %7506 = vmatprep.subr.bf16.mxu0 %v5366
        %7507 = vmatpush1.bf16.msra.mxu0 %v5365
        %7508 = vmatprep.subr.bf16.mxu0 %v5372
        %7509 = vmatpush1.bf16.msra.mxu0 %v5371
        %7510 = vmatprep.subr.bf16.mxu0 %v5378
        %7511 = vmatpush1.bf16.msra.mxu0 %v5377
        %7512 = vmatprep.subr.bf16.mxu0 %v5384
        %7513 = vmatpush1.bf16.msra.mxu0 %v5383
        %7514 = vmatprep.subr.bf16.mxu0 %v5390
        %7515 = vmatpush1.bf16.msra.mxu0 %v5389
        %7516 = vmatprep.subr.bf16.mxu0 %v5396
        %7517 = vmatpush1.bf16.msra.mxu0 %v5395
        %7518 = vmatprep.subr.bf16.mxu0 %v5402
        %7519 = vmatpush1.bf16.msra.mxu0 %v5401
        %7520 = vmatprep.subr.bf16.mxu0 %v5408
        %7521 = vmatpush1.bf16.msra.mxu0 %v5407
        %7522 = vmatprep.subr.bf16.mxu0 %v5414
        %7523 = vmatpush1.bf16.msra.mxu0 %v5413
        %7524 = vmatprep.subr.bf16.mxu0 %v5420
        %7525 = vmatpush1.bf16.msra.mxu0 %v5419
        %7526 = vmatprep.subr.bf16.mxu0 %v5426
        %7527 = vmatpush1.bf16.msra.mxu0 %v5425
        %7528 = vmatprep.subr.bf16.mxu0 %v5432
        %7529 = vmatpush1.bf16.msra.mxu0 %v5431
        %7530 = vmatprep.subr.bf16.mxu0 %v5438
        %7531 = vmatpush1.bf16.msra.mxu0 %v5437
        %7532 = vmatprep.subr.bf16.mxu0 %v5444
        %7533 = vmatpush1.bf16.msra.mxu0 %v5443
        %7534 = vmatprep.subr.bf16.mxu0 %v5450
        %7535 = vmatpush1.bf16.msra.mxu0 %v5449
        %7536 = vmatprep.mubr.bf16.mxu0 %v1574
        %7537 = vmatmul.mubr.bf16.gmra.mrb[0].mxu0 %v1573
        %v7538 = vpop.f32.mrb[0].mxu0
        %v7539 = vadd.f32 %v7496, %v7538
        %v7540 = vpop.f32.mrb[0].mxu0
        %v7541 = vadd.f32 %v7498, %v7540
        %v7542 = vpop.f32.mrb[0].mxu0
        %v7543 = vadd.f32 %v7500, %v7542
        %v7544 = vpop.f32.mrb[0].mxu0
        %v7545 = vadd.f32 %v7502, %v7544
        %7546 = vdwg.mxu0
        %7547 = vmatprep.subr.bf16.mxu0 %v5456
        %7548 = vmatpush1.bf16.msra.mxu0 %v5455
        %7549 = vmatprep.subr.bf16.mxu0 %v5462
        %7550 = vmatpush1.bf16.msra.mxu0 %v5461
        %7551 = vmatprep.subr.bf16.mxu0 %v5468
        %7552 = vmatpush1.bf16.msra.mxu0 %v5467
        %7553 = vmatprep.subr.bf16.mxu0 %v5474
        %7554 = vmatpush1.bf16.msra.mxu0 %v5473
        %7555 = vmatprep.subr.bf16.mxu0 %v5480
        %7556 = vmatpush1.bf16.msra.mxu0 %v5479
        %7557 = vmatprep.subr.bf16.mxu0 %v5486
        %7558 = vmatpush1.bf16.msra.mxu0 %v5485
        %7559 = vmatprep.subr.bf16.mxu0 %v5492
        %7560 = vmatpush1.bf16.msra.mxu0 %v5491
        %7561 = vmatprep.subr.bf16.mxu0 %v5498
        %7562 = vmatpush1.bf16.msra.mxu0 %v5497
        %7563 = vmatprep.subr.bf16.mxu0 %v5504
        %7564 = vmatpush1.bf16.msra.mxu0 %v5503
        %7565 = vmatprep.subr.bf16.mxu0 %v5510
        %7566 = vmatpush1.bf16.msra.mxu0 %v5509
        %7567 = vmatprep.subr.bf16.mxu0 %v5516
        %7568 = vmatpush1.bf16.msra.mxu0 %v5515
        %7569 = vmatprep.subr.bf16.mxu0 %v5522
        %7570 = vmatpush1.bf16.msra.mxu0 %v5521
        %7571 = vmatprep.subr.bf16.mxu0 %v5528
        %7572 = vmatpush1.bf16.msra.mxu0 %v5527
        %7573 = vmatprep.subr.bf16.mxu0 %v5534
        %7574 = vmatpush1.bf16.msra.mxu0 %v5533
        %7575 = vmatprep.subr.bf16.mxu0 %v5540
        %7576 = vmatpush1.bf16.msra.mxu0 %v5539
        %7577 = vmatprep.subr.bf16.mxu0 %v5546
        %7578 = vmatpush1.bf16.msra.mxu0 %v5545
        %7579 = vmatprep.mubr.bf16.mxu0 %v1576
        %7580 = vmatmul.mubr.bf16.gmra.mrb[0].mxu0 %v1575
        %v7581 = vpop.f32.mrb[0].mxu0
        %v7582 = vadd.f32 %v7539, %v7581
        %v7583 = vpop.f32.mrb[0].mxu0
        %v7584 = vadd.f32 %v7541, %v7583
        %v7585 = vpop.f32.mrb[0].mxu0
        %v7586 = vadd.f32 %v7543, %v7585
        %v7587 = vpop.f32.mrb[0].mxu0
        %v7588 = vadd.f32 %v7545, %v7587
        %7589 = vdwg.mxu0
        %7590 = vmatprep.subr.bf16.mxu0 %v5552
        %7591 = vmatpush1.bf16.msra.mxu0 %v5551
        %7592 = vmatprep.subr.bf16.mxu0 %v5558
        %7593 = vmatpush1.bf16.msra.mxu0 %v5557
        %7594 = vmatprep.subr.bf16.mxu0 %v5564
        %7595 = vmatpush1.bf16.msra.mxu0 %v5563
        %7596 = vmatprep.subr.bf16.mxu0 %v5570
        %7597 = vmatpush1.bf16.msra.mxu0 %v5569
        %7598 = vmatprep.subr.bf16.mxu0 %v5576
        %7599 = vmatpush1.bf16.msra.mxu0 %v5575
        %7600 = vmatprep.subr.bf16.mxu0 %v5582
        %7601 = vmatpush1.bf16.msra.mxu0 %v5581
        %7602 = vmatprep.subr.bf16.mxu0 %v5588
        %7603 = vmatpush1.bf16.msra.mxu0 %v5587
        %7604 = vmatprep.subr.bf16.mxu0 %v5594
        %7605 = vmatpush1.bf16.msra.mxu0 %v5593
        %7606 = vmatprep.subr.bf16.mxu0 %v5600
        %7607 = vmatpush1.bf16.msra.mxu0 %v5599
        %7608 = vmatprep.subr.bf16.mxu0 %v5606
        %7609 = vmatpush1.bf16.msra.mxu0 %v5605
        %7610 = vmatprep.subr.bf16.mxu0 %v5612
        %7611 = vmatpush1.bf16.msra.mxu0 %v5611
        %7612 = vmatprep.subr.bf16.mxu0 %v5618
        %7613 = vmatpush1.bf16.msra.mxu0 %v5617
        %7614 = vmatprep.subr.bf16.mxu0 %v5624
        %7615 = vmatpush1.bf16.msra.mxu0 %v5623
        %7616 = vmatprep.subr.bf16.mxu0 %v5630
        %7617 = vmatpush1.bf16.msra.mxu0 %v5629
        %7618 = vmatprep.subr.bf16.mxu0 %v5636
        %7619 = vmatpush1.bf16.msra.mxu0 %v5635
        %7620 = vmatprep.subr.bf16.mxu0 %v5642
        %7621 = vmatpush1.bf16.msra.mxu0 %v5641
        %7622 = vmatprep.mubr.bf16.mxu0 %v1578
        %7623 = vmatmul.mubr.bf16.gmra.mrb[0].mxu0 %v1577
        %v7624 = vpop.f32.mrb[0].mxu0
        %v7625 = vadd.f32 %v7582, %v7624
        %v7626 = vpop.f32.mrb[0].mxu0
        %v7627 = vadd.f32 %v7584, %v7626
        %v7628 = vpop.f32.mrb[0].mxu0
        %v7629 = vadd.f32 %v7586, %v7628
        %v7630 = vpop.f32.mrb[0].mxu0
        %v7631 = vadd.f32 %v7588, %v7630
        %7632 = vdwg.mxu0
        %7633 = vmatprep.subr.bf16.mxu0 %v5648
        %7634 = vmatpush1.bf16.msra.mxu0 %v5647
        %7635 = vmatprep.subr.bf16.mxu0 %v5654
        %7636 = vmatpush1.bf16.msra.mxu0 %v5653
        %7637 = vmatprep.subr.bf16.mxu0 %v5660
        %7638 = vmatpush1.bf16.msra.mxu0 %v5659
        %7639 = vmatprep.subr.bf16.mxu0 %v5666
        %7640 = vmatpush1.bf16.msra.mxu0 %v5665
        %7641 = vmatprep.subr.bf16.mxu0 %v5672
        %7642 = vmatpush1.bf16.msra.mxu0 %v5671
        %7643 = vmatprep.subr.bf16.mxu0 %v5678
        %7644 = vmatpush1.bf16.msra.mxu0 %v5677
        %7645 = vmatprep.subr.bf16.mxu0 %v5684
        %7646 = vmatpush1.bf16.msra.mxu0 %v5683
        %7647 = vmatprep.subr.bf16.mxu0 %v5690
        %7648 = vmatpush1.bf16.msra.mxu0 %v5689
        %7649 = vmatprep.subr.bf16.mxu0 %v5696
        %7650 = vmatpush1.bf16.msra.mxu0 %v5695
        %7651 = vmatprep.subr.bf16.mxu0 %v5702
        %7652 = vmatpush1.bf16.msra.mxu0 %v5701
        %7653 = vmatprep.subr.bf16.mxu0 %v5708
        %7654 = vmatpush1.bf16.msra.mxu0 %v5707
        %7655 = vmatprep.subr.bf16.mxu0 %v5714
        %7656 = vmatpush1.bf16.msra.mxu0 %v5713
        %7657 = vmatprep.subr.bf16.mxu0 %v5720
        %7658 = vmatpush1.bf16.msra.mxu0 %v5719
        %7659 = vmatprep.subr.bf16.mxu0 %v5726
        %7660 = vmatpush1.bf16.msra.mxu0 %v5725
        %7661 = vmatprep.subr.bf16.mxu0 %v5732
        %7662 = vmatpush1.bf16.msra.mxu0 %v5731
        %7663 = vmatprep.subr.bf16.mxu0 %v5738
        %7664 = vmatpush1.bf16.msra.mxu0 %v5737
        %7665 = vmatprep.mubr.bf16.mxu0 %v1580
        %7666 = vmatmul.mubr.bf16.gmra.mrb[0].mxu0 %v1579
        %v7667 = vpop.f32.mrb[0].mxu0
        %v7668 = vadd.f32 %v7625, %v7667
        %v7669 = vpop.f32.mrb[0].mxu0
        %v7670 = vadd.f32 %v7627, %v7669
        %v7671 = vpop.f32.mrb[0].mxu0
        %v7672 = vadd.f32 %v7629, %v7671
        %v7673 = vpop.f32.mrb[0].mxu0
        %v7674 = vadd.f32 %v7631, %v7673
        %7675 = vdwg.mxu0
        %7676 = vmatprep.subr.bf16.mxu0 %v5744
        %7677 = vmatpush1.bf16.msra.mxu0 %v5743
        %7678 = vmatprep.subr.bf16.mxu0 %v5750
        %7679 = vmatpush1.bf16.msra.mxu0 %v5749
        %7680 = vmatprep.subr.bf16.mxu0 %v5756
        %7681 = vmatpush1.bf16.msra.mxu0 %v5755
        %7682 = vmatprep.subr.bf16.mxu0 %v5762
        %7683 = vmatpush1.bf16.msra.mxu0 %v5761
        %7684 = vmatprep.subr.bf16.mxu0 %v5768
        %7685 = vmatpush1.bf16.msra.mxu0 %v5767
        %7686 = vmatprep.subr.bf16.mxu0 %v5774
        %7687 = vmatpush1.bf16.msra.mxu0 %v5773
        %7688 = vmatprep.subr.bf16.mxu0 %v5780
        %7689 = vmatpush1.bf16.msra.mxu0 %v5779
        %7690 = vmatprep.subr.bf16.mxu0 %v5786
        %7691 = vmatpush1.bf16.msra.mxu0 %v5785
        %7692 = vmatprep.subr.bf16.mxu0 %v5792
        %7693 = vmatpush1.bf16.msra.mxu0 %v5791
        %7694 = vmatprep.subr.bf16.mxu0 %v5798
        %7695 = vmatpush1.bf16.msra.mxu0 %v5797
        %7696 = vmatprep.subr.bf16.mxu0 %v5804
        %7697 = vmatpush1.bf16.msra.mxu0 %v5803
        %7698 = vmatprep.subr.bf16.mxu0 %v5810
        %7699 = vmatpush1.bf16.msra.mxu0 %v5809
        %7700 = vmatprep.subr.bf16.mxu0 %v5816
        %7701 = vmatpush1.bf16.msra.mxu0 %v5815
        %7702 = vmatprep.subr.bf16.mxu0 %v5822
        %7703 = vmatpush1.bf16.msra.mxu0 %v5821
        %7704 = vmatprep.subr.bf16.mxu0 %v5828
        %7705 = vmatpush1.bf16.msra.mxu0 %v5827
        %7706 = vmatprep.subr.bf16.mxu0 %v5834
        %7707 = vmatpush1.bf16.msra.mxu0 %v5833
        %7708 = vmatprep.mubr.bf16.mxu0 %v1582
        %7709 = vmatmul.mubr.bf16.gmra.mrb[0].mxu0 %v1581
        %v7710 = vpop.f32.mrb[0].mxu0
        %v7711 = vadd.f32 %v7668, %v7710
        %v7712 = vpop.f32.mrb[0].mxu0
        %v7713 = vadd.f32 %v7670, %v7712
        %v7714 = vpop.f32.mrb[0].mxu0
        %v7715 = vadd.f32 %v7672, %v7714
        %v7716 = vpop.f32.mrb[0].mxu0
        %v7717 = vadd.f32 %v7674, %v7716
        %7718 = vdwg.mxu0
        %7719 = vmatprep.subr.bf16.mxu0 %v5840
        %7720 = vmatpush1.bf16.msra.mxu0 %v5839
        %7721 = vmatprep.subr.bf16.mxu0 %v5846
        %7722 = vmatpush1.bf16.msra.mxu0 %v5845
        %7723 = vmatprep.subr.bf16.mxu0 %v5852
        %7724 = vmatpush1.bf16.msra.mxu0 %v5851
        %7725 = vmatprep.subr.bf16.mxu0 %v5858
        %7726 = vmatpush1.bf16.msra.mxu0 %v5857
        %7727 = vmatprep.subr.bf16.mxu0 %v5864
        %7728 = vmatpush1.bf16.msra.mxu0 %v5863
        %7729 = vmatprep.subr.bf16.mxu0 %v5870
        %7730 = vmatpush1.bf16.msra.mxu0 %v5869
        %7731 = vmatprep.subr.bf16.mxu0 %v5876
        %7732 = vmatpush1.bf16.msra.mxu0 %v5875
        %7733 = vmatprep.subr.bf16.mxu0 %v5882
        %7734 = vmatpush1.bf16.msra.mxu0 %v5881
        %7735 = vmatprep.subr.bf16.mxu0 %v5888
        %7736 = vmatpush1.bf16.msra.mxu0 %v5887
        %7737 = vmatprep.subr.bf16.mxu0 %v5894
        %7738 = vmatpush1.bf16.msra.mxu0 %v5893
        %7739 = vmatprep.subr.bf16.mxu0 %v5900
        %7740 = vmatpush1.bf16.msra.mxu0 %v5899
        %7741 = vmatprep.subr.bf16.mxu0 %v5906
        %7742 = vmatpush1.bf16.msra.mxu0 %v5905
        %7743 = vmatprep.subr.bf16.mxu0 %v5912
        %7744 = vmatpush1.bf16.msra.mxu0 %v5911
        %7745 = vmatprep.subr.bf16.mxu0 %v5918
        %7746 = vmatpush1.bf16.msra.mxu0 %v5917
        %7747 = vmatprep.subr.bf16.mxu0 %v5924
        %7748 = vmatpush1.bf16.msra.mxu0 %v5923
        %7749 = vmatprep.subr.bf16.mxu0 %v5930
        %7750 = vmatpush1.bf16.msra.mxu0 %v5929
        %7751 = vmatprep.mubr.bf16.mxu0 %v1584
        %7752 = vmatmul.mubr.bf16.gmra.mrb[0].mxu0 %v1583
        %v7753 = vpop.f32.mrb[0].mxu0
        %v7754 = vadd.f32 %v7711, %v7753
        %v7755 = vpop.f32.mrb[0].mxu0
        %v7756 = vadd.f32 %v7713, %v7755
        %v7757 = vpop.f32.mrb[0].mxu0
        %v7758 = vadd.f32 %v7715, %v7757
        %v7759 = vpop.f32.mrb[0].mxu0
        %v7760 = vadd.f32 %v7717, %v7759
        %7761 = vdwg.mxu0
        %7762 = vmatprep.subr.bf16.mxu0 %v5936
        %7763 = vmatpush1.bf16.msra.mxu0 %v5935
        %7764 = vmatprep.subr.bf16.mxu0 %v5942
        %7765 = vmatpush1.bf16.msra.mxu0 %v5941
        %7766 = vmatprep.subr.bf16.mxu0 %v5948
        %7767 = vmatpush1.bf16.msra.mxu0 %v5947
        %7768 = vmatprep.subr.bf16.mxu0 %v5954
        %7769 = vmatpush1.bf16.msra.mxu0 %v5953
        %7770 = vmatprep.subr.bf16.mxu0 %v5960
        %7771 = vmatpush1.bf16.msra.mxu0 %v5959
        %7772 = vmatprep.subr.bf16.mxu0 %v5966
        %7773 = vmatpush1.bf16.msra.mxu0 %v5965
        %7774 = vmatprep.subr.bf16.mxu0 %v5972
        %7775 = vmatpush1.bf16.msra.mxu0 %v5971
        %7776 = vmatprep.subr.bf16.mxu0 %v5978
        %7777 = vmatpush1.bf16.msra.mxu0 %v5977
        %7778 = vmatprep.subr.bf16.mxu0 %v5984
        %7779 = vmatpush1.bf16.msra.mxu0 %v5983
        %7780 = vmatprep.subr.bf16.mxu0 %v5990
        %7781 = vmatpush1.bf16.msra.mxu0 %v5989
        %7782 = vmatprep.subr.bf16.mxu0 %v5996
        %7783 = vmatpush1.bf16.msra.mxu0 %v5995
        %7784 = vmatprep.subr.bf16.mxu0 %v6002
        %7785 = vmatpush1.bf16.msra.mxu0 %v6001
        %7786 = vmatprep.subr.bf16.mxu0 %v6008
        %7787 = vmatpush1.bf16.msra.mxu0 %v6007
        %7788 = vmatprep.subr.bf16.mxu0 %v6014
        %7789 = vmatpush1.bf16.msra.mxu0 %v6013
        %7790 = vmatprep.subr.bf16.mxu0 %v6020
        %7791 = vmatpush1.bf16.msra.mxu0 %v6019
        %7792 = vmatprep.subr.bf16.mxu0 %v6026
        %7793 = vmatpush1.bf16.msra.mxu0 %v6025
        %7794 = vmatprep.mubr.bf16.mxu0 %v1586
        %7795 = vmatmul.mubr.bf16.gmra.mrb[0].mxu0 %v1585
        %v7796 = vpop.f32.mrb[0].mxu0
        %v7797 = vadd.f32 %v7754, %v7796
        %v7798 = vpop.f32.mrb[0].mxu0
        %v7799 = vadd.f32 %v7756, %v7798
        %v7800 = vpop.f32.mrb[0].mxu0
        %v7801 = vadd.f32 %v7758, %v7800
        %v7802 = vpop.f32.mrb[0].mxu0
        %v7803 = vadd.f32 %v7760, %v7802
        %7804 = vdwg.mxu0
        %7805 = vmatprep.subr.bf16.mxu0 %v6032
        %7806 = vmatpush1.bf16.msra.mxu0 %v6031
        %7807 = vmatprep.subr.bf16.mxu0 %v6038
        %7808 = vmatpush1.bf16.msra.mxu0 %v6037
        %7809 = vmatprep.subr.bf16.mxu0 %v6044
        %7810 = vmatpush1.bf16.msra.mxu0 %v6043
        %7811 = vmatprep.subr.bf16.mxu0 %v6050
        %7812 = vmatpush1.bf16.msra.mxu0 %v6049
        %7813 = vmatprep.subr.bf16.mxu0 %v6056
        %7814 = vmatpush1.bf16.msra.mxu0 %v6055
        %7815 = vmatprep.subr.bf16.mxu0 %v6062
        %7816 = vmatpush1.bf16.msra.mxu0 %v6061
        %7817 = vmatprep.subr.bf16.mxu0 %v6068
        %7818 = vmatpush1.bf16.msra.mxu0 %v6067
        %7819 = vmatprep.subr.bf16.mxu0 %v6074
        %7820 = vmatpush1.bf16.msra.mxu0 %v6073
        %7821 = vmatprep.subr.bf16.mxu0 %v6080
        %7822 = vmatpush1.bf16.msra.mxu0 %v6079
        %7823 = vmatprep.subr.bf16.mxu0 %v6086
        %7824 = vmatpush1.bf16.msra.mxu0 %v6085
        %7825 = vmatprep.subr.bf16.mxu0 %v6092
        %7826 = vmatpush1.bf16.msra.mxu0 %v6091
        %7827 = vmatprep.subr.bf16.mxu0 %v6098
        %7828 = vmatpush1.bf16.msra.mxu0 %v6097
        %7829 = vmatprep.subr.bf16.mxu0 %v6104
        %7830 = vmatpush1.bf16.msra.mxu0 %v6103
        %7831 = vmatprep.subr.bf16.mxu0 %v6110
        %7832 = vmatpush1.bf16.msra.mxu0 %v6109
        %7833 = vmatprep.subr.bf16.mxu0 %v6116
        %7834 = vmatpush1.bf16.msra.mxu0 %v6115
        %7835 = vmatprep.subr.bf16.mxu0 %v6122
        %7836 = vmatpush1.bf16.msra.mxu0 %v6121
        %7837 = vmatprep.mubr.bf16.mxu0 %v1588
        %7838 = vmatmul.mubr.bf16.gmra.mrb[0].mxu0 %v1587
        %v7839 = vpop.f32.mrb[0].mxu0
        %v7840 = vadd.f32 %v7797, %v7839
        %v7841 = vpop.f32.mrb[0].mxu0
        %v7842 = vadd.f32 %v7799, %v7841
        %v7843 = vpop.f32.mrb[0].mxu0
        %v7844 = vadd.f32 %v7801, %v7843
        %v7845 = vpop.f32.mrb[0].mxu0
        %v7846 = vadd.f32 %v7803, %v7845
        %7847 = vdwg.mxu0
        %7848 = vmatprep.subr.bf16.mxu0 %v6128
        %7849 = vmatpush1.bf16.msra.mxu0 %v6127
        %7850 = vmatprep.subr.bf16.mxu0 %v6134
        %7851 = vmatpush1.bf16.msra.mxu0 %v6133
        %7852 = vmatprep.subr.bf16.mxu0 %v6140
        %7853 = vmatpush1.bf16.msra.mxu0 %v6139
        %7854 = vmatprep.subr.bf16.mxu0 %v6146
        %7855 = vmatpush1.bf16.msra.mxu0 %v6145
        %7856 = vmatprep.subr.bf16.mxu0 %v6152
        %7857 = vmatpush1.bf16.msra.mxu0 %v6151
        %7858 = vmatprep.subr.bf16.mxu0 %v6158
        %7859 = vmatpush1.bf16.msra.mxu0 %v6157
        %7860 = vmatprep.subr.bf16.mxu0 %v6164
        %7861 = vmatpush1.bf16.msra.mxu0 %v6163
        %7862 = vmatprep.subr.bf16.mxu0 %v6170
        %7863 = vmatpush1.bf16.msra.mxu0 %v6169
        %7864 = vmatprep.subr.bf16.mxu0 %v6176
        %7865 = vmatpush1.bf16.msra.mxu0 %v6175
        %7866 = vmatprep.subr.bf16.mxu0 %v6182
        %7867 = vmatpush1.bf16.msra.mxu0 %v6181
        %7868 = vmatprep.subr.bf16.mxu0 %v6188
        %7869 = vmatpush1.bf16.msra.mxu0 %v6187
        %7870 = vmatprep.subr.bf16.mxu0 %v6194
        %7871 = vmatpush1.bf16.msra.mxu0 %v6193
        %7872 = vmatprep.subr.bf16.mxu0 %v6200
        %7873 = vmatpush1.bf16.msra.mxu0 %v6199
        %7874 = vmatprep.subr.bf16.mxu0 %v6206
        %7875 = vmatpush1.bf16.msra.mxu0 %v6205
        %7876 = vmatprep.subr.bf16.mxu0 %v6212
        %7877 = vmatpush1.bf16.msra.mxu0 %v6211
        %7878 = vmatprep.subr.bf16.mxu0 %v6218
        %7879 = vmatpush1.bf16.msra.mxu0 %v6217
        %7880 = vmatprep.mubr.bf16.mxu0 %v1590
        %7881 = vmatmul.mubr.bf16.gmra.mrb[0].mxu0 %v1589
        %v7882 = vpop.f32.mrb[0].mxu0
        %v7883 = vadd.f32 %v7840, %v7882
        %v7884 = vpop.f32.mrb[0].mxu0
        %v7885 = vadd.f32 %v7842, %v7884
        %v7886 = vpop.f32.mrb[0].mxu0
        %v7887 = vadd.f32 %v7844, %v7886
        %v7888 = vpop.f32.mrb[0].mxu0
        %v7889 = vadd.f32 %v7846, %v7888
        %7890 = vdwg.mxu0
        %7891 = vmatprep.subr.bf16.mxu0 %v5074
        %7892 = vmatpush1.bf16.msra.mxu0 %v5073
        %7893 = vmatprep.subr.bf16.mxu0 %v5080
        %7894 = vmatpush1.bf16.msra.mxu0 %v5079
        %7895 = vmatprep.subr.bf16.mxu0 %v5086
        %7896 = vmatpush1.bf16.msra.mxu0 %v5085
        %7897 = vmatprep.subr.bf16.mxu0 %v5092
        %7898 = vmatpush1.bf16.msra.mxu0 %v5091
        %7899 = vmatprep.subr.bf16.mxu0 %v5098
        %7900 = vmatpush1.bf16.msra.mxu0 %v5097
        %7901 = vmatprep.subr.bf16.mxu0 %v5104
        %7902 = vmatpush1.bf16.msra.mxu0 %v5103
        %7903 = vmatprep.subr.bf16.mxu0 %v5110
        %7904 = vmatpush1.bf16.msra.mxu0 %v5109
        %7905 = vmatprep.subr.bf16.mxu0 %v5116
        %7906 = vmatpush1.bf16.msra.mxu0 %v5115
        %7907 = vmatprep.subr.bf16.mxu0 %v5122
        %7908 = vmatpush1.bf16.msra.mxu0 %v5121
        %7909 = vmatprep.subr.bf16.mxu0 %v5128
        %7910 = vmatpush1.bf16.msra.mxu0 %v5127
        %7911 = vmatprep.subr.bf16.mxu0 %v5134
        %7912 = vmatpush1.bf16.msra.mxu0 %v5133
        %7913 = vmatprep.subr.bf16.mxu0 %v5140
        %7914 = vmatpush1.bf16.msra.mxu0 %v5139
        %7915 = vmatprep.subr.bf16.mxu0 %v5146
        %7916 = vmatpush1.bf16.msra.mxu0 %v5145
        %7917 = vmatprep.subr.bf16.mxu0 %v5152
        %7918 = vmatpush1.bf16.msra.mxu0 %v5151
        %7919 = vmatprep.subr.bf16.mxu0 %v5158
        %7920 = vmatpush1.bf16.msra.mxu0 %v5157
        %7921 = vmatprep.subr.bf16.mxu0 %v5164
        %7922 = vmatpush1.bf16.msra.mxu0 %v5163
        %7923 = vmatprep.mubr.bf16.mxu0 %v1568
        %7924 = vmatmul.mubr.bf16.gmra.mrb[0].mxu0 %v1567
        %v7925 = vpop.f32.mrb[0].mxu0
        %v7926 = vadd.f32 %v1476, %v7925
        %v7927 = vpop.f32.mrb[0].mxu0
        %v7928 = vadd.f32 %v1480, %v7927
        %v7929 = vpop.f32.mrb[0].mxu0
        %v7930 = vadd.f32 %v1476, %v7929
        %v7931 = vpop.f32.mrb[0].mxu0
        %v7932 = vadd.f32 %v1480, %v7931
        %7933 = vdwg.mxu0
        %7934 = vmatprep.subr.bf16.mxu0 %v5170
        %7935 = vmatpush1.bf16.msra.mxu0 %v5169
        %7936 = vmatprep.subr.bf16.mxu0 %v5176
        %7937 = vmatpush1.bf16.msra.mxu0 %v5175
        %7938 = vmatprep.subr.bf16.mxu0 %v5182
        %7939 = vmatpush1.bf16.msra.mxu0 %v5181
        %7940 = vmatprep.subr.bf16.mxu0 %v5188
        %7941 = vmatpush1.bf16.msra.mxu0 %v5187
        %7942 = vmatprep.subr.bf16.mxu0 %v5194
        %7943 = vmatpush1.bf16.msra.mxu0 %v5193
        %7944 = vmatprep.subr.bf16.mxu0 %v5200
        %7945 = vmatpush1.bf16.msra.mxu0 %v5199
        %7946 = vmatprep.subr.bf16.mxu0 %v5206
        %7947 = vmatpush1.bf16.msra.mxu0 %v5205
        %7948 = vmatprep.subr.bf16.mxu0 %v5212
        %7949 = vmatpush1.bf16.msra.mxu0 %v5211
        %7950 = vmatprep.subr.bf16.mxu0 %v5218
        %7951 = vmatpush1.bf16.msra.mxu0 %v5217
        %7952 = vmatprep.subr.bf16.mxu0 %v5224
        %7953 = vmatpush1.bf16.msra.mxu0 %v5223
        %7954 = vmatprep.subr.bf16.mxu0 %v5230
        %7955 = vmatpush1.bf16.msra.mxu0 %v5229
        %7956 = vmatprep.subr.bf16.mxu0 %v5236
        %7957 = vmatpush1.bf16.msra.mxu0 %v5235
        %7958 = vmatprep.subr.bf16.mxu0 %v5242
        %7959 = vmatpush1.bf16.msra.mxu0 %v5241
        %7960 = vmatprep.subr.bf16.mxu0 %v5248
        %7961 = vmatpush1.bf16.msra.mxu0 %v5247
        %7962 = vmatprep.subr.bf16.mxu0 %v5254
        %7963 = vmatpush1.bf16.msra.mxu0 %v5253
        %7964 = vmatprep.subr.bf16.mxu0 %v5260
        %7965 = vmatpush1.bf16.msra.mxu0 %v5259
        %7966 = vmatprep.mubr.bf16.mxu0 %v1570
        %7967 = vmatmul.mubr.bf16.gmra.mrb[0].mxu0 %v1569
        %v7968 = vpop.f32.mrb[0].mxu0
        %v7969 = vadd.f32 %v7926, %v7968
        %v7970 = vpop.f32.mrb[0].mxu0
        %v7971 = vadd.f32 %v7928, %v7970
        %v7972 = vpop.f32.mrb[0].mxu0
        %v7973 = vadd.f32 %v7930, %v7972
        %v7974 = vpop.f32.mrb[0].mxu0
        %v7975 = vadd.f32 %v7932, %v7974
        %7976 = vdwg.mxu0
        %7977 = vmatprep.subr.bf16.mxu0 %v5266
        %7978 = vmatpush1.bf16.msra.mxu0 %v5265
        %7979 = vmatprep.subr.bf16.mxu0 %v5272
        %7980 = vmatpush1.bf16.msra.mxu0 %v5271
        %7981 = vmatprep.subr.bf16.mxu0 %v5278
        %7982 = vmatpush1.bf16.msra.mxu0 %v5277
        %7983 = vmatprep.subr.bf16.mxu0 %v5284
        %7984 = vmatpush1.bf16.msra.mxu0 %v5283
        %7985 = vmatprep.subr.bf16.mxu0 %v5290
        %7986 = vmatpush1.bf16.msra.mxu0 %v5289
        %7987 = vmatprep.subr.bf16.mxu0 %v5296
        %7988 = vmatpush1.bf16.msra.mxu0 %v5295
        %7989 = vmatprep.subr.bf16.mxu0 %v5302
        %7990 = vmatpush1.bf16.msra.mxu0 %v5301
        %7991 = vmatprep.subr.bf16.mxu0 %v5308
        %7992 = vmatpush1.bf16.msra.mxu0 %v5307
        %7993 = vmatprep.subr.bf16.mxu0 %v5314
        %7994 = vmatpush1.bf16.msra.mxu0 %v5313
        %7995 = vmatprep.subr.bf16.mxu0 %v5320
        %7996 = vmatpush1.bf16.msra.mxu0 %v5319
        %7997 = vmatprep.subr.bf16.mxu0 %v5326
        %7998 = vmatpush1.bf16.msra.mxu0 %v5325
        %7999 = vmatprep.subr.bf16.mxu0 %v5332
        %8000 = vmatpush1.bf16.msra.mxu0 %v5331
        %8001 = vmatprep.subr.bf16.mxu0 %v5338
        %8002 = vmatpush1.bf16.msra.mxu0 %v5337
        %8003 = vmatprep.subr.bf16.mxu0 %v5344
        %8004 = vmatpush1.bf16.msra.mxu0 %v5343
        %8005 = vmatprep.subr.bf16.mxu0 %v5350
        %8006 = vmatpush1.bf16.msra.mxu0 %v5349
        %8007 = vmatprep.subr.bf16.mxu0 %v5356
        %8008 = vmatpush1.bf16.msra.mxu0 %v5355
        %8009 = vmatprep.mubr.bf16.mxu0 %v1572
        %8010 = vmatmul.mubr.bf16.gmra.mrb[0].mxu0 %v1571
        %v8011 = vpop.f32.mrb[0].mxu0
        %v8012 = vadd.f32 %v7969, %v8011
        %v8013 = vpop.f32.mrb[0].mxu0
        %v8014 = vadd.f32 %v7971, %v8013
        %v8015 = vpop.f32.mrb[0].mxu0
        %v8016 = vadd.f32 %v7973, %v8015
        %v8017 = vpop.f32.mrb[0].mxu0
        %v8018 = vadd.f32 %v7975, %v8017
        %8019 = vdwg.mxu0
        %8020 = vmatprep.subr.bf16.mxu0 %v5362
        %8021 = vmatpush1.bf16.msra.mxu0 %v5361
        %8022 = vmatprep.subr.bf16.mxu0 %v5368
        %8023 = vmatpush1.bf16.msra.mxu0 %v5367
        %8024 = vmatprep.subr.bf16.mxu0 %v5374
        %8025 = vmatpush1.bf16.msra.mxu0 %v5373
        %8026 = vmatprep.subr.bf16.mxu0 %v5380
        %8027 = vmatpush1.bf16.msra.mxu0 %v5379
        %8028 = vmatprep.subr.bf16.mxu0 %v5386
        %8029 = vmatpush1.bf16.msra.mxu0 %v5385
        %8030 = vmatprep.subr.bf16.mxu0 %v5392
        %8031 = vmatpush1.bf16.msra.mxu0 %v5391
        %8032 = vmatprep.subr.bf16.mxu0 %v5398
        %8033 = vmatpush1.bf16.msra.mxu0 %v5397
        %8034 = vmatprep.subr.bf16.mxu0 %v5404
        %8035 = vmatpush1.bf16.msra.mxu0 %v5403
        %8036 = vmatprep.subr.bf16.mxu0 %v5410
        %8037 = vmatpush1.bf16.msra.mxu0 %v5409
        %8038 = vmatprep.subr.bf16.mxu0 %v5416
        %8039 = vmatpush1.bf16.msra.mxu0 %v5415
        %8040 = vmatprep.subr.bf16.mxu0 %v5422
        %8041 = vmatpush1.bf16.msra.mxu0 %v5421
        %8042 = vmatprep.subr.bf16.mxu0 %v5428
        %8043 = vmatpush1.bf16.msra.mxu0 %v5427
        %8044 = vmatprep.subr.bf16.mxu0 %v5434
        %8045 = vmatpush1.bf16.msra.mxu0 %v5433
        %8046 = vmatprep.subr.bf16.mxu0 %v5440
        %8047 = vmatpush1.bf16.msra.mxu0 %v5439
        %8048 = vmatprep.subr.bf16.mxu0 %v5446
        %8049 = vmatpush1.bf16.msra.mxu0 %v5445
        %8050 = vmatprep.subr.bf16.mxu0 %v5452
        %8051 = vmatpush1.bf16.msra.mxu0 %v5451
        %8052 = vmatprep.mubr.bf16.mxu0 %v1574
        %8053 = vmatmul.mubr.bf16.gmra.mrb[0].mxu0 %v1573
        %v8054 = vpop.f32.mrb[0].mxu0
        %v8055 = vadd.f32 %v8012, %v8054
        %v8056 = vpop.f32.mrb[0].mxu0
        %v8057 = vadd.f32 %v8014, %v8056
        %v8058 = vpop.f32.mrb[0].mxu0
        %v8059 = vadd.f32 %v8016, %v8058
        %v8060 = vpop.f32.mrb[0].mxu0
        %v8061 = vadd.f32 %v8018, %v8060
        %8062 = vdwg.mxu0
        %8063 = vmatprep.subr.bf16.mxu0 %v5458
        %8064 = vmatpush1.bf16.msra.mxu0 %v5457
        %8065 = vmatprep.subr.bf16.mxu0 %v5464
        %8066 = vmatpush1.bf16.msra.mxu0 %v5463
        %8067 = vmatprep.subr.bf16.mxu0 %v5470
        %8068 = vmatpush1.bf16.msra.mxu0 %v5469
        %8069 = vmatprep.subr.bf16.mxu0 %v5476
        %8070 = vmatpush1.bf16.msra.mxu0 %v5475
        %8071 = vmatprep.subr.bf16.mxu0 %v5482
        %8072 = vmatpush1.bf16.msra.mxu0 %v5481
        %8073 = vmatprep.subr.bf16.mxu0 %v5488
        %8074 = vmatpush1.bf16.msra.mxu0 %v5487
        %8075 = vmatprep.subr.bf16.mxu0 %v5494
        %8076 = vmatpush1.bf16.msra.mxu0 %v5493
        %8077 = vmatprep.subr.bf16.mxu0 %v5500
        %8078 = vmatpush1.bf16.msra.mxu0 %v5499
        %8079 = vmatprep.subr.bf16.mxu0 %v5506
        %8080 = vmatpush1.bf16.msra.mxu0 %v5505
        %8081 = vmatprep.subr.bf16.mxu0 %v5512
        %8082 = vmatpush1.bf16.msra.mxu0 %v5511
        %8083 = vmatprep.subr.bf16.mxu0 %v5518
        %8084 = vmatpush1.bf16.msra.mxu0 %v5517
        %8085 = vmatprep.subr.bf16.mxu0 %v5524
        %8086 = vmatpush1.bf16.msra.mxu0 %v5523
        %8087 = vmatprep.subr.bf16.mxu0 %v5530
        %8088 = vmatpush1.bf16.msra.mxu0 %v5529
        %8089 = vmatprep.subr.bf16.mxu0 %v5536
        %8090 = vmatpush1.bf16.msra.mxu0 %v5535
        %8091 = vmatprep.subr.bf16.mxu0 %v5542
        %8092 = vmatpush1.bf16.msra.mxu0 %v5541
        %8093 = vmatprep.subr.bf16.mxu0 %v5548
        %8094 = vmatpush1.bf16.msra.mxu0 %v5547
        %8095 = vmatprep.mubr.bf16.mxu0 %v1576
        %8096 = vmatmul.mubr.bf16.gmra.mrb[0].mxu0 %v1575
        %v8097 = vpop.f32.mrb[0].mxu0
        %v8098 = vadd.f32 %v8055, %v8097
        %v8099 = vpop.f32.mrb[0].mxu0
        %v8100 = vadd.f32 %v8057, %v8099
        %v8101 = vpop.f32.mrb[0].mxu0
        %v8102 = vadd.f32 %v8059, %v8101
        %v8103 = vpop.f32.mrb[0].mxu0
        %v8104 = vadd.f32 %v8061, %v8103
        %8105 = vdwg.mxu0
        %8106 = vmatprep.subr.bf16.mxu0 %v5554
        %8107 = vmatpush1.bf16.msra.mxu0 %v5553
        %8108 = vmatprep.subr.bf16.mxu0 %v5560
        %8109 = vmatpush1.bf16.msra.mxu0 %v5559
        %8110 = vmatprep.subr.bf16.mxu0 %v5566
        %8111 = vmatpush1.bf16.msra.mxu0 %v5565
        %8112 = vmatprep.subr.bf16.mxu0 %v5572
        %8113 = vmatpush1.bf16.msra.mxu0 %v5571
        %8114 = vmatprep.subr.bf16.mxu0 %v5578
        %8115 = vmatpush1.bf16.msra.mxu0 %v5577
        %8116 = vmatprep.subr.bf16.mxu0 %v5584
        %8117 = vmatpush1.bf16.msra.mxu0 %v5583
        %8118 = vmatprep.subr.bf16.mxu0 %v5590
        %8119 = vmatpush1.bf16.msra.mxu0 %v5589
        %8120 = vmatprep.subr.bf16.mxu0 %v5596
        %8121 = vmatpush1.bf16.msra.mxu0 %v5595
        %8122 = vmatprep.subr.bf16.mxu0 %v5602
        %8123 = vmatpush1.bf16.msra.mxu0 %v5601
        %8124 = vmatprep.subr.bf16.mxu0 %v5608
        %8125 = vmatpush1.bf16.msra.mxu0 %v5607
        %8126 = vmatprep.subr.bf16.mxu0 %v5614
        %8127 = vmatpush1.bf16.msra.mxu0 %v5613
        %8128 = vmatprep.subr.bf16.mxu0 %v5620
        %8129 = vmatpush1.bf16.msra.mxu0 %v5619
        %8130 = vmatprep.subr.bf16.mxu0 %v5626
        %8131 = vmatpush1.bf16.msra.mxu0 %v5625
        %8132 = vmatprep.subr.bf16.mxu0 %v5632
        %8133 = vmatpush1.bf16.msra.mxu0 %v5631
        %8134 = vmatprep.subr.bf16.mxu0 %v5638
        %8135 = vmatpush1.bf16.msra.mxu0 %v5637
        %8136 = vmatprep.subr.bf16.mxu0 %v5644
        %8137 = vmatpush1.bf16.msra.mxu0 %v5643
        %8138 = vmatprep.mubr.bf16.mxu0 %v1578
        %8139 = vmatmul.mubr.bf16.gmra.mrb[0].mxu0 %v1577
        %v8140 = vpop.f32.mrb[0].mxu0
        %v8141 = vadd.f32 %v8098, %v8140
        %v8142 = vpop.f32.mrb[0].mxu0
        %v8143 = vadd.f32 %v8100, %v8142
        %v8144 = vpop.f32.mrb[0].mxu0
        %v8145 = vadd.f32 %v8102, %v8144
        %v8146 = vpop.f32.mrb[0].mxu0
        %v8147 = vadd.f32 %v8104, %v8146
        %8148 = vdwg.mxu0
        %8149 = vmatprep.subr.bf16.mxu0 %v5650
        %8150 = vmatpush1.bf16.msra.mxu0 %v5649
        %8151 = vmatprep.subr.bf16.mxu0 %v5656
        %8152 = vmatpush1.bf16.msra.mxu0 %v5655
        %8153 = vmatprep.subr.bf16.mxu0 %v5662
        %8154 = vmatpush1.bf16.msra.mxu0 %v5661
        %8155 = vmatprep.subr.bf16.mxu0 %v5668
        %8156 = vmatpush1.bf16.msra.mxu0 %v5667
        %8157 = vmatprep.subr.bf16.mxu0 %v5674
        %8158 = vmatpush1.bf16.msra.mxu0 %v5673
        %8159 = vmatprep.subr.bf16.mxu0 %v5680
        %8160 = vmatpush1.bf16.msra.mxu0 %v5679
        %8161 = vmatprep.subr.bf16.mxu0 %v5686
        %8162 = vmatpush1.bf16.msra.mxu0 %v5685
        %8163 = vmatprep.subr.bf16.mxu0 %v5692
        %8164 = vmatpush1.bf16.msra.mxu0 %v5691
        %8165 = vmatprep.subr.bf16.mxu0 %v5698
        %8166 = vmatpush1.bf16.msra.mxu0 %v5697
        %8167 = vmatprep.subr.bf16.mxu0 %v5704
        %8168 = vmatpush1.bf16.msra.mxu0 %v5703
        %8169 = vmatprep.subr.bf16.mxu0 %v5710
        %8170 = vmatpush1.bf16.msra.mxu0 %v5709
        %8171 = vmatprep.subr.bf16.mxu0 %v5716
        %8172 = vmatpush1.bf16.msra.mxu0 %v5715
        %8173 = vmatprep.subr.bf16.mxu0 %v5722
        %8174 = vmatpush1.bf16.msra.mxu0 %v5721
        %8175 = vmatprep.subr.bf16.mxu0 %v5728
        %8176 = vmatpush1.bf16.msra.mxu0 %v5727
        %8177 = vmatprep.subr.bf16.mxu0 %v5734
        %8178 = vmatpush1.bf16.msra.mxu0 %v5733
        %8179 = vmatprep.subr.bf16.mxu0 %v5740
        %8180 = vmatpush1.bf16.msra.mxu0 %v5739
        %8181 = vmatprep.mubr.bf16.mxu0 %v1580
        %8182 = vmatmul.mubr.bf16.gmra.mrb[0].mxu0 %v1579
        %v8183 = vpop.f32.mrb[0].mxu0
        %v8184 = vadd.f32 %v8141, %v8183
        %v8185 = vpop.f32.mrb[0].mxu0
        %v8186 = vadd.f32 %v8143, %v8185
        %v8187 = vpop.f32.mrb[0].mxu0
        %v8188 = vadd.f32 %v8145, %v8187
        %v8189 = vpop.f32.mrb[0].mxu0
        %v8190 = vadd.f32 %v8147, %v8189
        %8191 = vdwg.mxu0
        %8192 = vmatprep.subr.bf16.mxu0 %v5746
        %8193 = vmatpush1.bf16.msra.mxu0 %v5745
        %8194 = vmatprep.subr.bf16.mxu0 %v5752
        %8195 = vmatpush1.bf16.msra.mxu0 %v5751
        %8196 = vmatprep.subr.bf16.mxu0 %v5758
        %8197 = vmatpush1.bf16.msra.mxu0 %v5757
        %8198 = vmatprep.subr.bf16.mxu0 %v5764
        %8199 = vmatpush1.bf16.msra.mxu0 %v5763
        %8200 = vmatprep.subr.bf16.mxu0 %v5770
        %8201 = vmatpush1.bf16.msra.mxu0 %v5769
        %8202 = vmatprep.subr.bf16.mxu0 %v5776
        %8203 = vmatpush1.bf16.msra.mxu0 %v5775
        %8204 = vmatprep.subr.bf16.mxu0 %v5782
        %8205 = vmatpush1.bf16.msra.mxu0 %v5781
        %8206 = vmatprep.subr.bf16.mxu0 %v5788
        %8207 = vmatpush1.bf16.msra.mxu0 %v5787
        %8208 = vmatprep.subr.bf16.mxu0 %v5794
        %8209 = vmatpush1.bf16.msra.mxu0 %v5793
        %8210 = vmatprep.subr.bf16.mxu0 %v5800
        %8211 = vmatpush1.bf16.msra.mxu0 %v5799
        %8212 = vmatprep.subr.bf16.mxu0 %v5806
        %8213 = vmatpush1.bf16.msra.mxu0 %v5805
        %8214 = vmatprep.subr.bf16.mxu0 %v5812
        %8215 = vmatpush1.bf16.msra.mxu0 %v5811
        %8216 = vmatprep.subr.bf16.mxu0 %v5818
        %8217 = vmatpush1.bf16.msra.mxu0 %v5817
        %8218 = vmatprep.subr.bf16.mxu0 %v5824
        %8219 = vmatpush1.bf16.msra.mxu0 %v5823
        %8220 = vmatprep.subr.bf16.mxu0 %v5830
        %8221 = vmatpush1.bf16.msra.mxu0 %v5829
        %8222 = vmatprep.subr.bf16.mxu0 %v5836
        %8223 = vmatpush1.bf16.msra.mxu0 %v5835
        %8224 = vmatprep.mubr.bf16.mxu0 %v1582
        %8225 = vmatmul.mubr.bf16.gmra.mrb[0].mxu0 %v1581
        %v8226 = vpop.f32.mrb[0].mxu0
        %v8227 = vadd.f32 %v8184, %v8226
        %v8228 = vpop.f32.mrb[0].mxu0
        %v8229 = vadd.f32 %v8186, %v8228
        %v8230 = vpop.f32.mrb[0].mxu0
        %v8231 = vadd.f32 %v8188, %v8230
        %v8232 = vpop.f32.mrb[0].mxu0
        %v8233 = vadd.f32 %v8190, %v8232
        %8234 = vdwg.mxu0
        %8235 = vmatprep.subr.bf16.mxu0 %v5842
        %8236 = vmatpush1.bf16.msra.mxu0 %v5841
        %8237 = vmatprep.subr.bf16.mxu0 %v5848
        %8238 = vmatpush1.bf16.msra.mxu0 %v5847
        %8239 = vmatprep.subr.bf16.mxu0 %v5854
        %8240 = vmatpush1.bf16.msra.mxu0 %v5853
        %8241 = vmatprep.subr.bf16.mxu0 %v5860
        %8242 = vmatpush1.bf16.msra.mxu0 %v5859
        %8243 = vmatprep.subr.bf16.mxu0 %v5866
        %8244 = vmatpush1.bf16.msra.mxu0 %v5865
        %8245 = vmatprep.subr.bf16.mxu0 %v5872
        %8246 = vmatpush1.bf16.msra.mxu0 %v5871
        %8247 = vmatprep.subr.bf16.mxu0 %v5878
        %8248 = vmatpush1.bf16.msra.mxu0 %v5877
        %8249 = vmatprep.subr.bf16.mxu0 %v5884
        %8250 = vmatpush1.bf16.msra.mxu0 %v5883
        %8251 = vmatprep.subr.bf16.mxu0 %v5890
        %8252 = vmatpush1.bf16.msra.mxu0 %v5889
        %8253 = vmatprep.subr.bf16.mxu0 %v5896
        %8254 = vmatpush1.bf16.msra.mxu0 %v5895
        %8255 = vmatprep.subr.bf16.mxu0 %v5902
        %8256 = vmatpush1.bf16.msra.mxu0 %v5901
        %8257 = vmatprep.subr.bf16.mxu0 %v5908
        %8258 = vmatpush1.bf16.msra.mxu0 %v5907
        %8259 = vmatprep.subr.bf16.mxu0 %v5914
        %8260 = vmatpush1.bf16.msra.mxu0 %v5913
        %8261 = vmatprep.subr.bf16.mxu0 %v5920
        %8262 = vmatpush1.bf16.msra.mxu0 %v5919
        %8263 = vmatprep.subr.bf16.mxu0 %v5926
        %8264 = vmatpush1.bf16.msra.mxu0 %v5925
        %8265 = vmatprep.subr.bf16.mxu0 %v5932
        %8266 = vmatpush1.bf16.msra.mxu0 %v5931
        %8267 = vmatprep.mubr.bf16.mxu0 %v1584
        %8268 = vmatmul.mubr.bf16.gmra.mrb[0].mxu0 %v1583
        %v8269 = vpop.f32.mrb[0].mxu0
        %v8270 = vadd.f32 %v8227, %v8269
        %v8271 = vpop.f32.mrb[0].mxu0
        %v8272 = vadd.f32 %v8229, %v8271
        %v8273 = vpop.f32.mrb[0].mxu0
        %v8274 = vadd.f32 %v8231, %v8273
        %v8275 = vpop.f32.mrb[0].mxu0
        %v8276 = vadd.f32 %v8233, %v8275
        %8277 = vdwg.mxu0
        %8278 = vmatprep.subr.bf16.mxu0 %v5938
        %8279 = vmatpush1.bf16.msra.mxu0 %v5937
        %8280 = vmatprep.subr.bf16.mxu0 %v5944
        %8281 = vmatpush1.bf16.msra.mxu0 %v5943
        %8282 = vmatprep.subr.bf16.mxu0 %v5950
        %8283 = vmatpush1.bf16.msra.mxu0 %v5949
        %8284 = vmatprep.subr.bf16.mxu0 %v5956
        %8285 = vmatpush1.bf16.msra.mxu0 %v5955
        %8286 = vmatprep.subr.bf16.mxu0 %v5962
        %8287 = vmatpush1.bf16.msra.mxu0 %v5961
        %8288 = vmatprep.subr.bf16.mxu0 %v5968
        %8289 = vmatpush1.bf16.msra.mxu0 %v5967
        %8290 = vmatprep.subr.bf16.mxu0 %v5974
        %8291 = vmatpush1.bf16.msra.mxu0 %v5973
        %8292 = vmatprep.subr.bf16.mxu0 %v5980
        %8293 = vmatpush1.bf16.msra.mxu0 %v5979
        %8294 = vmatprep.subr.bf16.mxu0 %v5986
        %8295 = vmatpush1.bf16.msra.mxu0 %v5985
        %8296 = vmatprep.subr.bf16.mxu0 %v5992
        %8297 = vmatpush1.bf16.msra.mxu0 %v5991
        %8298 = vmatprep.subr.bf16.mxu0 %v5998
        %8299 = vmatpush1.bf16.msra.mxu0 %v5997
        %8300 = vmatprep.subr.bf16.mxu0 %v6004
        %8301 = vmatpush1.bf16.msra.mxu0 %v6003
        %8302 = vmatprep.subr.bf16.mxu0 %v6010
        %8303 = vmatpush1.bf16.msra.mxu0 %v6009
        %8304 = vmatprep.subr.bf16.mxu0 %v6016
        %8305 = vmatpush1.bf16.msra.mxu0 %v6015
        %8306 = vmatprep.subr.bf16.mxu0 %v6022
        %8307 = vmatpush1.bf16.msra.mxu0 %v6021
        %8308 = vmatprep.subr.bf16.mxu0 %v6028
        %8309 = vmatpush1.bf16.msra.mxu0 %v6027
        %8310 = vmatprep.mubr.bf16.mxu0 %v1586
        %8311 = vmatmul.mubr.bf16.gmra.mrb[0].mxu0 %v1585
        %v8312 = vpop.f32.mrb[0].mxu0
        %v8313 = vadd.f32 %v8270, %v8312
        %v8314 = vpop.f32.mrb[0].mxu0
        %v8315 = vadd.f32 %v8272, %v8314
        %v8316 = vpop.f32.mrb[0].mxu0
        %v8317 = vadd.f32 %v8274, %v8316
        %v8318 = vpop.f32.mrb[0].mxu0
        %v8319 = vadd.f32 %v8276, %v8318
        %8320 = vdwg.mxu0
        %8321 = vmatprep.subr.bf16.mxu0 %v6034
        %8322 = vmatpush1.bf16.msra.mxu0 %v6033
        %8323 = vmatprep.subr.bf16.mxu0 %v6040
        %8324 = vmatpush1.bf16.msra.mxu0 %v6039
        %8325 = vmatprep.subr.bf16.mxu0 %v6046
        %8326 = vmatpush1.bf16.msra.mxu0 %v6045
        %8327 = vmatprep.subr.bf16.mxu0 %v6052
        %8328 = vmatpush1.bf16.msra.mxu0 %v6051
        %8329 = vmatprep.subr.bf16.mxu0 %v6058
        %8330 = vmatpush1.bf16.msra.mxu0 %v6057
        %8331 = vmatprep.subr.bf16.mxu0 %v6064
        %8332 = vmatpush1.bf16.msra.mxu0 %v6063
        %8333 = vmatprep.subr.bf16.mxu0 %v6070
        %8334 = vmatpush1.bf16.msra.mxu0 %v6069
        %8335 = vmatprep.subr.bf16.mxu0 %v6076
        %8336 = vmatpush1.bf16.msra.mxu0 %v6075
        %8337 = vmatprep.subr.bf16.mxu0 %v6082
        %8338 = vmatpush1.bf16.msra.mxu0 %v6081
        %8339 = vmatprep.subr.bf16.mxu0 %v6088
        %8340 = vmatpush1.bf16.msra.mxu0 %v6087
        %8341 = vmatprep.subr.bf16.mxu0 %v6094
        %8342 = vmatpush1.bf16.msra.mxu0 %v6093
        %8343 = vmatprep.subr.bf16.mxu0 %v6100
        %8344 = vmatpush1.bf16.msra.mxu0 %v6099
        %8345 = vmatprep.subr.bf16.mxu0 %v6106
        %8346 = vmatpush1.bf16.msra.mxu0 %v6105
        %8347 = vmatprep.subr.bf16.mxu0 %v6112
        %8348 = vmatpush1.bf16.msra.mxu0 %v6111
        %8349 = vmatprep.subr.bf16.mxu0 %v6118
        %8350 = vmatpush1.bf16.msra.mxu0 %v6117
        %8351 = vmatprep.subr.bf16.mxu0 %v6124
        %8352 = vmatpush1.bf16.msra.mxu0 %v6123
        %8353 = vmatprep.mubr.bf16.mxu0 %v1588
        %8354 = vmatmul.mubr.bf16.gmra.mrb[0].mxu0 %v1587
        %v8355 = vpop.f32.mrb[0].mxu0
        %v8356 = vadd.f32 %v8313, %v8355
        %v8357 = vpop.f32.mrb[0].mxu0
        %v8358 = vadd.f32 %v8315, %v8357
        %v8359 = vpop.f32.mrb[0].mxu0
        %v8360 = vadd.f32 %v8317, %v8359
        %v8361 = vpop.f32.mrb[0].mxu0
        %v8362 = vadd.f32 %v8319, %v8361
        %8363 = vdwg.mxu0
        %8364 = vmatprep.subr.bf16.mxu0 %v6130
        %8365 = vmatpush1.bf16.msra.mxu0 %v6129
        %8366 = vmatprep.subr.bf16.mxu0 %v6136
        %8367 = vmatpush1.bf16.msra.mxu0 %v6135
        %8368 = vmatprep.subr.bf16.mxu0 %v6142
        %8369 = vmatpush1.bf16.msra.mxu0 %v6141
        %8370 = vmatprep.subr.bf16.mxu0 %v6148
        %8371 = vmatpush1.bf16.msra.mxu0 %v6147
        %8372 = vmatprep.subr.bf16.mxu0 %v6154
        %8373 = vmatpush1.bf16.msra.mxu0 %v6153
        %8374 = vmatprep.subr.bf16.mxu0 %v6160
        %8375 = vmatpush1.bf16.msra.mxu0 %v6159
        %8376 = vmatprep.subr.bf16.mxu0 %v6166
        %8377 = vmatpush1.bf16.msra.mxu0 %v6165
        %8378 = vmatprep.subr.bf16.mxu0 %v6172
        %8379 = vmatpush1.bf16.msra.mxu0 %v6171
        %8380 = vmatprep.subr.bf16.mxu0 %v6178
        %8381 = vmatpush1.bf16.msra.mxu0 %v6177
        %8382 = vmatprep.subr.bf16.mxu0 %v6184
        %8383 = vmatpush1.bf16.msra.mxu0 %v6183
        %8384 = vmatprep.subr.bf16.mxu0 %v6190
        %8385 = vmatpush1.bf16.msra.mxu0 %v6189
        %8386 = vmatprep.subr.bf16.mxu0 %v6196
        %8387 = vmatpush1.bf16.msra.mxu0 %v6195
        %8388 = vmatprep.subr.bf16.mxu0 %v6202
        %8389 = vmatpush1.bf16.msra.mxu0 %v6201
        %8390 = vmatprep.subr.bf16.mxu0 %v6208
        %8391 = vmatpush1.bf16.msra.mxu0 %v6207
        %8392 = vmatprep.subr.bf16.mxu0 %v6214
        %8393 = vmatpush1.bf16.msra.mxu0 %v6213
        %8394 = vmatprep.subr.bf16.mxu0 %v6220
        %8395 = vmatpush1.bf16.msra.mxu0 %v6219
        %8396 = vmatprep.mubr.bf16.mxu0 %v1590
        %8397 = vmatmul.mubr.bf16.gmra.mrb[0].mxu0 %v1589
        %v8398 = vpop.f32.mrb[0].mxu0
        %v8399 = vadd.f32 %v8356, %v8398
        %v8400 = vpop.f32.mrb[0].mxu0
        %v8401 = vadd.f32 %v8358, %v8400
        %v8402 = vpop.f32.mrb[0].mxu0
        %v8403 = vadd.f32 %v8360, %v8402
        %v8404 = vpop.f32.mrb[0].mxu0
        %v8405 = vadd.f32 %v8362, %v8404
        %8406 = vdwg.mxu0
        %8407 = vmatprep.subr.bf16.mxu0 %v5076
        %8408 = vmatpush1.bf16.msra.mxu0 %v5075
        %8409 = vmatprep.subr.bf16.mxu0 %v5082
        %8410 = vmatpush1.bf16.msra.mxu0 %v5081
        %8411 = vmatprep.subr.bf16.mxu0 %v5088
        %8412 = vmatpush1.bf16.msra.mxu0 %v5087
        %8413 = vmatprep.subr.bf16.mxu0 %v5094
        %8414 = vmatpush1.bf16.msra.mxu0 %v5093
        %8415 = vmatprep.subr.bf16.mxu0 %v5100
        %8416 = vmatpush1.bf16.msra.mxu0 %v5099
        %8417 = vmatprep.subr.bf16.mxu0 %v5106
        %8418 = vmatpush1.bf16.msra.mxu0 %v5105
        %8419 = vmatprep.subr.bf16.mxu0 %v5112
        %8420 = vmatpush1.bf16.msra.mxu0 %v5111
        %8421 = vmatprep.subr.bf16.mxu0 %v5118
        %8422 = vmatpush1.bf16.msra.mxu0 %v5117
        %8423 = vmatprep.subr.bf16.mxu0 %v5124
        %8424 = vmatpush1.bf16.msra.mxu0 %v5123
        %8425 = vmatprep.subr.bf16.mxu0 %v5130
        %8426 = vmatpush1.bf16.msra.mxu0 %v5129
        %8427 = vmatprep.subr.bf16.mxu0 %v5136
        %8428 = vmatpush1.bf16.msra.mxu0 %v5135
        %8429 = vmatprep.subr.bf16.mxu0 %v5142
        %8430 = vmatpush1.bf16.msra.mxu0 %v5141
        %8431 = vmatprep.subr.bf16.mxu0 %v5148
        %8432 = vmatpush1.bf16.msra.mxu0 %v5147
        %8433 = vmatprep.subr.bf16.mxu0 %v5154
        %8434 = vmatpush1.bf16.msra.mxu0 %v5153
        %8435 = vmatprep.subr.bf16.mxu0 %v5160
        %8436 = vmatpush1.bf16.msra.mxu0 %v5159
        %8437 = vmatprep.subr.bf16.mxu0 %v5166
        %8438 = vmatpush1.bf16.msra.mxu0 %v5165
        %8439 = vmatprep.mubr.bf16.mxu0 %v1568
        %8440 = vmatmul.mubr.bf16.gmra.mrb[0].mxu0 %v1567
        %v8441 = vpop.f32.mrb[0].mxu0
        %v8442 = vadd.f32 %v1484, %v8441
        %v8443 = vpop.f32.mrb[0].mxu0
        %v8444 = vadd.f32 %v1488, %v8443
        %v8445 = vpop.f32.mrb[0].mxu0
        %v8446 = vadd.f32 %v1484, %v8445
        %v8447 = vpop.f32.mrb[0].mxu0
        %v8448 = vadd.f32 %v1488, %v8447
        %8449 = vdwg.mxu0
        %8450 = vmatprep.subr.bf16.mxu0 %v5172
        %8451 = vmatpush1.bf16.msra.mxu0 %v5171
        %8452 = vmatprep.subr.bf16.mxu0 %v5178
        %8453 = vmatpush1.bf16.msra.mxu0 %v5177
        %8454 = vmatprep.subr.bf16.mxu0 %v5184
        %8455 = vmatpush1.bf16.msra.mxu0 %v5183
        %8456 = vmatprep.subr.bf16.mxu0 %v5190
        %8457 = vmatpush1.bf16.msra.mxu0 %v5189
        %8458 = vmatprep.subr.bf16.mxu0 %v5196
        %8459 = vmatpush1.bf16.msra.mxu0 %v5195
        %8460 = vmatprep.subr.bf16.mxu0 %v5202
        %8461 = vmatpush1.bf16.msra.mxu0 %v5201
        %8462 = vmatprep.subr.bf16.mxu0 %v5208
        %8463 = vmatpush1.bf16.msra.mxu0 %v5207
        %8464 = vmatprep.subr.bf16.mxu0 %v5214
        %8465 = vmatpush1.bf16.msra.mxu0 %v5213
        %8466 = vmatprep.subr.bf16.mxu0 %v5220
        %8467 = vmatpush1.bf16.msra.mxu0 %v5219
        %8468 = vmatprep.subr.bf16.mxu0 %v5226
        %8469 = vmatpush1.bf16.msra.mxu0 %v5225
        %8470 = vmatprep.subr.bf16.mxu0 %v5232
        %8471 = vmatpush1.bf16.msra.mxu0 %v5231
        %8472 = vmatprep.subr.bf16.mxu0 %v5238
        %8473 = vmatpush1.bf16.msra.mxu0 %v5237
        %8474 = vmatprep.subr.bf16.mxu0 %v5244
        %8475 = vmatpush1.bf16.msra.mxu0 %v5243
        %8476 = vmatprep.subr.bf16.mxu0 %v5250
        %8477 = vmatpush1.bf16.msra.mxu0 %v5249
        %8478 = vmatprep.subr.bf16.mxu0 %v5256
        %8479 = vmatpush1.bf16.msra.mxu0 %v5255
        %8480 = vmatprep.subr.bf16.mxu0 %v5262
        %8481 = vmatpush1.bf16.msra.mxu0 %v5261
        %8482 = vmatprep.mubr.bf16.mxu0 %v1570
        %8483 = vmatmul.mubr.bf16.gmra.mrb[0].mxu0 %v1569
        %v8484 = vpop.f32.mrb[0].mxu0
        %v8485 = vadd.f32 %v8442, %v8484
        %v8486 = vpop.f32.mrb[0].mxu0
        %v8487 = vadd.f32 %v8444, %v8486
        %v8488 = vpop.f32.mrb[0].mxu0
        %v8489 = vadd.f32 %v8446, %v8488
        %v8490 = vpop.f32.mrb[0].mxu0
        %v8491 = vadd.f32 %v8448, %v8490
        %8492 = vdwg.mxu0
        %8493 = vmatprep.subr.bf16.mxu0 %v5268
        %8494 = vmatpush1.bf16.msra.mxu0 %v5267
        %8495 = vmatprep.subr.bf16.mxu0 %v5274
        %8496 = vmatpush1.bf16.msra.mxu0 %v5273
        %8497 = vmatprep.subr.bf16.mxu0 %v5280
        %8498 = vmatpush1.bf16.msra.mxu0 %v5279
        %8499 = vmatprep.subr.bf16.mxu0 %v5286
        %8500 = vmatpush1.bf16.msra.mxu0 %v5285
        %8501 = vmatprep.subr.bf16.mxu0 %v5292
        %8502 = vmatpush1.bf16.msra.mxu0 %v5291
        %8503 = vmatprep.subr.bf16.mxu0 %v5298
        %8504 = vmatpush1.bf16.msra.mxu0 %v5297
        %8505 = vmatprep.subr.bf16.mxu0 %v5304
        %8506 = vmatpush1.bf16.msra.mxu0 %v5303
        %8507 = vmatprep.subr.bf16.mxu0 %v5310
        %8508 = vmatpush1.bf16.msra.mxu0 %v5309
        %8509 = vmatprep.subr.bf16.mxu0 %v5316
        %8510 = vmatpush1.bf16.msra.mxu0 %v5315
        %8511 = vmatprep.subr.bf16.mxu0 %v5322
        %8512 = vmatpush1.bf16.msra.mxu0 %v5321
        %8513 = vmatprep.subr.bf16.mxu0 %v5328
        %8514 = vmatpush1.bf16.msra.mxu0 %v5327
        %8515 = vmatprep.subr.bf16.mxu0 %v5334
        %8516 = vmatpush1.bf16.msra.mxu0 %v5333
        %8517 = vmatprep.subr.bf16.mxu0 %v5340
        %8518 = vmatpush1.bf16.msra.mxu0 %v5339
        %8519 = vmatprep.subr.bf16.mxu0 %v5346
        %8520 = vmatpush1.bf16.msra.mxu0 %v5345
        %8521 = vmatprep.subr.bf16.mxu0 %v5352
        %8522 = vmatpush1.bf16.msra.mxu0 %v5351
        %8523 = vmatprep.subr.bf16.mxu0 %v5358
        %8524 = vmatpush1.bf16.msra.mxu0 %v5357
        %8525 = vmatprep.mubr.bf16.mxu0 %v1572
        %8526 = vmatmul.mubr.bf16.gmra.mrb[0].mxu0 %v1571
        %v8527 = vpop.f32.mrb[0].mxu0
        %v8528 = vadd.f32 %v8485, %v8527
        %v8529 = vpop.f32.mrb[0].mxu0
        %v8530 = vadd.f32 %v8487, %v8529
        %v8531 = vpop.f32.mrb[0].mxu0
        %v8532 = vadd.f32 %v8489, %v8531
        %v8533 = vpop.f32.mrb[0].mxu0
        %v8534 = vadd.f32 %v8491, %v8533
        %8535 = vdwg.mxu0
        %8536 = vmatprep.subr.bf16.mxu0 %v5364
        %8537 = vmatpush1.bf16.msra.mxu0 %v5363
        %8538 = vmatprep.subr.bf16.mxu0 %v5370
        %8539 = vmatpush1.bf16.msra.mxu0 %v5369
        %8540 = vmatprep.subr.bf16.mxu0 %v5376
        %8541 = vmatpush1.bf16.msra.mxu0 %v5375
        %8542 = vmatprep.subr.bf16.mxu0 %v5382
        %8543 = vmatpush1.bf16.msra.mxu0 %v5381
        %8544 = vmatprep.subr.bf16.mxu0 %v5388
        %8545 = vmatpush1.bf16.msra.mxu0 %v5387
        %8546 = vmatprep.subr.bf16.mxu0 %v5394
        %8547 = vmatpush1.bf16.msra.mxu0 %v5393
        %8548 = vmatprep.subr.bf16.mxu0 %v5400
        %8549 = vmatpush1.bf16.msra.mxu0 %v5399
        %8550 = vmatprep.subr.bf16.mxu0 %v5406
        %8551 = vmatpush1.bf16.msra.mxu0 %v5405
        %8552 = vmatprep.subr.bf16.mxu0 %v5412
        %8553 = vmatpush1.bf16.msra.mxu0 %v5411
        %8554 = vmatprep.subr.bf16.mxu0 %v5418
        %8555 = vmatpush1.bf16.msra.mxu0 %v5417
        %8556 = vmatprep.subr.bf16.mxu0 %v5424
        %8557 = vmatpush1.bf16.msra.mxu0 %v5423
        %8558 = vmatprep.subr.bf16.mxu0 %v5430
        %8559 = vmatpush1.bf16.msra.mxu0 %v5429
        %8560 = vmatprep.subr.bf16.mxu0 %v5436
        %8561 = vmatpush1.bf16.msra.mxu0 %v5435
        %8562 = vmatprep.subr.bf16.mxu0 %v5442
        %8563 = vmatpush1.bf16.msra.mxu0 %v5441
        %8564 = vmatprep.subr.bf16.mxu0 %v5448
        %8565 = vmatpush1.bf16.msra.mxu0 %v5447
        %8566 = vmatprep.subr.bf16.mxu0 %v5454
        %8567 = vmatpush1.bf16.msra.mxu0 %v5453
        %8568 = vmatprep.mubr.bf16.mxu0 %v1574
        %8569 = vmatmul.mubr.bf16.gmra.mrb[0].mxu0 %v1573
        %v8570 = vpop.f32.mrb[0].mxu0
        %v8571 = vadd.f32 %v8528, %v8570
        %v8572 = vpop.f32.mrb[0].mxu0
        %v8573 = vadd.f32 %v8530, %v8572
        %v8574 = vpop.f32.mrb[0].mxu0
        %v8575 = vadd.f32 %v8532, %v8574
        %v8576 = vpop.f32.mrb[0].mxu0
        %v8577 = vadd.f32 %v8534, %v8576
        %8578 = vdwg.mxu0
        %8579 = vmatprep.subr.bf16.mxu0 %v5460
        %8580 = vmatpush1.bf16.msra.mxu0 %v5459
        %8581 = vmatprep.subr.bf16.mxu0 %v5466
        %8582 = vmatpush1.bf16.msra.mxu0 %v5465
        %8583 = vmatprep.subr.bf16.mxu0 %v5472
        %8584 = vmatpush1.bf16.msra.mxu0 %v5471
        %8585 = vmatprep.subr.bf16.mxu0 %v5478
        %8586 = vmatpush1.bf16.msra.mxu0 %v5477
        %8587 = vmatprep.subr.bf16.mxu0 %v5484
        %8588 = vmatpush1.bf16.msra.mxu0 %v5483
        %8589 = vmatprep.subr.bf16.mxu0 %v5490
        %8590 = vmatpush1.bf16.msra.mxu0 %v5489
        %8591 = vmatprep.subr.bf16.mxu0 %v5496
        %8592 = vmatpush1.bf16.msra.mxu0 %v5495
        %8593 = vmatprep.subr.bf16.mxu0 %v5502
        %8594 = vmatpush1.bf16.msra.mxu0 %v5501
        %8595 = vmatprep.subr.bf16.mxu0 %v5508
        %8596 = vmatpush1.bf16.msra.mxu0 %v5507
        %8597 = vmatprep.subr.bf16.mxu0 %v5514
        %8598 = vmatpush1.bf16.msra.mxu0 %v5513
        %8599 = vmatprep.subr.bf16.mxu0 %v5520
        %8600 = vmatpush1.bf16.msra.mxu0 %v5519
        %8601 = vmatprep.subr.bf16.mxu0 %v5526
        %8602 = vmatpush1.bf16.msra.mxu0 %v5525
        %8603 = vmatprep.subr.bf16.mxu0 %v5532
        %8604 = vmatpush1.bf16.msra.mxu0 %v5531
        %8605 = vmatprep.subr.bf16.mxu0 %v5538
        %8606 = vmatpush1.bf16.msra.mxu0 %v5537
        %8607 = vmatprep.subr.bf16.mxu0 %v5544
        %8608 = vmatpush1.bf16.msra.mxu0 %v5543
        %8609 = vmatprep.subr.bf16.mxu0 %v5550
        %8610 = vmatpush1.bf16.msra.mxu0 %v5549
        %8611 = vmatprep.mubr.bf16.mxu0 %v1576
        %8612 = vmatmul.mubr.bf16.gmra.mrb[0].mxu0 %v1575
        %v8613 = vpop.f32.mrb[0].mxu0
        %v8614 = vadd.f32 %v8571, %v8613
        %v8615 = vpop.f32.mrb[0].mxu0
        %v8616 = vadd.f32 %v8573, %v8615
        %v8617 = vpop.f32.mrb[0].mxu0
        %v8618 = vadd.f32 %v8575, %v8617
        %v8619 = vpop.f32.mrb[0].mxu0
        %v8620 = vadd.f32 %v8577, %v8619
        %8621 = vdwg.mxu0
        %8622 = vmatprep.subr.bf16.mxu0 %v5556
        %8623 = vmatpush1.bf16.msra.mxu0 %v5555
        %8624 = vmatprep.subr.bf16.mxu0 %v5562
        %8625 = vmatpush1.bf16.msra.mxu0 %v5561
        %8626 = vmatprep.subr.bf16.mxu0 %v5568
        %8627 = vmatpush1.bf16.msra.mxu0 %v5567
        %8628 = vmatprep.subr.bf16.mxu0 %v5574
        %8629 = vmatpush1.bf16.msra.mxu0 %v5573
        %8630 = vmatprep.subr.bf16.mxu0 %v5580
        %8631 = vmatpush1.bf16.msra.mxu0 %v5579
        %8632 = vmatprep.subr.bf16.mxu0 %v5586
        %8633 = vmatpush1.bf16.msra.mxu0 %v5585
        %8634 = vmatprep.subr.bf16.mxu0 %v5592
        %8635 = vmatpush1.bf16.msra.mxu0 %v5591
        %8636 = vmatprep.subr.bf16.mxu0 %v5598
        %8637 = vmatpush1.bf16.msra.mxu0 %v5597
        %8638 = vmatprep.subr.bf16.mxu0 %v5604
        %8639 = vmatpush1.bf16.msra.mxu0 %v5603
        %8640 = vmatprep.subr.bf16.mxu0 %v5610
        %8641 = vmatpush1.bf16.msra.mxu0 %v5609
        %8642 = vmatprep.subr.bf16.mxu0 %v5616
        %8643 = vmatpush1.bf16.msra.mxu0 %v5615
        %8644 = vmatprep.subr.bf16.mxu0 %v5622
        %8645 = vmatpush1.bf16.msra.mxu0 %v5621
        %8646 = vmatprep.subr.bf16.mxu0 %v5628
        %8647 = vmatpush1.bf16.msra.mxu0 %v5627
        %8648 = vmatprep.subr.bf16.mxu0 %v5634
        %8649 = vmatpush1.bf16.msra.mxu0 %v5633
        %8650 = vmatprep.subr.bf16.mxu0 %v5640
        %8651 = vmatpush1.bf16.msra.mxu0 %v5639
        %8652 = vmatprep.subr.bf16.mxu0 %v5646
        %8653 = vmatpush1.bf16.msra.mxu0 %v5645
        %8654 = vmatprep.mubr.bf16.mxu0 %v1578
        %8655 = vmatmul.mubr.bf16.gmra.mrb[0].mxu0 %v1577
        %v8656 = vpop.f32.mrb[0].mxu0
        %v8657 = vadd.f32 %v8614, %v8656
        %v8658 = vpop.f32.mrb[0].mxu0
        %v8659 = vadd.f32 %v8616, %v8658
        %v8660 = vpop.f32.mrb[0].mxu0
        %v8661 = vadd.f32 %v8618, %v8660
        %v8662 = vpop.f32.mrb[0].mxu0
        %v8663 = vadd.f32 %v8620, %v8662
        %8664 = vdwg.mxu0
        %8665 = vmatprep.subr.bf16.mxu0 %v5652
        %8666 = vmatpush1.bf16.msra.mxu0 %v5651
        %8667 = vmatprep.subr.bf16.mxu0 %v5658
        %8668 = vmatpush1.bf16.msra.mxu0 %v5657
        %8669 = vmatprep.subr.bf16.mxu0 %v5664
        %8670 = vmatpush1.bf16.msra.mxu0 %v5663
        %8671 = vmatprep.subr.bf16.mxu0 %v5670
        %8672 = vmatpush1.bf16.msra.mxu0 %v5669
        %8673 = vmatprep.subr.bf16.mxu0 %v5676
        %8674 = vmatpush1.bf16.msra.mxu0 %v5675
        %8675 = vmatprep.subr.bf16.mxu0 %v5682
        %8676 = vmatpush1.bf16.msra.mxu0 %v5681
        %8677 = vmatprep.subr.bf16.mxu0 %v5688
        %8678 = vmatpush1.bf16.msra.mxu0 %v5687
        %8679 = vmatprep.subr.bf16.mxu0 %v5694
        %8680 = vmatpush1.bf16.msra.mxu0 %v5693
        %8681 = vmatprep.subr.bf16.mxu0 %v5700
        %8682 = vmatpush1.bf16.msra.mxu0 %v5699
        %8683 = vmatprep.subr.bf16.mxu0 %v5706
        %8684 = vmatpush1.bf16.msra.mxu0 %v5705
        %8685 = vmatprep.subr.bf16.mxu0 %v5712
        %8686 = vmatpush1.bf16.msra.mxu0 %v5711
        %8687 = vmatprep.subr.bf16.mxu0 %v5718
        %8688 = vmatpush1.bf16.msra.mxu0 %v5717
        %8689 = vmatprep.subr.bf16.mxu0 %v5724
        %8690 = vmatpush1.bf16.msra.mxu0 %v5723
        %8691 = vmatprep.subr.bf16.mxu0 %v5730
        %8692 = vmatpush1.bf16.msra.mxu0 %v5729
        %8693 = vmatprep.subr.bf16.mxu0 %v5736
        %8694 = vmatpush1.bf16.msra.mxu0 %v5735
        %8695 = vmatprep.subr.bf16.mxu0 %v5742
        %8696 = vmatpush1.bf16.msra.mxu0 %v5741
        %8697 = vmatprep.mubr.bf16.mxu0 %v1580
        %8698 = vmatmul.mubr.bf16.gmra.mrb[0].mxu0 %v1579
        %v8699 = vpop.f32.mrb[0].mxu0
        %v8700 = vadd.f32 %v8657, %v8699
        %v8701 = vpop.f32.mrb[0].mxu0
        %v8702 = vadd.f32 %v8659, %v8701
        %v8703 = vpop.f32.mrb[0].mxu0
        %v8704 = vadd.f32 %v8661, %v8703
        %v8705 = vpop.f32.mrb[0].mxu0
        %v8706 = vadd.f32 %v8663, %v8705
        %8707 = vdwg.mxu0
        %8708 = vmatprep.subr.bf16.mxu0 %v5748
        %8709 = vmatpush1.bf16.msra.mxu0 %v5747
        %8710 = vmatprep.subr.bf16.mxu0 %v5754
        %8711 = vmatpush1.bf16.msra.mxu0 %v5753
        %8712 = vmatprep.subr.bf16.mxu0 %v5760
        %8713 = vmatpush1.bf16.msra.mxu0 %v5759
        %8714 = vmatprep.subr.bf16.mxu0 %v5766
        %8715 = vmatpush1.bf16.msra.mxu0 %v5765
        %8716 = vmatprep.subr.bf16.mxu0 %v5772
        %8717 = vmatpush1.bf16.msra.mxu0 %v5771
        %8718 = vmatprep.subr.bf16.mxu0 %v5778
        %8719 = vmatpush1.bf16.msra.mxu0 %v5777
        %8720 = vmatprep.subr.bf16.mxu0 %v5784
        %8721 = vmatpush1.bf16.msra.mxu0 %v5783
        %8722 = vmatprep.subr.bf16.mxu0 %v5790
        %8723 = vmatpush1.bf16.msra.mxu0 %v5789
        %8724 = vmatprep.subr.bf16.mxu0 %v5796
        %8725 = vmatpush1.bf16.msra.mxu0 %v5795
        %8726 = vmatprep.subr.bf16.mxu0 %v5802
        %8727 = vmatpush1.bf16.msra.mxu0 %v5801
        %8728 = vmatprep.subr.bf16.mxu0 %v5808
        %8729 = vmatpush1.bf16.msra.mxu0 %v5807
        %8730 = vmatprep.subr.bf16.mxu0 %v5814
        %8731 = vmatpush1.bf16.msra.mxu0 %v5813
        %8732 = vmatprep.subr.bf16.mxu0 %v5820
        %8733 = vmatpush1.bf16.msra.mxu0 %v5819
        %8734 = vmatprep.subr.bf16.mxu0 %v5826
        %8735 = vmatpush1.bf16.msra.mxu0 %v5825
        %8736 = vmatprep.subr.bf16.mxu0 %v5832
        %8737 = vmatpush1.bf16.msra.mxu0 %v5831
        %8738 = vmatprep.subr.bf16.mxu0 %v5838
        %8739 = vmatpush1.bf16.msra.mxu0 %v5837
        %8740 = vmatprep.mubr.bf16.mxu0 %v1582
        %8741 = vmatmul.mubr.bf16.gmra.mrb[0].mxu0 %v1581
        %v8742 = vpop.f32.mrb[0].mxu0
        %v8743 = vadd.f32 %v8700, %v8742
        %v8744 = vpop.f32.mrb[0].mxu0
        %v8745 = vadd.f32 %v8702, %v8744
        %v8746 = vpop.f32.mrb[0].mxu0
        %v8747 = vadd.f32 %v8704, %v8746
        %v8748 = vpop.f32.mrb[0].mxu0
        %v8749 = vadd.f32 %v8706, %v8748
        %8750 = vdwg.mxu0
        %8751 = vmatprep.subr.bf16.mxu0 %v5844
        %8752 = vmatpush1.bf16.msra.mxu0 %v5843
        %8753 = vmatprep.subr.bf16.mxu0 %v5850
        %8754 = vmatpush1.bf16.msra.mxu0 %v5849
        %8755 = vmatprep.subr.bf16.mxu0 %v5856
        %8756 = vmatpush1.bf16.msra.mxu0 %v5855
        %8757 = vmatprep.subr.bf16.mxu0 %v5862
        %8758 = vmatpush1.bf16.msra.mxu0 %v5861
        %8759 = vmatprep.subr.bf16.mxu0 %v5868
        %8760 = vmatpush1.bf16.msra.mxu0 %v5867
        %8761 = vmatprep.subr.bf16.mxu0 %v5874
        %8762 = vmatpush1.bf16.msra.mxu0 %v5873
        %8763 = vmatprep.subr.bf16.mxu0 %v5880
        %8764 = vmatpush1.bf16.msra.mxu0 %v5879
        %8765 = vmatprep.subr.bf16.mxu0 %v5886
        %8766 = vmatpush1.bf16.msra.mxu0 %v5885
        %8767 = vmatprep.subr.bf16.mxu0 %v5892
        %8768 = vmatpush1.bf16.msra.mxu0 %v5891
        %8769 = vmatprep.subr.bf16.mxu0 %v5898
        %8770 = vmatpush1.bf16.msra.mxu0 %v5897
        %8771 = vmatprep.subr.bf16.mxu0 %v5904
        %8772 = vmatpush1.bf16.msra.mxu0 %v5903
        %8773 = vmatprep.subr.bf16.mxu0 %v5910
        %8774 = vmatpush1.bf16.msra.mxu0 %v5909
        %8775 = vmatprep.subr.bf16.mxu0 %v5916
        %8776 = vmatpush1.bf16.msra.mxu0 %v5915
        %8777 = vmatprep.subr.bf16.mxu0 %v5922
        %8778 = vmatpush1.bf16.msra.mxu0 %v5921
        %8779 = vmatprep.subr.bf16.mxu0 %v5928
        %8780 = vmatpush1.bf16.msra.mxu0 %v5927
        %8781 = vmatprep.subr.bf16.mxu0 %v5934
        %8782 = vmatpush1.bf16.msra.mxu0 %v5933
        %8783 = vmatprep.mubr.bf16.mxu0 %v1584
        %8784 = vmatmul.mubr.bf16.gmra.mrb[0].mxu0 %v1583
        %v8785 = vpop.f32.mrb[0].mxu0
        %v8786 = vadd.f32 %v8743, %v8785
        %v8787 = vpop.f32.mrb[0].mxu0
        %v8788 = vadd.f32 %v8745, %v8787
        %v8789 = vpop.f32.mrb[0].mxu0
        %v8790 = vadd.f32 %v8747, %v8789
        %v8791 = vpop.f32.mrb[0].mxu0
        %v8792 = vadd.f32 %v8749, %v8791
        %8793 = vdwg.mxu0
        %8794 = vmatprep.subr.bf16.mxu0 %v5940
        %8795 = vmatpush1.bf16.msra.mxu0 %v5939
        %8796 = vmatprep.subr.bf16.mxu0 %v5946
        %8797 = vmatpush1.bf16.msra.mxu0 %v5945
        %8798 = vmatprep.subr.bf16.mxu0 %v5952
        %8799 = vmatpush1.bf16.msra.mxu0 %v5951
        %8800 = vmatprep.subr.bf16.mxu0 %v5958
        %8801 = vmatpush1.bf16.msra.mxu0 %v5957
        %8802 = vmatprep.subr.bf16.mxu0 %v5964
        %8803 = vmatpush1.bf16.msra.mxu0 %v5963
        %8804 = vmatprep.subr.bf16.mxu0 %v5970
        %8805 = vmatpush1.bf16.msra.mxu0 %v5969
        %8806 = vmatprep.subr.bf16.mxu0 %v5976
        %8807 = vmatpush1.bf16.msra.mxu0 %v5975
        %8808 = vmatprep.subr.bf16.mxu0 %v5982
        %8809 = vmatpush1.bf16.msra.mxu0 %v5981
        %8810 = vmatprep.subr.bf16.mxu0 %v5988
        %8811 = vmatpush1.bf16.msra.mxu0 %v5987
        %8812 = vmatprep.subr.bf16.mxu0 %v5994
        %8813 = vmatpush1.bf16.msra.mxu0 %v5993
        %8814 = vmatprep.subr.bf16.mxu0 %v6000
        %8815 = vmatpush1.bf16.msra.mxu0 %v5999
        %8816 = vmatprep.subr.bf16.mxu0 %v6006
        %8817 = vmatpush1.bf16.msra.mxu0 %v6005
        %8818 = vmatprep.subr.bf16.mxu0 %v6012
        %8819 = vmatpush1.bf16.msra.mxu0 %v6011
        %8820 = vmatprep.subr.bf16.mxu0 %v6018
        %8821 = vmatpush1.bf16.msra.mxu0 %v6017
        %8822 = vmatprep.subr.bf16.mxu0 %v6024
        %8823 = vmatpush1.bf16.msra.mxu0 %v6023
        %8824 = vmatprep.subr.bf16.mxu0 %v6030
        %8825 = vmatpush1.bf16.msra.mxu0 %v6029
        %8826 = vmatprep.mubr.bf16.mxu0 %v1586
        %8827 = vmatmul.mubr.bf16.gmra.mrb[0].mxu0 %v1585
        %v8828 = vpop.f32.mrb[0].mxu0
        %v8829 = vadd.f32 %v8786, %v8828
        %v8830 = vpop.f32.mrb[0].mxu0
        %v8831 = vadd.f32 %v8788, %v8830
        %v8832 = vpop.f32.mrb[0].mxu0
        %v8833 = vadd.f32 %v8790, %v8832
        %v8834 = vpop.f32.mrb[0].mxu0
        %v8835 = vadd.f32 %v8792, %v8834
        %8836 = vdwg.mxu0
        %8837 = vmatprep.subr.bf16.mxu0 %v6036
        %8838 = vmatpush1.bf16.msra.mxu0 %v6035
        %8839 = vmatprep.subr.bf16.mxu0 %v6042
        %8840 = vmatpush1.bf16.msra.mxu0 %v6041
        %8841 = vmatprep.subr.bf16.mxu0 %v6048
        %8842 = vmatpush1.bf16.msra.mxu0 %v6047
        %8843 = vmatprep.subr.bf16.mxu0 %v6054
        %8844 = vmatpush1.bf16.msra.mxu0 %v6053
        %8845 = vmatprep.subr.bf16.mxu0 %v6060
        %8846 = vmatpush1.bf16.msra.mxu0 %v6059
        %8847 = vmatprep.subr.bf16.mxu0 %v6066
        %8848 = vmatpush1.bf16.msra.mxu0 %v6065
        %8849 = vmatprep.subr.bf16.mxu0 %v6072
        %8850 = vmatpush1.bf16.msra.mxu0 %v6071
        %8851 = vmatprep.subr.bf16.mxu0 %v6078
        %8852 = vmatpush1.bf16.msra.mxu0 %v6077
        %8853 = vmatprep.subr.bf16.mxu0 %v6084
        %8854 = vmatpush1.bf16.msra.mxu0 %v6083
        %8855 = vmatprep.subr.bf16.mxu0 %v6090
        %8856 = vmatpush1.bf16.msra.mxu0 %v6089
        %8857 = vmatprep.subr.bf16.mxu0 %v6096
        %8858 = vmatpush1.bf16.msra.mxu0 %v6095
        %8859 = vmatprep.subr.bf16.mxu0 %v6102
        %8860 = vmatpush1.bf16.msra.mxu0 %v6101
        %8861 = vmatprep.subr.bf16.mxu0 %v6108
        %8862 = vmatpush1.bf16.msra.mxu0 %v6107
        %8863 = vmatprep.subr.bf16.mxu0 %v6114
        %8864 = vmatpush1.bf16.msra.mxu0 %v6113
        %8865 = vmatprep.subr.bf16.mxu0 %v6120
        %8866 = vmatpush1.bf16.msra.mxu0 %v6119
        %8867 = vmatprep.subr.bf16.mxu0 %v6126
        %8868 = vmatpush1.bf16.msra.mxu0 %v6125
        %8869 = vmatprep.mubr.bf16.mxu0 %v1588
        %8870 = vmatmul.mubr.bf16.gmra.mrb[0].mxu0 %v1587
        %v8871 = vpop.f32.mrb[0].mxu0
        %v8872 = vadd.f32 %v8829, %v8871
        %v8873 = vpop.f32.mrb[0].mxu0
        %v8874 = vadd.f32 %v8831, %v8873
        %v8875 = vpop.f32.mrb[0].mxu0
        %v8876 = vadd.f32 %v8833, %v8875
        %v8877 = vpop.f32.mrb[0].mxu0
        %v8878 = vadd.f32 %v8835, %v8877
        %8879 = vdwg.mxu0
        %8880 = vmatprep.subr.bf16.mxu0 %v6132
        %8881 = vmatpush1.bf16.msra.mxu0 %v6131
        %8882 = vmatprep.subr.bf16.mxu0 %v6138
        %8883 = vmatpush1.bf16.msra.mxu0 %v6137
        %8884 = vmatprep.subr.bf16.mxu0 %v6144
        %8885 = vmatpush1.bf16.msra.mxu0 %v6143
        %8886 = vmatprep.subr.bf16.mxu0 %v6150
        %8887 = vmatpush1.bf16.msra.mxu0 %v6149
        %8888 = vmatprep.subr.bf16.mxu0 %v6156
        %8889 = vmatpush1.bf16.msra.mxu0 %v6155
        %8890 = vmatprep.subr.bf16.mxu0 %v6162
        %8891 = vmatpush1.bf16.msra.mxu0 %v6161
        %8892 = vmatprep.subr.bf16.mxu0 %v6168
        %8893 = vmatpush1.bf16.msra.mxu0 %v6167
        %8894 = vmatprep.subr.bf16.mxu0 %v6174
        %8895 = vmatpush1.bf16.msra.mxu0 %v6173
        %8896 = vmatprep.subr.bf16.mxu0 %v6180
        %8897 = vmatpush1.bf16.msra.mxu0 %v6179
        %8898 = vmatprep.subr.bf16.mxu0 %v6186
        %8899 = vmatpush1.bf16.msra.mxu0 %v6185
        %8900 = vmatprep.subr.bf16.mxu0 %v6192
        %8901 = vmatpush1.bf16.msra.mxu0 %v6191
        %8902 = vmatprep.subr.bf16.mxu0 %v6198
        %8903 = vmatpush1.bf16.msra.mxu0 %v6197
        %8904 = vmatprep.subr.bf16.mxu0 %v6204
        %8905 = vmatpush1.bf16.msra.mxu0 %v6203
        %8906 = vmatprep.subr.bf16.mxu0 %v6210
        %8907 = vmatpush1.bf16.msra.mxu0 %v6209
        %8908 = vmatprep.subr.bf16.mxu0 %v6216
        %8909 = vmatpush1.bf16.msra.mxu0 %v6215
        %8910 = vmatprep.subr.bf16.mxu0 %v6222
        %8911 = vmatpush1.bf16.msra.mxu0 %v6221
        %8912 = vmatprep.mubr.bf16.mxu0 %v1590
        %8913 = vmatmul.mubr.bf16.gmra.mrb[0].mxu0 %v1589
        %v8914 = vpop.f32.mrb[0].mxu0
        %v8915 = vadd.f32 %v8872, %v8914
        %v8916 = vpop.f32.mrb[0].mxu0
        %v8917 = vadd.f32 %v8874, %v8916
        %v8918 = vpop.f32.mrb[0].mxu0
        %v8919 = vadd.f32 %v8876, %v8918
        %v8920 = vpop.f32.mrb[0].mxu0
        %v8921 = vadd.f32 %v8878, %v8920
        %8922 = vdwg.mxu0
        %v8923 = vmax.f32 %v7883, 0.0
        %v8924 = vmax.f32 %v7885, 0.0
        %v8925 = vmax.f32 %v8399, 0.0
        %v8926 = vmax.f32 %v8401, 0.0
        %v8927 = vmax.f32 %v8915, 0.0
        %v8928 = vmax.f32 %v8917, 0.0
        %v8929 = vmax.f32 %v7887, 0.0
        %v8930 = vmax.f32 %v7889, 0.0
        %v8931 = vmax.f32 %v8403, 0.0
        %v8932 = vmax.f32 %v8405, 0.0
        %v8933 = vmax.f32 %v8919, 0.0
        %v8934 = vmax.f32 %v8921, 0.0
        %v8935 = vpack.c.bf16 %v8929, %v8923
        %v8936 = vpack.c.bf16 %v8930, %v8924
        %v8937 = vpack.c.bf16 %v8931, %v8925
        %v8938 = vpack.c.bf16 %v8932, %v8926
        %v8939 = vpack.c.bf16 %v8933, %v8927
        %v8940 = vpack.c.bf16 %v8934, %v8928
        %v8941 = vld [vmem:[#allocation6] sm:$0xf]
        %v8942 = vld [vmem:[#allocation6 + $0x4] sm:$0xf]
        %v8943 = vld [vmem:[#allocation6 + $0x8] sm:$0xf]
        %v8944 = vld [vmem:[#allocation6 + $0xc] sm:$0xf]
        %v8945 = vld [vmem:[#allocation6 + $0x10] sm:$0xf]
        %v8946 = vld [vmem:[#allocation6 + $0x14] sm:$0xf]
        %v8947 = vld [vmem:[#allocation6 + $0x18] sm:$0xf]
        %v8948 = vld [vmem:[#allocation6 + $0x1c] sm:$0xf]
        %v8949 = vld [vmem:[#allocation6 + $0x20] sm:$0xf]
        %v8950 = vld [vmem:[#allocation6 + $0x24] sm:$0xf]
        %v8951 = vld [vmem:[#allocation6 + $0x28] sm:$0xf]
        %v8952 = vld [vmem:[#allocation6 + $0x2c] sm:$0xf]
        %v8953 = vld [vmem:[#allocation6 + $0x30] sm:$0xf]
        %v8954 = vld [vmem:[#allocation6 + $0x34] sm:$0xf]
        %v8955 = vld [vmem:[#allocation6 + $0x38] sm:$0xf]
        %v8956 = vld [vmem:[#allocation6 + $0x3c] sm:$0xf]
        %v8957 = vld [vmem:[#allocation6 + $0x40] sm:$0xf]
        %v8958 = vld [vmem:[#allocation6 + $0x44] sm:$0xf]
        %v8959 = vld [vmem:[#allocation6 + $0x48] sm:$0xf]
        %v8960 = vld [vmem:[#allocation6 + $0x4c] sm:$0xf]
        %v8961 = vld [vmem:[#allocation6 + $0x50] sm:$0xf]
        %v8962 = vld [vmem:[#allocation6 + $0x54] sm:$0xf]
        %v8963 = vld [vmem:[#allocation6 + $0x58] sm:$0xf]
        %v8964 = vld [vmem:[#allocation6 + $0x5c] sm:$0xf]
        %v8965 = vld [vmem:[#allocation6 + $0x60] sm:$0xf]
        %v8966 = vld [vmem:[#allocation6 + $0x64] sm:$0xf]
        %v8967 = vld [vmem:[#allocation6 + $0x68] sm:$0xf]
        %v8968 = vld [vmem:[#allocation6 + $0x6c] sm:$0xf]
        %v8969 = vld [vmem:[#allocation6 + $0x70] sm:$0xf]
        %v8970 = vld [vmem:[#allocation6 + $0x74] sm:$0xf]
        %v8971 = vld [vmem:[#allocation6 + $0x78] sm:$0xf]
        %v8972 = vld [vmem:[#allocation6 + $0x7c] sm:$0xf]
        %v8973 = vld [vmem:[#allocation6 + $0x80] sm:$0xf]
        %v8974 = vld [vmem:[#allocation6 + $0x84] sm:$0xf]
        %v8975 = vld [vmem:[#allocation6 + $0x88] sm:$0xf]
        %v8976 = vld [vmem:[#allocation6 + $0x8c] sm:$0xf]
        %v8977 = vld [vmem:[#allocation6 + $0x90] sm:$0xf]
        %v8978 = vld [vmem:[#allocation6 + $0x94] sm:$0xf]
        %v8979 = vld [vmem:[#allocation6 + $0x98] sm:$0xf]
        %v8980 = vld [vmem:[#allocation6 + $0x9c] sm:$0xf]
        %v8981 = vld [vmem:[#allocation6 + $0xa0] sm:$0xf]
        %v8982 = vld [vmem:[#allocation6 + $0xa4] sm:$0xf]
        %v8983 = vld [vmem:[#allocation6 + $0xa8] sm:$0xf]
        %v8984 = vld [vmem:[#allocation6 + $0xac] sm:$0xf]
        %v8985 = vld [vmem:[#allocation6 + $0xb0] sm:$0xf]
        %v8986 = vld [vmem:[#allocation6 + $0xb4] sm:$0xf]
        %v8987 = vld [vmem:[#allocation6 + $0xb8] sm:$0xf]
        %v8988 = vld [vmem:[#allocation6 + $0xbc] sm:$0xf]
        %v8989 = vld [vmem:[#allocation6 + $0xc0] sm:$0xf]
        %v8990 = vld [vmem:[#allocation6 + $0xc4] sm:$0xf]
        %v8991 = vld [vmem:[#allocation6 + $0xc8] sm:$0xf]
        %v8992 = vld [vmem:[#allocation6 + $0xcc] sm:$0xf]
        %v8993 = vld [vmem:[#allocation6 + $0xd0] sm:$0xf]
        %v8994 = vld [vmem:[#allocation6 + $0xd4] sm:$0xf]
        %v8995 = vld [vmem:[#allocation6 + $0xd8] sm:$0xf]
        %v8996 = vld [vmem:[#allocation6 + $0xdc] sm:$0xf]
        %v8997 = vld [vmem:[#allocation6 + $0xe0] sm:$0xf]
        %v8998 = vld [vmem:[#allocation6 + $0xe4] sm:$0xf]
        %v8999 = vld [vmem:[#allocation6 + $0xe8] sm:$0xf]
        %v9000 = vld [vmem:[#allocation6 + $0xec] sm:$0xf]
        %v9001 = vld [vmem:[#allocation6 + $0xf0] sm:$0xf]
        %v9002 = vld [vmem:[#allocation6 + $0xf4] sm:$0xf]
        %v9003 = vld [vmem:[#allocation6 + $0xf8] sm:$0xf]
        %v9004 = vld [vmem:[#allocation6 + $0xfc] sm:$0xf]
        %v9005 = vld [vmem:[#allocation6 + $0x100] sm:$0xf]
        %v9006 = vld [vmem:[#allocation6 + $0x104] sm:$0xf]
        %v9007 = vld [vmem:[#allocation6 + $0x108] sm:$0xf]
        %v9008 = vld [vmem:[#allocation6 + $0x10c] sm:$0xf]
        %v9009 = vld [vmem:[#allocation6 + $0x110] sm:$0xf]
        %v9010 = vld [vmem:[#allocation6 + $0x114] sm:$0xf]
        %v9011 = vld [vmem:[#allocation6 + $0x118] sm:$0xf]
        %v9012 = vld [vmem:[#allocation6 + $0x11c] sm:$0xf]
        %v9013 = vld [vmem:[#allocation6 + $0x120] sm:$0xf]
        %v9014 = vld [vmem:[#allocation6 + $0x124] sm:$0xf]
        %v9015 = vld [vmem:[#allocation6 + $0x128] sm:$0xf]
        %v9016 = vld [vmem:[#allocation6 + $0x12c] sm:$0xf]
        %v9017 = vld [vmem:[#allocation6 + $0x130] sm:$0xf]
        %v9018 = vld [vmem:[#allocation6 + $0x134] sm:$0xf]
        %v9019 = vld [vmem:[#allocation6 + $0x138] sm:$0xf]
        %v9020 = vld [vmem:[#allocation6 + $0x13c] sm:$0xf]
        %v9021 = vld [vmem:[#allocation6 + $0x140] sm:$0xf]
        %v9022 = vld [vmem:[#allocation6 + $0x144] sm:$0xf]
        %v9023 = vld [vmem:[#allocation6 + $0x148] sm:$0xf]
        %v9024 = vld [vmem:[#allocation6 + $0x14c] sm:$0xf]
        %v9025 = vld [vmem:[#allocation6 + $0x150] sm:$0xf]
        %v9026 = vld [vmem:[#allocation6 + $0x154] sm:$0xf]
        %v9027 = vld [vmem:[#allocation6 + $0x158] sm:$0xf]
        %v9028 = vld [vmem:[#allocation6 + $0x15c] sm:$0xf]
        %v9029 = vld [vmem:[#allocation6 + $0x160] sm:$0xf]
        %v9030 = vld [vmem:[#allocation6 + $0x164] sm:$0xf]
        %v9031 = vld [vmem:[#allocation6 + $0x168] sm:$0xf]
        %v9032 = vld [vmem:[#allocation6 + $0x16c] sm:$0xf]
        %v9033 = vld [vmem:[#allocation6 + $0x170] sm:$0xf]
        %v9034 = vld [vmem:[#allocation6 + $0x174] sm:$0xf]
        %v9035 = vld [vmem:[#allocation6 + $0x178] sm:$0xf]
        %v9036 = vld [vmem:[#allocation6 + $0x17c] sm:$0xf]
        %v9037 = vld [vmem:[#allocation7] sm:$0x1]
        %v9039 = vlaneseq
        %v9040 = vshrl.u32 %v9039, 7
        %v9041 = vsub.s32 0, %v9040
        %v9042 = vrot.slane %v9037, %v9041
        %v9140 = vunpack.c.l.b16 %v8941
        %v9141 = vunpack.c.l.b16 %v8942
        %v9142 = vunpack.c.l.b16 %v8943
        %v9143 = vunpack.c.l.b16 %v8944
        %v9144 = vunpack.c.l.b16 %v8945
        %v9145 = vunpack.c.l.b16 %v8946
        %v9146 = vunpack.c.l.b16 %v8947
        %v9147 = vunpack.c.l.b16 %v8948
        %v9148 = vunpack.c.l.b16 %v8949
        %v9149 = vunpack.c.l.b16 %v8950
        %v9150 = vunpack.c.l.b16 %v8951
        %v9151 = vunpack.c.l.b16 %v8952
        %v9152 = vunpack.c.l.b16 %v8953
        %v9153 = vunpack.c.l.b16 %v8954
        %v9154 = vunpack.c.l.b16 %v8955
        %v9155 = vunpack.c.l.b16 %v8956
        %v9156 = vunpack.c.l.b16 %v8957
        %v9157 = vunpack.c.l.b16 %v8958
        %v9158 = vunpack.c.l.b16 %v8959
        %v9159 = vunpack.c.l.b16 %v8960
        %v9160 = vunpack.c.l.b16 %v8961
        %v9161 = vunpack.c.l.b16 %v8962
        %v9162 = vunpack.c.l.b16 %v8963
        %v9163 = vunpack.c.l.b16 %v8964
        %v9164 = vunpack.c.l.b16 %v8965
        %v9165 = vunpack.c.l.b16 %v8966
        %v9166 = vunpack.c.l.b16 %v8967
        %v9167 = vunpack.c.l.b16 %v8968
        %v9168 = vunpack.c.l.b16 %v8969
        %v9169 = vunpack.c.l.b16 %v8970
        %v9170 = vunpack.c.l.b16 %v8971
        %v9171 = vunpack.c.l.b16 %v8972
        %v9172 = vunpack.c.l.b16 %v8973
        %v9173 = vunpack.c.l.b16 %v8974
        %v9174 = vunpack.c.l.b16 %v8975
        %v9175 = vunpack.c.l.b16 %v8976
        %v9176 = vunpack.c.l.b16 %v8977
        %v9177 = vunpack.c.l.b16 %v8978
        %v9178 = vunpack.c.l.b16 %v8979
        %v9179 = vunpack.c.l.b16 %v8980
        %v9180 = vunpack.c.l.b16 %v8981
        %v9181 = vunpack.c.l.b16 %v8982
        %v9182 = vunpack.c.l.b16 %v8983
        %v9183 = vunpack.c.l.b16 %v8984
        %v9184 = vunpack.c.l.b16 %v8985
        %v9185 = vunpack.c.l.b16 %v8986
        %v9186 = vunpack.c.l.b16 %v8987
        %v9187 = vunpack.c.l.b16 %v8988
        %v9188 = vunpack.c.l.b16 %v8989
        %v9189 = vunpack.c.l.b16 %v8990
        %v9190 = vunpack.c.l.b16 %v8991
        %v9191 = vunpack.c.l.b16 %v8992
        %v9192 = vunpack.c.l.b16 %v8993
        %v9193 = vunpack.c.l.b16 %v8994
        %v9194 = vunpack.c.l.b16 %v8995
        %v9195 = vunpack.c.l.b16 %v8996
        %v9196 = vunpack.c.l.b16 %v8997
        %v9197 = vunpack.c.l.b16 %v8998
        %v9198 = vunpack.c.l.b16 %v8999
        %v9199 = vunpack.c.l.b16 %v9000
        %v9200 = vunpack.c.l.b16 %v9001
        %v9201 = vunpack.c.l.b16 %v9002
        %v9202 = vunpack.c.l.b16 %v9003
        %v9203 = vunpack.c.l.b16 %v9004
        %v9204 = vunpack.c.l.b16 %v9005
        %v9205 = vunpack.c.l.b16 %v9006
        %v9206 = vunpack.c.l.b16 %v9007
        %v9207 = vunpack.c.l.b16 %v9008
        %v9208 = vunpack.c.l.b16 %v9009
        %v9209 = vunpack.c.l.b16 %v9010
        %v9210 = vunpack.c.l.b16 %v9011
        %v9211 = vunpack.c.l.b16 %v9012
        %v9212 = vunpack.c.l.b16 %v9013
        %v9213 = vunpack.c.l.b16 %v9014
        %v9214 = vunpack.c.l.b16 %v9015
        %v9215 = vunpack.c.l.b16 %v9016
        %v9216 = vunpack.c.l.b16 %v9017
        %v9217 = vunpack.c.l.b16 %v9018
        %v9218 = vunpack.c.l.b16 %v9019
        %v9219 = vunpack.c.l.b16 %v9020
        %v9220 = vunpack.c.l.b16 %v9021
        %v9221 = vunpack.c.l.b16 %v9022
        %v9222 = vunpack.c.l.b16 %v9023
        %v9223 = vunpack.c.l.b16 %v9024
        %v9224 = vunpack.c.l.b16 %v9025
        %v9225 = vunpack.c.l.b16 %v9026
        %v9226 = vunpack.c.l.b16 %v9027
        %v9227 = vunpack.c.l.b16 %v9028
        %v9228 = vunpack.c.l.b16 %v9029
        %v9229 = vunpack.c.l.b16 %v9030
        %v9230 = vunpack.c.l.b16 %v9031
        %v9231 = vunpack.c.l.b16 %v9032
        %v9232 = vunpack.c.l.b16 %v9033
        %v9233 = vunpack.c.l.b16 %v9034
        %v9234 = vunpack.c.l.b16 %v9035
        %v9235 = vunpack.c.l.b16 %v9036
        %v9236 = vpack.c.b16 %v9141, %v9140
        %v9237 = vpack.c.b16 %v9143, %v9142
        %v9238 = vpack.c.b16 %v9145, %v9144
        %v9239 = vpack.c.b16 %v9147, %v9146
        %v9240 = vpack.c.b16 %v9149, %v9148
        %v9241 = vpack.c.b16 %v9151, %v9150
        %v9242 = vpack.c.b16 %v9153, %v9152
        %v9243 = vpack.c.b16 %v9155, %v9154
        %v9244 = vpack.c.b16 %v9157, %v9156
        %v9245 = vpack.c.b16 %v9159, %v9158
        %v9246 = vpack.c.b16 %v9161, %v9160
        %v9247 = vpack.c.b16 %v9163, %v9162
        %v9248 = vpack.c.b16 %v9165, %v9164
        %v9249 = vpack.c.b16 %v9167, %v9166
        %v9250 = vpack.c.b16 %v9169, %v9168
        %v9251 = vpack.c.b16 %v9171, %v9170
        %v9252 = vpack.c.b16 %v9173, %v9172
        %v9253 = vpack.c.b16 %v9175, %v9174
        %v9254 = vpack.c.b16 %v9177, %v9176
        %v9255 = vpack.c.b16 %v9179, %v9178
        %v9256 = vpack.c.b16 %v9181, %v9180
        %v9257 = vpack.c.b16 %v9183, %v9182
        %v9258 = vpack.c.b16 %v9185, %v9184
        %v9259 = vpack.c.b16 %v9187, %v9186
        %v9260 = vpack.c.b16 %v9189, %v9188
        %v9261 = vpack.c.b16 %v9191, %v9190
        %v9262 = vpack.c.b16 %v9193, %v9192
        %v9263 = vpack.c.b16 %v9195, %v9194
        %v9264 = vpack.c.b16 %v9197, %v9196
        %v9265 = vpack.c.b16 %v9199, %v9198
        %v9266 = vpack.c.b16 %v9201, %v9200
        %v9267 = vpack.c.b16 %v9203, %v9202
        %v9268 = vpack.c.b16 %v9205, %v9204
        %v9269 = vpack.c.b16 %v9207, %v9206
        %v9270 = vpack.c.b16 %v9209, %v9208
        %v9271 = vpack.c.b16 %v9211, %v9210
        %v9272 = vpack.c.b16 %v9213, %v9212
        %v9273 = vpack.c.b16 %v9215, %v9214
        %v9274 = vpack.c.b16 %v9217, %v9216
        %v9275 = vpack.c.b16 %v9219, %v9218
        %v9276 = vpack.c.b16 %v9221, %v9220
        %v9277 = vpack.c.b16 %v9223, %v9222
        %v9278 = vpack.c.b16 %v9225, %v9224
        %v9279 = vpack.c.b16 %v9227, %v9226
        %v9280 = vpack.c.b16 %v9229, %v9228
        %v9281 = vpack.c.b16 %v9231, %v9230
        %v9282 = vpack.c.b16 %v9233, %v9232
        %v9283 = vpack.c.b16 %v9235, %v9234
        %9332 = vmatprep.subr.bf16.mxu0 0
        %9333 = vmatpush1.bf16.msra.mxu0 %v9236
        %9334 = vmatprep.subr.bf16.mxu0 0
        %9335 = vmatpush1.bf16.msra.mxu0 %v9237
        %9336 = vmatprep.subr.bf16.mxu0 0
        %9337 = vmatpush1.bf16.msra.mxu0 %v9238
        %9338 = vmatprep.subr.bf16.mxu0 0
        %9339 = vmatpush1.bf16.msra.mxu0 %v9239
        %9340 = vmatprep.subr.bf16.mxu0 0
        %9341 = vmatpush1.bf16.msra.mxu0 %v9240
        %9342 = vmatprep.subr.bf16.mxu0 0
        %9343 = vmatpush1.bf16.msra.mxu0 %v9241
        %9344 = vmatprep.subr.bf16.mxu0 0
        %9345 = vmatpush1.bf16.msra.mxu0 %v9242
        %9346 = vmatprep.subr.bf16.mxu0 0
        %9347 = vmatpush1.bf16.msra.mxu0 %v9243
        %9348 = vmatprep.subr.bf16.mxu0 0
        %9349 = vmatpush1.bf16.msra.mxu0 %v9244
        %9350 = vmatprep.subr.bf16.mxu0 0
        %9351 = vmatpush1.bf16.msra.mxu0 %v9245
        %9352 = vmatprep.subr.bf16.mxu0 0
        %9353 = vmatpush1.bf16.msra.mxu0 %v9246
        %9354 = vmatprep.subr.bf16.mxu0 0
        %9355 = vmatpush1.bf16.msra.mxu0 %v9247
        %9356 = vmatprep.subr.bf16.mxu0 0
        %9357 = vmatpush1.bf16.msra.mxu0 %v9248
        %9358 = vmatprep.subr.bf16.mxu0 0
        %9359 = vmatpush1.bf16.msra.mxu0 %v9249
        %9360 = vmatprep.subr.bf16.mxu0 0
        %9361 = vmatpush1.bf16.msra.mxu0 %v9250
        %9362 = vmatprep.subr.bf16.mxu0 0
        %9363 = vmatpush1.bf16.msra.mxu0 %v9251
        %9364 = vmatprep.mubr.bf16.mxu0 %v8936
        %9365 = vmatmul.mubr.bf16.gmra.mrb[0].mxu0 %v8935
        %v9366 = vpop.f32.mrb[0].mxu0
        %v9367 = vadd.f32 %v9042, %v9366
        %v9368 = vpop.f32.mrb[0].mxu0
        %v9369 = vpop.f32.mrb[0].mxu0
        %v9370 = vadd.f32 %v9042, %v9369
        %v9371 = vpop.f32.mrb[0].mxu0
        %9372 = vdwg.mxu0
        %9373 = vmatprep.subr.bf16.mxu0 0
        %9374 = vmatpush1.bf16.msra.mxu0 %v9252
        %9375 = vmatprep.subr.bf16.mxu0 0
        %9376 = vmatpush1.bf16.msra.mxu0 %v9253
        %9377 = vmatprep.subr.bf16.mxu0 0
        %9378 = vmatpush1.bf16.msra.mxu0 %v9254
        %9379 = vmatprep.subr.bf16.mxu0 0
        %9380 = vmatpush1.bf16.msra.mxu0 %v9255
        %9381 = vmatprep.subr.bf16.mxu0 0
        %9382 = vmatpush1.bf16.msra.mxu0 %v9256
        %9383 = vmatprep.subr.bf16.mxu0 0
        %9384 = vmatpush1.bf16.msra.mxu0 %v9257
        %9385 = vmatprep.subr.bf16.mxu0 0
        %9386 = vmatpush1.bf16.msra.mxu0 %v9258
        %9387 = vmatprep.subr.bf16.mxu0 0
        %9388 = vmatpush1.bf16.msra.mxu0 %v9259
        %9389 = vmatprep.subr.bf16.mxu0 0
        %9390 = vmatpush1.bf16.msra.mxu0 %v9260
        %9391 = vmatprep.subr.bf16.mxu0 0
        %9392 = vmatpush1.bf16.msra.mxu0 %v9261
        %9393 = vmatprep.subr.bf16.mxu0 0
        %9394 = vmatpush1.bf16.msra.mxu0 %v9262
        %9395 = vmatprep.subr.bf16.mxu0 0
        %9396 = vmatpush1.bf16.msra.mxu0 %v9263
        %9397 = vmatprep.subr.bf16.mxu0 0
        %9398 = vmatpush1.bf16.msra.mxu0 %v9264
        %9399 = vmatprep.subr.bf16.mxu0 0
        %9400 = vmatpush1.bf16.msra.mxu0 %v9265
        %9401 = vmatprep.subr.bf16.mxu0 0
        %9402 = vmatpush1.bf16.msra.mxu0 %v9266
        %9403 = vmatprep.subr.bf16.mxu0 0
        %9404 = vmatpush1.bf16.msra.mxu0 %v9267
        %9405 = vmatprep.mubr.bf16.mxu0 %v8938
        %9406 = vmatmul.mubr.bf16.gmra.mrb[0].mxu0 %v8937
        %v9407 = vpop.f32.mrb[0].mxu0
        %v9408 = vadd.f32 %v9367, %v9407
        %v9409 = vpop.f32.mrb[0].mxu0
        %v9410 = vpop.f32.mrb[0].mxu0
        %v9411 = vadd.f32 %v9370, %v9410
        %v9412 = vpop.f32.mrb[0].mxu0
        %9413 = vdwg.mxu0
        %9414 = vmatprep.subr.bf16.mxu0 0
        %9415 = vmatpush1.bf16.msra.mxu0 %v9268
        %9416 = vmatprep.subr.bf16.mxu0 0
        %9417 = vmatpush1.bf16.msra.mxu0 %v9269
        %9418 = vmatprep.subr.bf16.mxu0 0
        %9419 = vmatpush1.bf16.msra.mxu0 %v9270
        %9420 = vmatprep.subr.bf16.mxu0 0
        %9421 = vmatpush1.bf16.msra.mxu0 %v9271
        %9422 = vmatprep.subr.bf16.mxu0 0
        %9423 = vmatpush1.bf16.msra.mxu0 %v9272
        %9424 = vmatprep.subr.bf16.mxu0 0
        %9425 = vmatpush1.bf16.msra.mxu0 %v9273
        %9426 = vmatprep.subr.bf16.mxu0 0
        %9427 = vmatpush1.bf16.msra.mxu0 %v9274
        %9428 = vmatprep.subr.bf16.mxu0 0
        %9429 = vmatpush1.bf16.msra.mxu0 %v9275
        %9430 = vmatprep.subr.bf16.mxu0 0
        %9431 = vmatpush1.bf16.msra.mxu0 %v9276
        %9432 = vmatprep.subr.bf16.mxu0 0
        %9433 = vmatpush1.bf16.msra.mxu0 %v9277
        %9434 = vmatprep.subr.bf16.mxu0 0
        %9435 = vmatpush1.bf16.msra.mxu0 %v9278
        %9436 = vmatprep.subr.bf16.mxu0 0
        %9437 = vmatpush1.bf16.msra.mxu0 %v9279
        %9438 = vmatprep.subr.bf16.mxu0 0
        %9439 = vmatpush1.bf16.msra.mxu0 %v9280
        %9440 = vmatprep.subr.bf16.mxu0 0
        %9441 = vmatpush1.bf16.msra.mxu0 %v9281
        %9442 = vmatprep.subr.bf16.mxu0 0
        %9443 = vmatpush1.bf16.msra.mxu0 %v9282
        %9444 = vmatprep.subr.bf16.mxu0 0
        %9445 = vmatpush1.bf16.msra.mxu0 %v9283
        %9446 = vmatprep.mubr.bf16.mxu0 %v8940
        %9447 = vmatmul.mubr.bf16.gmra.mrb[0].mxu0 %v8939
        %v9448 = vpop.f32.mrb[0].mxu0
        %v9449 = vadd.f32 %v9408, %v9448
        %v9450 = vpop.f32.mrb[0].mxu0
        %v9451 = vpop.f32.mrb[0].mxu0
        %v9452 = vadd.f32 %v9411, %v9451
        %v9453 = vpop.f32.mrb[0].mxu0
        %9454 = vdwg.mxu0
        %9455 = vst [vmem:[%s284] sm:$0xff] %v9449
        %9456 = vst [vmem:[%s284 + $0x8] sm:$0xff] %v9452
        %s9457 = smul.u32 2, %s19
        %p9458 = scmp.lt.s32.totalorder %s9457, 3
        %s9459 = scalar_select %p9458, %s9457, 3
        %s9460 = smul.addr %s9459, 8
        %s9461 = scalar_lea.vmem %s5, %s9460
        // Predicated region
        $region57: #{one_layer_forward.1} parent=39 // pred_check
          %p9462 = pneg %p147
        $region58: #{one_layer_forward.1} parent=39 // pred_check_branch
          %9464 = sbr.rel (%p9462) target = $region60
        $region59: #{one_layer_forward.1} parent=39 // pred_region
          %s9465 = smul.u32 2, %s19
        $region60: #{one_layer_forward.1} parent=39 // pred_fallthru
          _
      $region40: #{one_layer_forward.1} parent=5 // pred_fallthru
        _
      %p9466 = scmp.le.s32.totalorder 2, %s14
      // Predicated region
      $region61: #{one_layer_forward.1} parent=5 // pred_check
        %p9467 = pneg %p9466
      $region62: #{one_layer_forward.1} parent=5 // pred_check_branch
        %9469 = sbr.rel (%p9467) target = $region64
      $region63: #{one_layer_forward.1} parent=5 // pred_region
        %s9470 = ssub.s32 %s14, 2
        // Predicated region
        $region65: #{one_layer_forward.1} parent=63 // pred_check
          %p9471 = pneg %p153
        $region66: #{one_layer_forward.1} parent=63 // pred_check_branch
          %9473 = sbr.rel (%p9471) target = $region68
        $region67: #{one_layer_forward.1} parent=63 // pred_region
          %s9474 = smul.u32 2, %s20
          %p9475 = scmp.lt.s32.totalorder %s9474, 3
          %s9476 = scalar_select %p9475, %s9474, 3
          %s9477 = smul.addr %s9476, 8
          %s9478 = scalar_lea.vmem %s5, %s9477
        $region68: #{one_layer_forward.1} parent=63 // pred_fallthru
          _
      $region64: #{one_layer_forward.1} parent=5 // pred_fallthru
        _
    $region6: #{one_layer_forward.1} parent=1 // loop_footer
      %s18 = sadd.s32 1, %s14
    $region7: #{one_layer_forward.1} parent=1 // loop_footer_branch
      %13 = sbr.rel target = $region3
    $region8: #{one_layer_forward.1} parent=1 // loop_exit
      _
    %9479 = vsyncpa [#allocation3], 1
    %s9480 = scalar_lea.sflag [#allocation3], 1
    %9481 = vsyncpa %s9480, 1
    %9482 = vsyncpa [#allocation5], 1
    %9483 = vsyncpa [#allocation8], 1

</llo_original>
